<compile_context>
chip_gen: v7x
topology: tpu7x:2x2x1
jax: 0.10.0
libtpu: 0.0.40
codegen_flags: <defaults>
</compile_context>

<pallas_src>
import math
from functools import partial

import jax
import jax.numpy as jnp
from jax.experimental import pallas as pl
from jax.experimental.pallas import tpu as pltpu
from jax.scipy.special import erf

_EPS = 1e-5


# ----------------------------- small helpers --------------------------------
def _layernorm(v, g, b, eps=_EPS):
    mu = jnp.mean(v, axis=-1, keepdims=True)
    var = jnp.mean((v - mu) ** 2, axis=-1, keepdims=True)  # biased var (PyTorch LN)
    return (v - mu) * jax.lax.rsqrt(var + eps) * g + b


def _gelu(x, exact):
    if exact:  # nn.GELU() default = exact erf formulation
        return 0.5 * x * (1.0 + erf(x * (1.0 / math.sqrt(2.0))))
    # tanh approximation — only used as a last-resort lowering fallback
    c = math.sqrt(2.0 / math.pi)
    return 0.5 * x * (1.0 + jnp.tanh(c * (x + 0.044715 * x * x * x)))


def _reciprocal(x):
    if hasattr(pl, "reciprocal"):
        return pl.reciprocal(x, approx=True)  # EUP slot -> effectively free
    return 1.0 / x


def _nbytes(shape, dtype):
    return math.prod(shape) * jnp.dtype(dtype).itemsize


def _vmem_limit_bytes(block_bytes, inter_bytes=0):
    # 2x for double-buffered blocks + in-kernel intermediates + slack, clamped so it
    # stays within every generation's physical VMEM (v7x = 64 MiB per TensorCore).
    est = 2 * block_bytes + inter_bytes + (8 << 20)
    return int(min(max(est, 32 << 20), 64 << 20))


# ------------------------------- kernels -------------------------------------
def qkv_kernel(x_ref, g1_ref, b1_ref, wqkv_ref, q_ref, k_ref, v_ref, *,
               num_heads, head_dim, scale):
    """LN1 + QKV projection for one (batch, token-tile); head-major bf16 outputs.

    q is pre-scaled (PyTorch does q = q * scale right after the projection), so the
    score tensor in the attention kernel needs no extra multiply.
    """
    C = num_heads * head_dim
    x = x_ref[0].astype(jnp.float32)                              # (TQ, C)
    xn = _layernorm(x, g1_ref[0], b1_ref[0])
    qkv = jnp.dot(xn.astype(jnp.bfloat16), wqkv_ref[...],
                  preferred_element_type=jnp.float32)             # (TQ, 3C) f32
    for h in range(num_heads):
        lo, hi = h * head_dim, (h + 1) * head_dim
        q_ref[0, h] = (qkv[:, lo:hi] * scale).astype(q_ref.dtype)
        k_ref[0, h] = qkv[:, C + lo:C + hi].astype(k_ref.dtype)
        v_ref[0, h] = qkv[:, 2 * C + lo:2 * C + hi].astype(v_ref.dtype)


def attn_mlp_kernel(x_ref, q_ref, k_ref, v_ref,
                    wproj_ref, bproj_ref, g2_ref, b2_ref,
                    w1_ref, bm1_ref, w2_ref, bm2_ref, o_ref, *,
                    num_heads, head_dim, gelu_exact):
    """Attention (all heads batched) + proj + residual + LN2 + MLP + residual."""
    f32, bf16 = jnp.float32, jnp.bfloat16
    x = x_ref[0].astype(f32)                                      # (TQ, C) residual

    q = q_ref[0]                                                  # (H, TQ, hd) bf16 (pre-scaled)
    k = k_ref[0]                                                  # (H, N,  hd) bf16
    v = v_ref[0]                                                  # (H, N,  hd) bf16

    # all heads in one batched contraction; scores are lane-dense (last dim = N)
    s = jnp.einsum("hqd,hkd->hqk", q, k,
                   preferred_element_type=f32)                    # (H, TQ, N) f32
    s = s - jnp.max(s, axis=-1, keepdims=True)
    p = jnp.exp(s)
    p = p * _reciprocal(jnp.sum(p, axis=-1, keepdims=True))
    o = jnp.einsum("hqk,hkd->hqd", p.astype(bf16), v,
                   preferred_element_type=f32)                    # (H, TQ, hd) f32

    # merge heads by fusing the merge into the proj matmul (no lane-axis concat):
    #   proj(concat_h o_h) = sum_h o_h @ Wproj_t[h*hd:(h+1)*hd, :]
    acc = jnp.dot(o[0].astype(bf16), wproj_ref[0:head_dim, :],
                  preferred_element_type=f32)                     # seed with head 0
    for h in range(1, num_heads):
        w_slab = wproj_ref[h * head_dim:(h + 1) * head_dim, :]    # (hd, C) bf16
        acc = acc + jnp.dot(o[h].astype(bf16), w_slab,
                            preferred_element_type=f32)
    x = x + (acc + bproj_ref[0])

    # ---- MLP branch ----
    xn = _layernorm(x, g2_ref[0], b2_ref[0])
    h1 = jnp.dot(xn.astype(bf16), w1_ref[...],
                 preferred_element_type=f32) + bm1_ref[0]
    h1 = _gelu(h1, gelu_exact)
    h2 = jnp.dot(h1.astype(bf16), w2_ref[...],
                 preferred_element_type=f32) + bm2_ref[0]
    o_ref[0] = (x + h2).astype(o_ref.dtype)


# ------------------------------- wrapper --------------------------------------
def block_forward(x, params, num_heads, *, q_tile=128,
                  gelu_exact=True, single_buffer_weights=True):
    B, N, C = x.shape
    H = num_heads
    assert C % H == 0, "num_heads must divide dim"
    hd = C // H
    scale = hd ** -0.5
    bf16 = jnp.bfloat16

    TQ = q_tile if (N % q_tile == 0) else N
    T = N // TQ

    # bf16 weights: native MXU input format, halves weight DMA + VMEM footprint
    wqkv = params["wqkv_t"].astype(bf16)
    wproj = params["wproj_t"].astype(bf16)
    w1 = params["w1_t"].astype(bf16)
    w2 = params["w2_t"].astype(bf16)
    hidden = w1.shape[1]

    use_buffered = single_buffer_weights and hasattr(pl, "Buffered")

    def const_spec(shape, single_buffer=False):
        idx = lambda b, t, _r=len(shape): (0,) * _r
        if single_buffer and use_buffered:
            # block index never changes across the grid -> one pipeline buffer suffices
            return pl.BlockSpec(shape, idx, pipeline_mode=pl.Buffered(1))
        return pl.BlockSpec(shape, idx)

    # ---- kernel 1: LN1 + QKV projection (token-tiled), head-major bf16 outputs ----
    blk1 = (_nbytes((1, TQ, C), x.dtype) + 2 * _nbytes((1, C), jnp.float32)
            + _nbytes((C, 3 * C), bf16) + 3 * _nbytes((1, H, TQ, hd), bf16))
    q_hm, k_hm, v_hm = pl.pallas_call(
        partial(qkv_kernel, num_heads=H, head_dim=hd, scale=scale),
        grid=(B, T),
        in_specs=[
            pl.BlockSpec((1, TQ, C), lambda b, t: (b, t, 0)),
            const_spec((1, C)),
            const_spec((1, C)),
            const_spec((C, 3 * C), single_buffer=True),
        ],
        out_specs=(
            pl.BlockSpec((1, H, TQ, hd), lambda b, t: (b, 0, t, 0)),
            pl.BlockSpec((1, H, TQ, hd), lambda b, t: (b, 0, t, 0)),
            pl.BlockSpec((1, H, TQ, hd), lambda b, t: (b, 0, t, 0)),
        ),
        out_shape=(
            jax.ShapeDtypeStruct((B, H, N, hd), bf16),
            jax.ShapeDtypeStruct((B, H, N, hd), bf16),
            jax.ShapeDtypeStruct((B, H, N, hd), bf16),
        ),
        compiler_params=pltpu.CompilerParams(
            dimension_semantics=("parallel", "parallel"),
            vmem_limit_bytes=_vmem_limit_bytes(blk1, TQ * 3 * C * 4)),
    )(x, params["g1"], params["b1"], wqkv)

    # ---- kernel 2: attention + proj + residual + LN2 + MLP + residual -------------
    blk2 = (2 * _nbytes((1, TQ, C), x.dtype) + _nbytes((1, H, TQ, hd), bf16)
            + 2 * _nbytes((1, H, N, hd), bf16)
            + _nbytes((C, C), bf16) + _nbytes((C, hidden), bf16)
            + _nbytes((hidden, C), bf16)
            + 4 * _nbytes((1, C), jnp.float32) + _nbytes((1, hidden), jnp.float32))
    inter2 = 2 * H * TQ * N * 4 + TQ * hidden * 4 + 4 * TQ * C * 4
    out = pl.pallas_call(
        partial(attn_mlp_kernel, num_heads=H, head_dim=hd, gelu_exact=gelu_exact),
        grid=(B, T),
        in_specs=[
            pl.BlockSpec((1, TQ, C), lambda b, t: (b, t, 0)),         # x (residual)
            pl.BlockSpec((1, H, TQ, hd), lambda b, t: (b, 0, t, 0)),  # q tile
            pl.BlockSpec((1, H, N, hd), lambda b, t: (b, 0, 0, 0)),   # k (full seq)
            pl.BlockSpec((1, H, N, hd), lambda b, t: (b, 0, 0, 0)),   # v (full seq)
            const_spec((C, C), single_buffer=True),                   # wproj_t
            const_spec((1, C)),                                       # bproj
            const_spec((1, C)),                                       # g2
            const_spec((1, C)),                                       # b2
            const_spec((C, hidden), single_buffer=True),              # w1_t
            const_spec((1, hidden)),                                  # bm1
            const_spec((hidden, C), single_buffer=True),              # w2_t
            const_spec((1, C)),                                       # bm2
        ],
        out_specs=pl.BlockSpec((1, TQ, C), lambda b, t: (b, t, 0)),
        out_shape=jax.ShapeDtypeStruct((B, N, C), x.dtype),
        compiler_params=pltpu.CompilerParams(
            dimension_semantics=("parallel", "parallel"),
            vmem_limit_bytes=_vmem_limit_bytes(blk2, inter2)),
    )(x, q_hm, k_hm, v_hm, wproj, params["bproj"], params["g2"], params["b2"],
      w1, params["bm1"], w2, params["bm2"])
    return out


# ----------------------------- pure-JAX reference -----------------------------
def block_reference(x, params, num_heads):
    B, N, C = x.shape
    H = num_heads
    hd = C // H
    scale = hd ** -0.5

    def ln(v, g, b):
        mu = v.mean(-1, keepdims=True)
        var = ((v - mu) ** 2).mean(-1, keepdims=True)
        return (v - mu) * jax.lax.rsqrt(var + _EPS) * g + b

    xn = ln(x, params["g1"], params["b1"])
    qkv = xn @ params["wqkv_t"]
    q, k, v = qkv[..., :C], qkv[..., C:2 * C], qkv[..., 2 * C:]
    q = q.reshape(B, N, H, hd).transpose(0, 2, 1, 3) * scale
    k = k.reshape(B, N, H, hd).transpose(0, 2, 1, 3)
    v = v.reshape(B, N, H, hd).transpose(0, 2, 1, 3)
    a = jax.nn.softmax(q @ k.transpose(0, 1, 3, 2), axis=-1)
    attn = (a @ v).transpose(0, 2, 1, 3).reshape(B, N, C)
    x = x + attn @ params["wproj_t"] + params["bproj"]
    xn2 = ln(x, params["g2"], params["b2"])
    h = xn2 @ params["w1_t"] + params["bm1"]
    h = 0.5 * h * (1.0 + erf(h / jnp.sqrt(2.0)))
    return x + h @ params["w2_t"] + params["bm2"]


def init_params(key, dim, num_heads, mlp_ratio=4.0):
    hidden = int(dim * mlp_ratio)
    ks = jax.random.split(key, 6)
    s = 0.02
    # qkv_bias=False (module default) -> no q/v bias; linear weights pre-transposed.
    return {
        "g1": jnp.ones((1, dim), jnp.float32),
        "b1": jnp.zeros((1, dim), jnp.float32),
        "wqkv_t": (jax.random.normal(ks[0], (dim, 3 * dim)) * s).astype(jnp.float32),
        "wproj_t": (jax.random.normal(ks[1], (dim, dim)) * s).astype(jnp.float32),
        "bproj": (jax.random.normal(ks[2], (1, dim)) * s).astype(jnp.float32),
        "g2": jnp.ones((1, dim), jnp.float32),
        "b2": jnp.zeros((1, dim), jnp.float32),
        "w1_t": (jax.random.normal(ks[3], (dim, hidden)) * s).astype(jnp.float32),
        "bm1": (jax.random.normal(ks[4], (1, hidden)) * s).astype(jnp.float32),
        "w2_t": (jax.random.normal(ks[5], (hidden, dim)) * s).astype(jnp.float32),
        "bm2": jnp.zeros((1, dim), jnp.float32),
    }


if __name__ == "__main__":
    # lane-friendly but small: C multiple of 128, N multiple of the 128-token tile
    B, N, C, num_heads = 2, 256, 128, 4

    key = jax.random.PRNGKey(0)
    kx, kp = jax.random.split(key)
    x = jax.random.normal(kx, (B, N, C), dtype=jnp.float32)
    params = init_params(kp, C, num_heads)

    # most-optimized first; fall back to conservative builds if the local
    # JAX/TPU lowering rejects pl.Buffered(1) or the exact-erf GELU.
    configs = (
        dict(single_buffer_weights=True, gelu_exact=True),
        dict(single_buffer_weights=False, gelu_exact=True),
        dict(single_buffer_weights=False, gelu_exact=False),
    )
    out, last_err = None, None
    for cfg in configs:
        try:
            out = block_forward(x, params, num_heads, **cfg)
            out = jax.block_until_ready(out)
            break
        except Exception as e:  # noqa: BLE001 — retry with a more conservative build
            last_err, out = e, None
    if out is None:
        raise last_err

    ref = block_reference(x, params, num_heads)
    assert out.shape == (B, N, C) and out.dtype == jnp.float32
    max_err = float(jnp.max(jnp.abs(out - ref)))
    assert max_err < 5e-2, f"max abs error vs f32 reference: {max_err}"
    print("KERNEL_OK")
</pallas_src>

<mosaic_0001>
module attributes {stable_mosaic.version = 11 : i64} {
  func.func @qkv_kernel(%arg0: i32, %arg1: i32, %arg2: memref<1x128x128xf32, #tpu.memory_space<vmem>>, %arg3: memref<1x128xf32, #tpu.memory_space<vmem>>, %arg4: memref<1x128xf32, #tpu.memory_space<vmem>>, %arg5: memref<128x384xbf16, #tpu.memory_space<vmem>>, %arg6: memref<1x4x128x32xbf16, #tpu.memory_space<vmem>>, %arg7: memref<1x4x128x32xbf16, #tpu.memory_space<vmem>>, %arg8: memref<1x4x128x32xbf16, #tpu.memory_space<vmem>>) attributes {dimension_semantics = [#tpu.dimension_semantics<parallel>, #tpu.dimension_semantics<parallel>], iteration_bounds = array<i64: 2, 2>, scalar_prefetch = 0 : i64, scratch_operands = 0 : i64, tpu.core_type = #tpu.core_type<tc>, window_params = [{transform_indices = @transform_0, window_bounds = array<i64: 1, 128, 128>}, {pipeline_mode = #tpu.pipeline_mode<synchronous>, transform_indices = @transform_1, window_bounds = array<i64: 1, 128>}, {pipeline_mode = #tpu.pipeline_mode<synchronous>, transform_indices = @transform_2, window_bounds = array<i64: 1, 128>}, {pipeline_mode = #tpu.pipeline_mode<synchronous>, transform_indices = @transform_3, window_bounds = array<i64: 128, 384>}, {transform_indices = @transform_4, window_bounds = array<i64: 1, 4, 128, 32>}, {transform_indices = @transform_5, window_bounds = array<i64: 1, 4, 128, 32>}, {transform_indices = @transform_6, window_bounds = array<i64: 1, 4, 128, 32>}]} {
    %c0 = arith.constant 0 : index
    %c0_0 = arith.constant 0 : index
    %c0_1 = arith.constant 0 : index
    %0 = vector.load %arg2[%c0, %c0_0, %c0_1] : memref<1x128x128xf32, #tpu.memory_space<vmem>>, vector<1x128x128xf32>
    %1 = vector.shape_cast %0 : vector<1x128x128xf32> to vector<128x128xf32>
    %c0_2 = arith.constant 0 : index
    %c0_3 = arith.constant 0 : index
    %2 = vector.load %arg3[%c0_2, %c0_3] : memref<1x128xf32, #tpu.memory_space<vmem>>, vector<1x128xf32>
    %3 = vector.shape_cast %2 : vector<1x128xf32> to vector<128xf32>
    %c0_4 = arith.constant 0 : index
    %c0_5 = arith.constant 0 : index
    %4 = vector.load %arg4[%c0_4, %c0_5] : memref<1x128xf32, #tpu.memory_space<vmem>>, vector<1x128xf32>
    %5 = vector.shape_cast %4 : vector<1x128xf32> to vector<128xf32>
    %cst = arith.constant dense<0.000000e+00> : vector<128xf32>
    %6 = vector.multi_reduction <add>, %1, %cst [1] : vector<128x128xf32> to vector<128xf32>
    %7 = vector.shape_cast %6 : vector<128xf32> to vector<128x1xf32>
    %cst_6 = arith.constant 1.280000e+02 : f32
    %8 = vector.broadcast %cst_6 : f32 to vector<128x1xf32>
    %9 = arith.divf %7, %8 : vector<128x1xf32>
    %10 = vector.broadcast %9 : vector<128x1xf32> to vector<128x128xf32>
    %11 = arith.subf %1, %10 : vector<128x128xf32>
    %12 = arith.mulf %11, %11 : vector<128x128xf32>
    %cst_7 = arith.constant dense<0.000000e+00> : vector<128xf32>
    %13 = vector.multi_reduction <add>, %12, %cst_7 [1] : vector<128x128xf32> to vector<128xf32>
    %14 = vector.shape_cast %13 : vector<128xf32> to vector<128x1xf32>
    %cst_8 = arith.constant 1.280000e+02 : f32
    %15 = vector.broadcast %cst_8 : f32 to vector<128x1xf32>
    %16 = arith.divf %14, %15 : vector<128x1xf32>
    %17 = vector.broadcast %9 : vector<128x1xf32> to vector<128x128xf32>
    %18 = arith.subf %1, %17 : vector<128x128xf32>
    %cst_9 = arith.constant 9.99999974E-6 : f32
    %19 = vector.broadcast %cst_9 : f32 to vector<128x1xf32>
    %20 = arith.addf %16, %19 : vector<128x1xf32>
    %21 = math.rsqrt %20 : vector<128x1xf32>
    %22 = vector.broadcast %21 : vector<128x1xf32> to vector<128x128xf32>
    %23 = arith.mulf %18, %22 : vector<128x128xf32>
    %24 = vector.shape_cast %3 : vector<128xf32> to vector<1x128xf32>
    %25 = vector.broadcast %24 : vector<1x128xf32> to vector<128x128xf32>
    %26 = arith.mulf %23, %25 : vector<128x128xf32>
    %27 = vector.shape_cast %5 : vector<128xf32> to vector<1x128xf32>
    %28 = vector.broadcast %27 : vector<1x128xf32> to vector<128x128xf32>
    %29 = arith.addf %26, %28 : vector<128x128xf32>
    %30 = arith.truncf %29 : vector<128x128xf32> to vector<128x128xbf16>
    %c0_10 = arith.constant 0 : index
    %c0_11 = arith.constant 0 : index
    %31 = vector.load %arg5[%c0_10, %c0_11] : memref<128x384xbf16, #tpu.memory_space<vmem>>, vector<128x384xbf16>
    %cst_12 = arith.constant dense<0.000000e+00> : vector<128x384xf32>
    %32 = tpu.matmul %30, %31, %cst_12 {dimension_numbers = #tpu.dot_dimension_numbers<[1], [0], [0], [1], [0, 0, 1, 1], [], []>} : vector<128x128xbf16>, vector<128x384xbf16>, vector<128x384xf32> -> vector<128x384xf32>
    %33 = vector.extract_strided_slice %32 {offsets = [0, 0], sizes = [128, 32], strides = [1, 1]} : vector<128x384xf32> to vector<128x32xf32>
    %cst_13 = arith.constant 0.176776692 : f32
    %34 = vector.broadcast %cst_13 : f32 to vector<128x32xf32>
    %35 = arith.mulf %33, %34 : vector<128x32xf32>
    %36 = arith.truncf %35 : vector<128x32xf32> to vector<128x32xbf16>
    %c0_14 = arith.constant 0 : index
    %c0_15 = arith.constant 0 : index
    %c0_16 = arith.constant 0 : index
    %c0_17 = arith.constant 0 : index
    %37 = vector.load %arg6[%c0_14, %c0_15, %c0_16, %c0_17] : memref<1x4x128x32xbf16, #tpu.memory_space<vmem>>, vector<1x1x128x32xbf16>
    %38 = vector.shape_cast %37 : vector<1x1x128x32xbf16> to vector<128x32xbf16>
    %39 = vector.shape_cast %36 : vector<128x32xbf16> to vector<1x1x128x32xbf16>
    tpu.vector_store %arg6[%c0_14, %c0_15, %c0_16, %c0_17], %39 {strides = array<i32>} : memref<1x4x128x32xbf16, #tpu.memory_space<vmem>>, vector<1x1x128x32xbf16>,
    %40 = vector.extract_strided_slice %32 {offsets = [0, 128], sizes = [128, 32], strides = [1, 1]} : vector<128x384xf32> to vector<128x32xf32>
    %41 = arith.truncf %40 : vector<128x32xf32> to vector<128x32xbf16>
    %c0_18 = arith.constant 0 : index
    %c0_19 = arith.constant 0 : index
    %c0_20 = arith.constant 0 : index
    %c0_21 = arith.constant 0 : index
    %42 = vector.load %arg7[%c0_18, %c0_19, %c0_20, %c0_21] : memref<1x4x128x32xbf16, #tpu.memory_space<vmem>>, vector<1x1x128x32xbf16>
    %43 = vector.shape_cast %42 : vector<1x1x128x32xbf16> to vector<128x32xbf16>
    %44 = vector.shape_cast %41 : vector<128x32xbf16> to vector<1x1x128x32xbf16>
    tpu.vector_store %arg7[%c0_18, %c0_19, %c0_20, %c0_21], %44 {strides = array<i32>} : memref<1x4x128x32xbf16, #tpu.memory_space<vmem>>, vector<1x1x128x32xbf16>,
    %45 = vector.extract_strided_slice %32 {offsets = [0, 256], sizes = [128, 32], strides = [1, 1]} : vector<128x384xf32> to vector<128x32xf32>
    %46 = arith.truncf %45 : vector<128x32xf32> to vector<128x32xbf16>
    %c0_22 = arith.constant 0 : index
    %c0_23 = arith.constant 0 : index
    %c0_24 = arith.constant 0 : index
    %c0_25 = arith.constant 0 : index
    %47 = vector.load %arg8[%c0_22, %c0_23, %c0_24, %c0_25] : memref<1x4x128x32xbf16, #tpu.memory_space<vmem>>, vector<1x1x128x32xbf16>
    %48 = vector.shape_cast %47 : vector<1x1x128x32xbf16> to vector<128x32xbf16>
    %49 = vector.shape_cast %46 : vector<128x32xbf16> to vector<1x1x128x32xbf16>
    tpu.vector_store %arg8[%c0_22, %c0_23, %c0_24, %c0_25], %49 {strides = array<i32>} : memref<1x4x128x32xbf16, #tpu.memory_space<vmem>>, vector<1x1x128x32xbf16>,
    %50 = vector.extract_strided_slice %32 {offsets = [0, 32], sizes = [128, 32], strides = [1, 1]} : vector<128x384xf32> to vector<128x32xf32>
    %cst_26 = arith.constant 0.176776692 : f32
    %51 = vector.broadcast %cst_26 : f32 to vector<128x32xf32>
    %52 = arith.mulf %50, %51 : vector<128x32xf32>
    %53 = arith.truncf %52 : vector<128x32xf32> to vector<128x32xbf16>
    %c0_27 = arith.constant 0 : index
    %c1 = arith.constant 1 : index
    %c0_28 = arith.constant 0 : index
    %c0_29 = arith.constant 0 : index
    %54 = vector.load %arg6[%c0_27, %c1, %c0_28, %c0_29] : memref<1x4x128x32xbf16, #tpu.memory_space<vmem>>, vector<1x1x128x32xbf16>
    %55 = vector.shape_cast %54 : vector<1x1x128x32xbf16> to vector<128x32xbf16>
    %56 = vector.shape_cast %53 : vector<128x32xbf16> to vector<1x1x128x32xbf16>
    tpu.vector_store %arg6[%c0_27, %c1, %c0_28, %c0_29], %56 {strides = array<i32>} : memref<1x4x128x32xbf16, #tpu.memory_space<vmem>>, vector<1x1x128x32xbf16>,
    %57 = vector.extract_strided_slice %32 {offsets = [0, 160], sizes = [128, 32], strides = [1, 1]} : vector<128x384xf32> to vector<128x32xf32>
    %58 = arith.truncf %57 : vector<128x32xf32> to vector<128x32xbf16>
    %c0_30 = arith.constant 0 : index
    %c1_31 = arith.constant 1 : index
    %c0_32 = arith.constant 0 : index
    %c0_33 = arith.constant 0 : index
    %59 = vector.load %arg7[%c0_30, %c1_31, %c0_32, %c0_33] : memref<1x4x128x32xbf16, #tpu.memory_space<vmem>>, vector<1x1x128x32xbf16>
    %60 = vector.shape_cast %59 : vector<1x1x128x32xbf16> to vector<128x32xbf16>
    %61 = vector.shape_cast %58 : vector<128x32xbf16> to vector<1x1x128x32xbf16>
    tpu.vector_store %arg7[%c0_30, %c1_31, %c0_32, %c0_33], %61 {strides = array<i32>} : memref<1x4x128x32xbf16, #tpu.memory_space<vmem>>, vector<1x1x128x32xbf16>,
    %62 = vector.extract_strided_slice %32 {offsets = [0, 288], sizes = [128, 32], strides = [1, 1]} : vector<128x384xf32> to vector<128x32xf32>
    %63 = arith.truncf %62 : vector<128x32xf32> to vector<128x32xbf16>
    %c0_34 = arith.constant 0 : index
    %c1_35 = arith.constant 1 : index
    %c0_36 = arith.constant 0 : index
    %c0_37 = arith.constant 0 : index
    %64 = vector.load %arg8[%c0_34, %c1_35, %c0_36, %c0_37] : memref<1x4x128x32xbf16, #tpu.memory_space<vmem>>, vector<1x1x128x32xbf16>
    %65 = vector.shape_cast %64 : vector<1x1x128x32xbf16> to vector<128x32xbf16>
    %66 = vector.shape_cast %63 : vector<128x32xbf16> to vector<1x1x128x32xbf16>
    tpu.vector_store %arg8[%c0_34, %c1_35, %c0_36, %c0_37], %66 {strides = array<i32>} : memref<1x4x128x32xbf16, #tpu.memory_space<vmem>>, vector<1x1x128x32xbf16>,
    %67 = vector.extract_strided_slice %32 {offsets = [0, 64], sizes = [128, 32], strides = [1, 1]} : vector<128x384xf32> to vector<128x32xf32>
    %cst_38 = arith.constant 0.176776692 : f32
    %68 = vector.broadcast %cst_38 : f32 to vector<128x32xf32>
    %69 = arith.mulf %67, %68 : vector<128x32xf32>
    %70 = arith.truncf %69 : vector<128x32xf32> to vector<128x32xbf16>
    %c0_39 = arith.constant 0 : index
    %c2 = arith.constant 2 : index
    %c0_40 = arith.constant 0 : index
    %c0_41 = arith.constant 0 : index
    %71 = vector.load %arg6[%c0_39, %c2, %c0_40, %c0_41] : memref<1x4x128x32xbf16, #tpu.memory_space<vmem>>, vector<1x1x128x32xbf16>
    %72 = vector.shape_cast %71 : vector<1x1x128x32xbf16> to vector<128x32xbf16>
    %73 = vector.shape_cast %70 : vector<128x32xbf16> to vector<1x1x128x32xbf16>
    tpu.vector_store %arg6[%c0_39, %c2, %c0_40, %c0_41], %73 {strides = array<i32>} : memref<1x4x128x32xbf16, #tpu.memory_space<vmem>>, vector<1x1x128x32xbf16>,
    %74 = vector.extract_strided_slice %32 {offsets = [0, 192], sizes = [128, 32], strides = [1, 1]} : vector<128x384xf32> to vector<128x32xf32>
    %75 = arith.truncf %74 : vector<128x32xf32> to vector<128x32xbf16>
    %c0_42 = arith.constant 0 : index
    %c2_43 = arith.constant 2 : index
    %c0_44 = arith.constant 0 : index
    %c0_45 = arith.constant 0 : index
    %76 = vector.load %arg7[%c0_42, %c2_43, %c0_44, %c0_45] : memref<1x4x128x32xbf16, #tpu.memory_space<vmem>>, vector<1x1x128x32xbf16>
    %77 = vector.shape_cast %76 : vector<1x1x128x32xbf16> to vector<128x32xbf16>
    %78 = vector.shape_cast %75 : vector<128x32xbf16> to vector<1x1x128x32xbf16>
    tpu.vector_store %arg7[%c0_42, %c2_43, %c0_44, %c0_45], %78 {strides = array<i32>} : memref<1x4x128x32xbf16, #tpu.memory_space<vmem>>, vector<1x1x128x32xbf16>,
    %79 = vector.extract_strided_slice %32 {offsets = [0, 320], sizes = [128, 32], strides = [1, 1]} : vector<128x384xf32> to vector<128x32xf32>
    %80 = arith.truncf %79 : vector<128x32xf32> to vector<128x32xbf16>
    %c0_46 = arith.constant 0 : index
    %c2_47 = arith.constant 2 : index
    %c0_48 = arith.constant 0 : index
    %c0_49 = arith.constant 0 : index
    %81 = vector.load %arg8[%c0_46, %c2_47, %c0_48, %c0_49] : memref<1x4x128x32xbf16, #tpu.memory_space<vmem>>, vector<1x1x128x32xbf16>
    %82 = vector.shape_cast %81 : vector<1x1x128x32xbf16> to vector<128x32xbf16>
    %83 = vector.shape_cast %80 : vector<128x32xbf16> to vector<1x1x128x32xbf16>
    tpu.vector_store %arg8[%c0_46, %c2_47, %c0_48, %c0_49], %83 {strides = array<i32>} : memref<1x4x128x32xbf16, #tpu.memory_space<vmem>>, vector<1x1x128x32xbf16>,
    %84 = vector.extract_strided_slice %32 {offsets = [0, 96], sizes = [128, 32], strides = [1, 1]} : vector<128x384xf32> to vector<128x32xf32>
    %cst_50 = arith.constant 0.176776692 : f32
    %85 = vector.broadcast %cst_50 : f32 to vector<128x32xf32>
    %86 = arith.mulf %84, %85 : vector<128x32xf32>
    %87 = arith.truncf %86 : vector<128x32xf32> to vector<128x32xbf16>
    %c0_51 = arith.constant 0 : index
    %c3 = arith.constant 3 : index
    %c0_52 = arith.constant 0 : index
    %c0_53 = arith.constant 0 : index
    %88 = vector.load %arg6[%c0_51, %c3, %c0_52, %c0_53] : memref<1x4x128x32xbf16, #tpu.memory_space<vmem>>, vector<1x1x128x32xbf16>
    %89 = vector.shape_cast %88 : vector<1x1x128x32xbf16> to vector<128x32xbf16>
    %90 = vector.shape_cast %87 : vector<128x32xbf16> to vector<1x1x128x32xbf16>
    tpu.vector_store %arg6[%c0_51, %c3, %c0_52, %c0_53], %90 {strides = array<i32>} : memref<1x4x128x32xbf16, #tpu.memory_space<vmem>>, vector<1x1x128x32xbf16>,
    %91 = vector.extract_strided_slice %32 {offsets = [0, 224], sizes = [128, 32], strides = [1, 1]} : vector<128x384xf32> to vector<128x32xf32>
    %92 = arith.truncf %91 : vector<128x32xf32> to vector<128x32xbf16>
    %c0_54 = arith.constant 0 : index
    %c3_55 = arith.constant 3 : index
    %c0_56 = arith.constant 0 : index
    %c0_57 = arith.constant 0 : index
    %93 = vector.load %arg7[%c0_54, %c3_55, %c0_56, %c0_57] : memref<1x4x128x32xbf16, #tpu.memory_space<vmem>>, vector<1x1x128x32xbf16>
    %94 = vector.shape_cast %93 : vector<1x1x128x32xbf16> to vector<128x32xbf16>
    %95 = vector.shape_cast %92 : vector<128x32xbf16> to vector<1x1x128x32xbf16>
    tpu.vector_store %arg7[%c0_54, %c3_55, %c0_56, %c0_57], %95 {strides = array<i32>} : memref<1x4x128x32xbf16, #tpu.memory_space<vmem>>, vector<1x1x128x32xbf16>,
    %96 = vector.extract_strided_slice %32 {offsets = [0, 352], sizes = [128, 32], strides = [1, 1]} : vector<128x384xf32> to vector<128x32xf32>
    %97 = arith.truncf %96 : vector<128x32xf32> to vector<128x32xbf16>
    %c0_58 = arith.constant 0 : index
    %c3_59 = arith.constant 3 : index
    %c0_60 = arith.constant 0 : index
    %c0_61 = arith.constant 0 : index
    %98 = vector.load %arg8[%c0_58, %c3_59, %c0_60, %c0_61] : memref<1x4x128x32xbf16, #tpu.memory_space<vmem>>, vector<1x1x128x32xbf16>
    %99 = vector.shape_cast %98 : vector<1x1x128x32xbf16> to vector<128x32xbf16>
    %100 = vector.shape_cast %97 : vector<128x32xbf16> to vector<1x1x128x32xbf16>
    tpu.vector_store %arg8[%c0_58, %c3_59, %c0_60, %c0_61], %100 {strides = array<i32>} : memref<1x4x128x32xbf16, #tpu.memory_space<vmem>>, vector<1x1x128x32xbf16>,
    return
  }
  func.func @transform_0(%arg0: i32, %arg1: i32) -> (i32, i32, i32) {
    %c0_i32 = arith.constant 0 : i32
    %c0_i32_0 = arith.constant 0 : i32
    return %arg0, %arg1, %c0_i32 : i32, i32, i32
  }
  func.func @transform_1(%arg0: i32, %arg1: i32) -> (i32, i32) {
    %c0_i32 = arith.constant 0 : i32
    %c0_i32_0 = arith.constant 0 : i32
    %c0_i32_1 = arith.constant 0 : i32
    return %c0_i32, %c0_i32_0 : i32, i32
  }
  func.func @transform_2(%arg0: i32, %arg1: i32) -> (i32, i32) {
    %c0_i32 = arith.constant 0 : i32
    %c0_i32_0 = arith.constant 0 : i32
    %c0_i32_1 = arith.constant 0 : i32
    return %c0_i32, %c0_i32_0 : i32, i32
  }
  func.func @transform_3(%arg0: i32, %arg1: i32) -> (i32, i32) {
    %c0_i32 = arith.constant 0 : i32
    %c0_i32_0 = arith.constant 0 : i32
    %c0_i32_1 = arith.constant 0 : i32
    return %c0_i32, %c0_i32_0 : i32, i32
  }
  func.func @transform_4(%arg0: i32, %arg1: i32) -> (i32, i32, i32, i32) {
    %c0_i32 = arith.constant 0 : i32
    %c0_i32_0 = arith.constant 0 : i32
    %c0_i32_1 = arith.constant 0 : i32
    return %arg0, %c0_i32, %arg1, %c0_i32_0 : i32, i32, i32, i32
  }
  func.func @transform_5(%arg0: i32, %arg1: i32) -> (i32, i32, i32, i32) {
    %c0_i32 = arith.constant 0 : i32
    %c0_i32_0 = arith.constant 0 : i32
    %c0_i32_1 = arith.constant 0 : i32
    return %arg0, %c0_i32, %arg1, %c0_i32_0 : i32, i32, i32, i32
  }
  func.func @transform_6(%arg0: i32, %arg1: i32) -> (i32, i32, i32, i32) {
    %c0_i32 = arith.constant 0 : i32
    %c0_i32_0 = arith.constant 0 : i32
    %c0_i32_1 = arith.constant 0 : i32
    return %arg0, %c0_i32, %arg1, %c0_i32_0 : i32, i32, i32, i32
  }
}

module attributes {stable_mosaic.version = 11 : i64} {
  func.func @qkv_kernel(%arg0: i32, %arg1: i32, %arg2: memref<1x128x128xf32, #tpu.memory_space<vmem>>, %arg3: memref<1x128xf32, #tpu.memory_space<vmem>>, %arg4: memref<1x128xf32, #tpu.memory_space<vmem>>, %arg5: memref<128x384xbf16, #tpu.memory_space<vmem>>, %arg6: memref<1x4x128x32xbf16, #tpu.memory_space<vmem>>, %arg7: memref<1x4x128x32xbf16, #tpu.memory_space<vmem>>, %arg8: memref<1x4x128x32xbf16, #tpu.memory_space<vmem>>) attributes {dimension_semantics = [#tpu.dimension_semantics<parallel>, #tpu.dimension_semantics<parallel>], iteration_bounds = array<i64: 2, 2>, scalar_prefetch = 0 : i64, scratch_operands = 0 : i64, tpu.core_type = #tpu.core_type<tc>, window_params = [{transform_indices = @transform_0, window_bounds = array<i64: 1, 128, 128>}, {pipeline_mode = #tpu.pipeline_mode<synchronous>, transform_indices = @transform_1, window_bounds = array<i64: 1, 128>}, {pipeline_mode = #tpu.pipeline_mode<synchronous>, transform_indices = @transform_2, window_bounds = array<i64: 1, 128>}, {pipeline_mode = #tpu.pipeline_mode<synchronous>, transform_indices = @transform_3, window_bounds = array<i64: 128, 384>}, {transform_indices = @transform_4, window_bounds = array<i64: 1, 4, 128, 32>}, {transform_indices = @transform_5, window_bounds = array<i64: 1, 4, 128, 32>}, {transform_indices = @transform_6, window_bounds = array<i64: 1, 4, 128, 32>}]} {
    %c0 = arith.constant 0 : index
    %c0_0 = arith.constant 0 : index
    %c0_1 = arith.constant 0 : index
    %0 = vector.load %arg2[%c0, %c0_0, %c0_1] : memref<1x128x128xf32, #tpu.memory_space<vmem>>, vector<1x128x128xf32>
    %1 = vector.shape_cast %0 : vector<1x128x128xf32> to vector<128x128xf32>
    %c0_2 = arith.constant 0 : index
    %c0_3 = arith.constant 0 : index
    %2 = vector.load %arg3[%c0_2, %c0_3] : memref<1x128xf32, #tpu.memory_space<vmem>>, vector<1x128xf32>
    %3 = vector.shape_cast %2 : vector<1x128xf32> to vector<128xf32>
    %c0_4 = arith.constant 0 : index
    %c0_5 = arith.constant 0 : index
    %4 = vector.load %arg4[%c0_4, %c0_5] : memref<1x128xf32, #tpu.memory_space<vmem>>, vector<1x128xf32>
    %5 = vector.shape_cast %4 : vector<1x128xf32> to vector<128xf32>
    %cst = arith.constant dense<0.000000e+00> : vector<128xf32>
    %6 = vector.multi_reduction <add>, %1, %cst [1] : vector<128x128xf32> to vector<128xf32>
    %7 = vector.shape_cast %6 : vector<128xf32> to vector<128x1xf32>
    %cst_6 = arith.constant 1.280000e+02 : f32
    %8 = vector.broadcast %cst_6 : f32 to vector<128x1xf32>
    %9 = arith.divf %7, %8 : vector<128x1xf32>
    %10 = vector.broadcast %9 : vector<128x1xf32> to vector<128x128xf32>
    %11 = arith.subf %1, %10 : vector<128x128xf32>
    %12 = arith.mulf %11, %11 : vector<128x128xf32>
    %cst_7 = arith.constant dense<0.000000e+00> : vector<128xf32>
    %13 = vector.multi_reduction <add>, %12, %cst_7 [1] : vector<128x128xf32> to vector<128xf32>
    %14 = vector.shape_cast %13 : vector<128xf32> to vector<128x1xf32>
    %cst_8 = arith.constant 1.280000e+02 : f32
    %15 = vector.broadcast %cst_8 : f32 to vector<128x1xf32>
    %16 = arith.divf %14, %15 : vector<128x1xf32>
    %17 = vector.broadcast %9 : vector<128x1xf32> to vector<128x128xf32>
    %18 = arith.subf %1, %17 : vector<128x128xf32>
    %cst_9 = arith.constant 9.99999974E-6 : f32
    %19 = vector.broadcast %cst_9 : f32 to vector<128x1xf32>
    %20 = arith.addf %16, %19 : vector<128x1xf32>
    %21 = math.rsqrt %20 : vector<128x1xf32>
    %22 = vector.broadcast %21 : vector<128x1xf32> to vector<128x128xf32>
    %23 = arith.mulf %18, %22 : vector<128x128xf32>
    %24 = vector.shape_cast %3 : vector<128xf32> to vector<1x128xf32>
    %25 = vector.broadcast %24 : vector<1x128xf32> to vector<128x128xf32>
    %26 = arith.mulf %23, %25 : vector<128x128xf32>
    %27 = vector.shape_cast %5 : vector<128xf32> to vector<1x128xf32>
    %28 = vector.broadcast %27 : vector<1x128xf32> to vector<128x128xf32>
    %29 = arith.addf %26, %28 : vector<128x128xf32>
    %30 = arith.truncf %29 : vector<128x128xf32> to vector<128x128xbf16>
    %c0_10 = arith.constant 0 : index
    %c0_11 = arith.constant 0 : index
    %31 = vector.load %arg5[%c0_10, %c0_11] : memref<128x384xbf16, #tpu.memory_space<vmem>>, vector<128x384xbf16>
    %cst_12 = arith.constant dense<0.000000e+00> : vector<128x384xf32>
    %32 = tpu.matmul %30, %31, %cst_12 {dimension_numbers = #tpu.dot_dimension_numbers<[1], [0], [0], [1], [0, 0, 1, 1], [], []>} : vector<128x128xbf16>, vector<128x384xbf16>, vector<128x384xf32> -> vector<128x384xf32>
    %33 = vector.extract_strided_slice %32 {offsets = [0, 0], sizes = [128, 32], strides = [1, 1]} : vector<128x384xf32> to vector<128x32xf32>
    %cst_13 = arith.constant 0.176776692 : f32
    %34 = vector.broadcast %cst_13 : f32 to vector<128x32xf32>
    %35 = arith.mulf %33, %34 : vector<128x32xf32>
    %36 = arith.truncf %35 : vector<128x32xf32> to vector<128x32xbf16>
    %c0_14 = arith.constant 0 : index
    %c0_15 = arith.constant 0 : index
    %c0_16 = arith.constant 0 : index
    %c0_17 = arith.constant 0 : index
    %37 = vector.load %arg6[%c0_14, %c0_15, %c0_16, %c0_17] : memref<1x4x128x32xbf16, #tpu.memory_space<vmem>>, vector<1x1x128x32xbf16>
    %38 = vector.shape_cast %37 : vector<1x1x128x32xbf16> to vector<128x32xbf16>
    %39 = vector.shape_cast %36 : vector<128x32xbf16> to vector<1x1x128x32xbf16>
    tpu.vector_store %arg6[%c0_14, %c0_15, %c0_16, %c0_17], %39 {strides = array<i32>} : memref<1x4x128x32xbf16, #tpu.memory_space<vmem>>, vector<1x1x128x32xbf16>,
    %40 = vector.extract_strided_slice %32 {offsets = [0, 128], sizes = [128, 32], strides = [1, 1]} : vector<128x384xf32> to vector<128x32xf32>
    %41 = arith.truncf %40 : vector<128x32xf32> to vector<128x32xbf16>
    %c0_18 = arith.constant 0 : index
    %c0_19 = arith.constant 0 : index
    %c0_20 = arith.constant 0 : index
    %c0_21 = arith.constant 0 : index
    %42 = vector.load %arg7[%c0_18, %c0_19, %c0_20, %c0_21] : memref<1x4x128x32xbf16, #tpu.memory_space<vmem>>, vector<1x1x128x32xbf16>
    %43 = vector.shape_cast %42 : vector<1x1x128x32xbf16> to vector<128x32xbf16>
    %44 = vector.shape_cast %41 : vector<128x32xbf16> to vector<1x1x128x32xbf16>
    tpu.vector_store %arg7[%c0_18, %c0_19, %c0_20, %c0_21], %44 {strides = array<i32>} : memref<1x4x128x32xbf16, #tpu.memory_space<vmem>>, vector<1x1x128x32xbf16>,
    %45 = vector.extract_strided_slice %32 {offsets = [0, 256], sizes = [128, 32], strides = [1, 1]} : vector<128x384xf32> to vector<128x32xf32>
    %46 = arith.truncf %45 : vector<128x32xf32> to vector<128x32xbf16>
    %c0_22 = arith.constant 0 : index
    %c0_23 = arith.constant 0 : index
    %c0_24 = arith.constant 0 : index
    %c0_25 = arith.constant 0 : index
    %47 = vector.load %arg8[%c0_22, %c0_23, %c0_24, %c0_25] : memref<1x4x128x32xbf16, #tpu.memory_space<vmem>>, vector<1x1x128x32xbf16>
    %48 = vector.shape_cast %47 : vector<1x1x128x32xbf16> to vector<128x32xbf16>
    %49 = vector.shape_cast %46 : vector<128x32xbf16> to vector<1x1x128x32xbf16>
    tpu.vector_store %arg8[%c0_22, %c0_23, %c0_24, %c0_25], %49 {strides = array<i32>} : memref<1x4x128x32xbf16, #tpu.memory_space<vmem>>, vector<1x1x128x32xbf16>,
    %50 = vector.extract_strided_slice %32 {offsets = [0, 32], sizes = [128, 32], strides = [1, 1]} : vector<128x384xf32> to vector<128x32xf32>
    %cst_26 = arith.constant 0.176776692 : f32
    %51 = vector.broadcast %cst_26 : f32 to vector<128x32xf32>
    %52 = arith.mulf %50, %51 : vector<128x32xf32>
    %53 = arith.truncf %52 : vector<128x32xf32> to vector<128x32xbf16>
    %c0_27 = arith.constant 0 : index
    %c1 = arith.constant 1 : index
    %c0_28 = arith.constant 0 : index
    %c0_29 = arith.constant 0 : index
    %54 = vector.load %arg6[%c0_27, %c1, %c0_28, %c0_29] : memref<1x4x128x32xbf16, #tpu.memory_space<vmem>>, vector<1x1x128x32xbf16>
    %55 = vector.shape_cast %54 : vector<1x1x128x32xbf16> to vector<128x32xbf16>
    %56 = vector.shape_cast %53 : vector<128x32xbf16> to vector<1x1x128x32xbf16>
    tpu.vector_store %arg6[%c0_27, %c1, %c0_28, %c0_29], %56 {strides = array<i32>} : memref<1x4x128x32xbf16, #tpu.memory_space<vmem>>, vector<1x1x128x32xbf16>,
    %57 = vector.extract_strided_slice %32 {offsets = [0, 160], sizes = [128, 32], strides = [1, 1]} : vector<128x384xf32> to vector<128x32xf32>
    %58 = arith.truncf %57 : vector<128x32xf32> to vector<128x32xbf16>
    %c0_30 = arith.constant 0 : index
    %c1_31 = arith.constant 1 : index
    %c0_32 = arith.constant 0 : index
    %c0_33 = arith.constant 0 : index
    %59 = vector.load %arg7[%c0_30, %c1_31, %c0_32, %c0_33] : memref<1x4x128x32xbf16, #tpu.memory_space<vmem>>, vector<1x1x128x32xbf16>
    %60 = vector.shape_cast %59 : vector<1x1x128x32xbf16> to vector<128x32xbf16>
    %61 = vector.shape_cast %58 : vector<128x32xbf16> to vector<1x1x128x32xbf16>
    tpu.vector_store %arg7[%c0_30, %c1_31, %c0_32, %c0_33], %61 {strides = array<i32>} : memref<1x4x128x32xbf16, #tpu.memory_space<vmem>>, vector<1x1x128x32xbf16>,
    %62 = vector.extract_strided_slice %32 {offsets = [0, 288], sizes = [128, 32], strides = [1, 1]} : vector<128x384xf32> to vector<128x32xf32>
    %63 = arith.truncf %62 : vector<128x32xf32> to vector<128x32xbf16>
    %c0_34 = arith.constant 0 : index
    %c1_35 = arith.constant 1 : index
    %c0_36 = arith.constant 0 : index
    %c0_37 = arith.constant 0 : index
    %64 = vector.load %arg8[%c0_34, %c1_35, %c0_36, %c0_37] : memref<1x4x128x32xbf16, #tpu.memory_space<vmem>>, vector<1x1x128x32xbf16>
    %65 = vector.shape_cast %64 : vector<1x1x128x32xbf16> to vector<128x32xbf16>
    %66 = vector.shape_cast %63 : vector<128x32xbf16> to vector<1x1x128x32xbf16>
    tpu.vector_store %arg8[%c0_34, %c1_35, %c0_36, %c0_37], %66 {strides = array<i32>} : memref<1x4x128x32xbf16, #tpu.memory_space<vmem>>, vector<1x1x128x32xbf16>,
    %67 = vector.extract_strided_slice %32 {offsets = [0, 64], sizes = [128, 32], strides = [1, 1]} : vector<128x384xf32> to vector<128x32xf32>
    %cst_38 = arith.constant 0.176776692 : f32
    %68 = vector.broadcast %cst_38 : f32 to vector<128x32xf32>
    %69 = arith.mulf %67, %68 : vector<128x32xf32>
    %70 = arith.truncf %69 : vector<128x32xf32> to vector<128x32xbf16>
    %c0_39 = arith.constant 0 : index
    %c2 = arith.constant 2 : index
    %c0_40 = arith.constant 0 : index
    %c0_41 = arith.constant 0 : index
    %71 = vector.load %arg6[%c0_39, %c2, %c0_40, %c0_41] : memref<1x4x128x32xbf16, #tpu.memory_space<vmem>>, vector<1x1x128x32xbf16>
    %72 = vector.shape_cast %71 : vector<1x1x128x32xbf16> to vector<128x32xbf16>
    %73 = vector.shape_cast %70 : vector<128x32xbf16> to vector<1x1x128x32xbf16>
    tpu.vector_store %arg6[%c0_39, %c2, %c0_40, %c0_41], %73 {strides = array<i32>} : memref<1x4x128x32xbf16, #tpu.memory_space<vmem>>, vector<1x1x128x32xbf16>,
    %74 = vector.extract_strided_slice %32 {offsets = [0, 192], sizes = [128, 32], strides = [1, 1]} : vector<128x384xf32> to vector<128x32xf32>
    %75 = arith.truncf %74 : vector<128x32xf32> to vector<128x32xbf16>
    %c0_42 = arith.constant 0 : index
    %c2_43 = arith.constant 2 : index
    %c0_44 = arith.constant 0 : index
    %c0_45 = arith.constant 0 : index
    %76 = vector.load %arg7[%c0_42, %c2_43, %c0_44, %c0_45] : memref<1x4x128x32xbf16, #tpu.memory_space<vmem>>, vector<1x1x128x32xbf16>
    %77 = vector.shape_cast %76 : vector<1x1x128x32xbf16> to vector<128x32xbf16>
    %78 = vector.shape_cast %75 : vector<128x32xbf16> to vector<1x1x128x32xbf16>
    tpu.vector_store %arg7[%c0_42, %c2_43, %c0_44, %c0_45], %78 {strides = array<i32>} : memref<1x4x128x32xbf16, #tpu.memory_space<vmem>>, vector<1x1x128x32xbf16>,
    %79 = vector.extract_strided_slice %32 {offsets = [0, 320], sizes = [128, 32], strides = [1, 1]} : vector<128x384xf32> to vector<128x32xf32>
    %80 = arith.truncf %79 : vector<128x32xf32> to vector<128x32xbf16>
    %c0_46 = arith.constant 0 : index
    %c2_47 = arith.constant 2 : index
    %c0_48 = arith.constant 0 : index
    %c0_49 = arith.constant 0 : index
    %81 = vector.load %arg8[%c0_46, %c2_47, %c0_48, %c0_49] : memref<1x4x128x32xbf16, #tpu.memory_space<vmem>>, vector<1x1x128x32xbf16>
    %82 = vector.shape_cast %81 : vector<1x1x128x32xbf16> to vector<128x32xbf16>
    %83 = vector.shape_cast %80 : vector<128x32xbf16> to vector<1x1x128x32xbf16>
    tpu.vector_store %arg8[%c0_46, %c2_47, %c0_48, %c0_49], %83 {strides = array<i32>} : memref<1x4x128x32xbf16, #tpu.memory_space<vmem>>, vector<1x1x128x32xbf16>,
    %84 = vector.extract_strided_slice %32 {offsets = [0, 96], sizes = [128, 32], strides = [1, 1]} : vector<128x384xf32> to vector<128x32xf32>
    %cst_50 = arith.constant 0.176776692 : f32
    %85 = vector.broadcast %cst_50 : f32 to vector<128x32xf32>
    %86 = arith.mulf %84, %85 : vector<128x32xf32>
    %87 = arith.truncf %86 : vector<128x32xf32> to vector<128x32xbf16>
    %c0_51 = arith.constant 0 : index
    %c3 = arith.constant 3 : index
    %c0_52 = arith.constant 0 : index
    %c0_53 = arith.constant 0 : index
    %88 = vector.load %arg6[%c0_51, %c3, %c0_52, %c0_53] : memref<1x4x128x32xbf16, #tpu.memory_space<vmem>>, vector<1x1x128x32xbf16>
    %89 = vector.shape_cast %88 : vector<1x1x128x32xbf16> to vector<128x32xbf16>
    %90 = vector.shape_cast %87 : vector<128x32xbf16> to vector<1x1x128x32xbf16>
    tpu.vector_store %arg6[%c0_51, %c3, %c0_52, %c0_53], %90 {strides = array<i32>} : memref<1x4x128x32xbf16, #tpu.memory_space<vmem>>, vector<1x1x128x32xbf16>,
    %91 = vector.extract_strided_slice %32 {offsets = [0, 224], sizes = [128, 32], strides = [1, 1]} : vector<128x384xf32> to vector<128x32xf32>
    %92 = arith.truncf %91 : vector<128x32xf32> to vector<128x32xbf16>
    %c0_54 = arith.constant 0 : index
    %c3_55 = arith.constant 3 : index
    %c0_56 = arith.constant 0 : index
    %c0_57 = arith.constant 0 : index
    %93 = vector.load %arg7[%c0_54, %c3_55, %c0_56, %c0_57] : memref<1x4x128x32xbf16, #tpu.memory_space<vmem>>, vector<1x1x128x32xbf16>
    %94 = vector.shape_cast %93 : vector<1x1x128x32xbf16> to vector<128x32xbf16>
    %95 = vector.shape_cast %92 : vector<128x32xbf16> to vector<1x1x128x32xbf16>
    tpu.vector_store %arg7[%c0_54, %c3_55, %c0_56, %c0_57], %95 {strides = array<i32>} : memref<1x4x128x32xbf16, #tpu.memory_space<vmem>>, vector<1x1x128x32xbf16>,
    %96 = vector.extract_strided_slice %32 {offsets = [0, 352], sizes = [128, 32], strides = [1, 1]} : vector<128x384xf32> to vector<128x32xf32>
    %97 = arith.truncf %96 : vector<128x32xf32> to vector<128x32xbf16>
    %c0_58 = arith.constant 0 : index
    %c3_59 = arith.constant 3 : index
    %c0_60 = arith.constant 0 : index
    %c0_61 = arith.constant 0 : index
    %98 = vector.load %arg8[%c0_58, %c3_59, %c0_60, %c0_61] : memref<1x4x128x32xbf16, #tpu.memory_space<vmem>>, vector<1x1x128x32xbf16>
    %99 = vector.shape_cast %98 : vector<1x1x128x32xbf16> to vector<128x32xbf16>
    %100 = vector.shape_cast %97 : vector<128x32xbf16> to vector<1x1x128x32xbf16>
    tpu.vector_store %arg8[%c0_58, %c3_59, %c0_60, %c0_61], %100 {strides = array<i32>} : memref<1x4x128x32xbf16, #tpu.memory_space<vmem>>, vector<1x1x128x32xbf16>,
    return
  }
  func.func @transform_0(%arg0: i32, %arg1: i32) -> (i32, i32, i32) {
    %c0_i32 = arith.constant 0 : i32
    %c0_i32_0 = arith.constant 0 : i32
    return %arg0, %arg1, %c0_i32 : i32, i32, i32
  }
  func.func @transform_1(%arg0: i32, %arg1: i32) -> (i32, i32) {
    %c0_i32 = arith.constant 0 : i32
    %c0_i32_0 = arith.constant 0 : i32
    %c0_i32_1 = arith.constant 0 : i32
    return %c0_i32, %c0_i32_0 : i32, i32
  }
  func.func @transform_2(%arg0: i32, %arg1: i32) -> (i32, i32) {
    %c0_i32 = arith.constant 0 : i32
    %c0_i32_0 = arith.constant 0 : i32
    %c0_i32_1 = arith.constant 0 : i32
    return %c0_i32, %c0_i32_0 : i32, i32
  }
  func.func @transform_3(%arg0: i32, %arg1: i32) -> (i32, i32) {
    %c0_i32 = arith.constant 0 : i32
    %c0_i32_0 = arith.constant 0 : i32
    %c0_i32_1 = arith.constant 0 : i32
    return %c0_i32, %c0_i32_0 : i32, i32
  }
  func.func @transform_4(%arg0: i32, %arg1: i32) -> (i32, i32, i32, i32) {
    %c0_i32 = arith.constant 0 : i32
    %c0_i32_0 = arith.constant 0 : i32
    %c0_i32_1 = arith.constant 0 : i32
    return %arg0, %c0_i32, %arg1, %c0_i32_0 : i32, i32, i32, i32
  }
  func.func @transform_5(%arg0: i32, %arg1: i32) -> (i32, i32, i32, i32) {
    %c0_i32 = arith.constant 0 : i32
    %c0_i32_0 = arith.constant 0 : i32
    %c0_i32_1 = arith.constant 0 : i32
    return %arg0, %c0_i32, %arg1, %c0_i32_0 : i32, i32, i32, i32
  }
  func.func @transform_6(%arg0: i32, %arg1: i32) -> (i32, i32, i32, i32) {
    %c0_i32 = arith.constant 0 : i32
    %c0_i32_0 = arith.constant 0 : i32
    %c0_i32_1 = arith.constant 0 : i32
    return %arg0, %c0_i32, %arg1, %c0_i32_0 : i32, i32, i32, i32
  }
}

module attributes {stable_mosaic.version = 11 : i64} {
  func.func @qkv_kernel(%arg0: i32, %arg1: i32, %arg2: memref<1x128x128xf32, #tpu.memory_space<vmem>>, %arg3: memref<1x128xf32, #tpu.memory_space<vmem>>, %arg4: memref<1x128xf32, #tpu.memory_space<vmem>>, %arg5: memref<128x384xbf16, #tpu.memory_space<vmem>>, %arg6: memref<1x4x128x32xbf16, #tpu.memory_space<vmem>>, %arg7: memref<1x4x128x32xbf16, #tpu.memory_space<vmem>>, %arg8: memref<1x4x128x32xbf16, #tpu.memory_space<vmem>>) attributes {dimension_semantics = [#tpu.dimension_semantics<parallel>, #tpu.dimension_semantics<parallel>], iteration_bounds = array<i64: 2, 2>, scalar_prefetch = 0 : i64, scratch_operands = 0 : i64, tpu.core_type = #tpu.core_type<tc>, window_params = [{transform_indices = @transform_0, window_bounds = array<i64: 1, 128, 128>}, {pipeline_mode = #tpu.pipeline_mode<synchronous>, transform_indices = @transform_1, window_bounds = array<i64: 1, 128>}, {pipeline_mode = #tpu.pipeline_mode<synchronous>, transform_indices = @transform_2, window_bounds = array<i64: 1, 128>}, {pipeline_mode = #tpu.pipeline_mode<synchronous>, transform_indices = @transform_3, window_bounds = array<i64: 128, 384>}, {transform_indices = @transform_4, window_bounds = array<i64: 1, 4, 128, 32>}, {transform_indices = @transform_5, window_bounds = array<i64: 1, 4, 128, 32>}, {transform_indices = @transform_6, window_bounds = array<i64: 1, 4, 128, 32>}]} {
    %c0 = arith.constant 0 : index
    %c0_0 = arith.constant 0 : index
    %c0_1 = arith.constant 0 : index
    %0 = vector.load %arg2[%c0, %c0_0, %c0_1] : memref<1x128x128xf32, #tpu.memory_space<vmem>>, vector<1x128x128xf32>
    %1 = vector.shape_cast %0 : vector<1x128x128xf32> to vector<128x128xf32>
    %c0_2 = arith.constant 0 : index
    %c0_3 = arith.constant 0 : index
    %2 = vector.load %arg3[%c0_2, %c0_3] : memref<1x128xf32, #tpu.memory_space<vmem>>, vector<1x128xf32>
    %3 = vector.shape_cast %2 : vector<1x128xf32> to vector<128xf32>
    %c0_4 = arith.constant 0 : index
    %c0_5 = arith.constant 0 : index
    %4 = vector.load %arg4[%c0_4, %c0_5] : memref<1x128xf32, #tpu.memory_space<vmem>>, vector<1x128xf32>
    %5 = vector.shape_cast %4 : vector<1x128xf32> to vector<128xf32>
    %cst = arith.constant dense<0.000000e+00> : vector<128xf32>
    %6 = vector.multi_reduction <add>, %1, %cst [1] : vector<128x128xf32> to vector<128xf32>
    %7 = vector.shape_cast %6 : vector<128xf32> to vector<128x1xf32>
    %cst_6 = arith.constant 1.280000e+02 : f32
    %8 = vector.broadcast %cst_6 : f32 to vector<128x1xf32>
    %9 = arith.divf %7, %8 : vector<128x1xf32>
    %10 = vector.broadcast %9 : vector<128x1xf32> to vector<128x128xf32>
    %11 = arith.subf %1, %10 : vector<128x128xf32>
    %12 = arith.mulf %11, %11 : vector<128x128xf32>
    %cst_7 = arith.constant dense<0.000000e+00> : vector<128xf32>
    %13 = vector.multi_reduction <add>, %12, %cst_7 [1] : vector<128x128xf32> to vector<128xf32>
    %14 = vector.shape_cast %13 : vector<128xf32> to vector<128x1xf32>
    %cst_8 = arith.constant 1.280000e+02 : f32
    %15 = vector.broadcast %cst_8 : f32 to vector<128x1xf32>
    %16 = arith.divf %14, %15 : vector<128x1xf32>
    %17 = vector.broadcast %9 : vector<128x1xf32> to vector<128x128xf32>
    %18 = arith.subf %1, %17 : vector<128x128xf32>
    %cst_9 = arith.constant 9.99999974E-6 : f32
    %19 = vector.broadcast %cst_9 : f32 to vector<128x1xf32>
    %20 = arith.addf %16, %19 : vector<128x1xf32>
    %21 = math.rsqrt %20 : vector<128x1xf32>
    %22 = vector.broadcast %21 : vector<128x1xf32> to vector<128x128xf32>
    %23 = arith.mulf %18, %22 : vector<128x128xf32>
    %24 = vector.shape_cast %3 : vector<128xf32> to vector<1x128xf32>
    %25 = vector.broadcast %24 : vector<1x128xf32> to vector<128x128xf32>
    %26 = arith.mulf %23, %25 : vector<128x128xf32>
    %27 = vector.shape_cast %5 : vector<128xf32> to vector<1x128xf32>
    %28 = vector.broadcast %27 : vector<1x128xf32> to vector<128x128xf32>
    %29 = arith.addf %26, %28 : vector<128x128xf32>
    %30 = arith.truncf %29 : vector<128x128xf32> to vector<128x128xbf16>
    %c0_10 = arith.constant 0 : index
    %c0_11 = arith.constant 0 : index
    %31 = vector.load %arg5[%c0_10, %c0_11] : memref<128x384xbf16, #tpu.memory_space<vmem>>, vector<128x384xbf16>
    %cst_12 = arith.constant dense<0.000000e+00> : vector<128x384xf32>
    %32 = tpu.matmul %30, %31, %cst_12 {dimension_numbers = #tpu.dot_dimension_numbers<[1], [0], [0], [1], [0, 0, 1, 1], [], []>} : vector<128x128xbf16>, vector<128x384xbf16>, vector<128x384xf32> -> vector<128x384xf32>
    %33 = vector.extract_strided_slice %32 {offsets = [0, 0], sizes = [128, 32], strides = [1, 1]} : vector<128x384xf32> to vector<128x32xf32>
    %cst_13 = arith.constant 0.176776692 : f32
    %34 = vector.broadcast %cst_13 : f32 to vector<128x32xf32>
    %35 = arith.mulf %33, %34 : vector<128x32xf32>
    %36 = arith.truncf %35 : vector<128x32xf32> to vector<128x32xbf16>
    %c0_14 = arith.constant 0 : index
    %c0_15 = arith.constant 0 : index
    %c0_16 = arith.constant 0 : index
    %c0_17 = arith.constant 0 : index
    %37 = vector.load %arg6[%c0_14, %c0_15, %c0_16, %c0_17] : memref<1x4x128x32xbf16, #tpu.memory_space<vmem>>, vector<1x1x128x32xbf16>
    %38 = vector.shape_cast %37 : vector<1x1x128x32xbf16> to vector<128x32xbf16>
    %39 = vector.shape_cast %36 : vector<128x32xbf16> to vector<1x1x128x32xbf16>
    tpu.vector_store %arg6[%c0_14, %c0_15, %c0_16, %c0_17], %39 {strides = array<i32>} : memref<1x4x128x32xbf16, #tpu.memory_space<vmem>>, vector<1x1x128x32xbf16>,
    %40 = vector.extract_strided_slice %32 {offsets = [0, 128], sizes = [128, 32], strides = [1, 1]} : vector<128x384xf32> to vector<128x32xf32>
    %41 = arith.truncf %40 : vector<128x32xf32> to vector<128x32xbf16>
    %c0_18 = arith.constant 0 : index
    %c0_19 = arith.constant 0 : index
    %c0_20 = arith.constant 0 : index
    %c0_21 = arith.constant 0 : index
    %42 = vector.load %arg7[%c0_18, %c0_19, %c0_20, %c0_21] : memref<1x4x128x32xbf16, #tpu.memory_space<vmem>>, vector<1x1x128x32xbf16>
    %43 = vector.shape_cast %42 : vector<1x1x128x32xbf16> to vector<128x32xbf16>
    %44 = vector.shape_cast %41 : vector<128x32xbf16> to vector<1x1x128x32xbf16>
    tpu.vector_store %arg7[%c0_18, %c0_19, %c0_20, %c0_21], %44 {strides = array<i32>} : memref<1x4x128x32xbf16, #tpu.memory_space<vmem>>, vector<1x1x128x32xbf16>,
    %45 = vector.extract_strided_slice %32 {offsets = [0, 256], sizes = [128, 32], strides = [1, 1]} : vector<128x384xf32> to vector<128x32xf32>
    %46 = arith.truncf %45 : vector<128x32xf32> to vector<128x32xbf16>
    %c0_22 = arith.constant 0 : index
    %c0_23 = arith.constant 0 : index
    %c0_24 = arith.constant 0 : index
    %c0_25 = arith.constant 0 : index
    %47 = vector.load %arg8[%c0_22, %c0_23, %c0_24, %c0_25] : memref<1x4x128x32xbf16, #tpu.memory_space<vmem>>, vector<1x1x128x32xbf16>
    %48 = vector.shape_cast %47 : vector<1x1x128x32xbf16> to vector<128x32xbf16>
    %49 = vector.shape_cast %46 : vector<128x32xbf16> to vector<1x1x128x32xbf16>
    tpu.vector_store %arg8[%c0_22, %c0_23, %c0_24, %c0_25], %49 {strides = array<i32>} : memref<1x4x128x32xbf16, #tpu.memory_space<vmem>>, vector<1x1x128x32xbf16>,
    %50 = vector.extract_strided_slice %32 {offsets = [0, 32], sizes = [128, 32], strides = [1, 1]} : vector<128x384xf32> to vector<128x32xf32>
    %cst_26 = arith.constant 0.176776692 : f32
    %51 = vector.broadcast %cst_26 : f32 to vector<128x32xf32>
    %52 = arith.mulf %50, %51 : vector<128x32xf32>
    %53 = arith.truncf %52 : vector<128x32xf32> to vector<128x32xbf16>
    %c0_27 = arith.constant 0 : index
    %c1 = arith.constant 1 : index
    %c0_28 = arith.constant 0 : index
    %c0_29 = arith.constant 0 : index
    %54 = vector.load %arg6[%c0_27, %c1, %c0_28, %c0_29] : memref<1x4x128x32xbf16, #tpu.memory_space<vmem>>, vector<1x1x128x32xbf16>
    %55 = vector.shape_cast %54 : vector<1x1x128x32xbf16> to vector<128x32xbf16>
    %56 = vector.shape_cast %53 : vector<128x32xbf16> to vector<1x1x128x32xbf16>
    tpu.vector_store %arg6[%c0_27, %c1, %c0_28, %c0_29], %56 {strides = array<i32>} : memref<1x4x128x32xbf16, #tpu.memory_space<vmem>>, vector<1x1x128x32xbf16>,
    %57 = vector.extract_strided_slice %32 {offsets = [0, 160], sizes = [128, 32], strides = [1, 1]} : vector<128x384xf32> to vector<128x32xf32>
    %58 = arith.truncf %57 : vector<128x32xf32> to vector<128x32xbf16>
    %c0_30 = arith.constant 0 : index
    %c1_31 = arith.constant 1 : index
    %c0_32 = arith.constant 0 : index
    %c0_33 = arith.constant 0 : index
    %59 = vector.load %arg7[%c0_30, %c1_31, %c0_32, %c0_33] : memref<1x4x128x32xbf16, #tpu.memory_space<vmem>>, vector<1x1x128x32xbf16>
    %60 = vector.shape_cast %59 : vector<1x1x128x32xbf16> to vector<128x32xbf16>
    %61 = vector.shape_cast %58 : vector<128x32xbf16> to vector<1x1x128x32xbf16>
    tpu.vector_store %arg7[%c0_30, %c1_31, %c0_32, %c0_33], %61 {strides = array<i32>} : memref<1x4x128x32xbf16, #tpu.memory_space<vmem>>, vector<1x1x128x32xbf16>,
    %62 = vector.extract_strided_slice %32 {offsets = [0, 288], sizes = [128, 32], strides = [1, 1]} : vector<128x384xf32> to vector<128x32xf32>
    %63 = arith.truncf %62 : vector<128x32xf32> to vector<128x32xbf16>
    %c0_34 = arith.constant 0 : index
    %c1_35 = arith.constant 1 : index
    %c0_36 = arith.constant 0 : index
    %c0_37 = arith.constant 0 : index
    %64 = vector.load %arg8[%c0_34, %c1_35, %c0_36, %c0_37] : memref<1x4x128x32xbf16, #tpu.memory_space<vmem>>, vector<1x1x128x32xbf16>
    %65 = vector.shape_cast %64 : vector<1x1x128x32xbf16> to vector<128x32xbf16>
    %66 = vector.shape_cast %63 : vector<128x32xbf16> to vector<1x1x128x32xbf16>
    tpu.vector_store %arg8[%c0_34, %c1_35, %c0_36, %c0_37], %66 {strides = array<i32>} : memref<1x4x128x32xbf16, #tpu.memory_space<vmem>>, vector<1x1x128x32xbf16>,
    %67 = vector.extract_strided_slice %32 {offsets = [0, 64], sizes = [128, 32], strides = [1, 1]} : vector<128x384xf32> to vector<128x32xf32>
    %cst_38 = arith.constant 0.176776692 : f32
    %68 = vector.broadcast %cst_38 : f32 to vector<128x32xf32>
    %69 = arith.mulf %67, %68 : vector<128x32xf32>
    %70 = arith.truncf %69 : vector<128x32xf32> to vector<128x32xbf16>
    %c0_39 = arith.constant 0 : index
    %c2 = arith.constant 2 : index
    %c0_40 = arith.constant 0 : index
    %c0_41 = arith.constant 0 : index
    %71 = vector.load %arg6[%c0_39, %c2, %c0_40, %c0_41] : memref<1x4x128x32xbf16, #tpu.memory_space<vmem>>, vector<1x1x128x32xbf16>
    %72 = vector.shape_cast %71 : vector<1x1x128x32xbf16> to vector<128x32xbf16>
    %73 = vector.shape_cast %70 : vector<128x32xbf16> to vector<1x1x128x32xbf16>
    tpu.vector_store %arg6[%c0_39, %c2, %c0_40, %c0_41], %73 {strides = array<i32>} : memref<1x4x128x32xbf16, #tpu.memory_space<vmem>>, vector<1x1x128x32xbf16>,
    %74 = vector.extract_strided_slice %32 {offsets = [0, 192], sizes = [128, 32], strides = [1, 1]} : vector<128x384xf32> to vector<128x32xf32>
    %75 = arith.truncf %74 : vector<128x32xf32> to vector<128x32xbf16>
    %c0_42 = arith.constant 0 : index
    %c2_43 = arith.constant 2 : index
    %c0_44 = arith.constant 0 : index
    %c0_45 = arith.constant 0 : index
    %76 = vector.load %arg7[%c0_42, %c2_43, %c0_44, %c0_45] : memref<1x4x128x32xbf16, #tpu.memory_space<vmem>>, vector<1x1x128x32xbf16>
    %77 = vector.shape_cast %76 : vector<1x1x128x32xbf16> to vector<128x32xbf16>
    %78 = vector.shape_cast %75 : vector<128x32xbf16> to vector<1x1x128x32xbf16>
    tpu.vector_store %arg7[%c0_42, %c2_43, %c0_44, %c0_45], %78 {strides = array<i32>} : memref<1x4x128x32xbf16, #tpu.memory_space<vmem>>, vector<1x1x128x32xbf16>,
    %79 = vector.extract_strided_slice %32 {offsets = [0, 320], sizes = [128, 32], strides = [1, 1]} : vector<128x384xf32> to vector<128x32xf32>
    %80 = arith.truncf %79 : vector<128x32xf32> to vector<128x32xbf16>
    %c0_46 = arith.constant 0 : index
    %c2_47 = arith.constant 2 : index
    %c0_48 = arith.constant 0 : index
    %c0_49 = arith.constant 0 : index
    %81 = vector.load %arg8[%c0_46, %c2_47, %c0_48, %c0_49] : memref<1x4x128x32xbf16, #tpu.memory_space<vmem>>, vector<1x1x128x32xbf16>
    %82 = vector.shape_cast %81 : vector<1x1x128x32xbf16> to vector<128x32xbf16>
    %83 = vector.shape_cast %80 : vector<128x32xbf16> to vector<1x1x128x32xbf16>
    tpu.vector_store %arg8[%c0_46, %c2_47, %c0_48, %c0_49], %83 {strides = array<i32>} : memref<1x4x128x32xbf16, #tpu.memory_space<vmem>>, vector<1x1x128x32xbf16>,
    %84 = vector.extract_strided_slice %32 {offsets = [0, 96], sizes = [128, 32], strides = [1, 1]} : vector<128x384xf32> to vector<128x32xf32>
    %cst_50 = arith.constant 0.176776692 : f32
    %85 = vector.broadcast %cst_50 : f32 to vector<128x32xf32>
    %86 = arith.mulf %84, %85 : vector<128x32xf32>
    %87 = arith.truncf %86 : vector<128x32xf32> to vector<128x32xbf16>
    %c0_51 = arith.constant 0 : index
    %c3 = arith.constant 3 : index
    %c0_52 = arith.constant 0 : index
    %c0_53 = arith.constant 0 : index
    %88 = vector.load %arg6[%c0_51, %c3, %c0_52, %c0_53] : memref<1x4x128x32xbf16, #tpu.memory_space<vmem>>, vector<1x1x128x32xbf16>
    %89 = vector.shape_cast %88 : vector<1x1x128x32xbf16> to vector<128x32xbf16>
    %90 = vector.shape_cast %87 : vector<128x32xbf16> to vector<1x1x128x32xbf16>
    tpu.vector_store %arg6[%c0_51, %c3, %c0_52, %c0_53], %90 {strides = array<i32>} : memref<1x4x128x32xbf16, #tpu.memory_space<vmem>>, vector<1x1x128x32xbf16>,
    %91 = vector.extract_strided_slice %32 {offsets = [0, 224], sizes = [128, 32], strides = [1, 1]} : vector<128x384xf32> to vector<128x32xf32>
    %92 = arith.truncf %91 : vector<128x32xf32> to vector<128x32xbf16>
    %c0_54 = arith.constant 0 : index
    %c3_55 = arith.constant 3 : index
    %c0_56 = arith.constant 0 : index
    %c0_57 = arith.constant 0 : index
    %93 = vector.load %arg7[%c0_54, %c3_55, %c0_56, %c0_57] : memref<1x4x128x32xbf16, #tpu.memory_space<vmem>>, vector<1x1x128x32xbf16>
    %94 = vector.shape_cast %93 : vector<1x1x128x32xbf16> to vector<128x32xbf16>
    %95 = vector.shape_cast %92 : vector<128x32xbf16> to vector<1x1x128x32xbf16>
    tpu.vector_store %arg7[%c0_54, %c3_55, %c0_56, %c0_57], %95 {strides = array<i32>} : memref<1x4x128x32xbf16, #tpu.memory_space<vmem>>, vector<1x1x128x32xbf16>,
    %96 = vector.extract_strided_slice %32 {offsets = [0, 352], sizes = [128, 32], strides = [1, 1]} : vector<128x384xf32> to vector<128x32xf32>
    %97 = arith.truncf %96 : vector<128x32xf32> to vector<128x32xbf16>
    %c0_58 = arith.constant 0 : index
    %c3_59 = arith.constant 3 : index
    %c0_60 = arith.constant 0 : index
    %c0_61 = arith.constant 0 : index
    %98 = vector.load %arg8[%c0_58, %c3_59, %c0_60, %c0_61] : memref<1x4x128x32xbf16, #tpu.memory_space<vmem>>, vector<1x1x128x32xbf16>
    %99 = vector.shape_cast %98 : vector<1x1x128x32xbf16> to vector<128x32xbf16>
    %100 = vector.shape_cast %97 : vector<128x32xbf16> to vector<1x1x128x32xbf16>
    tpu.vector_store %arg8[%c0_58, %c3_59, %c0_60, %c0_61], %100 {strides = array<i32>} : memref<1x4x128x32xbf16, #tpu.memory_space<vmem>>, vector<1x1x128x32xbf16>,
    return
  }
  func.func @transform_0(%arg0: i32, %arg1: i32) -> (i32, i32, i32) {
    %c0_i32 = arith.constant 0 : i32
    %c0_i32_0 = arith.constant 0 : i32
    return %arg0, %arg1, %c0_i32 : i32, i32, i32
  }
  func.func @transform_1(%arg0: i32, %arg1: i32) -> (i32, i32) {
    %c0_i32 = arith.constant 0 : i32
    %c0_i32_0 = arith.constant 0 : i32
    %c0_i32_1 = arith.constant 0 : i32
    return %c0_i32, %c0_i32_0 : i32, i32
  }
  func.func @transform_2(%arg0: i32, %arg1: i32) -> (i32, i32) {
    %c0_i32 = arith.constant 0 : i32
    %c0_i32_0 = arith.constant 0 : i32
    %c0_i32_1 = arith.constant 0 : i32
    return %c0_i32, %c0_i32_0 : i32, i32
  }
  func.func @transform_3(%arg0: i32, %arg1: i32) -> (i32, i32) {
    %c0_i32 = arith.constant 0 : i32
    %c0_i32_0 = arith.constant 0 : i32
    %c0_i32_1 = arith.constant 0 : i32
    return %c0_i32, %c0_i32_0 : i32, i32
  }
  func.func @transform_4(%arg0: i32, %arg1: i32) -> (i32, i32, i32, i32) {
    %c0_i32 = arith.constant 0 : i32
    %c0_i32_0 = arith.constant 0 : i32
    %c0_i32_1 = arith.constant 0 : i32
    return %arg0, %c0_i32, %arg1, %c0_i32_0 : i32, i32, i32, i32
  }
  func.func @transform_5(%arg0: i32, %arg1: i32) -> (i32, i32, i32, i32) {
    %c0_i32 = arith.constant 0 : i32
    %c0_i32_0 = arith.constant 0 : i32
    %c0_i32_1 = arith.constant 0 : i32
    return %arg0, %c0_i32, %arg1, %c0_i32_0 : i32, i32, i32, i32
  }
  func.func @transform_6(%arg0: i32, %arg1: i32) -> (i32, i32, i32, i32) {
    %c0_i32 = arith.constant 0 : i32
    %c0_i32_0 = arith.constant 0 : i32
    %c0_i32_1 = arith.constant 0 : i32
    return %arg0, %c0_i32, %arg1, %c0_i32_0 : i32, i32, i32, i32
  }
}

</mosaic_0001>

<llo_original>
// kernel: tpu_custom_call.1
$region0: #{tpu_custom_call.1}
  #allocation0 [shape = 'u32[]', space=smem, size = 0x4, offset = 0x4, fixed_abs, tag = 'smem constant byte address 0x4 - core index']
  #allocation1 [shape = 'u32[144,128]{1,0:T(1,128)}', space=vmem, size = 0x12000, scoped, tag = 'internal scratch']
  %s0 = inlined_call_operand.hbm [shape: f32[2,256,128], index: 0, kind: input, shape index: {}]
  %s1 = inlined_call_operand.vmem [shape: f32[1,128], index: 1, kind: input, shape index: {}]
  %s2 = inlined_call_operand.vmem [shape: f32[1,128], index: 2, kind: input, shape index: {}]
  %s3 = inlined_call_operand.hbm [shape: bf16[128,384], index: 3, kind: input, shape index: {}]
  %s4 = inlined_call_operand.vmem [shape: bf16[2,4,256,32], index: 4, kind: output, shape index: {0}]
  %s5 = inlined_call_operand.vmem [shape: bf16[2,4,256,32], index: 5, kind: output, shape index: {1}]
  %s6 = inlined_call_operand.vmem [shape: bf16[2,4,256,32], index: 6, kind: output, shape index: {2}]
  %7 = xla_tuple %s4, %s5, %s6
  %s8 = sld [smem:[#allocation0]]
  $region184: #{tpu_custom_call.1} parent=0
    _
  %s10 = ssub.s32 1, %s8
  %s11 = scalar_select 0, %s10, %s8
  $region1: #{tpu_custom_call.1} parent=0
    #allocation2 [shape = 'u8[131072]{0}', space=vmem, size = 0x20000, scoped, tag = 'input window, operand 0']
    #allocation3 [shape = 's32[2]{0}', space=sflag, size = 0x8, scoped, tag = 'scoped memory for tpu_custom_call.1']
    #allocation4 [shape = 'u8[98304]{0}', space=vmem, size = 0x18000, scoped, tag = 'input window, operand 3, single buffered']
    #allocation5 [shape = 's32[1]{0}', space=sflag, size = 0x4, scoped, tag = 'scoped memory for tpu_custom_call.1']
    #allocation6 [shape = 'u8[262144]{0}', space=vmem, size = 0x40000, scoped, tag = 'output window, operand 0']
    #allocation7 [shape = 'u8[262144]{0}', space=vmem, size = 0x40000, scoped, tag = 'output window, operand 1']
    #allocation8 [shape = 'u8[262144]{0}', space=vmem, size = 0x40000, scoped, tag = 'output window, operand 2']
    %12 = vsyncpa [#allocation3], 0
    %s13 = scalar_lea.sflag [#allocation3], 1
    %14 = vsyncpa %s13, 0
    %15 = vsyncpa [#allocation5], 0
    loop: start=0, step=1, limit=6
    $region2: #{tpu_custom_call.1} parent=1 // loop_pre_header
      _
    $region3: #{tpu_custom_call.1} parent=1 // loop_header
      %s17 = sphi 0, %s21
      %p18 = scmp.ge.s32.totalorder %s17, 6
      %s24 = sphi 0, %s36
      %s25 = sphi 0, %s32
      %s26 = sphi 0, %s24
      %s27 = sphi 0, %s25
      %s28 = sphi 0, %s26
      %s29 = sphi 0, %s27
      %s41 = sphi 0, %s43
      %s44 = sphi 0, %s41
      %s45 = sphi 0, %s44
      %s61 = sphi 0, %s45
      %s65 = sphi 0, %s65
      %s67 = sphi 0, %s65
      %s68 = sphi 0, %s67
      %s82 = sphi 0, %s68
      %s86 = sphi 0, %s86
      %s88 = sphi 0, %s86
      %s89 = sphi 0, %s88
      %s103 = sphi 0, %s89
      %s107 = sphi 0, %s107
      %s109 = sphi 0, %s107
      %s110 = sphi 0, %s109
      %s124 = sphi 0, %s110
      %s132 = sphi 0, %s134
      %s135 = sphi 0, %s132
      %s136 = sphi 0, %s135
      %s152 = sphi 0, %s136
      %s160 = sphi 0, %s162
      %s163 = sphi 0, %s160
      %s164 = sphi 0, %s163
      %s180 = sphi 0, %s164
      %s188 = sphi 0, %s190
      %s191 = sphi 0, %s188
      %s192 = sphi 0, %s191
      %s208 = sphi 0, %s192
    $region4: #{tpu_custom_call.1} parent=1 // loop_header_branch
      %20 = sbr.rel (%p18) target = $region8
    $region5: #{tpu_custom_call.1} parent=1 // loop_body
      %s22 = ssub.s32 %s17, 1
      %s23 = ssub.s32 %s17, 2
      %s30 = sadd.s32 1, %s25
      %p31 = scmp.ge.s32.totalorder %s30, 2
      %s32 = scalar_select %p31, 0, %s30
      %s33 = sadd.s32 1, %s24
      %s34 = scalar_select %p31, %s33, %s24
      %p35 = scmp.ge.s32.totalorder %s34, 2
      %s36 = scalar_select %p35, 0, %s34
      %s37 = ssub.s32 %s24, %s36
      %s38 = ssub.s32 %s25, %s32
      %s39 = sor.u32 %s37, %s38
      %p40 = scmp.eq.s32.totalorder %s39, 0
      %s42 = sadd.s32 %s41, 1
      %s43 = scalar_select %p40, %s41, %s42
      %p46 = pneg %p40
      %p47 = scmp.eq.s32.totalorder %s17, 3
      %p48 = por %p46, %p47
      %p49 = scmp.ne.s32.totalorder %s41, %s44
      %p50 = scmp.eq.s32.totalorder %s17, 0
      %p51 = por %p49, %p50
      %p52 = scmp.ne.s32.totalorder %s41, %s44
      %p53 = scmp.eq.s32.totalorder %s22, 3
      %p54 = por %p52, %p53
      %p55 = scmp.ne.s32.totalorder %s44, %s45
      %p56 = scmp.eq.s32.totalorder %s22, 0
      %p57 = por %p55, %p56
      %p58 = scmp.ne.s32.totalorder %s44, %s45
      %p59 = scmp.eq.s32.totalorder %s23, 3
      %p60 = por %p58, %p59
      %p62 = scmp.ne.s32.totalorder %s45, %s61
      %p63 = scmp.eq.s32.totalorder %s23, 0
      %p64 = por %p62, %p63
      %s66 = sadd.s32 %s65, 1
      %p69 = scmp.eq.s32.totalorder %s17, 3
      %p70 = scmp.ne.s32.totalorder %s65, %s67
      %p71 = scmp.eq.s32.totalorder %s17, 0
      %p72 = por %p70, %p71
      %p73 = scmp.ne.s32.totalorder %s65, %s67
      %p74 = scmp.eq.s32.totalorder %s22, 3
      %p75 = por %p73, %p74
      %p76 = scmp.ne.s32.totalorder %s67, %s68
      %p77 = scmp.eq.s32.totalorder %s22, 0
      %p78 = por %p76, %p77
      %p79 = scmp.ne.s32.totalorder %s67, %s68
      %p80 = scmp.eq.s32.totalorder %s23, 3
      %p81 = por %p79, %p80
      %p83 = scmp.ne.s32.totalorder %s68, %s82
      %p84 = scmp.eq.s32.totalorder %s23, 0
      %p85 = por %p83, %p84
      %s87 = sadd.s32 %s86, 1
      %p90 = scmp.eq.s32.totalorder %s17, 3
      %p91 = scmp.ne.s32.totalorder %s86, %s88
      %p92 = scmp.eq.s32.totalorder %s17, 0
      %p93 = por %p91, %p92
      %p94 = scmp.ne.s32.totalorder %s86, %s88
      %p95 = scmp.eq.s32.totalorder %s22, 3
      %p96 = por %p94, %p95
      %p97 = scmp.ne.s32.totalorder %s88, %s89
      %p98 = scmp.eq.s32.totalorder %s22, 0
      %p99 = por %p97, %p98
      %p100 = scmp.ne.s32.totalorder %s88, %s89
      %p101 = scmp.eq.s32.totalorder %s23, 3
      %p102 = por %p100, %p101
      %p104 = scmp.ne.s32.totalorder %s89, %s103
      %p105 = scmp.eq.s32.totalorder %s23, 0
      %p106 = por %p104, %p105
      %s108 = sadd.s32 %s107, 1
      %p111 = scmp.eq.s32.totalorder %s17, 3
      %p112 = scmp.ne.s32.totalorder %s107, %s109
      %p113 = scmp.eq.s32.totalorder %s17, 0
      %p114 = por %p112, %p113
      %p115 = scmp.ne.s32.totalorder %s107, %s109
      %p116 = scmp.eq.s32.totalorder %s22, 3
      %p117 = por %p115, %p116
      %p118 = scmp.ne.s32.totalorder %s109, %s110
      %p119 = scmp.eq.s32.totalorder %s22, 0
      %p120 = por %p118, %p119
      %p121 = scmp.ne.s32.totalorder %s109, %s110
      %p122 = scmp.eq.s32.totalorder %s23, 3
      %p123 = por %p121, %p122
      %p125 = scmp.ne.s32.totalorder %s110, %s124
      %p126 = scmp.eq.s32.totalorder %s23, 0
      %p127 = por %p125, %p126
      %s128 = ssub.s32 %s24, %s36
      %s129 = ssub.s32 %s25, %s32
      %s130 = sor.u32 %s128, %s129
      %p131 = scmp.eq.s32.totalorder %s130, 0
      %s133 = sadd.s32 %s132, 1
      %s134 = scalar_select %p131, %s132, %s133
      %p137 = pneg %p131
      %p138 = scmp.eq.s32.totalorder %s17, 3
      %p139 = por %p137, %p138
      %p140 = scmp.ne.s32.totalorder %s132, %s135
      %p141 = scmp.eq.s32.totalorder %s17, 0
      %p142 = por %p140, %p141
      %p143 = scmp.ne.s32.totalorder %s132, %s135
      %p144 = scmp.eq.s32.totalorder %s22, 3
      %p145 = por %p143, %p144
      %p146 = scmp.ne.s32.totalorder %s135, %s136
      %p147 = scmp.eq.s32.totalorder %s22, 0
      %p148 = por %p146, %p147
      %p149 = scmp.ne.s32.totalorder %s135, %s136
      %p150 = scmp.eq.s32.totalorder %s23, 3
      %p151 = por %p149, %p150
      %p153 = scmp.ne.s32.totalorder %s136, %s152
      %p154 = scmp.eq.s32.totalorder %s23, 0
      %p155 = por %p153, %p154
      %s156 = ssub.s32 %s24, %s36
      %s157 = ssub.s32 %s25, %s32
      %s158 = sor.u32 %s156, %s157
      %p159 = scmp.eq.s32.totalorder %s158, 0
      %s161 = sadd.s32 %s160, 1
      %s162 = scalar_select %p159, %s160, %s161
      %p165 = pneg %p159
      %p166 = scmp.eq.s32.totalorder %s17, 3
      %p167 = por %p165, %p166
      %p168 = scmp.ne.s32.totalorder %s160, %s163
      %p169 = scmp.eq.s32.totalorder %s17, 0
      %p170 = por %p168, %p169
      %p171 = scmp.ne.s32.totalorder %s160, %s163
      %p172 = scmp.eq.s32.totalorder %s22, 3
      %p173 = por %p171, %p172
      %p174 = scmp.ne.s32.totalorder %s163, %s164
      %p175 = scmp.eq.s32.totalorder %s22, 0
      %p176 = por %p174, %p175
      %p177 = scmp.ne.s32.totalorder %s163, %s164
      %p178 = scmp.eq.s32.totalorder %s23, 3
      %p179 = por %p177, %p178
      %p181 = scmp.ne.s32.totalorder %s164, %s180
      %p182 = scmp.eq.s32.totalorder %s23, 0
      %p183 = por %p181, %p182
      %s184 = ssub.s32 %s24, %s36
      %s185 = ssub.s32 %s25, %s32
      %s186 = sor.u32 %s184, %s185
      %p187 = scmp.eq.s32.totalorder %s186, 0
      %s189 = sadd.s32 %s188, 1
      %s190 = scalar_select %p187, %s188, %s189
      %p193 = pneg %p187
      %p194 = scmp.eq.s32.totalorder %s17, 3
      %p195 = por %p193, %p194
      %p196 = scmp.ne.s32.totalorder %s188, %s191
      %p197 = scmp.eq.s32.totalorder %s17, 0
      %p198 = por %p196, %p197
      %p199 = scmp.ne.s32.totalorder %s188, %s191
      %p200 = scmp.eq.s32.totalorder %s22, 3
      %p201 = por %p199, %p200
      %p202 = scmp.ne.s32.totalorder %s191, %s192
      %p203 = scmp.eq.s32.totalorder %s22, 0
      %p204 = por %p202, %p203
      %p205 = scmp.ne.s32.totalorder %s191, %s192
      %p206 = scmp.eq.s32.totalorder %s23, 3
      %p207 = por %p205, %p206
      %p209 = scmp.ne.s32.totalorder %s192, %s208
      %p210 = scmp.eq.s32.totalorder %s23, 0
      %p211 = por %p209, %p210
      %p212 = scmp.le.s32.totalorder 1, %s17
      %p213 = scmp.lt.s32.totalorder %s17, 5
      %p214 = pnand %p212, %p213
      %p215 = pneg %p214
      // Predicated region
      $region9: #{tpu_custom_call.1} parent=5 // pred_check
        _
      $region10: #{tpu_custom_call.1} parent=5 // pred_check_branch
        %217 = sbr.rel (%p214) target = $region12
      $region11: #{tpu_custom_call.1} parent=5 // pred_region
        %s218 = ssub.s32 %s17, 1
        // Predicated region
        $region13: #{tpu_custom_call.1} parent=11 // pred_check
          %p219 = pneg %p78
        $region14: #{tpu_custom_call.1} parent=11 // pred_check_branch
          %221 = sbr.rel (%p219) target = $region16
        $region15: #{tpu_custom_call.1} parent=11 // pred_region
          _
        $region16: #{tpu_custom_call.1} parent=11 // pred_fallthru
          _
        // Predicated region
        $region17: #{tpu_custom_call.1} parent=11 // pred_check
          %p222 = pneg %p99
        $region18: #{tpu_custom_call.1} parent=11 // pred_check_branch
          %224 = sbr.rel (%p222) target = $region20
        $region19: #{tpu_custom_call.1} parent=11 // pred_region
          _
        $region20: #{tpu_custom_call.1} parent=11 // pred_fallthru
          _
        // Predicated region
        $region21: #{tpu_custom_call.1} parent=11 // pred_check
          %p225 = pneg %p120
        $region22: #{tpu_custom_call.1} parent=11 // pred_check_branch
          %227 = sbr.rel (%p225) target = $region24
        $region23: #{tpu_custom_call.1} parent=11 // pred_region
          %s229 = ssub.s32 3072, 3072
          %230 = vsyncadd [#allocation5], %s229
          %s231 = sshll.u32 [#allocation4], 4
          %s232 = int_to_ptr.vmem [resolvable:$true] %s231
          %237 = dma.hbm_to_vmem [thread:$0]  %s3, 3072, %s232, [#allocation5], 192, 192, 12
        $region24: #{tpu_custom_call.1} parent=11 // pred_fallthru
          _
      $region12: #{tpu_custom_call.1} parent=5 // pred_fallthru
        _
      %p238 = scmp.lt.s32.totalorder %s17, 4
      // Predicated region
      $region25: #{tpu_custom_call.1} parent=5 // pred_check
        %p239 = pneg %p238
      $region26: #{tpu_custom_call.1} parent=5 // pred_check_branch
        %241 = sbr.rel (%p239) target = $region28
      $region27: #{tpu_custom_call.1} parent=5 // pred_region
        // Predicated region
        $region29: #{tpu_custom_call.1} parent=27 // pred_check
          %p242 = pneg %p51
        $region30: #{tpu_custom_call.1} parent=27 // pred_check_branch
          %244 = sbr.rel (%p242) target = $region32
        $region31: #{tpu_custom_call.1} parent=27 // pred_region
          %s245 = sand.u32 %s41, 1
          %s246 = scalar_lea.sflag [#allocation3], %s245
          %s247 = sand.u32 %s41, 1
          %s248 = smul.addr %s247, 128
          %s249 = scalar_lea.vmem [#allocation2], %s248
          %s250 = smul.u32 16, %s25
          %s252 = ssub.s32 2048, 2048
          %253 = vsyncadd %s246, %s252
          %s254 = smul.addr %s24, 32
          %s255 = sadd.s32 %s250, %s254
          %s256 = smul.addr %s255, 128
          %s257 = scalar_lea.hbm %s0, %s256
          %s258 = sshll.u32 %s249, 4
          %s259 = int_to_ptr.vmem [resolvable:$true] %s258
          %264 = dma.hbm_to_vmem [thread:$0]  %s257, 2048, %s259, %s246, 128, 128, 8
        $region32: #{tpu_custom_call.1} parent=27 // pred_fallthru
          _
      $region28: #{tpu_custom_call.1} parent=5 // pred_fallthru
        _
      %p265 = scmp.le.s32.totalorder 1, %s17
      %p266 = scmp.lt.s32.totalorder %s17, 5
      %p267 = pnand %p265, %p266
      %p268 = pneg %p267
      // Predicated region
      $region33: #{tpu_custom_call.1} parent=5 // pred_check
        _
      $region34: #{tpu_custom_call.1} parent=5 // pred_check_branch
        %270 = sbr.rel (%p267) target = $region36
      $region35: #{tpu_custom_call.1} parent=5 // pred_region
        %s271 = ssub.s32 %s17, 1
        %s272 = sand.u32 %s44, 1
        %s273 = scalar_lea.sflag [#allocation3], %s272
        %s274 = sand.u32 %s44, 1
        %s275 = smul.addr %s274, 128
        %s276 = scalar_lea.vmem [#allocation2], %s275
        // Predicated region
        $region37: #{tpu_custom_call.1} parent=35 // pred_check
          %p277 = pneg %p57
        $region38: #{tpu_custom_call.1} parent=35 // pred_check_branch
          %279 = sbr.rel (%p277) target = $region40
        $region39: #{tpu_custom_call.1} parent=35 // pred_region
          %280 = dma.done %s273, 2048
        $region40: #{tpu_custom_call.1} parent=35 // pred_fallthru
          _
        // Predicated region
        $region41: #{tpu_custom_call.1} parent=35 // pred_check
          %p281 = pneg %p120
        $region42: #{tpu_custom_call.1} parent=35 // pred_check_branch
          %283 = sbr.rel (%p281) target = $region44
        $region43: #{tpu_custom_call.1} parent=35 // pred_region
          %284 = dma.done [#allocation5], 3072
        $region44: #{tpu_custom_call.1} parent=35 // pred_fallthru
          _
        %s285 = sand.u32 %s44, 1
        %s286 = scalar_lea.sflag [#allocation3], %s285
        %s287 = sand.u32 %s44, 1
        %s288 = smul.addr %s287, 128
        %s289 = scalar_lea.vmem [#allocation2], %s288
        %p290 = pneg %p57
        %p291 = pneg %p54
        %p292 = pneg %p78
        %p293 = pneg %p75
        %p294 = pneg %p99
        %p295 = pneg %p96
        %p296 = pneg %p120
        %p297 = pneg %p117
        %p298 = pneg %p148
        %p299 = pneg %p145
        %s300 = sand.u32 %s135, 1
        %s301 = sand.u32 %s135, 1
        %s302 = smul.addr %s301, 256
        %s303 = scalar_lea.vmem [#allocation6], %s302
        %p304 = pneg %p176
        %p305 = pneg %p173
        %s306 = sand.u32 %s163, 1
        %s307 = sand.u32 %s163, 1
        %s308 = smul.addr %s307, 256
        %s309 = scalar_lea.vmem [#allocation7], %s308
        %p310 = pneg %p204
        %p311 = pneg %p201
        %s312 = sand.u32 %s191, 1
        %s313 = sand.u32 %s191, 1
        %s314 = smul.addr %s313, 256
        %s315 = scalar_lea.vmem [#allocation8], %s314
        %s316 = smul.u32 16, %s27
        %s317 = smul.u32 16, %s27
        %s318 = smul.u32 16, %s27
        %s319 = smul.u32 16, %s27
        %v321 = vld [vmem:[%s276] sm:$0xff]
        %v322 = vld [vmem:[%s276 + $0x8] sm:$0xff]
        %v323 = vld [vmem:[%s276 + $0x10] sm:$0xff]
        %v324 = vld [vmem:[%s276 + $0x18] sm:$0xff]
        %v325 = vld [vmem:[%s276 + $0x20] sm:$0xff]
        %v326 = vld [vmem:[%s276 + $0x28] sm:$0xff]
        %v327 = vld [vmem:[%s276 + $0x30] sm:$0xff]
        %v328 = vld [vmem:[%s276 + $0x38] sm:$0xff]
        %v329 = vld [vmem:[%s276 + $0x40] sm:$0xff]
        %v330 = vld [vmem:[%s276 + $0x48] sm:$0xff]
        %v331 = vld [vmem:[%s276 + $0x50] sm:$0xff]
        %v332 = vld [vmem:[%s276 + $0x58] sm:$0xff]
        %v333 = vld [vmem:[%s276 + $0x60] sm:$0xff]
        %v334 = vld [vmem:[%s276 + $0x68] sm:$0xff]
        %v335 = vld [vmem:[%s276 + $0x70] sm:$0xff]
        %v336 = vld [vmem:[%s276 + $0x78] sm:$0xff]
        %v337 = vld [vmem:[%s1] sm:$0x1]
        %v338 = vld [vmem:[%s2] sm:$0x1]
        %339 = vadd.xlane.f32.xlu0 %v321
        %v340 = vpop.xlane.xlu0 %339
        %341 = vadd.xlane.f32.xlu0 %v322
        %v342 = vpop.xlane.xlu0 %341
        %343 = vadd.xlane.f32.xlu0 %v323
        %v344 = vpop.xlane.xlu0 %343
        %345 = vadd.xlane.f32.xlu0 %v324
        %v346 = vpop.xlane.xlu0 %345
        %347 = vadd.xlane.f32.xlu0 %v325
        %v348 = vpop.xlane.xlu0 %347
        %349 = vadd.xlane.f32.xlu0 %v326
        %v350 = vpop.xlane.xlu0 %349
        %351 = vadd.xlane.f32.xlu0 %v327
        %v352 = vpop.xlane.xlu0 %351
        %353 = vadd.xlane.f32.xlu0 %v328
        %v354 = vpop.xlane.xlu0 %353
        %355 = vadd.xlane.f32.xlu0 %v329
        %v356 = vpop.xlane.xlu0 %355
        %357 = vadd.xlane.f32.xlu0 %v330
        %v358 = vpop.xlane.xlu0 %357
        %359 = vadd.xlane.f32.xlu0 %v331
        %v360 = vpop.xlane.xlu0 %359
        %361 = vadd.xlane.f32.xlu0 %v332
        %v362 = vpop.xlane.xlu0 %361
        %363 = vadd.xlane.f32.xlu0 %v333
        %v364 = vpop.xlane.xlu0 %363
        %365 = vadd.xlane.f32.xlu0 %v334
        %v366 = vpop.xlane.xlu0 %365
        %367 = vadd.xlane.f32.xlu0 %v335
        %v368 = vpop.xlane.xlu0 %367
        %369 = vadd.xlane.f32.xlu0 %v336
        %v370 = vpop.xlane.xlu0 %369
        %v371 = vrcp.pop 128.0
        %v372 = vmul.f32 %v340, %v371
        %v373 = vmul.f32 %v342, %v371
        %v374 = vmul.f32 %v344, %v371
        %v375 = vmul.f32 %v346, %v371
        %v376 = vmul.f32 %v348, %v371
        %v377 = vmul.f32 %v350, %v371
        %v378 = vmul.f32 %v352, %v371
        %v379 = vmul.f32 %v354, %v371
        %v380 = vmul.f32 %v356, %v371
        %v381 = vmul.f32 %v358, %v371
        %v382 = vmul.f32 %v360, %v371
        %v383 = vmul.f32 %v362, %v371
        %v384 = vmul.f32 %v364, %v371
        %v385 = vmul.f32 %v366, %v371
        %v386 = vmul.f32 %v368, %v371
        %v387 = vmul.f32 %v370, %v371
        %v388 = vsub.f32 %v321, %v372
        %v389 = vsub.f32 %v322, %v373
        %v390 = vsub.f32 %v323, %v374
        %v391 = vsub.f32 %v324, %v375
        %v392 = vsub.f32 %v325, %v376
        %v393 = vsub.f32 %v326, %v377
        %v394 = vsub.f32 %v327, %v378
        %v395 = vsub.f32 %v328, %v379
        %v396 = vsub.f32 %v329, %v380
        %v397 = vsub.f32 %v330, %v381
        %v398 = vsub.f32 %v331, %v382
        %v399 = vsub.f32 %v332, %v383
        %v400 = vsub.f32 %v333, %v384
        %v401 = vsub.f32 %v334, %v385
        %v402 = vsub.f32 %v335, %v386
        %v403 = vsub.f32 %v336, %v387
        %v404 = vmul.f32 %v388, %v388
        %v405 = vmul.f32 %v389, %v389
        %v406 = vmul.f32 %v390, %v390
        %v407 = vmul.f32 %v391, %v391
        %v408 = vmul.f32 %v392, %v392
        %v409 = vmul.f32 %v393, %v393
        %v410 = vmul.f32 %v394, %v394
        %v411 = vmul.f32 %v395, %v395
        %v412 = vmul.f32 %v396, %v396
        %v413 = vmul.f32 %v397, %v397
        %v414 = vmul.f32 %v398, %v398
        %v415 = vmul.f32 %v399, %v399
        %v416 = vmul.f32 %v400, %v400
        %v417 = vmul.f32 %v401, %v401
        %v418 = vmul.f32 %v402, %v402
        %v419 = vmul.f32 %v403, %v403
        %420 = vadd.xlane.f32.xlu0 %v404
        %v421 = vpop.xlane.xlu0 %420
        %422 = vadd.xlane.f32.xlu0 %v405
        %v423 = vpop.xlane.xlu0 %422
        %424 = vadd.xlane.f32.xlu0 %v406
        %v425 = vpop.xlane.xlu0 %424
        %426 = vadd.xlane.f32.xlu0 %v407
        %v427 = vpop.xlane.xlu0 %426
        %428 = vadd.xlane.f32.xlu0 %v408
        %v429 = vpop.xlane.xlu0 %428
        %430 = vadd.xlane.f32.xlu0 %v409
        %v431 = vpop.xlane.xlu0 %430
        %432 = vadd.xlane.f32.xlu0 %v410
        %v433 = vpop.xlane.xlu0 %432
        %434 = vadd.xlane.f32.xlu0 %v411
        %v435 = vpop.xlane.xlu0 %434
        %436 = vadd.xlane.f32.xlu0 %v412
        %v437 = vpop.xlane.xlu0 %436
        %438 = vadd.xlane.f32.xlu0 %v413
        %v439 = vpop.xlane.xlu0 %438
        %440 = vadd.xlane.f32.xlu0 %v414
        %v441 = vpop.xlane.xlu0 %440
        %442 = vadd.xlane.f32.xlu0 %v415
        %v443 = vpop.xlane.xlu0 %442
        %444 = vadd.xlane.f32.xlu0 %v416
        %v445 = vpop.xlane.xlu0 %444
        %446 = vadd.xlane.f32.xlu0 %v417
        %v447 = vpop.xlane.xlu0 %446
        %448 = vadd.xlane.f32.xlu0 %v418
        %v449 = vpop.xlane.xlu0 %448
        %450 = vadd.xlane.f32.xlu0 %v419
        %v451 = vpop.xlane.xlu0 %450
        %v452 = vmul.f32 %v421, %v371
        %v453 = vmul.f32 %v423, %v371
        %v454 = vmul.f32 %v425, %v371
        %v455 = vmul.f32 %v427, %v371
        %v456 = vmul.f32 %v429, %v371
        %v457 = vmul.f32 %v431, %v371
        %v458 = vmul.f32 %v433, %v371
        %v459 = vmul.f32 %v435, %v371
        %v460 = vmul.f32 %v437, %v371
        %v461 = vmul.f32 %v439, %v371
        %v462 = vmul.f32 %v441, %v371
        %v463 = vmul.f32 %v443, %v371
        %v464 = vmul.f32 %v445, %v371
        %v465 = vmul.f32 %v447, %v371
        %v466 = vmul.f32 %v449, %v371
        %v467 = vmul.f32 %v451, %v371
        %v468 = vadd.f32 %v452, 1e-05
        %v469 = vadd.f32 %v453, 1e-05
        %v470 = vadd.f32 %v454, 1e-05
        %v471 = vadd.f32 %v455, 1e-05
        %v472 = vadd.f32 %v456, 1e-05
        %v473 = vadd.f32 %v457, 1e-05
        %v474 = vadd.f32 %v458, 1e-05
        %v475 = vadd.f32 %v459, 1e-05
        %v476 = vadd.f32 %v460, 1e-05
        %v477 = vadd.f32 %v461, 1e-05
        %v478 = vadd.f32 %v462, 1e-05
        %v479 = vadd.f32 %v463, 1e-05
        %v480 = vadd.f32 %v464, 1e-05
        %v481 = vadd.f32 %v465, 1e-05
        %v482 = vadd.f32 %v466, 1e-05
        %v483 = vadd.f32 %v467, 1e-05
        %v484 = vrsqrt.pop %v468
        %v485 = vrsqrt.pop %v469
        %v486 = vrsqrt.pop %v470
        %v487 = vrsqrt.pop %v471
        %v488 = vrsqrt.pop %v472
        %v489 = vrsqrt.pop %v473
        %v490 = vrsqrt.pop %v474
        %v491 = vrsqrt.pop %v475
        %v492 = vrsqrt.pop %v476
        %v493 = vrsqrt.pop %v477
        %v494 = vrsqrt.pop %v478
        %v495 = vrsqrt.pop %v479
        %v496 = vrsqrt.pop %v480
        %v497 = vrsqrt.pop %v481
        %v498 = vrsqrt.pop %v482
        %v499 = vrsqrt.pop %v483
        %v500 = vmul.f32 %v388, %v484
        %v501 = vmul.f32 %v389, %v485
        %v502 = vmul.f32 %v390, %v486
        %v503 = vmul.f32 %v391, %v487
        %v504 = vmul.f32 %v392, %v488
        %v505 = vmul.f32 %v393, %v489
        %v506 = vmul.f32 %v394, %v490
        %v507 = vmul.f32 %v395, %v491
        %v508 = vmul.f32 %v396, %v492
        %v509 = vmul.f32 %v397, %v493
        %v510 = vmul.f32 %v398, %v494
        %v511 = vmul.f32 %v399, %v495
        %v512 = vmul.f32 %v400, %v496
        %v513 = vmul.f32 %v401, %v497
        %v514 = vmul.f32 %v402, %v498
        %v515 = vmul.f32 %v403, %v499
        %v517 = vlaneseq
        %v518 = vshrl.u32 %v517, 7
        %v519 = vsub.s32 0, %v518
        %v520 = vrot.slane %v337, %v519
        %v522 = vmul.f32 %v500, %v520
        %v523 = vmul.f32 %v501, %v520
        %v524 = vmul.f32 %v502, %v520
        %v525 = vmul.f32 %v503, %v520
        %v526 = vmul.f32 %v504, %v520
        %v527 = vmul.f32 %v505, %v520
        %v528 = vmul.f32 %v506, %v520
        %v529 = vmul.f32 %v507, %v520
        %v530 = vmul.f32 %v508, %v520
        %v531 = vmul.f32 %v509, %v520
        %v532 = vmul.f32 %v510, %v520
        %v533 = vmul.f32 %v511, %v520
        %v534 = vmul.f32 %v512, %v520
        %v535 = vmul.f32 %v513, %v520
        %v536 = vmul.f32 %v514, %v520
        %v537 = vmul.f32 %v515, %v520
        %v539 = vlaneseq
        %v540 = vshrl.u32 %v539, 7
        %v541 = vsub.s32 0, %v540
        %v542 = vrot.slane %v338, %v541
        %v544 = vadd.f32 %v522, %v542
        %v545 = vadd.f32 %v523, %v542
        %v546 = vadd.f32 %v524, %v542
        %v547 = vadd.f32 %v525, %v542
        %v548 = vadd.f32 %v526, %v542
        %v549 = vadd.f32 %v527, %v542
        %v550 = vadd.f32 %v528, %v542
        %v551 = vadd.f32 %v529, %v542
        %v552 = vadd.f32 %v530, %v542
        %v553 = vadd.f32 %v531, %v542
        %v554 = vadd.f32 %v532, %v542
        %v555 = vadd.f32 %v533, %v542
        %v556 = vadd.f32 %v534, %v542
        %v557 = vadd.f32 %v535, %v542
        %v558 = vadd.f32 %v536, %v542
        %v559 = vadd.f32 %v537, %v542
        %v560 = vpack.c.bf16 %v545, %v544
        %v561 = vpack.c.bf16 %v547, %v546
        %v562 = vpack.c.bf16 %v549, %v548
        %v563 = vpack.c.bf16 %v551, %v550
        %v564 = vpack.c.bf16 %v553, %v552
        %v565 = vpack.c.bf16 %v555, %v554
        %v566 = vpack.c.bf16 %v557, %v556
        %v567 = vpack.c.bf16 %v559, %v558
        %v568 = vld [vmem:[#allocation4] sm:$0xff]
        %v569 = vld [vmem:[#allocation4 + $0x8] sm:$0xf]
        %v570 = vld [vmem:[#allocation4 + $0xc] sm:$0xff]
        %v571 = vld [vmem:[#allocation4 + $0x14] sm:$0xf]
        %v572 = vld [vmem:[#allocation4 + $0x18] sm:$0xff]
        %v573 = vld [vmem:[#allocation4 + $0x20] sm:$0xf]
        %v574 = vld [vmem:[#allocation4 + $0x24] sm:$0xff]
        %v575 = vld [vmem:[#allocation4 + $0x2c] sm:$0xf]
        %v576 = vld [vmem:[#allocation4 + $0x30] sm:$0xff]
        %v577 = vld [vmem:[#allocation4 + $0x38] sm:$0xf]
        %v578 = vld [vmem:[#allocation4 + $0x3c] sm:$0xff]
        %v579 = vld [vmem:[#allocation4 + $0x44] sm:$0xf]
        %v580 = vld [vmem:[#allocation4 + $0x48] sm:$0xff]
        %v581 = vld [vmem:[#allocation4 + $0x50] sm:$0xf]
        %v582 = vld [vmem:[#allocation4 + $0x54] sm:$0xff]
        %v583 = vld [vmem:[#allocation4 + $0x5c] sm:$0xf]
        %v584 = vld [vmem:[#allocation4 + $0x60] sm:$0xff]
        %v585 = vld [vmem:[#allocation4 + $0x68] sm:$0xf]
        %v586 = vld [vmem:[#allocation4 + $0x6c] sm:$0xff]
        %v587 = vld [vmem:[#allocation4 + $0x74] sm:$0xf]
        %v588 = vld [vmem:[#allocation4 + $0x78] sm:$0xff]
        %v589 = vld [vmem:[#allocation4 + $0x80] sm:$0xf]
        %v590 = vld [vmem:[#allocation4 + $0x84] sm:$0xff]
        %v591 = vld [vmem:[#allocation4 + $0x8c] sm:$0xf]
        %v592 = vld [vmem:[#allocation4 + $0x90] sm:$0xff]
        %v593 = vld [vmem:[#allocation4 + $0x98] sm:$0xf]
        %v594 = vld [vmem:[#allocation4 + $0x9c] sm:$0xff]
        %v595 = vld [vmem:[#allocation4 + $0xa4] sm:$0xf]
        %v596 = vld [vmem:[#allocation4 + $0xa8] sm:$0xff]
        %v597 = vld [vmem:[#allocation4 + $0xb0] sm:$0xf]
        %v598 = vld [vmem:[#allocation4 + $0xb4] sm:$0xff]
        %v599 = vld [vmem:[#allocation4 + $0xbc] sm:$0xf]
        %v632 = vunpack.c.l.b16 %v568
        %v633 = vunpack.c.h.b16 %v568
        %v634 = vunpack.c.l.b16 %v569
        %v635 = vunpack.c.l.b16 %v570
        %v636 = vunpack.c.h.b16 %v570
        %v637 = vunpack.c.l.b16 %v571
        %v638 = vunpack.c.l.b16 %v572
        %v639 = vunpack.c.h.b16 %v572
        %v640 = vunpack.c.l.b16 %v573
        %v641 = vunpack.c.l.b16 %v574
        %v642 = vunpack.c.h.b16 %v574
        %v643 = vunpack.c.l.b16 %v575
        %v644 = vunpack.c.l.b16 %v576
        %v645 = vunpack.c.h.b16 %v576
        %v646 = vunpack.c.l.b16 %v577
        %v647 = vunpack.c.l.b16 %v578
        %v648 = vunpack.c.h.b16 %v578
        %v649 = vunpack.c.l.b16 %v579
        %v650 = vunpack.c.l.b16 %v580
        %v651 = vunpack.c.h.b16 %v580
        %v652 = vunpack.c.l.b16 %v581
        %v653 = vunpack.c.l.b16 %v582
        %v654 = vunpack.c.h.b16 %v582
        %v655 = vunpack.c.l.b16 %v583
        %v656 = vunpack.c.l.b16 %v584
        %v657 = vunpack.c.h.b16 %v584
        %v658 = vunpack.c.l.b16 %v585
        %v659 = vunpack.c.l.b16 %v586
        %v660 = vunpack.c.h.b16 %v586
        %v661 = vunpack.c.l.b16 %v587
        %v662 = vunpack.c.l.b16 %v588
        %v663 = vunpack.c.h.b16 %v588
        %v664 = vunpack.c.l.b16 %v589
        %v665 = vunpack.c.l.b16 %v590
        %v666 = vunpack.c.h.b16 %v590
        %v667 = vunpack.c.l.b16 %v591
        %v668 = vunpack.c.l.b16 %v592
        %v669 = vunpack.c.h.b16 %v592
        %v670 = vunpack.c.l.b16 %v593
        %v671 = vunpack.c.l.b16 %v594
        %v672 = vunpack.c.h.b16 %v594
        %v673 = vunpack.c.l.b16 %v595
        %v674 = vunpack.c.l.b16 %v596
        %v675 = vunpack.c.h.b16 %v596
        %v676 = vunpack.c.l.b16 %v597
        %v677 = vunpack.c.l.b16 %v598
        %v678 = vunpack.c.h.b16 %v598
        %v679 = vunpack.c.l.b16 %v599
        %v680 = vpack.c.b16 %v635, %v632
        %v681 = vpack.c.b16 %v636, %v633
        %v682 = vpack.c.b16 %v637, %v634
        %v683 = vpack.c.b16 %v641, %v638
        %v684 = vpack.c.b16 %v642, %v639
        %v685 = vpack.c.b16 %v643, %v640
        %v686 = vpack.c.b16 %v647, %v644
        %v687 = vpack.c.b16 %v648, %v645
        %v688 = vpack.c.b16 %v649, %v646
        %v689 = vpack.c.b16 %v653, %v650
        %v690 = vpack.c.b16 %v654, %v651
        %v691 = vpack.c.b16 %v655, %v652
        %v692 = vpack.c.b16 %v659, %v656
        %v693 = vpack.c.b16 %v660, %v657
        %v694 = vpack.c.b16 %v661, %v658
        %v695 = vpack.c.b16 %v665, %v662
        %v696 = vpack.c.b16 %v666, %v663
        %v697 = vpack.c.b16 %v667, %v664
        %v698 = vpack.c.b16 %v671, %v668
        %v699 = vpack.c.b16 %v672, %v669
        %v700 = vpack.c.b16 %v673, %v670
        %v701 = vpack.c.b16 %v677, %v674
        %v702 = vpack.c.b16 %v678, %v675
        %v703 = vpack.c.b16 %v679, %v676
        %728 = vmatprep.subr.bf16.mxu0 %v681
        %729 = vmatpush1.bf16.msra.mxu0 %v680
        %730 = vmatprep.subr.bf16.mxu0 %v684
        %731 = vmatpush1.bf16.msra.mxu0 %v683
        %732 = vmatprep.subr.bf16.mxu0 %v687
        %733 = vmatpush1.bf16.msra.mxu0 %v686
        %734 = vmatprep.subr.bf16.mxu0 %v690
        %735 = vmatpush1.bf16.msra.mxu0 %v689
        %736 = vmatprep.subr.bf16.mxu0 %v693
        %737 = vmatpush1.bf16.msra.mxu0 %v692
        %738 = vmatprep.subr.bf16.mxu0 %v696
        %739 = vmatpush1.bf16.msra.mxu0 %v695
        %740 = vmatprep.subr.bf16.mxu0 %v699
        %741 = vmatpush1.bf16.msra.mxu0 %v698
        %742 = vmatprep.subr.bf16.mxu0 %v702
        %743 = vmatpush1.bf16.msra.mxu0 %v701
        %744 = vmatprep.subr.bf16.mxu0 0
        %745 = vmatpush1.bf16.msra.mxu0 0
        %746 = vmatprep.subr.bf16.mxu0 0
        %747 = vmatpush1.bf16.msra.mxu0 0
        %748 = vmatprep.subr.bf16.mxu0 0
        %749 = vmatpush1.bf16.msra.mxu0 0
        %750 = vmatprep.subr.bf16.mxu0 0
        %751 = vmatpush1.bf16.msra.mxu0 0
        %752 = vmatprep.subr.bf16.mxu0 0
        %753 = vmatpush1.bf16.msra.mxu0 0
        %754 = vmatprep.subr.bf16.mxu0 0
        %755 = vmatpush1.bf16.msra.mxu0 0
        %756 = vmatprep.subr.bf16.mxu0 0
        %757 = vmatpush1.bf16.msra.mxu0 0
        %758 = vmatprep.subr.bf16.mxu0 0
        %759 = vmatpush1.bf16.msra.mxu0 0
        %760 = vmatprep.mubr.bf16.mxu0 0
        %761 = vmatmul.mubr.bf16.gmra.mrb[0].mxu0 %v560
        %v762 = vpop.f32.mrb[0].mxu0
        %v763 = vadd.f32 0.0, %v762
        %v764 = vpop.f32.mrb[0].mxu0
        %v765 = vadd.f32 0.0, %v764
        %v766 = vpop.f32.mrb[0].mxu0
        %v767 = vadd.f32 0.0, %v766
        %v768 = vpop.f32.mrb[0].mxu0
        %v769 = vadd.f32 0.0, %v768
        %770 = vmatprep.mubr.bf16.mxu0 0
        %771 = vmatmul.mubr.bf16.gmra.mrb[0].mxu0 %v561
        %v772 = vpop.f32.mrb[0].mxu0
        %v773 = vadd.f32 0.0, %v772
        %v774 = vpop.f32.mrb[0].mxu0
        %v775 = vadd.f32 0.0, %v774
        %v776 = vpop.f32.mrb[0].mxu0
        %v777 = vadd.f32 0.0, %v776
        %v778 = vpop.f32.mrb[0].mxu0
        %v779 = vadd.f32 0.0, %v778
        %780 = vmatprep.mubr.bf16.mxu0 0
        %781 = vmatmul.mubr.bf16.gmra.mrb[0].mxu0 %v562
        %v782 = vpop.f32.mrb[0].mxu0
        %v783 = vadd.f32 0.0, %v782
        %v784 = vpop.f32.mrb[0].mxu0
        %v785 = vadd.f32 0.0, %v784
        %v786 = vpop.f32.mrb[0].mxu0
        %v787 = vadd.f32 0.0, %v786
        %v788 = vpop.f32.mrb[0].mxu0
        %v789 = vadd.f32 0.0, %v788
        %790 = vmatprep.mubr.bf16.mxu0 0
        %791 = vmatmul.mubr.bf16.gmra.mrb[0].mxu0 %v563
        %v792 = vpop.f32.mrb[0].mxu0
        %v793 = vadd.f32 0.0, %v792
        %v794 = vpop.f32.mrb[0].mxu0
        %v795 = vadd.f32 0.0, %v794
        %v796 = vpop.f32.mrb[0].mxu0
        %v797 = vadd.f32 0.0, %v796
        %v798 = vpop.f32.mrb[0].mxu0
        %v799 = vadd.f32 0.0, %v798
        %800 = vmatprep.mubr.bf16.mxu0 0
        %801 = vmatmul.mubr.bf16.gmra.mrb[0].mxu0 %v564
        %v802 = vpop.f32.mrb[0].mxu0
        %v803 = vadd.f32 0.0, %v802
        %v804 = vpop.f32.mrb[0].mxu0
        %v805 = vadd.f32 0.0, %v804
        %v806 = vpop.f32.mrb[0].mxu0
        %v807 = vadd.f32 0.0, %v806
        %v808 = vpop.f32.mrb[0].mxu0
        %v809 = vadd.f32 0.0, %v808
        %810 = vmatprep.mubr.bf16.mxu0 0
        %811 = vmatmul.mubr.bf16.gmra.mrb[0].mxu0 %v565
        %v812 = vpop.f32.mrb[0].mxu0
        %v813 = vadd.f32 0.0, %v812
        %v814 = vpop.f32.mrb[0].mxu0
        %v815 = vadd.f32 0.0, %v814
        %v816 = vpop.f32.mrb[0].mxu0
        %v817 = vadd.f32 0.0, %v816
        %v818 = vpop.f32.mrb[0].mxu0
        %v819 = vadd.f32 0.0, %v818
        %820 = vmatprep.mubr.bf16.mxu0 0
        %821 = vmatmul.mubr.bf16.gmra.mrb[0].mxu0 %v566
        %v822 = vpop.f32.mrb[0].mxu0
        %v823 = vadd.f32 0.0, %v822
        %v824 = vpop.f32.mrb[0].mxu0
        %v825 = vadd.f32 0.0, %v824
        %v826 = vpop.f32.mrb[0].mxu0
        %v827 = vadd.f32 0.0, %v826
        %v828 = vpop.f32.mrb[0].mxu0
        %v829 = vadd.f32 0.0, %v828
        %830 = vmatprep.mubr.bf16.mxu0 0
        %831 = vmatmul.mubr.bf16.gmra.mrb[0].mxu0 %v567
        %v832 = vpop.f32.mrb[0].mxu0
        %v833 = vadd.f32 0.0, %v832
        %v834 = vpop.f32.mrb[0].mxu0
        %v835 = vadd.f32 0.0, %v834
        %v836 = vpop.f32.mrb[0].mxu0
        %v837 = vadd.f32 0.0, %v836
        %v838 = vpop.f32.mrb[0].mxu0
        %v839 = vadd.f32 0.0, %v838
        %840 = vdwg.mxu0
        %841 = vmatprep.subr.bf16.mxu0 0
        %842 = vmatpush1.bf16.msra.mxu0 %v682
        %843 = vmatprep.subr.bf16.mxu0 0
        %844 = vmatpush1.bf16.msra.mxu0 %v685
        %845 = vmatprep.subr.bf16.mxu0 0
        %846 = vmatpush1.bf16.msra.mxu0 %v688
        %847 = vmatprep.subr.bf16.mxu0 0
        %848 = vmatpush1.bf16.msra.mxu0 %v691
        %849 = vmatprep.subr.bf16.mxu0 0
        %850 = vmatpush1.bf16.msra.mxu0 %v694
        %851 = vmatprep.subr.bf16.mxu0 0
        %852 = vmatpush1.bf16.msra.mxu0 %v697
        %853 = vmatprep.subr.bf16.mxu0 0
        %854 = vmatpush1.bf16.msra.mxu0 %v700
        %855 = vmatprep.subr.bf16.mxu0 0
        %856 = vmatpush1.bf16.msra.mxu0 %v703
        %857 = vmatprep.subr.bf16.mxu0 0
        %858 = vmatpush1.bf16.msra.mxu0 0
        %859 = vmatprep.subr.bf16.mxu0 0
        %860 = vmatpush1.bf16.msra.mxu0 0
        %861 = vmatprep.subr.bf16.mxu0 0
        %862 = vmatpush1.bf16.msra.mxu0 0
        %863 = vmatprep.subr.bf16.mxu0 0
        %864 = vmatpush1.bf16.msra.mxu0 0
        %865 = vmatprep.subr.bf16.mxu0 0
        %866 = vmatpush1.bf16.msra.mxu0 0
        %867 = vmatprep.subr.bf16.mxu0 0
        %868 = vmatpush1.bf16.msra.mxu0 0
        %869 = vmatprep.subr.bf16.mxu0 0
        %870 = vmatpush1.bf16.msra.mxu0 0
        %871 = vmatprep.subr.bf16.mxu0 0
        %872 = vmatpush1.bf16.msra.mxu0 0
        %873 = vmatprep.mubr.bf16.mxu0 0
        %874 = vmatmul.mubr.bf16.gmra.mrb[0].mxu0 %v560
        %v875 = vpop.f32.mrb[0].mxu0
        %v876 = vadd.f32 0.0, %v875
        %v877 = vpop.f32.mrb[0].mxu0
        %v878 = vpop.f32.mrb[0].mxu0
        %v879 = vadd.f32 0.0, %v878
        %v880 = vpop.f32.mrb[0].mxu0
        %881 = vmatprep.mubr.bf16.mxu0 0
        %882 = vmatmul.mubr.bf16.gmra.mrb[0].mxu0 %v561
        %v883 = vpop.f32.mrb[0].mxu0
        %v884 = vadd.f32 0.0, %v883
        %v885 = vpop.f32.mrb[0].mxu0
        %v886 = vpop.f32.mrb[0].mxu0
        %v887 = vadd.f32 0.0, %v886
        %v888 = vpop.f32.mrb[0].mxu0
        %889 = vmatprep.mubr.bf16.mxu0 0
        %890 = vmatmul.mubr.bf16.gmra.mrb[0].mxu0 %v562
        %v891 = vpop.f32.mrb[0].mxu0
        %v892 = vadd.f32 0.0, %v891
        %v893 = vpop.f32.mrb[0].mxu0
        %v894 = vpop.f32.mrb[0].mxu0
        %v895 = vadd.f32 0.0, %v894
        %v896 = vpop.f32.mrb[0].mxu0
        %897 = vmatprep.mubr.bf16.mxu0 0
        %898 = vmatmul.mubr.bf16.gmra.mrb[0].mxu0 %v563
        %v899 = vpop.f32.mrb[0].mxu0
        %v900 = vadd.f32 0.0, %v899
        %v901 = vpop.f32.mrb[0].mxu0
        %v902 = vpop.f32.mrb[0].mxu0
        %v903 = vadd.f32 0.0, %v902
        %v904 = vpop.f32.mrb[0].mxu0
        %905 = vmatprep.mubr.bf16.mxu0 0
        %906 = vmatmul.mubr.bf16.gmra.mrb[0].mxu0 %v564
        %v907 = vpop.f32.mrb[0].mxu0
        %v908 = vadd.f32 0.0, %v907
        %v909 = vpop.f32.mrb[0].mxu0
        %v910 = vpop.f32.mrb[0].mxu0
        %v911 = vadd.f32 0.0, %v910
        %v912 = vpop.f32.mrb[0].mxu0
        %913 = vmatprep.mubr.bf16.mxu0 0
        %914 = vmatmul.mubr.bf16.gmra.mrb[0].mxu0 %v565
        %v915 = vpop.f32.mrb[0].mxu0
        %v916 = vadd.f32 0.0, %v915
        %v917 = vpop.f32.mrb[0].mxu0
        %v918 = vpop.f32.mrb[0].mxu0
        %v919 = vadd.f32 0.0, %v918
        %v920 = vpop.f32.mrb[0].mxu0
        %921 = vmatprep.mubr.bf16.mxu0 0
        %922 = vmatmul.mubr.bf16.gmra.mrb[0].mxu0 %v566
        %v923 = vpop.f32.mrb[0].mxu0
        %v924 = vadd.f32 0.0, %v923
        %v925 = vpop.f32.mrb[0].mxu0
        %v926 = vpop.f32.mrb[0].mxu0
        %v927 = vadd.f32 0.0, %v926
        %v928 = vpop.f32.mrb[0].mxu0
        %929 = vmatprep.mubr.bf16.mxu0 0
        %930 = vmatmul.mubr.bf16.gmra.mrb[0].mxu0 %v567
        %v931 = vpop.f32.mrb[0].mxu0
        %v932 = vadd.f32 0.0, %v931
        %v933 = vpop.f32.mrb[0].mxu0
        %v934 = vpop.f32.mrb[0].mxu0
        %v935 = vadd.f32 0.0, %v934
        %v936 = vpop.f32.mrb[0].mxu0
        %937 = vdwg.mxu0
        %v938 = vmul.f32 %v763, 0.17677669
        %v939 = vmul.f32 %v767, 0.17677669
        %v940 = vmul.f32 %v773, 0.17677669
        %v941 = vmul.f32 %v777, 0.17677669
        %v942 = vmul.f32 %v783, 0.17677669
        %v943 = vmul.f32 %v787, 0.17677669
        %v944 = vmul.f32 %v793, 0.17677669
        %v945 = vmul.f32 %v797, 0.17677669
        %v946 = vmul.f32 %v803, 0.17677669
        %v947 = vmul.f32 %v807, 0.17677669
        %v948 = vmul.f32 %v813, 0.17677669
        %v949 = vmul.f32 %v817, 0.17677669
        %v950 = vmul.f32 %v823, 0.17677669
        %v951 = vmul.f32 %v827, 0.17677669
        %v952 = vmul.f32 %v833, 0.17677669
        %v953 = vmul.f32 %v837, 0.17677669
        %v954 = vpack.c.bf16 %v939, %v938
        %v955 = vpack.c.bf16 %v941, %v940
        %v956 = vpack.c.bf16 %v943, %v942
        %v957 = vpack.c.bf16 %v945, %v944
        %v958 = vpack.c.bf16 %v947, %v946
        %v959 = vpack.c.bf16 %v949, %v948
        %v960 = vpack.c.bf16 %v951, %v950
        %v961 = vpack.c.bf16 %v953, %v952
        %v970 = vunpack.c.l.b16 %v954
        %v971 = vunpack.c.h.b16 %v954
        %v972 = vunpack.c.l.b16 %v955
        %v973 = vunpack.c.h.b16 %v955
        %v974 = vunpack.c.l.b16 %v956
        %v975 = vunpack.c.h.b16 %v956
        %v976 = vunpack.c.l.b16 %v957
        %v977 = vunpack.c.h.b16 %v957
        %v978 = vunpack.c.l.b16 %v958
        %v979 = vunpack.c.h.b16 %v958
        %v980 = vunpack.c.l.b16 %v959
        %v981 = vunpack.c.h.b16 %v959
        %v982 = vunpack.c.l.b16 %v960
        %v983 = vunpack.c.h.b16 %v960
        %v984 = vunpack.c.l.b16 %v961
        %v985 = vunpack.c.h.b16 %v961
        %v986 = vpack.c.b16 %v970, %v970
        %v987 = vpack.c.b16 %v971, %v971
        %v988 = vpack.c.b16 %v972, %v972
        %v989 = vpack.c.b16 %v973, %v973
        %v990 = vpack.c.b16 %v974, %v974
        %v991 = vpack.c.b16 %v975, %v975
        %v992 = vpack.c.b16 %v976, %v976
        %v993 = vpack.c.b16 %v977, %v977
        %v994 = vpack.c.b16 %v978, %v978
        %v995 = vpack.c.b16 %v979, %v979
        %v996 = vpack.c.b16 %v980, %v980
        %v997 = vpack.c.b16 %v981, %v981
        %v998 = vpack.c.b16 %v982, %v982
        %v999 = vpack.c.b16 %v983, %v983
        %v1000 = vpack.c.b16 %v984, %v984
        %v1001 = vpack.c.b16 %v985, %v985
        %vm1018 = vcmask 257024
        %1019 = vst.msk [vmem:[%s303] sm:$0xf] %vm1018, %v986
        %1020 = vst.msk [vmem:[%s303 + $0x4] sm:$0xf] %vm1018, %v987
        %1021 = vst.msk [vmem:[%s303 + $0x8] sm:$0xf] %vm1018, %v988
        %1022 = vst.msk [vmem:[%s303 + $0xc] sm:$0xf] %vm1018, %v989
        %1023 = vst.msk [vmem:[%s303 + $0x10] sm:$0xf] %vm1018, %v990
        %1024 = vst.msk [vmem:[%s303 + $0x14] sm:$0xf] %vm1018, %v991
        %1025 = vst.msk [vmem:[%s303 + $0x18] sm:$0xf] %vm1018, %v992
        %1026 = vst.msk [vmem:[%s303 + $0x1c] sm:$0xf] %vm1018, %v993
        %1027 = vst.msk [vmem:[%s303 + $0x20] sm:$0xf] %vm1018, %v994
        %1028 = vst.msk [vmem:[%s303 + $0x24] sm:$0xf] %vm1018, %v995
        %1029 = vst.msk [vmem:[%s303 + $0x28] sm:$0xf] %vm1018, %v996
        %1030 = vst.msk [vmem:[%s303 + $0x2c] sm:$0xf] %vm1018, %v997
        %1031 = vst.msk [vmem:[%s303 + $0x30] sm:$0xf] %vm1018, %v998
        %1032 = vst.msk [vmem:[%s303 + $0x34] sm:$0xf] %vm1018, %v999
        %1033 = vst.msk [vmem:[%s303 + $0x38] sm:$0xf] %vm1018, %v1000
        %1034 = vst.msk [vmem:[%s303 + $0x3c] sm:$0xf] %vm1018, %v1001
        %v1035 = vpack.c.bf16 %v769, %v765
        %v1036 = vpack.c.bf16 %v779, %v775
        %v1037 = vpack.c.bf16 %v789, %v785
        %v1038 = vpack.c.bf16 %v799, %v795
        %v1039 = vpack.c.bf16 %v809, %v805
        %v1040 = vpack.c.bf16 %v819, %v815
        %v1041 = vpack.c.bf16 %v829, %v825
        %v1042 = vpack.c.bf16 %v839, %v835
        %v1051 = vunpack.c.l.b16 %v1035
        %v1052 = vunpack.c.h.b16 %v1035
        %v1053 = vunpack.c.l.b16 %v1036
        %v1054 = vunpack.c.h.b16 %v1036
        %v1055 = vunpack.c.l.b16 %v1037
        %v1056 = vunpack.c.h.b16 %v1037
        %v1057 = vunpack.c.l.b16 %v1038
        %v1058 = vunpack.c.h.b16 %v1038
        %v1059 = vunpack.c.l.b16 %v1039
        %v1060 = vunpack.c.h.b16 %v1039
        %v1061 = vunpack.c.l.b16 %v1040
        %v1062 = vunpack.c.h.b16 %v1040
        %v1063 = vunpack.c.l.b16 %v1041
        %v1064 = vunpack.c.h.b16 %v1041
        %v1065 = vunpack.c.l.b16 %v1042
        %v1066 = vunpack.c.h.b16 %v1042
        %v1067 = vpack.c.b16 %v1051, %v1051
        %v1068 = vpack.c.b16 %v1052, %v1052
        %v1069 = vpack.c.b16 %v1053, %v1053
        %v1070 = vpack.c.b16 %v1054, %v1054
        %v1071 = vpack.c.b16 %v1055, %v1055
        %v1072 = vpack.c.b16 %v1056, %v1056
        %v1073 = vpack.c.b16 %v1057, %v1057
        %v1074 = vpack.c.b16 %v1058, %v1058
        %v1075 = vpack.c.b16 %v1059, %v1059
        %v1076 = vpack.c.b16 %v1060, %v1060
        %v1077 = vpack.c.b16 %v1061, %v1061
        %v1078 = vpack.c.b16 %v1062, %v1062
        %v1079 = vpack.c.b16 %v1063, %v1063
        %v1080 = vpack.c.b16 %v1064, %v1064
        %v1081 = vpack.c.b16 %v1065, %v1065
        %v1082 = vpack.c.b16 %v1066, %v1066
        %1099 = vst.msk [vmem:[%s309] sm:$0xf] %vm1018, %v1067
        %1100 = vst.msk [vmem:[%s309 + $0x4] sm:$0xf] %vm1018, %v1068
        %1101 = vst.msk [vmem:[%s309 + $0x8] sm:$0xf] %vm1018, %v1069
        %1102 = vst.msk [vmem:[%s309 + $0xc] sm:$0xf] %vm1018, %v1070
        %1103 = vst.msk [vmem:[%s309 + $0x10] sm:$0xf] %vm1018, %v1071
        %1104 = vst.msk [vmem:[%s309 + $0x14] sm:$0xf] %vm1018, %v1072
        %1105 = vst.msk [vmem:[%s309 + $0x18] sm:$0xf] %vm1018, %v1073
        %1106 = vst.msk [vmem:[%s309 + $0x1c] sm:$0xf] %vm1018, %v1074
        %1107 = vst.msk [vmem:[%s309 + $0x20] sm:$0xf] %vm1018, %v1075
        %1108 = vst.msk [vmem:[%s309 + $0x24] sm:$0xf] %vm1018, %v1076
        %1109 = vst.msk [vmem:[%s309 + $0x28] sm:$0xf] %vm1018, %v1077
        %1110 = vst.msk [vmem:[%s309 + $0x2c] sm:$0xf] %vm1018, %v1078
        %1111 = vst.msk [vmem:[%s309 + $0x30] sm:$0xf] %vm1018, %v1079
        %1112 = vst.msk [vmem:[%s309 + $0x34] sm:$0xf] %vm1018, %v1080
        %1113 = vst.msk [vmem:[%s309 + $0x38] sm:$0xf] %vm1018, %v1081
        %1114 = vst.msk [vmem:[%s309 + $0x3c] sm:$0xf] %vm1018, %v1082
        %v1115 = vpack.c.bf16 %v879, %v876
        %v1116 = vpack.c.bf16 %v887, %v884
        %v1117 = vpack.c.bf16 %v895, %v892
        %v1118 = vpack.c.bf16 %v903, %v900
        %v1119 = vpack.c.bf16 %v911, %v908
        %v1120 = vpack.c.bf16 %v919, %v916
        %v1121 = vpack.c.bf16 %v927, %v924
        %v1122 = vpack.c.bf16 %v935, %v932
        %v1131 = vunpack.c.l.b16 %v1115
        %v1132 = vunpack.c.h.b16 %v1115
        %v1133 = vunpack.c.l.b16 %v1116
        %v1134 = vunpack.c.h.b16 %v1116
        %v1135 = vunpack.c.l.b16 %v1117
        %v1136 = vunpack.c.h.b16 %v1117
        %v1137 = vunpack.c.l.b16 %v1118
        %v1138 = vunpack.c.h.b16 %v1118
        %v1139 = vunpack.c.l.b16 %v1119
        %v1140 = vunpack.c.h.b16 %v1119
        %v1141 = vunpack.c.l.b16 %v1120
        %v1142 = vunpack.c.h.b16 %v1120
        %v1143 = vunpack.c.l.b16 %v1121
        %v1144 = vunpack.c.h.b16 %v1121
        %v1145 = vunpack.c.l.b16 %v1122
        %v1146 = vunpack.c.h.b16 %v1122
        %v1147 = vpack.c.b16 %v1131, %v1131
        %v1148 = vpack.c.b16 %v1132, %v1132
        %v1149 = vpack.c.b16 %v1133, %v1133
        %v1150 = vpack.c.b16 %v1134, %v1134
        %v1151 = vpack.c.b16 %v1135, %v1135
        %v1152 = vpack.c.b16 %v1136, %v1136
        %v1153 = vpack.c.b16 %v1137, %v1137
        %v1154 = vpack.c.b16 %v1138, %v1138
        %v1155 = vpack.c.b16 %v1139, %v1139
        %v1156 = vpack.c.b16 %v1140, %v1140
        %v1157 = vpack.c.b16 %v1141, %v1141
        %v1158 = vpack.c.b16 %v1142, %v1142
        %v1159 = vpack.c.b16 %v1143, %v1143
        %v1160 = vpack.c.b16 %v1144, %v1144
        %v1161 = vpack.c.b16 %v1145, %v1145
        %v1162 = vpack.c.b16 %v1146, %v1146
        %1179 = vst.msk [vmem:[%s315] sm:$0xf] %vm1018, %v1147
        %1180 = vst.msk [vmem:[%s315 + $0x4] sm:$0xf] %vm1018, %v1148
        %1181 = vst.msk [vmem:[%s315 + $0x8] sm:$0xf] %vm1018, %v1149
        %1182 = vst.msk [vmem:[%s315 + $0xc] sm:$0xf] %vm1018, %v1150
        %1183 = vst.msk [vmem:[%s315 + $0x10] sm:$0xf] %vm1018, %v1151
        %1184 = vst.msk [vmem:[%s315 + $0x14] sm:$0xf] %vm1018, %v1152
        %1185 = vst.msk [vmem:[%s315 + $0x18] sm:$0xf] %vm1018, %v1153
        %1186 = vst.msk [vmem:[%s315 + $0x1c] sm:$0xf] %vm1018, %v1154
        %1187 = vst.msk [vmem:[%s315 + $0x20] sm:$0xf] %vm1018, %v1155
        %1188 = vst.msk [vmem:[%s315 + $0x24] sm:$0xf] %vm1018, %v1156
        %1189 = vst.msk [vmem:[%s315 + $0x28] sm:$0xf] %vm1018, %v1157
        %1190 = vst.msk [vmem:[%s315 + $0x2c] sm:$0xf] %vm1018, %v1158
        %1191 = vst.msk [vmem:[%s315 + $0x30] sm:$0xf] %vm1018, %v1159
        %1192 = vst.msk [vmem:[%s315 + $0x34] sm:$0xf] %vm1018, %v1160
        %1193 = vst.msk [vmem:[%s315 + $0x38] sm:$0xf] %vm1018, %v1161
        %1194 = vst.msk [vmem:[%s315 + $0x3c] sm:$0xf] %vm1018, %v1162
        %1195 = vrot.lane.b32.xlu0 %v986, 96
        %v1196 = vpop.permute.xlu0 %1195
        %1197 = vrot.lane.b32.xlu0 %v987, 96
        %v1198 = vpop.permute.xlu0 %1197
        %1199 = vrot.lane.b32.xlu0 %v988, 96
        %v1200 = vpop.permute.xlu0 %1199
        %1201 = vrot.lane.b32.xlu0 %v989, 96
        %v1202 = vpop.permute.xlu0 %1201
        %1203 = vrot.lane.b32.xlu0 %v990, 96
        %v1204 = vpop.permute.xlu0 %1203
        %1205 = vrot.lane.b32.xlu0 %v991, 96
        %v1206 = vpop.permute.xlu0 %1205
        %1207 = vrot.lane.b32.xlu0 %v992, 96
        %v1208 = vpop.permute.xlu0 %1207
        %1209 = vrot.lane.b32.xlu0 %v993, 96
        %v1210 = vpop.permute.xlu0 %1209
        %1211 = vrot.lane.b32.xlu0 %v994, 96
        %v1212 = vpop.permute.xlu0 %1211
        %1213 = vrot.lane.b32.xlu0 %v995, 96
        %v1214 = vpop.permute.xlu0 %1213
        %1215 = vrot.lane.b32.xlu0 %v996, 96
        %v1216 = vpop.permute.xlu0 %1215
        %1217 = vrot.lane.b32.xlu0 %v997, 96
        %v1218 = vpop.permute.xlu0 %1217
        %1219 = vrot.lane.b32.xlu0 %v998, 96
        %v1220 = vpop.permute.xlu0 %1219
        %1221 = vrot.lane.b32.xlu0 %v999, 96
        %v1222 = vpop.permute.xlu0 %1221
        %1223 = vrot.lane.b32.xlu0 %v1000, 96
        %v1224 = vpop.permute.xlu0 %1223
        %1225 = vrot.lane.b32.xlu0 %v1001, 96
        %v1226 = vpop.permute.xlu0 %1225
        %s1243 = scalar_lea.vmem %s303, 64 [#allocation6]
        %1244 = vst.msk [vmem:[%s1243] sm:$0xf] %vm1018, %v1196
        %1245 = vst.msk [vmem:[%s1243 + $0x4] sm:$0xf] %vm1018, %v1198
        %1246 = vst.msk [vmem:[%s1243 + $0x8] sm:$0xf] %vm1018, %v1200
        %1247 = vst.msk [vmem:[%s1243 + $0xc] sm:$0xf] %vm1018, %v1202
        %1248 = vst.msk [vmem:[%s1243 + $0x10] sm:$0xf] %vm1018, %v1204
        %1249 = vst.msk [vmem:[%s1243 + $0x14] sm:$0xf] %vm1018, %v1206
        %1250 = vst.msk [vmem:[%s1243 + $0x18] sm:$0xf] %vm1018, %v1208
        %1251 = vst.msk [vmem:[%s1243 + $0x1c] sm:$0xf] %vm1018, %v1210
        %1252 = vst.msk [vmem:[%s1243 + $0x20] sm:$0xf] %vm1018, %v1212
        %1253 = vst.msk [vmem:[%s1243 + $0x24] sm:$0xf] %vm1018, %v1214
        %1254 = vst.msk [vmem:[%s1243 + $0x28] sm:$0xf] %vm1018, %v1216
        %1255 = vst.msk [vmem:[%s1243 + $0x2c] sm:$0xf] %vm1018, %v1218
        %1256 = vst.msk [vmem:[%s1243 + $0x30] sm:$0xf] %vm1018, %v1220
        %1257 = vst.msk [vmem:[%s1243 + $0x34] sm:$0xf] %vm1018, %v1222
        %1258 = vst.msk [vmem:[%s1243 + $0x38] sm:$0xf] %vm1018, %v1224
        %1259 = vst.msk [vmem:[%s1243 + $0x3c] sm:$0xf] %vm1018, %v1226
        %1260 = vrot.lane.b32.xlu0 %v1067, 96
        %v1261 = vpop.permute.xlu0 %1260
        %1262 = vrot.lane.b32.xlu0 %v1068, 96
        %v1263 = vpop.permute.xlu0 %1262
        %1264 = vrot.lane.b32.xlu0 %v1069, 96
        %v1265 = vpop.permute.xlu0 %1264
        %1266 = vrot.lane.b32.xlu0 %v1070, 96
        %v1267 = vpop.permute.xlu0 %1266
        %1268 = vrot.lane.b32.xlu0 %v1071, 96
        %v1269 = vpop.permute.xlu0 %1268
        %1270 = vrot.lane.b32.xlu0 %v1072, 96
        %v1271 = vpop.permute.xlu0 %1270
        %1272 = vrot.lane.b32.xlu0 %v1073, 96
        %v1273 = vpop.permute.xlu0 %1272
        %1274 = vrot.lane.b32.xlu0 %v1074, 96
        %v1275 = vpop.permute.xlu0 %1274
        %1276 = vrot.lane.b32.xlu0 %v1075, 96
        %v1277 = vpop.permute.xlu0 %1276
        %1278 = vrot.lane.b32.xlu0 %v1076, 96
        %v1279 = vpop.permute.xlu0 %1278
        %1280 = vrot.lane.b32.xlu0 %v1077, 96
        %v1281 = vpop.permute.xlu0 %1280
        %1282 = vrot.lane.b32.xlu0 %v1078, 96
        %v1283 = vpop.permute.xlu0 %1282
        %1284 = vrot.lane.b32.xlu0 %v1079, 96
        %v1285 = vpop.permute.xlu0 %1284
        %1286 = vrot.lane.b32.xlu0 %v1080, 96
        %v1287 = vpop.permute.xlu0 %1286
        %1288 = vrot.lane.b32.xlu0 %v1081, 96
        %v1289 = vpop.permute.xlu0 %1288
        %1290 = vrot.lane.b32.xlu0 %v1082, 96
        %v1291 = vpop.permute.xlu0 %1290
        %s1308 = scalar_lea.vmem %s309, 64 [#allocation7]
        %1309 = vst.msk [vmem:[%s1308] sm:$0xf] %vm1018, %v1261
        %1310 = vst.msk [vmem:[%s1308 + $0x4] sm:$0xf] %vm1018, %v1263
        %1311 = vst.msk [vmem:[%s1308 + $0x8] sm:$0xf] %vm1018, %v1265
        %1312 = vst.msk [vmem:[%s1308 + $0xc] sm:$0xf] %vm1018, %v1267
        %1313 = vst.msk [vmem:[%s1308 + $0x10] sm:$0xf] %vm1018, %v1269
        %1314 = vst.msk [vmem:[%s1308 + $0x14] sm:$0xf] %vm1018, %v1271
        %1315 = vst.msk [vmem:[%s1308 + $0x18] sm:$0xf] %vm1018, %v1273
        %1316 = vst.msk [vmem:[%s1308 + $0x1c] sm:$0xf] %vm1018, %v1275
        %1317 = vst.msk [vmem:[%s1308 + $0x20] sm:$0xf] %vm1018, %v1277
        %1318 = vst.msk [vmem:[%s1308 + $0x24] sm:$0xf] %vm1018, %v1279
        %1319 = vst.msk [vmem:[%s1308 + $0x28] sm:$0xf] %vm1018, %v1281
        %1320 = vst.msk [vmem:[%s1308 + $0x2c] sm:$0xf] %vm1018, %v1283
        %1321 = vst.msk [vmem:[%s1308 + $0x30] sm:$0xf] %vm1018, %v1285
        %1322 = vst.msk [vmem:[%s1308 + $0x34] sm:$0xf] %vm1018, %v1287
        %1323 = vst.msk [vmem:[%s1308 + $0x38] sm:$0xf] %vm1018, %v1289
        %1324 = vst.msk [vmem:[%s1308 + $0x3c] sm:$0xf] %vm1018, %v1291
        %1325 = vrot.lane.b32.xlu0 %v1147, 96
        %v1326 = vpop.permute.xlu0 %1325
        %1327 = vrot.lane.b32.xlu0 %v1148, 96
        %v1328 = vpop.permute.xlu0 %1327
        %1329 = vrot.lane.b32.xlu0 %v1149, 96
        %v1330 = vpop.permute.xlu0 %1329
        %1331 = vrot.lane.b32.xlu0 %v1150, 96
        %v1332 = vpop.permute.xlu0 %1331
        %1333 = vrot.lane.b32.xlu0 %v1151, 96
        %v1334 = vpop.permute.xlu0 %1333
        %1335 = vrot.lane.b32.xlu0 %v1152, 96
        %v1336 = vpop.permute.xlu0 %1335
        %1337 = vrot.lane.b32.xlu0 %v1153, 96
        %v1338 = vpop.permute.xlu0 %1337
        %1339 = vrot.lane.b32.xlu0 %v1154, 96
        %v1340 = vpop.permute.xlu0 %1339
        %1341 = vrot.lane.b32.xlu0 %v1155, 96
        %v1342 = vpop.permute.xlu0 %1341
        %1343 = vrot.lane.b32.xlu0 %v1156, 96
        %v1344 = vpop.permute.xlu0 %1343
        %1345 = vrot.lane.b32.xlu0 %v1157, 96
        %v1346 = vpop.permute.xlu0 %1345
        %1347 = vrot.lane.b32.xlu0 %v1158, 96
        %v1348 = vpop.permute.xlu0 %1347
        %1349 = vrot.lane.b32.xlu0 %v1159, 96
        %v1350 = vpop.permute.xlu0 %1349
        %1351 = vrot.lane.b32.xlu0 %v1160, 96
        %v1352 = vpop.permute.xlu0 %1351
        %1353 = vrot.lane.b32.xlu0 %v1161, 96
        %v1354 = vpop.permute.xlu0 %1353
        %1355 = vrot.lane.b32.xlu0 %v1162, 96
        %v1356 = vpop.permute.xlu0 %1355
        %s1373 = scalar_lea.vmem %s315, 64 [#allocation8]
        %1374 = vst.msk [vmem:[%s1373] sm:$0xf] %vm1018, %v1326
        %1375 = vst.msk [vmem:[%s1373 + $0x4] sm:$0xf] %vm1018, %v1328
        %1376 = vst.msk [vmem:[%s1373 + $0x8] sm:$0xf] %vm1018, %v1330
        %1377 = vst.msk [vmem:[%s1373 + $0xc] sm:$0xf] %vm1018, %v1332
        %1378 = vst.msk [vmem:[%s1373 + $0x10] sm:$0xf] %vm1018, %v1334
        %1379 = vst.msk [vmem:[%s1373 + $0x14] sm:$0xf] %vm1018, %v1336
        %1380 = vst.msk [vmem:[%s1373 + $0x18] sm:$0xf] %vm1018, %v1338
        %1381 = vst.msk [vmem:[%s1373 + $0x1c] sm:$0xf] %vm1018, %v1340
        %1382 = vst.msk [vmem:[%s1373 + $0x20] sm:$0xf] %vm1018, %v1342
        %1383 = vst.msk [vmem:[%s1373 + $0x24] sm:$0xf] %vm1018, %v1344
        %1384 = vst.msk [vmem:[%s1373 + $0x28] sm:$0xf] %vm1018, %v1346
        %1385 = vst.msk [vmem:[%s1373 + $0x2c] sm:$0xf] %vm1018, %v1348
        %1386 = vst.msk [vmem:[%s1373 + $0x30] sm:$0xf] %vm1018, %v1350
        %1387 = vst.msk [vmem:[%s1373 + $0x34] sm:$0xf] %vm1018, %v1352
        %1388 = vst.msk [vmem:[%s1373 + $0x38] sm:$0xf] %vm1018, %v1354
        %1389 = vst.msk [vmem:[%s1373 + $0x3c] sm:$0xf] %vm1018, %v1356
        %1390 = vrot.lane.b32.xlu0 %v986, 64
        %v1391 = vpop.permute.xlu0 %1390
        %1392 = vrot.lane.b32.xlu0 %v987, 64
        %v1393 = vpop.permute.xlu0 %1392
        %1394 = vrot.lane.b32.xlu0 %v988, 64
        %v1395 = vpop.permute.xlu0 %1394
        %1396 = vrot.lane.b32.xlu0 %v989, 64
        %v1397 = vpop.permute.xlu0 %1396
        %1398 = vrot.lane.b32.xlu0 %v990, 64
        %v1399 = vpop.permute.xlu0 %1398
        %1400 = vrot.lane.b32.xlu0 %v991, 64
        %v1401 = vpop.permute.xlu0 %1400
        %1402 = vrot.lane.b32.xlu0 %v992, 64
        %v1403 = vpop.permute.xlu0 %1402
        %1404 = vrot.lane.b32.xlu0 %v993, 64
        %v1405 = vpop.permute.xlu0 %1404
        %1406 = vrot.lane.b32.xlu0 %v994, 64
        %v1407 = vpop.permute.xlu0 %1406
        %1408 = vrot.lane.b32.xlu0 %v995, 64
        %v1409 = vpop.permute.xlu0 %1408
        %1410 = vrot.lane.b32.xlu0 %v996, 64
        %v1411 = vpop.permute.xlu0 %1410
        %1412 = vrot.lane.b32.xlu0 %v997, 64
        %v1413 = vpop.permute.xlu0 %1412
        %1414 = vrot.lane.b32.xlu0 %v998, 64
        %v1415 = vpop.permute.xlu0 %1414
        %1416 = vrot.lane.b32.xlu0 %v999, 64
        %v1417 = vpop.permute.xlu0 %1416
        %1418 = vrot.lane.b32.xlu0 %v1000, 64
        %v1419 = vpop.permute.xlu0 %1418
        %1420 = vrot.lane.b32.xlu0 %v1001, 64
        %v1421 = vpop.permute.xlu0 %1420
        %s1438 = scalar_lea.vmem %s303, 128 [#allocation6]
        %1439 = vst.msk [vmem:[%s1438] sm:$0xf] %vm1018, %v1391
        %1440 = vst.msk [vmem:[%s1438 + $0x4] sm:$0xf] %vm1018, %v1393
        %1441 = vst.msk [vmem:[%s1438 + $0x8] sm:$0xf] %vm1018, %v1395
        %1442 = vst.msk [vmem:[%s1438 + $0xc] sm:$0xf] %vm1018, %v1397
        %1443 = vst.msk [vmem:[%s1438 + $0x10] sm:$0xf] %vm1018, %v1399
        %1444 = vst.msk [vmem:[%s1438 + $0x14] sm:$0xf] %vm1018, %v1401
        %1445 = vst.msk [vmem:[%s1438 + $0x18] sm:$0xf] %vm1018, %v1403
        %1446 = vst.msk [vmem:[%s1438 + $0x1c] sm:$0xf] %vm1018, %v1405
        %1447 = vst.msk [vmem:[%s1438 + $0x20] sm:$0xf] %vm1018, %v1407
        %1448 = vst.msk [vmem:[%s1438 + $0x24] sm:$0xf] %vm1018, %v1409
        %1449 = vst.msk [vmem:[%s1438 + $0x28] sm:$0xf] %vm1018, %v1411
        %1450 = vst.msk [vmem:[%s1438 + $0x2c] sm:$0xf] %vm1018, %v1413
        %1451 = vst.msk [vmem:[%s1438 + $0x30] sm:$0xf] %vm1018, %v1415
        %1452 = vst.msk [vmem:[%s1438 + $0x34] sm:$0xf] %vm1018, %v1417
        %1453 = vst.msk [vmem:[%s1438 + $0x38] sm:$0xf] %vm1018, %v1419
        %1454 = vst.msk [vmem:[%s1438 + $0x3c] sm:$0xf] %vm1018, %v1421
        %1455 = vrot.lane.b32.xlu0 %v1067, 64
        %v1456 = vpop.permute.xlu0 %1455
        %1457 = vrot.lane.b32.xlu0 %v1068, 64
        %v1458 = vpop.permute.xlu0 %1457
        %1459 = vrot.lane.b32.xlu0 %v1069, 64
        %v1460 = vpop.permute.xlu0 %1459
        %1461 = vrot.lane.b32.xlu0 %v1070, 64
        %v1462 = vpop.permute.xlu0 %1461
        %1463 = vrot.lane.b32.xlu0 %v1071, 64
        %v1464 = vpop.permute.xlu0 %1463
        %1465 = vrot.lane.b32.xlu0 %v1072, 64
        %v1466 = vpop.permute.xlu0 %1465
        %1467 = vrot.lane.b32.xlu0 %v1073, 64
        %v1468 = vpop.permute.xlu0 %1467
        %1469 = vrot.lane.b32.xlu0 %v1074, 64
        %v1470 = vpop.permute.xlu0 %1469
        %1471 = vrot.lane.b32.xlu0 %v1075, 64
        %v1472 = vpop.permute.xlu0 %1471
        %1473 = vrot.lane.b32.xlu0 %v1076, 64
        %v1474 = vpop.permute.xlu0 %1473
        %1475 = vrot.lane.b32.xlu0 %v1077, 64
        %v1476 = vpop.permute.xlu0 %1475
        %1477 = vrot.lane.b32.xlu0 %v1078, 64
        %v1478 = vpop.permute.xlu0 %1477
        %1479 = vrot.lane.b32.xlu0 %v1079, 64
        %v1480 = vpop.permute.xlu0 %1479
        %1481 = vrot.lane.b32.xlu0 %v1080, 64
        %v1482 = vpop.permute.xlu0 %1481
        %1483 = vrot.lane.b32.xlu0 %v1081, 64
        %v1484 = vpop.permute.xlu0 %1483
        %1485 = vrot.lane.b32.xlu0 %v1082, 64
        %v1486 = vpop.permute.xlu0 %1485
        %s1503 = scalar_lea.vmem %s309, 128 [#allocation7]
        %1504 = vst.msk [vmem:[%s1503] sm:$0xf] %vm1018, %v1456
        %1505 = vst.msk [vmem:[%s1503 + $0x4] sm:$0xf] %vm1018, %v1458
        %1506 = vst.msk [vmem:[%s1503 + $0x8] sm:$0xf] %vm1018, %v1460
        %1507 = vst.msk [vmem:[%s1503 + $0xc] sm:$0xf] %vm1018, %v1462
        %1508 = vst.msk [vmem:[%s1503 + $0x10] sm:$0xf] %vm1018, %v1464
        %1509 = vst.msk [vmem:[%s1503 + $0x14] sm:$0xf] %vm1018, %v1466
        %1510 = vst.msk [vmem:[%s1503 + $0x18] sm:$0xf] %vm1018, %v1468
        %1511 = vst.msk [vmem:[%s1503 + $0x1c] sm:$0xf] %vm1018, %v1470
        %1512 = vst.msk [vmem:[%s1503 + $0x20] sm:$0xf] %vm1018, %v1472
        %1513 = vst.msk [vmem:[%s1503 + $0x24] sm:$0xf] %vm1018, %v1474
        %1514 = vst.msk [vmem:[%s1503 + $0x28] sm:$0xf] %vm1018, %v1476
        %1515 = vst.msk [vmem:[%s1503 + $0x2c] sm:$0xf] %vm1018, %v1478
        %1516 = vst.msk [vmem:[%s1503 + $0x30] sm:$0xf] %vm1018, %v1480
        %1517 = vst.msk [vmem:[%s1503 + $0x34] sm:$0xf] %vm1018, %v1482
        %1518 = vst.msk [vmem:[%s1503 + $0x38] sm:$0xf] %vm1018, %v1484
        %1519 = vst.msk [vmem:[%s1503 + $0x3c] sm:$0xf] %vm1018, %v1486
        %1520 = vrot.lane.b32.xlu0 %v1147, 64
        %v1521 = vpop.permute.xlu0 %1520
        %1522 = vrot.lane.b32.xlu0 %v1148, 64
        %v1523 = vpop.permute.xlu0 %1522
        %1524 = vrot.lane.b32.xlu0 %v1149, 64
        %v1525 = vpop.permute.xlu0 %1524
        %1526 = vrot.lane.b32.xlu0 %v1150, 64
        %v1527 = vpop.permute.xlu0 %1526
        %1528 = vrot.lane.b32.xlu0 %v1151, 64
        %v1529 = vpop.permute.xlu0 %1528
        %1530 = vrot.lane.b32.xlu0 %v1152, 64
        %v1531 = vpop.permute.xlu0 %1530
        %1532 = vrot.lane.b32.xlu0 %v1153, 64
        %v1533 = vpop.permute.xlu0 %1532
        %1534 = vrot.lane.b32.xlu0 %v1154, 64
        %v1535 = vpop.permute.xlu0 %1534
        %1536 = vrot.lane.b32.xlu0 %v1155, 64
        %v1537 = vpop.permute.xlu0 %1536
        %1538 = vrot.lane.b32.xlu0 %v1156, 64
        %v1539 = vpop.permute.xlu0 %1538
        %1540 = vrot.lane.b32.xlu0 %v1157, 64
        %v1541 = vpop.permute.xlu0 %1540
        %1542 = vrot.lane.b32.xlu0 %v1158, 64
        %v1543 = vpop.permute.xlu0 %1542
        %1544 = vrot.lane.b32.xlu0 %v1159, 64
        %v1545 = vpop.permute.xlu0 %1544
        %1546 = vrot.lane.b32.xlu0 %v1160, 64
        %v1547 = vpop.permute.xlu0 %1546
        %1548 = vrot.lane.b32.xlu0 %v1161, 64
        %v1549 = vpop.permute.xlu0 %1548
        %1550 = vrot.lane.b32.xlu0 %v1162, 64
        %v1551 = vpop.permute.xlu0 %1550
        %s1568 = scalar_lea.vmem %s315, 128 [#allocation8]
        %1569 = vst.msk [vmem:[%s1568] sm:$0xf] %vm1018, %v1521
        %1570 = vst.msk [vmem:[%s1568 + $0x4] sm:$0xf] %vm1018, %v1523
        %1571 = vst.msk [vmem:[%s1568 + $0x8] sm:$0xf] %vm1018, %v1525
        %1572 = vst.msk [vmem:[%s1568 + $0xc] sm:$0xf] %vm1018, %v1527
        %1573 = vst.msk [vmem:[%s1568 + $0x10] sm:$0xf] %vm1018, %v1529
        %1574 = vst.msk [vmem:[%s1568 + $0x14] sm:$0xf] %vm1018, %v1531
        %1575 = vst.msk [vmem:[%s1568 + $0x18] sm:$0xf] %vm1018, %v1533
        %1576 = vst.msk [vmem:[%s1568 + $0x1c] sm:$0xf] %vm1018, %v1535
        %1577 = vst.msk [vmem:[%s1568 + $0x20] sm:$0xf] %vm1018, %v1537
        %1578 = vst.msk [vmem:[%s1568 + $0x24] sm:$0xf] %vm1018, %v1539
        %1579 = vst.msk [vmem:[%s1568 + $0x28] sm:$0xf] %vm1018, %v1541
        %1580 = vst.msk [vmem:[%s1568 + $0x2c] sm:$0xf] %vm1018, %v1543
        %1581 = vst.msk [vmem:[%s1568 + $0x30] sm:$0xf] %vm1018, %v1545
        %1582 = vst.msk [vmem:[%s1568 + $0x34] sm:$0xf] %vm1018, %v1547
        %1583 = vst.msk [vmem:[%s1568 + $0x38] sm:$0xf] %vm1018, %v1549
        %1584 = vst.msk [vmem:[%s1568 + $0x3c] sm:$0xf] %vm1018, %v1551
        %1585 = vrot.lane.b32.xlu0 %v986, 32
        %v1586 = vpop.permute.xlu0 %1585
        %1587 = vrot.lane.b32.xlu0 %v987, 32
        %v1588 = vpop.permute.xlu0 %1587
        %1589 = vrot.lane.b32.xlu0 %v988, 32
        %v1590 = vpop.permute.xlu0 %1589
        %1591 = vrot.lane.b32.xlu0 %v989, 32
        %v1592 = vpop.permute.xlu0 %1591
        %1593 = vrot.lane.b32.xlu0 %v990, 32
        %v1594 = vpop.permute.xlu0 %1593
        %1595 = vrot.lane.b32.xlu0 %v991, 32
        %v1596 = vpop.permute.xlu0 %1595
        %1597 = vrot.lane.b32.xlu0 %v992, 32
        %v1598 = vpop.permute.xlu0 %1597
        %1599 = vrot.lane.b32.xlu0 %v993, 32
        %v1600 = vpop.permute.xlu0 %1599
        %1601 = vrot.lane.b32.xlu0 %v994, 32
        %v1602 = vpop.permute.xlu0 %1601
        %1603 = vrot.lane.b32.xlu0 %v995, 32
        %v1604 = vpop.permute.xlu0 %1603
        %1605 = vrot.lane.b32.xlu0 %v996, 32
        %v1606 = vpop.permute.xlu0 %1605
        %1607 = vrot.lane.b32.xlu0 %v997, 32
        %v1608 = vpop.permute.xlu0 %1607
        %1609 = vrot.lane.b32.xlu0 %v998, 32
        %v1610 = vpop.permute.xlu0 %1609
        %1611 = vrot.lane.b32.xlu0 %v999, 32
        %v1612 = vpop.permute.xlu0 %1611
        %1613 = vrot.lane.b32.xlu0 %v1000, 32
        %v1614 = vpop.permute.xlu0 %1613
        %1615 = vrot.lane.b32.xlu0 %v1001, 32
        %v1616 = vpop.permute.xlu0 %1615
        %s1633 = scalar_lea.vmem %s303, 192 [#allocation6]
        %1634 = vst.msk [vmem:[%s1633] sm:$0xf] %vm1018, %v1586
        %1635 = vst.msk [vmem:[%s1633 + $0x4] sm:$0xf] %vm1018, %v1588
        %1636 = vst.msk [vmem:[%s1633 + $0x8] sm:$0xf] %vm1018, %v1590
        %1637 = vst.msk [vmem:[%s1633 + $0xc] sm:$0xf] %vm1018, %v1592
        %1638 = vst.msk [vmem:[%s1633 + $0x10] sm:$0xf] %vm1018, %v1594
        %1639 = vst.msk [vmem:[%s1633 + $0x14] sm:$0xf] %vm1018, %v1596
        %1640 = vst.msk [vmem:[%s1633 + $0x18] sm:$0xf] %vm1018, %v1598
        %1641 = vst.msk [vmem:[%s1633 + $0x1c] sm:$0xf] %vm1018, %v1600
        %1642 = vst.msk [vmem:[%s1633 + $0x20] sm:$0xf] %vm1018, %v1602
        %1643 = vst.msk [vmem:[%s1633 + $0x24] sm:$0xf] %vm1018, %v1604
        %1644 = vst.msk [vmem:[%s1633 + $0x28] sm:$0xf] %vm1018, %v1606
        %1645 = vst.msk [vmem:[%s1633 + $0x2c] sm:$0xf] %vm1018, %v1608
        %1646 = vst.msk [vmem:[%s1633 + $0x30] sm:$0xf] %vm1018, %v1610
        %1647 = vst.msk [vmem:[%s1633 + $0x34] sm:$0xf] %vm1018, %v1612
        %1648 = vst.msk [vmem:[%s1633 + $0x38] sm:$0xf] %vm1018, %v1614
        %1649 = vst.msk [vmem:[%s1633 + $0x3c] sm:$0xf] %vm1018, %v1616
        %1650 = vrot.lane.b32.xlu0 %v1067, 32
        %v1651 = vpop.permute.xlu0 %1650
        %1652 = vrot.lane.b32.xlu0 %v1068, 32
        %v1653 = vpop.permute.xlu0 %1652
        %1654 = vrot.lane.b32.xlu0 %v1069, 32
        %v1655 = vpop.permute.xlu0 %1654
        %1656 = vrot.lane.b32.xlu0 %v1070, 32
        %v1657 = vpop.permute.xlu0 %1656
        %1658 = vrot.lane.b32.xlu0 %v1071, 32
        %v1659 = vpop.permute.xlu0 %1658
        %1660 = vrot.lane.b32.xlu0 %v1072, 32
        %v1661 = vpop.permute.xlu0 %1660
        %1662 = vrot.lane.b32.xlu0 %v1073, 32
        %v1663 = vpop.permute.xlu0 %1662
        %1664 = vrot.lane.b32.xlu0 %v1074, 32
        %v1665 = vpop.permute.xlu0 %1664
        %1666 = vrot.lane.b32.xlu0 %v1075, 32
        %v1667 = vpop.permute.xlu0 %1666
        %1668 = vrot.lane.b32.xlu0 %v1076, 32
        %v1669 = vpop.permute.xlu0 %1668
        %1670 = vrot.lane.b32.xlu0 %v1077, 32
        %v1671 = vpop.permute.xlu0 %1670
        %1672 = vrot.lane.b32.xlu0 %v1078, 32
        %v1673 = vpop.permute.xlu0 %1672
        %1674 = vrot.lane.b32.xlu0 %v1079, 32
        %v1675 = vpop.permute.xlu0 %1674
        %1676 = vrot.lane.b32.xlu0 %v1080, 32
        %v1677 = vpop.permute.xlu0 %1676
        %1678 = vrot.lane.b32.xlu0 %v1081, 32
        %v1679 = vpop.permute.xlu0 %1678
        %1680 = vrot.lane.b32.xlu0 %v1082, 32
        %v1681 = vpop.permute.xlu0 %1680
        %s1698 = scalar_lea.vmem %s309, 192 [#allocation7]
        %1699 = vst.msk [vmem:[%s1698] sm:$0xf] %vm1018, %v1651
        %1700 = vst.msk [vmem:[%s1698 + $0x4] sm:$0xf] %vm1018, %v1653
        %1701 = vst.msk [vmem:[%s1698 + $0x8] sm:$0xf] %vm1018, %v1655
        %1702 = vst.msk [vmem:[%s1698 + $0xc] sm:$0xf] %vm1018, %v1657
        %1703 = vst.msk [vmem:[%s1698 + $0x10] sm:$0xf] %vm1018, %v1659
        %1704 = vst.msk [vmem:[%s1698 + $0x14] sm:$0xf] %vm1018, %v1661
        %1705 = vst.msk [vmem:[%s1698 + $0x18] sm:$0xf] %vm1018, %v1663
        %1706 = vst.msk [vmem:[%s1698 + $0x1c] sm:$0xf] %vm1018, %v1665
        %1707 = vst.msk [vmem:[%s1698 + $0x20] sm:$0xf] %vm1018, %v1667
        %1708 = vst.msk [vmem:[%s1698 + $0x24] sm:$0xf] %vm1018, %v1669
        %1709 = vst.msk [vmem:[%s1698 + $0x28] sm:$0xf] %vm1018, %v1671
        %1710 = vst.msk [vmem:[%s1698 + $0x2c] sm:$0xf] %vm1018, %v1673
        %1711 = vst.msk [vmem:[%s1698 + $0x30] sm:$0xf] %vm1018, %v1675
        %1712 = vst.msk [vmem:[%s1698 + $0x34] sm:$0xf] %vm1018, %v1677
        %1713 = vst.msk [vmem:[%s1698 + $0x38] sm:$0xf] %vm1018, %v1679
        %1714 = vst.msk [vmem:[%s1698 + $0x3c] sm:$0xf] %vm1018, %v1681
        %1715 = vrot.lane.b32.xlu0 %v1147, 32
        %v1716 = vpop.permute.xlu0 %1715
        %1717 = vrot.lane.b32.xlu0 %v1148, 32
        %v1718 = vpop.permute.xlu0 %1717
        %1719 = vrot.lane.b32.xlu0 %v1149, 32
        %v1720 = vpop.permute.xlu0 %1719
        %1721 = vrot.lane.b32.xlu0 %v1150, 32
        %v1722 = vpop.permute.xlu0 %1721
        %1723 = vrot.lane.b32.xlu0 %v1151, 32
        %v1724 = vpop.permute.xlu0 %1723
        %1725 = vrot.lane.b32.xlu0 %v1152, 32
        %v1726 = vpop.permute.xlu0 %1725
        %1727 = vrot.lane.b32.xlu0 %v1153, 32
        %v1728 = vpop.permute.xlu0 %1727
        %1729 = vrot.lane.b32.xlu0 %v1154, 32
        %v1730 = vpop.permute.xlu0 %1729
        %1731 = vrot.lane.b32.xlu0 %v1155, 32
        %v1732 = vpop.permute.xlu0 %1731
        %1733 = vrot.lane.b32.xlu0 %v1156, 32
        %v1734 = vpop.permute.xlu0 %1733
        %1735 = vrot.lane.b32.xlu0 %v1157, 32
        %v1736 = vpop.permute.xlu0 %1735
        %1737 = vrot.lane.b32.xlu0 %v1158, 32
        %v1738 = vpop.permute.xlu0 %1737
        %1739 = vrot.lane.b32.xlu0 %v1159, 32
        %v1740 = vpop.permute.xlu0 %1739
        %1741 = vrot.lane.b32.xlu0 %v1160, 32
        %v1742 = vpop.permute.xlu0 %1741
        %1743 = vrot.lane.b32.xlu0 %v1161, 32
        %v1744 = vpop.permute.xlu0 %1743
        %1745 = vrot.lane.b32.xlu0 %v1162, 32
        %v1746 = vpop.permute.xlu0 %1745
        %s1763 = scalar_lea.vmem %s315, 192 [#allocation8]
        %1764 = vst.msk [vmem:[%s1763] sm:$0xf] %vm1018, %v1716
        %1765 = vst.msk [vmem:[%s1763 + $0x4] sm:$0xf] %vm1018, %v1718
        %1766 = vst.msk [vmem:[%s1763 + $0x8] sm:$0xf] %vm1018, %v1720
        %1767 = vst.msk [vmem:[%s1763 + $0xc] sm:$0xf] %vm1018, %v1722
        %1768 = vst.msk [vmem:[%s1763 + $0x10] sm:$0xf] %vm1018, %v1724
        %1769 = vst.msk [vmem:[%s1763 + $0x14] sm:$0xf] %vm1018, %v1726
        %1770 = vst.msk [vmem:[%s1763 + $0x18] sm:$0xf] %vm1018, %v1728
        %1771 = vst.msk [vmem:[%s1763 + $0x1c] sm:$0xf] %vm1018, %v1730
        %1772 = vst.msk [vmem:[%s1763 + $0x20] sm:$0xf] %vm1018, %v1732
        %1773 = vst.msk [vmem:[%s1763 + $0x24] sm:$0xf] %vm1018, %v1734
        %1774 = vst.msk [vmem:[%s1763 + $0x28] sm:$0xf] %vm1018, %v1736
        %1775 = vst.msk [vmem:[%s1763 + $0x2c] sm:$0xf] %vm1018, %v1738
        %1776 = vst.msk [vmem:[%s1763 + $0x30] sm:$0xf] %vm1018, %v1740
        %1777 = vst.msk [vmem:[%s1763 + $0x34] sm:$0xf] %vm1018, %v1742
        %1778 = vst.msk [vmem:[%s1763 + $0x38] sm:$0xf] %vm1018, %v1744
        %1779 = vst.msk [vmem:[%s1763 + $0x3c] sm:$0xf] %vm1018, %v1746
        %s1780 = sand.u32 %s135, 1
        %s1781 = sand.u32 %s135, 1
        %s1782 = smul.addr %s1781, 256
        %s1783 = scalar_lea.vmem [#allocation6], %s1782
        %s1784 = sand.u32 %s163, 1
        %s1785 = sand.u32 %s163, 1
        %s1786 = smul.addr %s1785, 256
        %s1787 = scalar_lea.vmem [#allocation7], %s1786
        %s1788 = sand.u32 %s191, 1
        %s1789 = sand.u32 %s191, 1
        %s1790 = smul.addr %s1789, 256
        %s1791 = scalar_lea.vmem [#allocation8], %s1790
        // Predicated region
        $region45: #{tpu_custom_call.1} parent=35 // pred_check
          %p1792 = pneg %p145
        $region46: #{tpu_custom_call.1} parent=35 // pred_check_branch
          %1794 = sbr.rel (%p1792) target = $region48
        $region47: #{tpu_custom_call.1} parent=35 // pred_region
          %s1795 = smul.u32 16, %s27
          %s1796 = smul.addr %s26, 128
          %s1797 = sadd.s32 %s1795, %s1796
          %s1798 = smul.addr %s1797, 4
          %s1799 = scalar_lea.vmem %s4, %s1798
          // Predicated region
          $region49: #{tpu_custom_call.1} parent=47 // pred_check
            _
          $region50: #{tpu_custom_call.1} parent=47 // pred_check_branch
            %1801 = sbr.rel (0) target = $region52
          $region51: #{tpu_custom_call.1} parent=47 // pred_region
            // Predicated region
            $region53: #{tpu_custom_call.1} parent=51 // pred_check
              _
            $region54: #{tpu_custom_call.1} parent=51 // pred_check_branch
              %1803 = sbr.rel target = $region56
            $region55: #{tpu_custom_call.1} parent=51 // pred_region
              // Predicated region
              $region68: #{tpu_custom_call.1} parent=55 // pred_check
                _
              $region69: #{tpu_custom_call.1} parent=55 // pred_check_branch
                %1944 = sbr.rel (0) target = $region71
              $region70: #{tpu_custom_call.1} parent=55 // pred_region
                loop: start=0, step=1, limit=1
                $region72: #{tpu_custom_call.1} parent=70 // loop_pre_header
                  _
                $region73: #{tpu_custom_call.1} parent=70 // loop_header
                  %s1946 = sphi 0, %s1950
                  %p1947 = scmp.ge.s32.totalorder %s1946, 1
                  %s1951 = sphi %s1783, %s1783
                  %s1952 = sphi %s1799, %s1799
                $region74: #{tpu_custom_call.1} parent=70 // loop_header_branch
                  %1949 = sbr.rel (%p1947) target = $region78
                $region75: #{tpu_custom_call.1} parent=70 // loop_body
                  _
                $region76: #{tpu_custom_call.1} parent=70 // loop_footer
                  %s1950 = sadd.s32 1, %s1946
                $region77: #{tpu_custom_call.1} parent=70 // loop_footer_branch
                  %1945 = sbr.rel target = $region73
                $region78: #{tpu_custom_call.1} parent=70 // loop_exit
                  _
                loop: start=0, step=1, limit=1
                $region79: #{tpu_custom_call.1} parent=70 // loop_pre_header
                  _
                $region80: #{tpu_custom_call.1} parent=70 // loop_header
                  %s1955 = sphi 0, %s1959
                  %p1956 = scmp.ge.s32.totalorder %s1955, 1
                  %s1960 = sphi %s1783, %s1783
                  %s1961 = sphi %s1799, %s1799
                $region81: #{tpu_custom_call.1} parent=70 // loop_header_branch
                  %1958 = sbr.rel (%p1956) target = $region85
                $region82: #{tpu_custom_call.1} parent=70 // loop_body
                  %v1962 = vld [vmem:[%s1960] sm:$0xf]
                  %1963 = vst [vmem:[%s1961] sm:$0xf] %v1962
                  %v1964 = vld [vmem:[%s1960 + $0x4] sm:$0xf]
                  %1965 = vst [vmem:[%s1961 + $0x4] sm:$0xf] %v1964
                  %v1966 = vld [vmem:[%s1960 + $0x8] sm:$0xf]
                  %1967 = vst [vmem:[%s1961 + $0x8] sm:$0xf] %v1966
                  %v1968 = vld [vmem:[%s1960 + $0xc] sm:$0xf]
                  %1969 = vst [vmem:[%s1961 + $0xc] sm:$0xf] %v1968
                  %v1970 = vld [vmem:[%s1960 + $0x10] sm:$0xf]
                  %1971 = vst [vmem:[%s1961 + $0x10] sm:$0xf] %v1970
                  %v1972 = vld [vmem:[%s1960 + $0x14] sm:$0xf]
                  %1973 = vst [vmem:[%s1961 + $0x14] sm:$0xf] %v1972
                  %v1974 = vld [vmem:[%s1960 + $0x18] sm:$0xf]
                  %1975 = vst [vmem:[%s1961 + $0x18] sm:$0xf] %v1974
                  %v1976 = vld [vmem:[%s1960 + $0x1c] sm:$0xf]
                  %1977 = vst [vmem:[%s1961 + $0x1c] sm:$0xf] %v1976
                  %v1978 = vld [vmem:[%s1960 + $0x20] sm:$0xf]
                  %1979 = vst [vmem:[%s1961 + $0x20] sm:$0xf] %v1978
                  %v1980 = vld [vmem:[%s1960 + $0x24] sm:$0xf]
                  %1981 = vst [vmem:[%s1961 + $0x24] sm:$0xf] %v1980
                  %v1982 = vld [vmem:[%s1960 + $0x28] sm:$0xf]
                  %1983 = vst [vmem:[%s1961 + $0x28] sm:$0xf] %v1982
                  %v1984 = vld [vmem:[%s1960 + $0x2c] sm:$0xf]
                  %1985 = vst [vmem:[%s1961 + $0x2c] sm:$0xf] %v1984
                  %v1986 = vld [vmem:[%s1960 + $0x30] sm:$0xf]
                  %1987 = vst [vmem:[%s1961 + $0x30] sm:$0xf] %v1986
                  %v1988 = vld [vmem:[%s1960 + $0x34] sm:$0xf]
                  %1989 = vst [vmem:[%s1961 + $0x34] sm:$0xf] %v1988
                  %v1990 = vld [vmem:[%s1960 + $0x38] sm:$0xf]
                  %1991 = vst [vmem:[%s1961 + $0x38] sm:$0xf] %v1990
                  %v1992 = vld [vmem:[%s1960 + $0x3c] sm:$0xf]
                  %1993 = vst [vmem:[%s1961 + $0x3c] sm:$0xf] %v1992
                  %v1994 = vld [vmem:[%s1960 + $0x40] sm:$0xf]
                  %1995 = vst [vmem:[%s1961 + $0x80] sm:$0xf] %v1994
                  %v1996 = vld [vmem:[%s1960 + $0x44] sm:$0xf]
                  %1997 = vst [vmem:[%s1961 + $0x84] sm:$0xf] %v1996
                  %v1998 = vld [vmem:[%s1960 + $0x48] sm:$0xf]
                  %1999 = vst [vmem:[%s1961 + $0x88] sm:$0xf] %v1998
                  %v2000 = vld [vmem:[%s1960 + $0x4c] sm:$0xf]
                  %2001 = vst [vmem:[%s1961 + $0x8c] sm:$0xf] %v2000
                  %v2002 = vld [vmem:[%s1960 + $0x50] sm:$0xf]
                  %2003 = vst [vmem:[%s1961 + $0x90] sm:$0xf] %v2002
                  %v2004 = vld [vmem:[%s1960 + $0x54] sm:$0xf]
                  %2005 = vst [vmem:[%s1961 + $0x94] sm:$0xf] %v2004
                  %v2006 = vld [vmem:[%s1960 + $0x58] sm:$0xf]
                  %2007 = vst [vmem:[%s1961 + $0x98] sm:$0xf] %v2006
                  %v2008 = vld [vmem:[%s1960 + $0x5c] sm:$0xf]
                  %2009 = vst [vmem:[%s1961 + $0x9c] sm:$0xf] %v2008
                  %v2010 = vld [vmem:[%s1960 + $0x60] sm:$0xf]
                  %2011 = vst [vmem:[%s1961 + $0xa0] sm:$0xf] %v2010
                  %v2012 = vld [vmem:[%s1960 + $0x64] sm:$0xf]
                  %2013 = vst [vmem:[%s1961 + $0xa4] sm:$0xf] %v2012
                  %v2014 = vld [vmem:[%s1960 + $0x68] sm:$0xf]
                  %2015 = vst [vmem:[%s1961 + $0xa8] sm:$0xf] %v2014
                  %v2016 = vld [vmem:[%s1960 + $0x6c] sm:$0xf]
                  %2017 = vst [vmem:[%s1961 + $0xac] sm:$0xf] %v2016
                  %v2018 = vld [vmem:[%s1960 + $0x70] sm:$0xf]
                  %2019 = vst [vmem:[%s1961 + $0xb0] sm:$0xf] %v2018
                  %v2020 = vld [vmem:[%s1960 + $0x74] sm:$0xf]
                  %2021 = vst [vmem:[%s1961 + $0xb4] sm:$0xf] %v2020
                  %v2022 = vld [vmem:[%s1960 + $0x78] sm:$0xf]
                  %2023 = vst [vmem:[%s1961 + $0xb8] sm:$0xf] %v2022
                  %v2024 = vld [vmem:[%s1960 + $0x7c] sm:$0xf]
                  %2025 = vst [vmem:[%s1961 + $0xbc] sm:$0xf] %v2024
                  %v2026 = vld [vmem:[%s1960 + $0x80] sm:$0xf]
                  %2027 = vst [vmem:[%s1961 + $0x100] sm:$0xf] %v2026
                  %v2028 = vld [vmem:[%s1960 + $0x84] sm:$0xf]
                  %2029 = vst [vmem:[%s1961 + $0x104] sm:$0xf] %v2028
                  %v2030 = vld [vmem:[%s1960 + $0x88] sm:$0xf]
                  %2031 = vst [vmem:[%s1961 + $0x108] sm:$0xf] %v2030
                  %v2032 = vld [vmem:[%s1960 + $0x8c] sm:$0xf]
                  %2033 = vst [vmem:[%s1961 + $0x10c] sm:$0xf] %v2032
                  %v2034 = vld [vmem:[%s1960 + $0x90] sm:$0xf]
                  %2035 = vst [vmem:[%s1961 + $0x110] sm:$0xf] %v2034
                  %v2036 = vld [vmem:[%s1960 + $0x94] sm:$0xf]
                  %2037 = vst [vmem:[%s1961 + $0x114] sm:$0xf] %v2036
                  %v2038 = vld [vmem:[%s1960 + $0x98] sm:$0xf]
                  %2039 = vst [vmem:[%s1961 + $0x118] sm:$0xf] %v2038
                  %v2040 = vld [vmem:[%s1960 + $0x9c] sm:$0xf]
                  %2041 = vst [vmem:[%s1961 + $0x11c] sm:$0xf] %v2040
                  %v2042 = vld [vmem:[%s1960 + $0xa0] sm:$0xf]
                  %2043 = vst [vmem:[%s1961 + $0x120] sm:$0xf] %v2042
                  %v2044 = vld [vmem:[%s1960 + $0xa4] sm:$0xf]
                  %2045 = vst [vmem:[%s1961 + $0x124] sm:$0xf] %v2044
                  %v2046 = vld [vmem:[%s1960 + $0xa8] sm:$0xf]
                  %2047 = vst [vmem:[%s1961 + $0x128] sm:$0xf] %v2046
                  %v2048 = vld [vmem:[%s1960 + $0xac] sm:$0xf]
                  %2049 = vst [vmem:[%s1961 + $0x12c] sm:$0xf] %v2048
                  %v2050 = vld [vmem:[%s1960 + $0xb0] sm:$0xf]
                  %2051 = vst [vmem:[%s1961 + $0x130] sm:$0xf] %v2050
                  %v2052 = vld [vmem:[%s1960 + $0xb4] sm:$0xf]
                  %2053 = vst [vmem:[%s1961 + $0x134] sm:$0xf] %v2052
                  %v2054 = vld [vmem:[%s1960 + $0xb8] sm:$0xf]
                  %2055 = vst [vmem:[%s1961 + $0x138] sm:$0xf] %v2054
                  %v2056 = vld [vmem:[%s1960 + $0xbc] sm:$0xf]
                  %2057 = vst [vmem:[%s1961 + $0x13c] sm:$0xf] %v2056
                  %v2058 = vld [vmem:[%s1960 + $0xc0] sm:$0xf]
                  %2059 = vst [vmem:[%s1961 + $0x180] sm:$0xf] %v2058
                  %v2060 = vld [vmem:[%s1960 + $0xc4] sm:$0xf]
                  %2061 = vst [vmem:[%s1961 + $0x184] sm:$0xf] %v2060
                  %v2062 = vld [vmem:[%s1960 + $0xc8] sm:$0xf]
                  %2063 = vst [vmem:[%s1961 + $0x188] sm:$0xf] %v2062
                  %v2064 = vld [vmem:[%s1960 + $0xcc] sm:$0xf]
                  %2065 = vst [vmem:[%s1961 + $0x18c] sm:$0xf] %v2064
                  %v2066 = vld [vmem:[%s1960 + $0xd0] sm:$0xf]
                  %2067 = vst [vmem:[%s1961 + $0x190] sm:$0xf] %v2066
                  %v2068 = vld [vmem:[%s1960 + $0xd4] sm:$0xf]
                  %2069 = vst [vmem:[%s1961 + $0x194] sm:$0xf] %v2068
                  %v2070 = vld [vmem:[%s1960 + $0xd8] sm:$0xf]
                  %2071 = vst [vmem:[%s1961 + $0x198] sm:$0xf] %v2070
                  %v2072 = vld [vmem:[%s1960 + $0xdc] sm:$0xf]
                  %2073 = vst [vmem:[%s1961 + $0x19c] sm:$0xf] %v2072
                  %v2074 = vld [vmem:[%s1960 + $0xe0] sm:$0xf]
                  %2075 = vst [vmem:[%s1961 + $0x1a0] sm:$0xf] %v2074
                  %v2076 = vld [vmem:[%s1960 + $0xe4] sm:$0xf]
                  %2077 = vst [vmem:[%s1961 + $0x1a4] sm:$0xf] %v2076
                  %v2078 = vld [vmem:[%s1960 + $0xe8] sm:$0xf]
                  %2079 = vst [vmem:[%s1961 + $0x1a8] sm:$0xf] %v2078
                  %v2080 = vld [vmem:[%s1960 + $0xec] sm:$0xf]
                  %2081 = vst [vmem:[%s1961 + $0x1ac] sm:$0xf] %v2080
                  %v2082 = vld [vmem:[%s1960 + $0xf0] sm:$0xf]
                  %2083 = vst [vmem:[%s1961 + $0x1b0] sm:$0xf] %v2082
                  %v2084 = vld [vmem:[%s1960 + $0xf4] sm:$0xf]
                  %2085 = vst [vmem:[%s1961 + $0x1b4] sm:$0xf] %v2084
                  %v2086 = vld [vmem:[%s1960 + $0xf8] sm:$0xf]
                  %2087 = vst [vmem:[%s1961 + $0x1b8] sm:$0xf] %v2086
                  %v2088 = vld [vmem:[%s1960 + $0xfc] sm:$0xf]
                  %2089 = vst [vmem:[%s1961 + $0x1bc] sm:$0xf] %v2088
                $region83: #{tpu_custom_call.1} parent=70 // loop_footer
                  %s1959 = sadd.s32 1, %s1955
                $region84: #{tpu_custom_call.1} parent=70 // loop_footer_branch
                  %1954 = sbr.rel target = $region80
                $region85: #{tpu_custom_call.1} parent=70 // loop_exit
                  _
              $region71: #{tpu_custom_call.1} parent=55 // pred_fallthru
                _
            $region56: #{tpu_custom_call.1} parent=51 // pred_fallthru
              _
            // Predicated region
            $region57: #{tpu_custom_call.1} parent=51 // pred_check
              _
            $region58: #{tpu_custom_call.1} parent=51 // pred_check_branch
              %1805 = sbr.rel (0) target = $region60
            $region59: #{tpu_custom_call.1} parent=51 // pred_region
              loop: start=0, step=1, limit=1
              $region61: #{tpu_custom_call.1} parent=59 // loop_pre_header
                _
              $region62: #{tpu_custom_call.1} parent=59 // loop_header
                %s1808 = sphi 0, %s1812
                %p1809 = scmp.ge.s32.totalorder %s1808, 1
                %s1813 = sphi %s1783, %s1783
                %s1814 = sphi %s1799, %s1799
              $region63: #{tpu_custom_call.1} parent=59 // loop_header_branch
                %1811 = sbr.rel (%p1809) target = $region67
              $region64: #{tpu_custom_call.1} parent=59 // loop_body
                %v1815 = vld [vmem:[%s1813] sm:$0xf]
                %1816 = vst [vmem:[%s1814] sm:$0xf] %v1815
                %v1817 = vld [vmem:[%s1813 + $0x4] sm:$0xf]
                %1818 = vst [vmem:[%s1814 + $0x4] sm:$0xf] %v1817
                %v1819 = vld [vmem:[%s1813 + $0x8] sm:$0xf]
                %1820 = vst [vmem:[%s1814 + $0x8] sm:$0xf] %v1819
                %v1821 = vld [vmem:[%s1813 + $0xc] sm:$0xf]
                %1822 = vst [vmem:[%s1814 + $0xc] sm:$0xf] %v1821
                %v1823 = vld [vmem:[%s1813 + $0x10] sm:$0xf]
                %1824 = vst [vmem:[%s1814 + $0x10] sm:$0xf] %v1823
                %v1825 = vld [vmem:[%s1813 + $0x14] sm:$0xf]
                %1826 = vst [vmem:[%s1814 + $0x14] sm:$0xf] %v1825
                %v1827 = vld [vmem:[%s1813 + $0x18] sm:$0xf]
                %1828 = vst [vmem:[%s1814 + $0x18] sm:$0xf] %v1827
                %v1829 = vld [vmem:[%s1813 + $0x1c] sm:$0xf]
                %1830 = vst [vmem:[%s1814 + $0x1c] sm:$0xf] %v1829
                %v1831 = vld [vmem:[%s1813 + $0x20] sm:$0xf]
                %1832 = vst [vmem:[%s1814 + $0x20] sm:$0xf] %v1831
                %v1833 = vld [vmem:[%s1813 + $0x24] sm:$0xf]
                %1834 = vst [vmem:[%s1814 + $0x24] sm:$0xf] %v1833
                %v1835 = vld [vmem:[%s1813 + $0x28] sm:$0xf]
                %1836 = vst [vmem:[%s1814 + $0x28] sm:$0xf] %v1835
                %v1837 = vld [vmem:[%s1813 + $0x2c] sm:$0xf]
                %1838 = vst [vmem:[%s1814 + $0x2c] sm:$0xf] %v1837
                %v1839 = vld [vmem:[%s1813 + $0x30] sm:$0xf]
                %1840 = vst [vmem:[%s1814 + $0x30] sm:$0xf] %v1839
                %v1841 = vld [vmem:[%s1813 + $0x34] sm:$0xf]
                %1842 = vst [vmem:[%s1814 + $0x34] sm:$0xf] %v1841
                %v1843 = vld [vmem:[%s1813 + $0x38] sm:$0xf]
                %1844 = vst [vmem:[%s1814 + $0x38] sm:$0xf] %v1843
                %v1845 = vld [vmem:[%s1813 + $0x3c] sm:$0xf]
                %1846 = vst [vmem:[%s1814 + $0x3c] sm:$0xf] %v1845
                %v1847 = vld [vmem:[%s1813 + $0x40] sm:$0xf]
                %1848 = vst [vmem:[%s1814 + $0x80] sm:$0xf] %v1847
                %v1849 = vld [vmem:[%s1813 + $0x44] sm:$0xf]
                %1850 = vst [vmem:[%s1814 + $0x84] sm:$0xf] %v1849
                %v1851 = vld [vmem:[%s1813 + $0x48] sm:$0xf]
                %1852 = vst [vmem:[%s1814 + $0x88] sm:$0xf] %v1851
                %v1853 = vld [vmem:[%s1813 + $0x4c] sm:$0xf]
                %1854 = vst [vmem:[%s1814 + $0x8c] sm:$0xf] %v1853
                %v1855 = vld [vmem:[%s1813 + $0x50] sm:$0xf]
                %1856 = vst [vmem:[%s1814 + $0x90] sm:$0xf] %v1855
                %v1857 = vld [vmem:[%s1813 + $0x54] sm:$0xf]
                %1858 = vst [vmem:[%s1814 + $0x94] sm:$0xf] %v1857
                %v1859 = vld [vmem:[%s1813 + $0x58] sm:$0xf]
                %1860 = vst [vmem:[%s1814 + $0x98] sm:$0xf] %v1859
                %v1861 = vld [vmem:[%s1813 + $0x5c] sm:$0xf]
                %1862 = vst [vmem:[%s1814 + $0x9c] sm:$0xf] %v1861
                %v1863 = vld [vmem:[%s1813 + $0x60] sm:$0xf]
                %1864 = vst [vmem:[%s1814 + $0xa0] sm:$0xf] %v1863
                %v1865 = vld [vmem:[%s1813 + $0x64] sm:$0xf]
                %1866 = vst [vmem:[%s1814 + $0xa4] sm:$0xf] %v1865
                %v1867 = vld [vmem:[%s1813 + $0x68] sm:$0xf]
                %1868 = vst [vmem:[%s1814 + $0xa8] sm:$0xf] %v1867
                %v1869 = vld [vmem:[%s1813 + $0x6c] sm:$0xf]
                %1870 = vst [vmem:[%s1814 + $0xac] sm:$0xf] %v1869
                %v1871 = vld [vmem:[%s1813 + $0x70] sm:$0xf]
                %1872 = vst [vmem:[%s1814 + $0xb0] sm:$0xf] %v1871
                %v1873 = vld [vmem:[%s1813 + $0x74] sm:$0xf]
                %1874 = vst [vmem:[%s1814 + $0xb4] sm:$0xf] %v1873
                %v1875 = vld [vmem:[%s1813 + $0x78] sm:$0xf]
                %1876 = vst [vmem:[%s1814 + $0xb8] sm:$0xf] %v1875
                %v1877 = vld [vmem:[%s1813 + $0x7c] sm:$0xf]
                %1878 = vst [vmem:[%s1814 + $0xbc] sm:$0xf] %v1877
                %v1879 = vld [vmem:[%s1813 + $0x80] sm:$0xf]
                %1880 = vst [vmem:[%s1814 + $0x100] sm:$0xf] %v1879
                %v1881 = vld [vmem:[%s1813 + $0x84] sm:$0xf]
                %1882 = vst [vmem:[%s1814 + $0x104] sm:$0xf] %v1881
                %v1883 = vld [vmem:[%s1813 + $0x88] sm:$0xf]
                %1884 = vst [vmem:[%s1814 + $0x108] sm:$0xf] %v1883
                %v1885 = vld [vmem:[%s1813 + $0x8c] sm:$0xf]
                %1886 = vst [vmem:[%s1814 + $0x10c] sm:$0xf] %v1885
                %v1887 = vld [vmem:[%s1813 + $0x90] sm:$0xf]
                %1888 = vst [vmem:[%s1814 + $0x110] sm:$0xf] %v1887
                %v1889 = vld [vmem:[%s1813 + $0x94] sm:$0xf]
                %1890 = vst [vmem:[%s1814 + $0x114] sm:$0xf] %v1889
                %v1891 = vld [vmem:[%s1813 + $0x98] sm:$0xf]
                %1892 = vst [vmem:[%s1814 + $0x118] sm:$0xf] %v1891
                %v1893 = vld [vmem:[%s1813 + $0x9c] sm:$0xf]
                %1894 = vst [vmem:[%s1814 + $0x11c] sm:$0xf] %v1893
                %v1895 = vld [vmem:[%s1813 + $0xa0] sm:$0xf]
                %1896 = vst [vmem:[%s1814 + $0x120] sm:$0xf] %v1895
                %v1897 = vld [vmem:[%s1813 + $0xa4] sm:$0xf]
                %1898 = vst [vmem:[%s1814 + $0x124] sm:$0xf] %v1897
                %v1899 = vld [vmem:[%s1813 + $0xa8] sm:$0xf]
                %1900 = vst [vmem:[%s1814 + $0x128] sm:$0xf] %v1899
                %v1901 = vld [vmem:[%s1813 + $0xac] sm:$0xf]
                %1902 = vst [vmem:[%s1814 + $0x12c] sm:$0xf] %v1901
                %v1903 = vld [vmem:[%s1813 + $0xb0] sm:$0xf]
                %1904 = vst [vmem:[%s1814 + $0x130] sm:$0xf] %v1903
                %v1905 = vld [vmem:[%s1813 + $0xb4] sm:$0xf]
                %1906 = vst [vmem:[%s1814 + $0x134] sm:$0xf] %v1905
                %v1907 = vld [vmem:[%s1813 + $0xb8] sm:$0xf]
                %1908 = vst [vmem:[%s1814 + $0x138] sm:$0xf] %v1907
                %v1909 = vld [vmem:[%s1813 + $0xbc] sm:$0xf]
                %1910 = vst [vmem:[%s1814 + $0x13c] sm:$0xf] %v1909
                %v1911 = vld [vmem:[%s1813 + $0xc0] sm:$0xf]
                %1912 = vst [vmem:[%s1814 + $0x180] sm:$0xf] %v1911
                %v1913 = vld [vmem:[%s1813 + $0xc4] sm:$0xf]
                %1914 = vst [vmem:[%s1814 + $0x184] sm:$0xf] %v1913
                %v1915 = vld [vmem:[%s1813 + $0xc8] sm:$0xf]
                %1916 = vst [vmem:[%s1814 + $0x188] sm:$0xf] %v1915
                %v1917 = vld [vmem:[%s1813 + $0xcc] sm:$0xf]
                %1918 = vst [vmem:[%s1814 + $0x18c] sm:$0xf] %v1917
                %v1919 = vld [vmem:[%s1813 + $0xd0] sm:$0xf]
                %1920 = vst [vmem:[%s1814 + $0x190] sm:$0xf] %v1919
                %v1921 = vld [vmem:[%s1813 + $0xd4] sm:$0xf]
                %1922 = vst [vmem:[%s1814 + $0x194] sm:$0xf] %v1921
                %v1923 = vld [vmem:[%s1813 + $0xd8] sm:$0xf]
                %1924 = vst [vmem:[%s1814 + $0x198] sm:$0xf] %v1923
                %v1925 = vld [vmem:[%s1813 + $0xdc] sm:$0xf]
                %1926 = vst [vmem:[%s1814 + $0x19c] sm:$0xf] %v1925
                %v1927 = vld [vmem:[%s1813 + $0xe0] sm:$0xf]
                %1928 = vst [vmem:[%s1814 + $0x1a0] sm:$0xf] %v1927
                %v1929 = vld [vmem:[%s1813 + $0xe4] sm:$0xf]
                %1930 = vst [vmem:[%s1814 + $0x1a4] sm:$0xf] %v1929
                %v1931 = vld [vmem:[%s1813 + $0xe8] sm:$0xf]
                %1932 = vst [vmem:[%s1814 + $0x1a8] sm:$0xf] %v1931
                %v1933 = vld [vmem:[%s1813 + $0xec] sm:$0xf]
                %1934 = vst [vmem:[%s1814 + $0x1ac] sm:$0xf] %v1933
                %v1935 = vld [vmem:[%s1813 + $0xf0] sm:$0xf]
                %1936 = vst [vmem:[%s1814 + $0x1b0] sm:$0xf] %v1935
                %v1937 = vld [vmem:[%s1813 + $0xf4] sm:$0xf]
                %1938 = vst [vmem:[%s1814 + $0x1b4] sm:$0xf] %v1937
                %v1939 = vld [vmem:[%s1813 + $0xf8] sm:$0xf]
                %1940 = vst [vmem:[%s1814 + $0x1b8] sm:$0xf] %v1939
                %v1941 = vld [vmem:[%s1813 + $0xfc] sm:$0xf]
                %1942 = vst [vmem:[%s1814 + $0x1bc] sm:$0xf] %v1941
              $region65: #{tpu_custom_call.1} parent=59 // loop_footer
                %s1812 = sadd.s32 1, %s1808
              $region66: #{tpu_custom_call.1} parent=59 // loop_footer_branch
                %1807 = sbr.rel target = $region62
              $region67: #{tpu_custom_call.1} parent=59 // loop_exit
                _
            $region60: #{tpu_custom_call.1} parent=51 // pred_fallthru
              _
          $region52: #{tpu_custom_call.1} parent=47 // pred_fallthru
            _
          %2090 = vnop
        $region48: #{tpu_custom_call.1} parent=35 // pred_fallthru
          _
        // Predicated region
        $region86: #{tpu_custom_call.1} parent=35 // pred_check
          %p2091 = pneg %p173
        $region87: #{tpu_custom_call.1} parent=35 // pred_check_branch
          %2093 = sbr.rel (%p2091) target = $region89
        $region88: #{tpu_custom_call.1} parent=35 // pred_region
          %s2094 = smul.u32 16, %s27
          %s2095 = smul.addr %s26, 128
          %s2096 = sadd.s32 %s2094, %s2095
          %s2097 = smul.addr %s2096, 4
          %s2098 = scalar_lea.vmem %s5, %s2097
          // Predicated region
          $region90: #{tpu_custom_call.1} parent=88 // pred_check
            _
          $region91: #{tpu_custom_call.1} parent=88 // pred_check_branch
            %2100 = sbr.rel (0) target = $region93
          $region92: #{tpu_custom_call.1} parent=88 // pred_region
            // Predicated region
            $region94: #{tpu_custom_call.1} parent=92 // pred_check
              _
            $region95: #{tpu_custom_call.1} parent=92 // pred_check_branch
              %2102 = sbr.rel target = $region97
            $region96: #{tpu_custom_call.1} parent=92 // pred_region
              // Predicated region
              $region109: #{tpu_custom_call.1} parent=96 // pred_check
                _
              $region110: #{tpu_custom_call.1} parent=96 // pred_check_branch
                %2243 = sbr.rel (0) target = $region112
              $region111: #{tpu_custom_call.1} parent=96 // pred_region
                loop: start=0, step=1, limit=1
                $region113: #{tpu_custom_call.1} parent=111 // loop_pre_header
                  _
                $region114: #{tpu_custom_call.1} parent=111 // loop_header
                  %s2245 = sphi 0, %s2249
                  %p2246 = scmp.ge.s32.totalorder %s2245, 1
                  %s2250 = sphi %s1787, %s1787
                  %s2251 = sphi %s2098, %s2098
                $region115: #{tpu_custom_call.1} parent=111 // loop_header_branch
                  %2248 = sbr.rel (%p2246) target = $region119
                $region116: #{tpu_custom_call.1} parent=111 // loop_body
                  _
                $region117: #{tpu_custom_call.1} parent=111 // loop_footer
                  %s2249 = sadd.s32 1, %s2245
                $region118: #{tpu_custom_call.1} parent=111 // loop_footer_branch
                  %2244 = sbr.rel target = $region114
                $region119: #{tpu_custom_call.1} parent=111 // loop_exit
                  _
                loop: start=0, step=1, limit=1
                $region120: #{tpu_custom_call.1} parent=111 // loop_pre_header
                  _
                $region121: #{tpu_custom_call.1} parent=111 // loop_header
                  %s2254 = sphi 0, %s2258
                  %p2255 = scmp.ge.s32.totalorder %s2254, 1
                  %s2259 = sphi %s1787, %s1787
                  %s2260 = sphi %s2098, %s2098
                $region122: #{tpu_custom_call.1} parent=111 // loop_header_branch
                  %2257 = sbr.rel (%p2255) target = $region126
                $region123: #{tpu_custom_call.1} parent=111 // loop_body
                  %v2261 = vld [vmem:[%s2259] sm:$0xf]
                  %2262 = vst [vmem:[%s2260] sm:$0xf] %v2261
                  %v2263 = vld [vmem:[%s2259 + $0x4] sm:$0xf]
                  %2264 = vst [vmem:[%s2260 + $0x4] sm:$0xf] %v2263
                  %v2265 = vld [vmem:[%s2259 + $0x8] sm:$0xf]
                  %2266 = vst [vmem:[%s2260 + $0x8] sm:$0xf] %v2265
                  %v2267 = vld [vmem:[%s2259 + $0xc] sm:$0xf]
                  %2268 = vst [vmem:[%s2260 + $0xc] sm:$0xf] %v2267
                  %v2269 = vld [vmem:[%s2259 + $0x10] sm:$0xf]
                  %2270 = vst [vmem:[%s2260 + $0x10] sm:$0xf] %v2269
                  %v2271 = vld [vmem:[%s2259 + $0x14] sm:$0xf]
                  %2272 = vst [vmem:[%s2260 + $0x14] sm:$0xf] %v2271
                  %v2273 = vld [vmem:[%s2259 + $0x18] sm:$0xf]
                  %2274 = vst [vmem:[%s2260 + $0x18] sm:$0xf] %v2273
                  %v2275 = vld [vmem:[%s2259 + $0x1c] sm:$0xf]
                  %2276 = vst [vmem:[%s2260 + $0x1c] sm:$0xf] %v2275
                  %v2277 = vld [vmem:[%s2259 + $0x20] sm:$0xf]
                  %2278 = vst [vmem:[%s2260 + $0x20] sm:$0xf] %v2277
                  %v2279 = vld [vmem:[%s2259 + $0x24] sm:$0xf]
                  %2280 = vst [vmem:[%s2260 + $0x24] sm:$0xf] %v2279
                  %v2281 = vld [vmem:[%s2259 + $0x28] sm:$0xf]
                  %2282 = vst [vmem:[%s2260 + $0x28] sm:$0xf] %v2281
                  %v2283 = vld [vmem:[%s2259 + $0x2c] sm:$0xf]
                  %2284 = vst [vmem:[%s2260 + $0x2c] sm:$0xf] %v2283
                  %v2285 = vld [vmem:[%s2259 + $0x30] sm:$0xf]
                  %2286 = vst [vmem:[%s2260 + $0x30] sm:$0xf] %v2285
                  %v2287 = vld [vmem:[%s2259 + $0x34] sm:$0xf]
                  %2288 = vst [vmem:[%s2260 + $0x34] sm:$0xf] %v2287
                  %v2289 = vld [vmem:[%s2259 + $0x38] sm:$0xf]
                  %2290 = vst [vmem:[%s2260 + $0x38] sm:$0xf] %v2289
                  %v2291 = vld [vmem:[%s2259 + $0x3c] sm:$0xf]
                  %2292 = vst [vmem:[%s2260 + $0x3c] sm:$0xf] %v2291
                  %v2293 = vld [vmem:[%s2259 + $0x40] sm:$0xf]
                  %2294 = vst [vmem:[%s2260 + $0x80] sm:$0xf] %v2293
                  %v2295 = vld [vmem:[%s2259 + $0x44] sm:$0xf]
                  %2296 = vst [vmem:[%s2260 + $0x84] sm:$0xf] %v2295
                  %v2297 = vld [vmem:[%s2259 + $0x48] sm:$0xf]
                  %2298 = vst [vmem:[%s2260 + $0x88] sm:$0xf] %v2297
                  %v2299 = vld [vmem:[%s2259 + $0x4c] sm:$0xf]
                  %2300 = vst [vmem:[%s2260 + $0x8c] sm:$0xf] %v2299
                  %v2301 = vld [vmem:[%s2259 + $0x50] sm:$0xf]
                  %2302 = vst [vmem:[%s2260 + $0x90] sm:$0xf] %v2301
                  %v2303 = vld [vmem:[%s2259 + $0x54] sm:$0xf]
                  %2304 = vst [vmem:[%s2260 + $0x94] sm:$0xf] %v2303
                  %v2305 = vld [vmem:[%s2259 + $0x58] sm:$0xf]
                  %2306 = vst [vmem:[%s2260 + $0x98] sm:$0xf] %v2305
                  %v2307 = vld [vmem:[%s2259 + $0x5c] sm:$0xf]
                  %2308 = vst [vmem:[%s2260 + $0x9c] sm:$0xf] %v2307
                  %v2309 = vld [vmem:[%s2259 + $0x60] sm:$0xf]
                  %2310 = vst [vmem:[%s2260 + $0xa0] sm:$0xf] %v2309
                  %v2311 = vld [vmem:[%s2259 + $0x64] sm:$0xf]
                  %2312 = vst [vmem:[%s2260 + $0xa4] sm:$0xf] %v2311
                  %v2313 = vld [vmem:[%s2259 + $0x68] sm:$0xf]
                  %2314 = vst [vmem:[%s2260 + $0xa8] sm:$0xf] %v2313
                  %v2315 = vld [vmem:[%s2259 + $0x6c] sm:$0xf]
                  %2316 = vst [vmem:[%s2260 + $0xac] sm:$0xf] %v2315
                  %v2317 = vld [vmem:[%s2259 + $0x70] sm:$0xf]
                  %2318 = vst [vmem:[%s2260 + $0xb0] sm:$0xf] %v2317
                  %v2319 = vld [vmem:[%s2259 + $0x74] sm:$0xf]
                  %2320 = vst [vmem:[%s2260 + $0xb4] sm:$0xf] %v2319
                  %v2321 = vld [vmem:[%s2259 + $0x78] sm:$0xf]
                  %2322 = vst [vmem:[%s2260 + $0xb8] sm:$0xf] %v2321
                  %v2323 = vld [vmem:[%s2259 + $0x7c] sm:$0xf]
                  %2324 = vst [vmem:[%s2260 + $0xbc] sm:$0xf] %v2323
                  %v2325 = vld [vmem:[%s2259 + $0x80] sm:$0xf]
                  %2326 = vst [vmem:[%s2260 + $0x100] sm:$0xf] %v2325
                  %v2327 = vld [vmem:[%s2259 + $0x84] sm:$0xf]
                  %2328 = vst [vmem:[%s2260 + $0x104] sm:$0xf] %v2327
                  %v2329 = vld [vmem:[%s2259 + $0x88] sm:$0xf]
                  %2330 = vst [vmem:[%s2260 + $0x108] sm:$0xf] %v2329
                  %v2331 = vld [vmem:[%s2259 + $0x8c] sm:$0xf]
                  %2332 = vst [vmem:[%s2260 + $0x10c] sm:$0xf] %v2331
                  %v2333 = vld [vmem:[%s2259 + $0x90] sm:$0xf]
                  %2334 = vst [vmem:[%s2260 + $0x110] sm:$0xf] %v2333
                  %v2335 = vld [vmem:[%s2259 + $0x94] sm:$0xf]
                  %2336 = vst [vmem:[%s2260 + $0x114] sm:$0xf] %v2335
                  %v2337 = vld [vmem:[%s2259 + $0x98] sm:$0xf]
                  %2338 = vst [vmem:[%s2260 + $0x118] sm:$0xf] %v2337
                  %v2339 = vld [vmem:[%s2259 + $0x9c] sm:$0xf]
                  %2340 = vst [vmem:[%s2260 + $0x11c] sm:$0xf] %v2339
                  %v2341 = vld [vmem:[%s2259 + $0xa0] sm:$0xf]
                  %2342 = vst [vmem:[%s2260 + $0x120] sm:$0xf] %v2341
                  %v2343 = vld [vmem:[%s2259 + $0xa4] sm:$0xf]
                  %2344 = vst [vmem:[%s2260 + $0x124] sm:$0xf] %v2343
                  %v2345 = vld [vmem:[%s2259 + $0xa8] sm:$0xf]
                  %2346 = vst [vmem:[%s2260 + $0x128] sm:$0xf] %v2345
                  %v2347 = vld [vmem:[%s2259 + $0xac] sm:$0xf]
                  %2348 = vst [vmem:[%s2260 + $0x12c] sm:$0xf] %v2347
                  %v2349 = vld [vmem:[%s2259 + $0xb0] sm:$0xf]
                  %2350 = vst [vmem:[%s2260 + $0x130] sm:$0xf] %v2349
                  %v2351 = vld [vmem:[%s2259 + $0xb4] sm:$0xf]
                  %2352 = vst [vmem:[%s2260 + $0x134] sm:$0xf] %v2351
                  %v2353 = vld [vmem:[%s2259 + $0xb8] sm:$0xf]
                  %2354 = vst [vmem:[%s2260 + $0x138] sm:$0xf] %v2353
                  %v2355 = vld [vmem:[%s2259 + $0xbc] sm:$0xf]
                  %2356 = vst [vmem:[%s2260 + $0x13c] sm:$0xf] %v2355
                  %v2357 = vld [vmem:[%s2259 + $0xc0] sm:$0xf]
                  %2358 = vst [vmem:[%s2260 + $0x180] sm:$0xf] %v2357
                  %v2359 = vld [vmem:[%s2259 + $0xc4] sm:$0xf]
                  %2360 = vst [vmem:[%s2260 + $0x184] sm:$0xf] %v2359
                  %v2361 = vld [vmem:[%s2259 + $0xc8] sm:$0xf]
                  %2362 = vst [vmem:[%s2260 + $0x188] sm:$0xf] %v2361
                  %v2363 = vld [vmem:[%s2259 + $0xcc] sm:$0xf]
                  %2364 = vst [vmem:[%s2260 + $0x18c] sm:$0xf] %v2363
                  %v2365 = vld [vmem:[%s2259 + $0xd0] sm:$0xf]
                  %2366 = vst [vmem:[%s2260 + $0x190] sm:$0xf] %v2365
                  %v2367 = vld [vmem:[%s2259 + $0xd4] sm:$0xf]
                  %2368 = vst [vmem:[%s2260 + $0x194] sm:$0xf] %v2367
                  %v2369 = vld [vmem:[%s2259 + $0xd8] sm:$0xf]
                  %2370 = vst [vmem:[%s2260 + $0x198] sm:$0xf] %v2369
                  %v2371 = vld [vmem:[%s2259 + $0xdc] sm:$0xf]
                  %2372 = vst [vmem:[%s2260 + $0x19c] sm:$0xf] %v2371
                  %v2373 = vld [vmem:[%s2259 + $0xe0] sm:$0xf]
                  %2374 = vst [vmem:[%s2260 + $0x1a0] sm:$0xf] %v2373
                  %v2375 = vld [vmem:[%s2259 + $0xe4] sm:$0xf]
                  %2376 = vst [vmem:[%s2260 + $0x1a4] sm:$0xf] %v2375
                  %v2377 = vld [vmem:[%s2259 + $0xe8] sm:$0xf]
                  %2378 = vst [vmem:[%s2260 + $0x1a8] sm:$0xf] %v2377
                  %v2379 = vld [vmem:[%s2259 + $0xec] sm:$0xf]
                  %2380 = vst [vmem:[%s2260 + $0x1ac] sm:$0xf] %v2379
                  %v2381 = vld [vmem:[%s2259 + $0xf0] sm:$0xf]
                  %2382 = vst [vmem:[%s2260 + $0x1b0] sm:$0xf] %v2381
                  %v2383 = vld [vmem:[%s2259 + $0xf4] sm:$0xf]
                  %2384 = vst [vmem:[%s2260 + $0x1b4] sm:$0xf] %v2383
                  %v2385 = vld [vmem:[%s2259 + $0xf8] sm:$0xf]
                  %2386 = vst [vmem:[%s2260 + $0x1b8] sm:$0xf] %v2385
                  %v2387 = vld [vmem:[%s2259 + $0xfc] sm:$0xf]
                  %2388 = vst [vmem:[%s2260 + $0x1bc] sm:$0xf] %v2387
                $region124: #{tpu_custom_call.1} parent=111 // loop_footer
                  %s2258 = sadd.s32 1, %s2254
                $region125: #{tpu_custom_call.1} parent=111 // loop_footer_branch
                  %2253 = sbr.rel target = $region121
                $region126: #{tpu_custom_call.1} parent=111 // loop_exit
                  _
              $region112: #{tpu_custom_call.1} parent=96 // pred_fallthru
                _
            $region97: #{tpu_custom_call.1} parent=92 // pred_fallthru
              _
            // Predicated region
            $region98: #{tpu_custom_call.1} parent=92 // pred_check
              _
            $region99: #{tpu_custom_call.1} parent=92 // pred_check_branch
              %2104 = sbr.rel (0) target = $region101
            $region100: #{tpu_custom_call.1} parent=92 // pred_region
              loop: start=0, step=1, limit=1
              $region102: #{tpu_custom_call.1} parent=100 // loop_pre_header
                _
              $region103: #{tpu_custom_call.1} parent=100 // loop_header
                %s2107 = sphi 0, %s2111
                %p2108 = scmp.ge.s32.totalorder %s2107, 1
                %s2112 = sphi %s1787, %s1787
                %s2113 = sphi %s2098, %s2098
              $region104: #{tpu_custom_call.1} parent=100 // loop_header_branch
                %2110 = sbr.rel (%p2108) target = $region108
              $region105: #{tpu_custom_call.1} parent=100 // loop_body
                %v2114 = vld [vmem:[%s2112] sm:$0xf]
                %2115 = vst [vmem:[%s2113] sm:$0xf] %v2114
                %v2116 = vld [vmem:[%s2112 + $0x4] sm:$0xf]
                %2117 = vst [vmem:[%s2113 + $0x4] sm:$0xf] %v2116
                %v2118 = vld [vmem:[%s2112 + $0x8] sm:$0xf]
                %2119 = vst [vmem:[%s2113 + $0x8] sm:$0xf] %v2118
                %v2120 = vld [vmem:[%s2112 + $0xc] sm:$0xf]
                %2121 = vst [vmem:[%s2113 + $0xc] sm:$0xf] %v2120
                %v2122 = vld [vmem:[%s2112 + $0x10] sm:$0xf]
                %2123 = vst [vmem:[%s2113 + $0x10] sm:$0xf] %v2122
                %v2124 = vld [vmem:[%s2112 + $0x14] sm:$0xf]
                %2125 = vst [vmem:[%s2113 + $0x14] sm:$0xf] %v2124
                %v2126 = vld [vmem:[%s2112 + $0x18] sm:$0xf]
                %2127 = vst [vmem:[%s2113 + $0x18] sm:$0xf] %v2126
                %v2128 = vld [vmem:[%s2112 + $0x1c] sm:$0xf]
                %2129 = vst [vmem:[%s2113 + $0x1c] sm:$0xf] %v2128
                %v2130 = vld [vmem:[%s2112 + $0x20] sm:$0xf]
                %2131 = vst [vmem:[%s2113 + $0x20] sm:$0xf] %v2130
                %v2132 = vld [vmem:[%s2112 + $0x24] sm:$0xf]
                %2133 = vst [vmem:[%s2113 + $0x24] sm:$0xf] %v2132
                %v2134 = vld [vmem:[%s2112 + $0x28] sm:$0xf]
                %2135 = vst [vmem:[%s2113 + $0x28] sm:$0xf] %v2134
                %v2136 = vld [vmem:[%s2112 + $0x2c] sm:$0xf]
                %2137 = vst [vmem:[%s2113 + $0x2c] sm:$0xf] %v2136
                %v2138 = vld [vmem:[%s2112 + $0x30] sm:$0xf]
                %2139 = vst [vmem:[%s2113 + $0x30] sm:$0xf] %v2138
                %v2140 = vld [vmem:[%s2112 + $0x34] sm:$0xf]
                %2141 = vst [vmem:[%s2113 + $0x34] sm:$0xf] %v2140
                %v2142 = vld [vmem:[%s2112 + $0x38] sm:$0xf]
                %2143 = vst [vmem:[%s2113 + $0x38] sm:$0xf] %v2142
                %v2144 = vld [vmem:[%s2112 + $0x3c] sm:$0xf]
                %2145 = vst [vmem:[%s2113 + $0x3c] sm:$0xf] %v2144
                %v2146 = vld [vmem:[%s2112 + $0x40] sm:$0xf]
                %2147 = vst [vmem:[%s2113 + $0x80] sm:$0xf] %v2146
                %v2148 = vld [vmem:[%s2112 + $0x44] sm:$0xf]
                %2149 = vst [vmem:[%s2113 + $0x84] sm:$0xf] %v2148
                %v2150 = vld [vmem:[%s2112 + $0x48] sm:$0xf]
                %2151 = vst [vmem:[%s2113 + $0x88] sm:$0xf] %v2150
                %v2152 = vld [vmem:[%s2112 + $0x4c] sm:$0xf]
                %2153 = vst [vmem:[%s2113 + $0x8c] sm:$0xf] %v2152
                %v2154 = vld [vmem:[%s2112 + $0x50] sm:$0xf]
                %2155 = vst [vmem:[%s2113 + $0x90] sm:$0xf] %v2154
                %v2156 = vld [vmem:[%s2112 + $0x54] sm:$0xf]
                %2157 = vst [vmem:[%s2113 + $0x94] sm:$0xf] %v2156
                %v2158 = vld [vmem:[%s2112 + $0x58] sm:$0xf]
                %2159 = vst [vmem:[%s2113 + $0x98] sm:$0xf] %v2158
                %v2160 = vld [vmem:[%s2112 + $0x5c] sm:$0xf]
                %2161 = vst [vmem:[%s2113 + $0x9c] sm:$0xf] %v2160
                %v2162 = vld [vmem:[%s2112 + $0x60] sm:$0xf]
                %2163 = vst [vmem:[%s2113 + $0xa0] sm:$0xf] %v2162
                %v2164 = vld [vmem:[%s2112 + $0x64] sm:$0xf]
                %2165 = vst [vmem:[%s2113 + $0xa4] sm:$0xf] %v2164
                %v2166 = vld [vmem:[%s2112 + $0x68] sm:$0xf]
                %2167 = vst [vmem:[%s2113 + $0xa8] sm:$0xf] %v2166
                %v2168 = vld [vmem:[%s2112 + $0x6c] sm:$0xf]
                %2169 = vst [vmem:[%s2113 + $0xac] sm:$0xf] %v2168
                %v2170 = vld [vmem:[%s2112 + $0x70] sm:$0xf]
                %2171 = vst [vmem:[%s2113 + $0xb0] sm:$0xf] %v2170
                %v2172 = vld [vmem:[%s2112 + $0x74] sm:$0xf]
                %2173 = vst [vmem:[%s2113 + $0xb4] sm:$0xf] %v2172
                %v2174 = vld [vmem:[%s2112 + $0x78] sm:$0xf]
                %2175 = vst [vmem:[%s2113 + $0xb8] sm:$0xf] %v2174
                %v2176 = vld [vmem:[%s2112 + $0x7c] sm:$0xf]
                %2177 = vst [vmem:[%s2113 + $0xbc] sm:$0xf] %v2176
                %v2178 = vld [vmem:[%s2112 + $0x80] sm:$0xf]
                %2179 = vst [vmem:[%s2113 + $0x100] sm:$0xf] %v2178
                %v2180 = vld [vmem:[%s2112 + $0x84] sm:$0xf]
                %2181 = vst [vmem:[%s2113 + $0x104] sm:$0xf] %v2180
                %v2182 = vld [vmem:[%s2112 + $0x88] sm:$0xf]
                %2183 = vst [vmem:[%s2113 + $0x108] sm:$0xf] %v2182
                %v2184 = vld [vmem:[%s2112 + $0x8c] sm:$0xf]
                %2185 = vst [vmem:[%s2113 + $0x10c] sm:$0xf] %v2184
                %v2186 = vld [vmem:[%s2112 + $0x90] sm:$0xf]
                %2187 = vst [vmem:[%s2113 + $0x110] sm:$0xf] %v2186
                %v2188 = vld [vmem:[%s2112 + $0x94] sm:$0xf]
                %2189 = vst [vmem:[%s2113 + $0x114] sm:$0xf] %v2188
                %v2190 = vld [vmem:[%s2112 + $0x98] sm:$0xf]
                %2191 = vst [vmem:[%s2113 + $0x118] sm:$0xf] %v2190
                %v2192 = vld [vmem:[%s2112 + $0x9c] sm:$0xf]
                %2193 = vst [vmem:[%s2113 + $0x11c] sm:$0xf] %v2192
                %v2194 = vld [vmem:[%s2112 + $0xa0] sm:$0xf]
                %2195 = vst [vmem:[%s2113 + $0x120] sm:$0xf] %v2194
                %v2196 = vld [vmem:[%s2112 + $0xa4] sm:$0xf]
                %2197 = vst [vmem:[%s2113 + $0x124] sm:$0xf] %v2196
                %v2198 = vld [vmem:[%s2112 + $0xa8] sm:$0xf]
                %2199 = vst [vmem:[%s2113 + $0x128] sm:$0xf] %v2198
                %v2200 = vld [vmem:[%s2112 + $0xac] sm:$0xf]
                %2201 = vst [vmem:[%s2113 + $0x12c] sm:$0xf] %v2200
                %v2202 = vld [vmem:[%s2112 + $0xb0] sm:$0xf]
                %2203 = vst [vmem:[%s2113 + $0x130] sm:$0xf] %v2202
                %v2204 = vld [vmem:[%s2112 + $0xb4] sm:$0xf]
                %2205 = vst [vmem:[%s2113 + $0x134] sm:$0xf] %v2204
                %v2206 = vld [vmem:[%s2112 + $0xb8] sm:$0xf]
                %2207 = vst [vmem:[%s2113 + $0x138] sm:$0xf] %v2206
                %v2208 = vld [vmem:[%s2112 + $0xbc] sm:$0xf]
                %2209 = vst [vmem:[%s2113 + $0x13c] sm:$0xf] %v2208
                %v2210 = vld [vmem:[%s2112 + $0xc0] sm:$0xf]
                %2211 = vst [vmem:[%s2113 + $0x180] sm:$0xf] %v2210
                %v2212 = vld [vmem:[%s2112 + $0xc4] sm:$0xf]
                %2213 = vst [vmem:[%s2113 + $0x184] sm:$0xf] %v2212
                %v2214 = vld [vmem:[%s2112 + $0xc8] sm:$0xf]
                %2215 = vst [vmem:[%s2113 + $0x188] sm:$0xf] %v2214
                %v2216 = vld [vmem:[%s2112 + $0xcc] sm:$0xf]
                %2217 = vst [vmem:[%s2113 + $0x18c] sm:$0xf] %v2216
                %v2218 = vld [vmem:[%s2112 + $0xd0] sm:$0xf]
                %2219 = vst [vmem:[%s2113 + $0x190] sm:$0xf] %v2218
                %v2220 = vld [vmem:[%s2112 + $0xd4] sm:$0xf]
                %2221 = vst [vmem:[%s2113 + $0x194] sm:$0xf] %v2220
                %v2222 = vld [vmem:[%s2112 + $0xd8] sm:$0xf]
                %2223 = vst [vmem:[%s2113 + $0x198] sm:$0xf] %v2222
                %v2224 = vld [vmem:[%s2112 + $0xdc] sm:$0xf]
                %2225 = vst [vmem:[%s2113 + $0x19c] sm:$0xf] %v2224
                %v2226 = vld [vmem:[%s2112 + $0xe0] sm:$0xf]
                %2227 = vst [vmem:[%s2113 + $0x1a0] sm:$0xf] %v2226
                %v2228 = vld [vmem:[%s2112 + $0xe4] sm:$0xf]
                %2229 = vst [vmem:[%s2113 + $0x1a4] sm:$0xf] %v2228
                %v2230 = vld [vmem:[%s2112 + $0xe8] sm:$0xf]
                %2231 = vst [vmem:[%s2113 + $0x1a8] sm:$0xf] %v2230
                %v2232 = vld [vmem:[%s2112 + $0xec] sm:$0xf]
                %2233 = vst [vmem:[%s2113 + $0x1ac] sm:$0xf] %v2232
                %v2234 = vld [vmem:[%s2112 + $0xf0] sm:$0xf]
                %2235 = vst [vmem:[%s2113 + $0x1b0] sm:$0xf] %v2234
                %v2236 = vld [vmem:[%s2112 + $0xf4] sm:$0xf]
                %2237 = vst [vmem:[%s2113 + $0x1b4] sm:$0xf] %v2236
                %v2238 = vld [vmem:[%s2112 + $0xf8] sm:$0xf]
                %2239 = vst [vmem:[%s2113 + $0x1b8] sm:$0xf] %v2238
                %v2240 = vld [vmem:[%s2112 + $0xfc] sm:$0xf]
                %2241 = vst [vmem:[%s2113 + $0x1bc] sm:$0xf] %v2240
              $region106: #{tpu_custom_call.1} parent=100 // loop_footer
                %s2111 = sadd.s32 1, %s2107
              $region107: #{tpu_custom_call.1} parent=100 // loop_footer_branch
                %2106 = sbr.rel target = $region103
              $region108: #{tpu_custom_call.1} parent=100 // loop_exit
                _
            $region101: #{tpu_custom_call.1} parent=92 // pred_fallthru
              _
          $region93: #{tpu_custom_call.1} parent=88 // pred_fallthru
            _
          %2389 = vnop
        $region89: #{tpu_custom_call.1} parent=35 // pred_fallthru
          _
        // Predicated region
        $region127: #{tpu_custom_call.1} parent=35 // pred_check
          %p2390 = pneg %p201
        $region128: #{tpu_custom_call.1} parent=35 // pred_check_branch
          %2392 = sbr.rel (%p2390) target = $region130
        $region129: #{tpu_custom_call.1} parent=35 // pred_region
          %s2393 = smul.u32 16, %s27
          %s2394 = smul.addr %s26, 128
          %s2395 = sadd.s32 %s2393, %s2394
          %s2396 = smul.addr %s2395, 4
          %s2397 = scalar_lea.vmem %s6, %s2396
          // Predicated region
          $region131: #{tpu_custom_call.1} parent=129 // pred_check
            _
          $region132: #{tpu_custom_call.1} parent=129 // pred_check_branch
            %2399 = sbr.rel (0) target = $region134
          $region133: #{tpu_custom_call.1} parent=129 // pred_region
            // Predicated region
            $region135: #{tpu_custom_call.1} parent=133 // pred_check
              _
            $region136: #{tpu_custom_call.1} parent=133 // pred_check_branch
              %2401 = sbr.rel target = $region138
            $region137: #{tpu_custom_call.1} parent=133 // pred_region
              // Predicated region
              $region150: #{tpu_custom_call.1} parent=137 // pred_check
                _
              $region151: #{tpu_custom_call.1} parent=137 // pred_check_branch
                %2542 = sbr.rel (0) target = $region153
              $region152: #{tpu_custom_call.1} parent=137 // pred_region
                loop: start=0, step=1, limit=1
                $region154: #{tpu_custom_call.1} parent=152 // loop_pre_header
                  _
                $region155: #{tpu_custom_call.1} parent=152 // loop_header
                  %s2544 = sphi 0, %s2548
                  %p2545 = scmp.ge.s32.totalorder %s2544, 1
                  %s2549 = sphi %s1791, %s1791
                  %s2550 = sphi %s2397, %s2397
                $region156: #{tpu_custom_call.1} parent=152 // loop_header_branch
                  %2547 = sbr.rel (%p2545) target = $region160
                $region157: #{tpu_custom_call.1} parent=152 // loop_body
                  _
                $region158: #{tpu_custom_call.1} parent=152 // loop_footer
                  %s2548 = sadd.s32 1, %s2544
                $region159: #{tpu_custom_call.1} parent=152 // loop_footer_branch
                  %2543 = sbr.rel target = $region155
                $region160: #{tpu_custom_call.1} parent=152 // loop_exit
                  _
                loop: start=0, step=1, limit=1
                $region161: #{tpu_custom_call.1} parent=152 // loop_pre_header
                  _
                $region162: #{tpu_custom_call.1} parent=152 // loop_header
                  %s2553 = sphi 0, %s2557
                  %p2554 = scmp.ge.s32.totalorder %s2553, 1
                  %s2558 = sphi %s1791, %s1791
                  %s2559 = sphi %s2397, %s2397
                $region163: #{tpu_custom_call.1} parent=152 // loop_header_branch
                  %2556 = sbr.rel (%p2554) target = $region167
                $region164: #{tpu_custom_call.1} parent=152 // loop_body
                  %v2560 = vld [vmem:[%s2558] sm:$0xf]
                  %2561 = vst [vmem:[%s2559] sm:$0xf] %v2560
                  %v2562 = vld [vmem:[%s2558 + $0x4] sm:$0xf]
                  %2563 = vst [vmem:[%s2559 + $0x4] sm:$0xf] %v2562
                  %v2564 = vld [vmem:[%s2558 + $0x8] sm:$0xf]
                  %2565 = vst [vmem:[%s2559 + $0x8] sm:$0xf] %v2564
                  %v2566 = vld [vmem:[%s2558 + $0xc] sm:$0xf]
                  %2567 = vst [vmem:[%s2559 + $0xc] sm:$0xf] %v2566
                  %v2568 = vld [vmem:[%s2558 + $0x10] sm:$0xf]
                  %2569 = vst [vmem:[%s2559 + $0x10] sm:$0xf] %v2568
                  %v2570 = vld [vmem:[%s2558 + $0x14] sm:$0xf]
                  %2571 = vst [vmem:[%s2559 + $0x14] sm:$0xf] %v2570
                  %v2572 = vld [vmem:[%s2558 + $0x18] sm:$0xf]
                  %2573 = vst [vmem:[%s2559 + $0x18] sm:$0xf] %v2572
                  %v2574 = vld [vmem:[%s2558 + $0x1c] sm:$0xf]
                  %2575 = vst [vmem:[%s2559 + $0x1c] sm:$0xf] %v2574
                  %v2576 = vld [vmem:[%s2558 + $0x20] sm:$0xf]
                  %2577 = vst [vmem:[%s2559 + $0x20] sm:$0xf] %v2576
                  %v2578 = vld [vmem:[%s2558 + $0x24] sm:$0xf]
                  %2579 = vst [vmem:[%s2559 + $0x24] sm:$0xf] %v2578
                  %v2580 = vld [vmem:[%s2558 + $0x28] sm:$0xf]
                  %2581 = vst [vmem:[%s2559 + $0x28] sm:$0xf] %v2580
                  %v2582 = vld [vmem:[%s2558 + $0x2c] sm:$0xf]
                  %2583 = vst [vmem:[%s2559 + $0x2c] sm:$0xf] %v2582
                  %v2584 = vld [vmem:[%s2558 + $0x30] sm:$0xf]
                  %2585 = vst [vmem:[%s2559 + $0x30] sm:$0xf] %v2584
                  %v2586 = vld [vmem:[%s2558 + $0x34] sm:$0xf]
                  %2587 = vst [vmem:[%s2559 + $0x34] sm:$0xf] %v2586
                  %v2588 = vld [vmem:[%s2558 + $0x38] sm:$0xf]
                  %2589 = vst [vmem:[%s2559 + $0x38] sm:$0xf] %v2588
                  %v2590 = vld [vmem:[%s2558 + $0x3c] sm:$0xf]
                  %2591 = vst [vmem:[%s2559 + $0x3c] sm:$0xf] %v2590
                  %v2592 = vld [vmem:[%s2558 + $0x40] sm:$0xf]
                  %2593 = vst [vmem:[%s2559 + $0x80] sm:$0xf] %v2592
                  %v2594 = vld [vmem:[%s2558 + $0x44] sm:$0xf]
                  %2595 = vst [vmem:[%s2559 + $0x84] sm:$0xf] %v2594
                  %v2596 = vld [vmem:[%s2558 + $0x48] sm:$0xf]
                  %2597 = vst [vmem:[%s2559 + $0x88] sm:$0xf] %v2596
                  %v2598 = vld [vmem:[%s2558 + $0x4c] sm:$0xf]
                  %2599 = vst [vmem:[%s2559 + $0x8c] sm:$0xf] %v2598
                  %v2600 = vld [vmem:[%s2558 + $0x50] sm:$0xf]
                  %2601 = vst [vmem:[%s2559 + $0x90] sm:$0xf] %v2600
                  %v2602 = vld [vmem:[%s2558 + $0x54] sm:$0xf]
                  %2603 = vst [vmem:[%s2559 + $0x94] sm:$0xf] %v2602
                  %v2604 = vld [vmem:[%s2558 + $0x58] sm:$0xf]
                  %2605 = vst [vmem:[%s2559 + $0x98] sm:$0xf] %v2604
                  %v2606 = vld [vmem:[%s2558 + $0x5c] sm:$0xf]
                  %2607 = vst [vmem:[%s2559 + $0x9c] sm:$0xf] %v2606
                  %v2608 = vld [vmem:[%s2558 + $0x60] sm:$0xf]
                  %2609 = vst [vmem:[%s2559 + $0xa0] sm:$0xf] %v2608
                  %v2610 = vld [vmem:[%s2558 + $0x64] sm:$0xf]
                  %2611 = vst [vmem:[%s2559 + $0xa4] sm:$0xf] %v2610
                  %v2612 = vld [vmem:[%s2558 + $0x68] sm:$0xf]
                  %2613 = vst [vmem:[%s2559 + $0xa8] sm:$0xf] %v2612
                  %v2614 = vld [vmem:[%s2558 + $0x6c] sm:$0xf]
                  %2615 = vst [vmem:[%s2559 + $0xac] sm:$0xf] %v2614
                  %v2616 = vld [vmem:[%s2558 + $0x70] sm:$0xf]
                  %2617 = vst [vmem:[%s2559 + $0xb0] sm:$0xf] %v2616
                  %v2618 = vld [vmem:[%s2558 + $0x74] sm:$0xf]
                  %2619 = vst [vmem:[%s2559 + $0xb4] sm:$0xf] %v2618
                  %v2620 = vld [vmem:[%s2558 + $0x78] sm:$0xf]
                  %2621 = vst [vmem:[%s2559 + $0xb8] sm:$0xf] %v2620
                  %v2622 = vld [vmem:[%s2558 + $0x7c] sm:$0xf]
                  %2623 = vst [vmem:[%s2559 + $0xbc] sm:$0xf] %v2622
                  %v2624 = vld [vmem:[%s2558 + $0x80] sm:$0xf]
                  %2625 = vst [vmem:[%s2559 + $0x100] sm:$0xf] %v2624
                  %v2626 = vld [vmem:[%s2558 + $0x84] sm:$0xf]
                  %2627 = vst [vmem:[%s2559 + $0x104] sm:$0xf] %v2626
                  %v2628 = vld [vmem:[%s2558 + $0x88] sm:$0xf]
                  %2629 = vst [vmem:[%s2559 + $0x108] sm:$0xf] %v2628
                  %v2630 = vld [vmem:[%s2558 + $0x8c] sm:$0xf]
                  %2631 = vst [vmem:[%s2559 + $0x10c] sm:$0xf] %v2630
                  %v2632 = vld [vmem:[%s2558 + $0x90] sm:$0xf]
                  %2633 = vst [vmem:[%s2559 + $0x110] sm:$0xf] %v2632
                  %v2634 = vld [vmem:[%s2558 + $0x94] sm:$0xf]
                  %2635 = vst [vmem:[%s2559 + $0x114] sm:$0xf] %v2634
                  %v2636 = vld [vmem:[%s2558 + $0x98] sm:$0xf]
                  %2637 = vst [vmem:[%s2559 + $0x118] sm:$0xf] %v2636
                  %v2638 = vld [vmem:[%s2558 + $0x9c] sm:$0xf]
                  %2639 = vst [vmem:[%s2559 + $0x11c] sm:$0xf] %v2638
                  %v2640 = vld [vmem:[%s2558 + $0xa0] sm:$0xf]
                  %2641 = vst [vmem:[%s2559 + $0x120] sm:$0xf] %v2640
                  %v2642 = vld [vmem:[%s2558 + $0xa4] sm:$0xf]
                  %2643 = vst [vmem:[%s2559 + $0x124] sm:$0xf] %v2642
                  %v2644 = vld [vmem:[%s2558 + $0xa8] sm:$0xf]
                  %2645 = vst [vmem:[%s2559 + $0x128] sm:$0xf] %v2644
                  %v2646 = vld [vmem:[%s2558 + $0xac] sm:$0xf]
                  %2647 = vst [vmem:[%s2559 + $0x12c] sm:$0xf] %v2646
                  %v2648 = vld [vmem:[%s2558 + $0xb0] sm:$0xf]
                  %2649 = vst [vmem:[%s2559 + $0x130] sm:$0xf] %v2648
                  %v2650 = vld [vmem:[%s2558 + $0xb4] sm:$0xf]
                  %2651 = vst [vmem:[%s2559 + $0x134] sm:$0xf] %v2650
                  %v2652 = vld [vmem:[%s2558 + $0xb8] sm:$0xf]
                  %2653 = vst [vmem:[%s2559 + $0x138] sm:$0xf] %v2652
                  %v2654 = vld [vmem:[%s2558 + $0xbc] sm:$0xf]
                  %2655 = vst [vmem:[%s2559 + $0x13c] sm:$0xf] %v2654
                  %v2656 = vld [vmem:[%s2558 + $0xc0] sm:$0xf]
                  %2657 = vst [vmem:[%s2559 + $0x180] sm:$0xf] %v2656
                  %v2658 = vld [vmem:[%s2558 + $0xc4] sm:$0xf]
                  %2659 = vst [vmem:[%s2559 + $0x184] sm:$0xf] %v2658
                  %v2660 = vld [vmem:[%s2558 + $0xc8] sm:$0xf]
                  %2661 = vst [vmem:[%s2559 + $0x188] sm:$0xf] %v2660
                  %v2662 = vld [vmem:[%s2558 + $0xcc] sm:$0xf]
                  %2663 = vst [vmem:[%s2559 + $0x18c] sm:$0xf] %v2662
                  %v2664 = vld [vmem:[%s2558 + $0xd0] sm:$0xf]
                  %2665 = vst [vmem:[%s2559 + $0x190] sm:$0xf] %v2664
                  %v2666 = vld [vmem:[%s2558 + $0xd4] sm:$0xf]
                  %2667 = vst [vmem:[%s2559 + $0x194] sm:$0xf] %v2666
                  %v2668 = vld [vmem:[%s2558 + $0xd8] sm:$0xf]
                  %2669 = vst [vmem:[%s2559 + $0x198] sm:$0xf] %v2668
                  %v2670 = vld [vmem:[%s2558 + $0xdc] sm:$0xf]
                  %2671 = vst [vmem:[%s2559 + $0x19c] sm:$0xf] %v2670
                  %v2672 = vld [vmem:[%s2558 + $0xe0] sm:$0xf]
                  %2673 = vst [vmem:[%s2559 + $0x1a0] sm:$0xf] %v2672
                  %v2674 = vld [vmem:[%s2558 + $0xe4] sm:$0xf]
                  %2675 = vst [vmem:[%s2559 + $0x1a4] sm:$0xf] %v2674
                  %v2676 = vld [vmem:[%s2558 + $0xe8] sm:$0xf]
                  %2677 = vst [vmem:[%s2559 + $0x1a8] sm:$0xf] %v2676
                  %v2678 = vld [vmem:[%s2558 + $0xec] sm:$0xf]
                  %2679 = vst [vmem:[%s2559 + $0x1ac] sm:$0xf] %v2678
                  %v2680 = vld [vmem:[%s2558 + $0xf0] sm:$0xf]
                  %2681 = vst [vmem:[%s2559 + $0x1b0] sm:$0xf] %v2680
                  %v2682 = vld [vmem:[%s2558 + $0xf4] sm:$0xf]
                  %2683 = vst [vmem:[%s2559 + $0x1b4] sm:$0xf] %v2682
                  %v2684 = vld [vmem:[%s2558 + $0xf8] sm:$0xf]
                  %2685 = vst [vmem:[%s2559 + $0x1b8] sm:$0xf] %v2684
                  %v2686 = vld [vmem:[%s2558 + $0xfc] sm:$0xf]
                  %2687 = vst [vmem:[%s2559 + $0x1bc] sm:$0xf] %v2686
                $region165: #{tpu_custom_call.1} parent=152 // loop_footer
                  %s2557 = sadd.s32 1, %s2553
                $region166: #{tpu_custom_call.1} parent=152 // loop_footer_branch
                  %2552 = sbr.rel target = $region162
                $region167: #{tpu_custom_call.1} parent=152 // loop_exit
                  _
              $region153: #{tpu_custom_call.1} parent=137 // pred_fallthru
                _
            $region138: #{tpu_custom_call.1} parent=133 // pred_fallthru
              _
            // Predicated region
            $region139: #{tpu_custom_call.1} parent=133 // pred_check
              _
            $region140: #{tpu_custom_call.1} parent=133 // pred_check_branch
              %2403 = sbr.rel (0) target = $region142
            $region141: #{tpu_custom_call.1} parent=133 // pred_region
              loop: start=0, step=1, limit=1
              $region143: #{tpu_custom_call.1} parent=141 // loop_pre_header
                _
              $region144: #{tpu_custom_call.1} parent=141 // loop_header
                %s2406 = sphi 0, %s2410
                %p2407 = scmp.ge.s32.totalorder %s2406, 1
                %s2411 = sphi %s1791, %s1791
                %s2412 = sphi %s2397, %s2397
              $region145: #{tpu_custom_call.1} parent=141 // loop_header_branch
                %2409 = sbr.rel (%p2407) target = $region149
              $region146: #{tpu_custom_call.1} parent=141 // loop_body
                %v2413 = vld [vmem:[%s2411] sm:$0xf]
                %2414 = vst [vmem:[%s2412] sm:$0xf] %v2413
                %v2415 = vld [vmem:[%s2411 + $0x4] sm:$0xf]
                %2416 = vst [vmem:[%s2412 + $0x4] sm:$0xf] %v2415
                %v2417 = vld [vmem:[%s2411 + $0x8] sm:$0xf]
                %2418 = vst [vmem:[%s2412 + $0x8] sm:$0xf] %v2417
                %v2419 = vld [vmem:[%s2411 + $0xc] sm:$0xf]
                %2420 = vst [vmem:[%s2412 + $0xc] sm:$0xf] %v2419
                %v2421 = vld [vmem:[%s2411 + $0x10] sm:$0xf]
                %2422 = vst [vmem:[%s2412 + $0x10] sm:$0xf] %v2421
                %v2423 = vld [vmem:[%s2411 + $0x14] sm:$0xf]
                %2424 = vst [vmem:[%s2412 + $0x14] sm:$0xf] %v2423
                %v2425 = vld [vmem:[%s2411 + $0x18] sm:$0xf]
                %2426 = vst [vmem:[%s2412 + $0x18] sm:$0xf] %v2425
                %v2427 = vld [vmem:[%s2411 + $0x1c] sm:$0xf]
                %2428 = vst [vmem:[%s2412 + $0x1c] sm:$0xf] %v2427
                %v2429 = vld [vmem:[%s2411 + $0x20] sm:$0xf]
                %2430 = vst [vmem:[%s2412 + $0x20] sm:$0xf] %v2429
                %v2431 = vld [vmem:[%s2411 + $0x24] sm:$0xf]
                %2432 = vst [vmem:[%s2412 + $0x24] sm:$0xf] %v2431
                %v2433 = vld [vmem:[%s2411 + $0x28] sm:$0xf]
                %2434 = vst [vmem:[%s2412 + $0x28] sm:$0xf] %v2433
                %v2435 = vld [vmem:[%s2411 + $0x2c] sm:$0xf]
                %2436 = vst [vmem:[%s2412 + $0x2c] sm:$0xf] %v2435
                %v2437 = vld [vmem:[%s2411 + $0x30] sm:$0xf]
                %2438 = vst [vmem:[%s2412 + $0x30] sm:$0xf] %v2437
                %v2439 = vld [vmem:[%s2411 + $0x34] sm:$0xf]
                %2440 = vst [vmem:[%s2412 + $0x34] sm:$0xf] %v2439
                %v2441 = vld [vmem:[%s2411 + $0x38] sm:$0xf]
                %2442 = vst [vmem:[%s2412 + $0x38] sm:$0xf] %v2441
                %v2443 = vld [vmem:[%s2411 + $0x3c] sm:$0xf]
                %2444 = vst [vmem:[%s2412 + $0x3c] sm:$0xf] %v2443
                %v2445 = vld [vmem:[%s2411 + $0x40] sm:$0xf]
                %2446 = vst [vmem:[%s2412 + $0x80] sm:$0xf] %v2445
                %v2447 = vld [vmem:[%s2411 + $0x44] sm:$0xf]
                %2448 = vst [vmem:[%s2412 + $0x84] sm:$0xf] %v2447
                %v2449 = vld [vmem:[%s2411 + $0x48] sm:$0xf]
                %2450 = vst [vmem:[%s2412 + $0x88] sm:$0xf] %v2449
                %v2451 = vld [vmem:[%s2411 + $0x4c] sm:$0xf]
                %2452 = vst [vmem:[%s2412 + $0x8c] sm:$0xf] %v2451
                %v2453 = vld [vmem:[%s2411 + $0x50] sm:$0xf]
                %2454 = vst [vmem:[%s2412 + $0x90] sm:$0xf] %v2453
                %v2455 = vld [vmem:[%s2411 + $0x54] sm:$0xf]
                %2456 = vst [vmem:[%s2412 + $0x94] sm:$0xf] %v2455
                %v2457 = vld [vmem:[%s2411 + $0x58] sm:$0xf]
                %2458 = vst [vmem:[%s2412 + $0x98] sm:$0xf] %v2457
                %v2459 = vld [vmem:[%s2411 + $0x5c] sm:$0xf]
                %2460 = vst [vmem:[%s2412 + $0x9c] sm:$0xf] %v2459
                %v2461 = vld [vmem:[%s2411 + $0x60] sm:$0xf]
                %2462 = vst [vmem:[%s2412 + $0xa0] sm:$0xf] %v2461
                %v2463 = vld [vmem:[%s2411 + $0x64] sm:$0xf]
                %2464 = vst [vmem:[%s2412 + $0xa4] sm:$0xf] %v2463
                %v2465 = vld [vmem:[%s2411 + $0x68] sm:$0xf]
                %2466 = vst [vmem:[%s2412 + $0xa8] sm:$0xf] %v2465
                %v2467 = vld [vmem:[%s2411 + $0x6c] sm:$0xf]
                %2468 = vst [vmem:[%s2412 + $0xac] sm:$0xf] %v2467
                %v2469 = vld [vmem:[%s2411 + $0x70] sm:$0xf]
                %2470 = vst [vmem:[%s2412 + $0xb0] sm:$0xf] %v2469
                %v2471 = vld [vmem:[%s2411 + $0x74] sm:$0xf]
                %2472 = vst [vmem:[%s2412 + $0xb4] sm:$0xf] %v2471
                %v2473 = vld [vmem:[%s2411 + $0x78] sm:$0xf]
                %2474 = vst [vmem:[%s2412 + $0xb8] sm:$0xf] %v2473
                %v2475 = vld [vmem:[%s2411 + $0x7c] sm:$0xf]
                %2476 = vst [vmem:[%s2412 + $0xbc] sm:$0xf] %v2475
                %v2477 = vld [vmem:[%s2411 + $0x80] sm:$0xf]
                %2478 = vst [vmem:[%s2412 + $0x100] sm:$0xf] %v2477
                %v2479 = vld [vmem:[%s2411 + $0x84] sm:$0xf]
                %2480 = vst [vmem:[%s2412 + $0x104] sm:$0xf] %v2479
                %v2481 = vld [vmem:[%s2411 + $0x88] sm:$0xf]
                %2482 = vst [vmem:[%s2412 + $0x108] sm:$0xf] %v2481
                %v2483 = vld [vmem:[%s2411 + $0x8c] sm:$0xf]
                %2484 = vst [vmem:[%s2412 + $0x10c] sm:$0xf] %v2483
                %v2485 = vld [vmem:[%s2411 + $0x90] sm:$0xf]
                %2486 = vst [vmem:[%s2412 + $0x110] sm:$0xf] %v2485
                %v2487 = vld [vmem:[%s2411 + $0x94] sm:$0xf]
                %2488 = vst [vmem:[%s2412 + $0x114] sm:$0xf] %v2487
                %v2489 = vld [vmem:[%s2411 + $0x98] sm:$0xf]
                %2490 = vst [vmem:[%s2412 + $0x118] sm:$0xf] %v2489
                %v2491 = vld [vmem:[%s2411 + $0x9c] sm:$0xf]
                %2492 = vst [vmem:[%s2412 + $0x11c] sm:$0xf] %v2491
                %v2493 = vld [vmem:[%s2411 + $0xa0] sm:$0xf]
                %2494 = vst [vmem:[%s2412 + $0x120] sm:$0xf] %v2493
                %v2495 = vld [vmem:[%s2411 + $0xa4] sm:$0xf]
                %2496 = vst [vmem:[%s2412 + $0x124] sm:$0xf] %v2495
                %v2497 = vld [vmem:[%s2411 + $0xa8] sm:$0xf]
                %2498 = vst [vmem:[%s2412 + $0x128] sm:$0xf] %v2497
                %v2499 = vld [vmem:[%s2411 + $0xac] sm:$0xf]
                %2500 = vst [vmem:[%s2412 + $0x12c] sm:$0xf] %v2499
                %v2501 = vld [vmem:[%s2411 + $0xb0] sm:$0xf]
                %2502 = vst [vmem:[%s2412 + $0x130] sm:$0xf] %v2501
                %v2503 = vld [vmem:[%s2411 + $0xb4] sm:$0xf]
                %2504 = vst [vmem:[%s2412 + $0x134] sm:$0xf] %v2503
                %v2505 = vld [vmem:[%s2411 + $0xb8] sm:$0xf]
                %2506 = vst [vmem:[%s2412 + $0x138] sm:$0xf] %v2505
                %v2507 = vld [vmem:[%s2411 + $0xbc] sm:$0xf]
                %2508 = vst [vmem:[%s2412 + $0x13c] sm:$0xf] %v2507
                %v2509 = vld [vmem:[%s2411 + $0xc0] sm:$0xf]
                %2510 = vst [vmem:[%s2412 + $0x180] sm:$0xf] %v2509
                %v2511 = vld [vmem:[%s2411 + $0xc4] sm:$0xf]
                %2512 = vst [vmem:[%s2412 + $0x184] sm:$0xf] %v2511
                %v2513 = vld [vmem:[%s2411 + $0xc8] sm:$0xf]
                %2514 = vst [vmem:[%s2412 + $0x188] sm:$0xf] %v2513
                %v2515 = vld [vmem:[%s2411 + $0xcc] sm:$0xf]
                %2516 = vst [vmem:[%s2412 + $0x18c] sm:$0xf] %v2515
                %v2517 = vld [vmem:[%s2411 + $0xd0] sm:$0xf]
                %2518 = vst [vmem:[%s2412 + $0x190] sm:$0xf] %v2517
                %v2519 = vld [vmem:[%s2411 + $0xd4] sm:$0xf]
                %2520 = vst [vmem:[%s2412 + $0x194] sm:$0xf] %v2519
                %v2521 = vld [vmem:[%s2411 + $0xd8] sm:$0xf]
                %2522 = vst [vmem:[%s2412 + $0x198] sm:$0xf] %v2521
                %v2523 = vld [vmem:[%s2411 + $0xdc] sm:$0xf]
                %2524 = vst [vmem:[%s2412 + $0x19c] sm:$0xf] %v2523
                %v2525 = vld [vmem:[%s2411 + $0xe0] sm:$0xf]
                %2526 = vst [vmem:[%s2412 + $0x1a0] sm:$0xf] %v2525
                %v2527 = vld [vmem:[%s2411 + $0xe4] sm:$0xf]
                %2528 = vst [vmem:[%s2412 + $0x1a4] sm:$0xf] %v2527
                %v2529 = vld [vmem:[%s2411 + $0xe8] sm:$0xf]
                %2530 = vst [vmem:[%s2412 + $0x1a8] sm:$0xf] %v2529
                %v2531 = vld [vmem:[%s2411 + $0xec] sm:$0xf]
                %2532 = vst [vmem:[%s2412 + $0x1ac] sm:$0xf] %v2531
                %v2533 = vld [vmem:[%s2411 + $0xf0] sm:$0xf]
                %2534 = vst [vmem:[%s2412 + $0x1b0] sm:$0xf] %v2533
                %v2535 = vld [vmem:[%s2411 + $0xf4] sm:$0xf]
                %2536 = vst [vmem:[%s2412 + $0x1b4] sm:$0xf] %v2535
                %v2537 = vld [vmem:[%s2411 + $0xf8] sm:$0xf]
                %2538 = vst [vmem:[%s2412 + $0x1b8] sm:$0xf] %v2537
                %v2539 = vld [vmem:[%s2411 + $0xfc] sm:$0xf]
                %2540 = vst [vmem:[%s2412 + $0x1bc] sm:$0xf] %v2539
              $region147: #{tpu_custom_call.1} parent=141 // loop_footer
                %s2410 = sadd.s32 1, %s2406
              $region148: #{tpu_custom_call.1} parent=141 // loop_footer_branch
                %2405 = sbr.rel target = $region144
              $region149: #{tpu_custom_call.1} parent=141 // loop_exit
                _
            $region142: #{tpu_custom_call.1} parent=133 // pred_fallthru
              _
          $region134: #{tpu_custom_call.1} parent=129 // pred_fallthru
            _
          %2688 = vnop
        $region130: #{tpu_custom_call.1} parent=35 // pred_fallthru
          _
      $region36: #{tpu_custom_call.1} parent=5 // pred_fallthru
        _
      %p2689 = scmp.le.s32.totalorder 2, %s17
      // Predicated region
      $region168: #{tpu_custom_call.1} parent=5 // pred_check
        %p2690 = pneg %p2689
      $region169: #{tpu_custom_call.1} parent=5 // pred_check_branch
        %2692 = sbr.rel (%p2690) target = $region171
      $region170: #{tpu_custom_call.1} parent=5 // pred_region
        %s2693 = ssub.s32 %s17, 2
        // Predicated region
        $region172: #{tpu_custom_call.1} parent=170 // pred_check
          %p2694 = pneg %p151
        $region173: #{tpu_custom_call.1} parent=170 // pred_check_branch
          %2696 = sbr.rel (%p2694) target = $region175
        $region174: #{tpu_custom_call.1} parent=170 // pred_region
          %s2697 = sand.u32 %s136, 1
          %s2698 = sand.u32 %s136, 1
          %s2699 = smul.addr %s2698, 256
          %s2700 = scalar_lea.vmem [#allocation6], %s2699
        $region175: #{tpu_custom_call.1} parent=170 // pred_fallthru
          _
        // Predicated region
        $region176: #{tpu_custom_call.1} parent=170 // pred_check
          %p2701 = pneg %p179
        $region177: #{tpu_custom_call.1} parent=170 // pred_check_branch
          %2703 = sbr.rel (%p2701) target = $region179
        $region178: #{tpu_custom_call.1} parent=170 // pred_region
          %s2704 = sand.u32 %s164, 1
          %s2705 = sand.u32 %s164, 1
          %s2706 = smul.addr %s2705, 256
          %s2707 = scalar_lea.vmem [#allocation7], %s2706
        $region179: #{tpu_custom_call.1} parent=170 // pred_fallthru
          _
        // Predicated region
        $region180: #{tpu_custom_call.1} parent=170 // pred_check
          %p2708 = pneg %p207
        $region181: #{tpu_custom_call.1} parent=170 // pred_check_branch
          %2710 = sbr.rel (%p2708) target = $region183
        $region182: #{tpu_custom_call.1} parent=170 // pred_region
          %s2711 = sand.u32 %s192, 1
          %s2712 = sand.u32 %s192, 1
          %s2713 = smul.addr %s2712, 256
          %s2714 = scalar_lea.vmem [#allocation8], %s2713
        $region183: #{tpu_custom_call.1} parent=170 // pred_fallthru
          _
      $region171: #{tpu_custom_call.1} parent=5 // pred_fallthru
        _
    $region6: #{tpu_custom_call.1} parent=1 // loop_footer
      %s21 = sadd.s32 1, %s17
    $region7: #{tpu_custom_call.1} parent=1 // loop_footer_branch
      %16 = sbr.rel target = $region3
    $region8: #{tpu_custom_call.1} parent=1 // loop_exit
      _
    %2715 = vsyncpa [#allocation3], 1
    %s2716 = scalar_lea.sflag [#allocation3], 1
    %2717 = vsyncpa %s2716, 1
    %2718 = vsyncpa [#allocation5], 1

// kernel: tpu_custom_call.1
$region0: #{tpu_custom_call.1}
  #allocation0 [shape = 'u32[]', space=smem, size = 0x4, offset = 0x4, fixed_abs, tag = 'smem constant byte address 0x4 - core index']
  #allocation1 [shape = 'u32[144,128]{1,0:T(1,128)}', space=vmem, size = 0x12000, scoped, tag = 'internal scratch']
  %s0 = inlined_call_operand.hbm [shape: f32[2,256,128], index: 0, kind: input, shape index: {}]
  %s1 = inlined_call_operand.vmem [shape: f32[1,128], index: 1, kind: input, shape index: {}]
  %s2 = inlined_call_operand.vmem [shape: f32[1,128], index: 2, kind: input, shape index: {}]
  %s3 = inlined_call_operand.hbm [shape: bf16[128,384], index: 3, kind: input, shape index: {}]
  %s4 = inlined_call_operand.vmem [shape: bf16[2,4,256,32], index: 4, kind: output, shape index: {0}]
  %s5 = inlined_call_operand.vmem [shape: bf16[2,4,256,32], index: 5, kind: output, shape index: {1}]
  %s6 = inlined_call_operand.vmem [shape: bf16[2,4,256,32], index: 6, kind: output, shape index: {2}]
  %7 = xla_tuple %s4, %s5, %s6
  %s8 = sld [smem:[#allocation0]]
  $region184: #{tpu_custom_call.1} parent=0
    _
  %s10 = ssub.s32 1, %s8
  %s11 = scalar_select 0, %s10, %s8
  $region1: #{tpu_custom_call.1} parent=0
    #allocation2 [shape = 'u8[131072]{0}', space=vmem, size = 0x20000, scoped, tag = 'input window, operand 0']
    #allocation3 [shape = 's32[2]{0}', space=sflag, size = 0x8, scoped, tag = 'scoped memory for tpu_custom_call.1']
    #allocation4 [shape = 'u8[98304]{0}', space=vmem, size = 0x18000, scoped, tag = 'input window, operand 3, single buffered']
    #allocation5 [shape = 's32[1]{0}', space=sflag, size = 0x4, scoped, tag = 'scoped memory for tpu_custom_call.1']
    #allocation6 [shape = 'u8[262144]{0}', space=vmem, size = 0x40000, scoped, tag = 'output window, operand 0']
    #allocation7 [shape = 'u8[262144]{0}', space=vmem, size = 0x40000, scoped, tag = 'output window, operand 1']
    #allocation8 [shape = 'u8[262144]{0}', space=vmem, size = 0x40000, scoped, tag = 'output window, operand 2']
    %12 = vsyncpa [#allocation3], 0
    %s13 = scalar_lea.sflag [#allocation3], 1
    %14 = vsyncpa %s13, 0
    %15 = vsyncpa [#allocation5], 0
    loop: start=0, step=1, limit=6
    $region2: #{tpu_custom_call.1} parent=1 // loop_pre_header
      _
    $region3: #{tpu_custom_call.1} parent=1 // loop_header
      %s17 = sphi 0, %s21
      %p18 = scmp.ge.s32.totalorder %s17, 6
      %s24 = sphi 0, %s36
      %s25 = sphi 0, %s32
      %s26 = sphi 0, %s24
      %s27 = sphi 0, %s25
      %s28 = sphi 0, %s26
      %s29 = sphi 0, %s27
      %s41 = sphi 0, %s43
      %s44 = sphi 0, %s41
      %s45 = sphi 0, %s44
      %s61 = sphi 0, %s45
      %s65 = sphi 0, %s65
      %s67 = sphi 0, %s65
      %s68 = sphi 0, %s67
      %s82 = sphi 0, %s68
      %s86 = sphi 0, %s86
      %s88 = sphi 0, %s86
      %s89 = sphi 0, %s88
      %s103 = sphi 0, %s89
      %s107 = sphi 0, %s107
      %s109 = sphi 0, %s107
      %s110 = sphi 0, %s109
      %s124 = sphi 0, %s110
      %s132 = sphi 0, %s134
      %s135 = sphi 0, %s132
      %s136 = sphi 0, %s135
      %s152 = sphi 0, %s136
      %s160 = sphi 0, %s162
      %s163 = sphi 0, %s160
      %s164 = sphi 0, %s163
      %s180 = sphi 0, %s164
      %s188 = sphi 0, %s190
      %s191 = sphi 0, %s188
      %s192 = sphi 0, %s191
      %s208 = sphi 0, %s192
    $region4: #{tpu_custom_call.1} parent=1 // loop_header_branch
      %20 = sbr.rel (%p18) target = $region8
    $region5: #{tpu_custom_call.1} parent=1 // loop_body
      %s22 = ssub.s32 %s17, 1
      %s23 = ssub.s32 %s17, 2
      %s30 = sadd.s32 1, %s25
      %p31 = scmp.ge.s32.totalorder %s30, 2
      %s32 = scalar_select %p31, 0, %s30
      %s33 = sadd.s32 1, %s24
      %s34 = scalar_select %p31, %s33, %s24
      %p35 = scmp.ge.s32.totalorder %s34, 2
      %s36 = scalar_select %p35, 0, %s34
      %s37 = ssub.s32 %s24, %s36
      %s38 = ssub.s32 %s25, %s32
      %s39 = sor.u32 %s37, %s38
      %p40 = scmp.eq.s32.totalorder %s39, 0
      %s42 = sadd.s32 %s41, 1
      %s43 = scalar_select %p40, %s41, %s42
      %p46 = pneg %p40
      %p47 = scmp.eq.s32.totalorder %s17, 3
      %p48 = por %p46, %p47
      %p49 = scmp.ne.s32.totalorder %s41, %s44
      %p50 = scmp.eq.s32.totalorder %s17, 0
      %p51 = por %p49, %p50
      %p52 = scmp.ne.s32.totalorder %s41, %s44
      %p53 = scmp.eq.s32.totalorder %s22, 3
      %p54 = por %p52, %p53
      %p55 = scmp.ne.s32.totalorder %s44, %s45
      %p56 = scmp.eq.s32.totalorder %s22, 0
      %p57 = por %p55, %p56
      %p58 = scmp.ne.s32.totalorder %s44, %s45
      %p59 = scmp.eq.s32.totalorder %s23, 3
      %p60 = por %p58, %p59
      %p62 = scmp.ne.s32.totalorder %s45, %s61
      %p63 = scmp.eq.s32.totalorder %s23, 0
      %p64 = por %p62, %p63
      %s66 = sadd.s32 %s65, 1
      %p69 = scmp.eq.s32.totalorder %s17, 3
      %p70 = scmp.ne.s32.totalorder %s65, %s67
      %p71 = scmp.eq.s32.totalorder %s17, 0
      %p72 = por %p70, %p71
      %p73 = scmp.ne.s32.totalorder %s65, %s67
      %p74 = scmp.eq.s32.totalorder %s22, 3
      %p75 = por %p73, %p74
      %p76 = scmp.ne.s32.totalorder %s67, %s68
      %p77 = scmp.eq.s32.totalorder %s22, 0
      %p78 = por %p76, %p77
      %p79 = scmp.ne.s32.totalorder %s67, %s68
      %p80 = scmp.eq.s32.totalorder %s23, 3
      %p81 = por %p79, %p80
      %p83 = scmp.ne.s32.totalorder %s68, %s82
      %p84 = scmp.eq.s32.totalorder %s23, 0
      %p85 = por %p83, %p84
      %s87 = sadd.s32 %s86, 1
      %p90 = scmp.eq.s32.totalorder %s17, 3
      %p91 = scmp.ne.s32.totalorder %s86, %s88
      %p92 = scmp.eq.s32.totalorder %s17, 0
      %p93 = por %p91, %p92
      %p94 = scmp.ne.s32.totalorder %s86, %s88
      %p95 = scmp.eq.s32.totalorder %s22, 3
      %p96 = por %p94, %p95
      %p97 = scmp.ne.s32.totalorder %s88, %s89
      %p98 = scmp.eq.s32.totalorder %s22, 0
      %p99 = por %p97, %p98
      %p100 = scmp.ne.s32.totalorder %s88, %s89
      %p101 = scmp.eq.s32.totalorder %s23, 3
      %p102 = por %p100, %p101
      %p104 = scmp.ne.s32.totalorder %s89, %s103
      %p105 = scmp.eq.s32.totalorder %s23, 0
      %p106 = por %p104, %p105
      %s108 = sadd.s32 %s107, 1
      %p111 = scmp.eq.s32.totalorder %s17, 3
      %p112 = scmp.ne.s32.totalorder %s107, %s109
      %p113 = scmp.eq.s32.totalorder %s17, 0
      %p114 = por %p112, %p113
      %p115 = scmp.ne.s32.totalorder %s107, %s109
      %p116 = scmp.eq.s32.totalorder %s22, 3
      %p117 = por %p115, %p116
      %p118 = scmp.ne.s32.totalorder %s109, %s110
      %p119 = scmp.eq.s32.totalorder %s22, 0
      %p120 = por %p118, %p119
      %p121 = scmp.ne.s32.totalorder %s109, %s110
      %p122 = scmp.eq.s32.totalorder %s23, 3
      %p123 = por %p121, %p122
      %p125 = scmp.ne.s32.totalorder %s110, %s124
      %p126 = scmp.eq.s32.totalorder %s23, 0
      %p127 = por %p125, %p126
      %s128 = ssub.s32 %s24, %s36
      %s129 = ssub.s32 %s25, %s32
      %s130 = sor.u32 %s128, %s129
      %p131 = scmp.eq.s32.totalorder %s130, 0
      %s133 = sadd.s32 %s132, 1
      %s134 = scalar_select %p131, %s132, %s133
      %p137 = pneg %p131
      %p138 = scmp.eq.s32.totalorder %s17, 3
      %p139 = por %p137, %p138
      %p140 = scmp.ne.s32.totalorder %s132, %s135
      %p141 = scmp.eq.s32.totalorder %s17, 0
      %p142 = por %p140, %p141
      %p143 = scmp.ne.s32.totalorder %s132, %s135
      %p144 = scmp.eq.s32.totalorder %s22, 3
      %p145 = por %p143, %p144
      %p146 = scmp.ne.s32.totalorder %s135, %s136
      %p147 = scmp.eq.s32.totalorder %s22, 0
      %p148 = por %p146, %p147
      %p149 = scmp.ne.s32.totalorder %s135, %s136
      %p150 = scmp.eq.s32.totalorder %s23, 3
      %p151 = por %p149, %p150
      %p153 = scmp.ne.s32.totalorder %s136, %s152
      %p154 = scmp.eq.s32.totalorder %s23, 0
      %p155 = por %p153, %p154
      %s156 = ssub.s32 %s24, %s36
      %s157 = ssub.s32 %s25, %s32
      %s158 = sor.u32 %s156, %s157
      %p159 = scmp.eq.s32.totalorder %s158, 0
      %s161 = sadd.s32 %s160, 1
      %s162 = scalar_select %p159, %s160, %s161
      %p165 = pneg %p159
      %p166 = scmp.eq.s32.totalorder %s17, 3
      %p167 = por %p165, %p166
      %p168 = scmp.ne.s32.totalorder %s160, %s163
      %p169 = scmp.eq.s32.totalorder %s17, 0
      %p170 = por %p168, %p169
      %p171 = scmp.ne.s32.totalorder %s160, %s163
      %p172 = scmp.eq.s32.totalorder %s22, 3
      %p173 = por %p171, %p172
      %p174 = scmp.ne.s32.totalorder %s163, %s164
      %p175 = scmp.eq.s32.totalorder %s22, 0
      %p176 = por %p174, %p175
      %p177 = scmp.ne.s32.totalorder %s163, %s164
      %p178 = scmp.eq.s32.totalorder %s23, 3
      %p179 = por %p177, %p178
      %p181 = scmp.ne.s32.totalorder %s164, %s180
      %p182 = scmp.eq.s32.totalorder %s23, 0
      %p183 = por %p181, %p182
      %s184 = ssub.s32 %s24, %s36
      %s185 = ssub.s32 %s25, %s32
      %s186 = sor.u32 %s184, %s185
      %p187 = scmp.eq.s32.totalorder %s186, 0
      %s189 = sadd.s32 %s188, 1
      %s190 = scalar_select %p187, %s188, %s189
      %p193 = pneg %p187
      %p194 = scmp.eq.s32.totalorder %s17, 3
      %p195 = por %p193, %p194
      %p196 = scmp.ne.s32.totalorder %s188, %s191
      %p197 = scmp.eq.s32.totalorder %s17, 0
      %p198 = por %p196, %p197
      %p199 = scmp.ne.s32.totalorder %s188, %s191
      %p200 = scmp.eq.s32.totalorder %s22, 3
      %p201 = por %p199, %p200
      %p202 = scmp.ne.s32.totalorder %s191, %s192
      %p203 = scmp.eq.s32.totalorder %s22, 0
      %p204 = por %p202, %p203
      %p205 = scmp.ne.s32.totalorder %s191, %s192
      %p206 = scmp.eq.s32.totalorder %s23, 3
      %p207 = por %p205, %p206
      %p209 = scmp.ne.s32.totalorder %s192, %s208
      %p210 = scmp.eq.s32.totalorder %s23, 0
      %p211 = por %p209, %p210
      %p212 = scmp.le.s32.totalorder 1, %s17
      %p213 = scmp.lt.s32.totalorder %s17, 5
      %p214 = pnand %p212, %p213
      %p215 = pneg %p214
      // Predicated region
      $region9: #{tpu_custom_call.1} parent=5 // pred_check
        _
      $region10: #{tpu_custom_call.1} parent=5 // pred_check_branch
        %217 = sbr.rel (%p214) target = $region12
      $region11: #{tpu_custom_call.1} parent=5 // pred_region
        %s218 = ssub.s32 %s17, 1
        // Predicated region
        $region13: #{tpu_custom_call.1} parent=11 // pred_check
          %p219 = pneg %p78
        $region14: #{tpu_custom_call.1} parent=11 // pred_check_branch
          %221 = sbr.rel (%p219) target = $region16
        $region15: #{tpu_custom_call.1} parent=11 // pred_region
          _
        $region16: #{tpu_custom_call.1} parent=11 // pred_fallthru
          _
        // Predicated region
        $region17: #{tpu_custom_call.1} parent=11 // pred_check
          %p222 = pneg %p99
        $region18: #{tpu_custom_call.1} parent=11 // pred_check_branch
          %224 = sbr.rel (%p222) target = $region20
        $region19: #{tpu_custom_call.1} parent=11 // pred_region
          _
        $region20: #{tpu_custom_call.1} parent=11 // pred_fallthru
          _
        // Predicated region
        $region21: #{tpu_custom_call.1} parent=11 // pred_check
          %p225 = pneg %p120
        $region22: #{tpu_custom_call.1} parent=11 // pred_check_branch
          %227 = sbr.rel (%p225) target = $region24
        $region23: #{tpu_custom_call.1} parent=11 // pred_region
          %s229 = ssub.s32 3072, 3072
          %230 = vsyncadd [#allocation5], %s229
          %s231 = sshll.u32 [#allocation4], 4
          %s232 = int_to_ptr.vmem [resolvable:$true] %s231
          %237 = dma.hbm_to_vmem [thread:$0]  %s3, 3072, %s232, [#allocation5], 192, 192, 12
        $region24: #{tpu_custom_call.1} parent=11 // pred_fallthru
          _
      $region12: #{tpu_custom_call.1} parent=5 // pred_fallthru
        _
      %p238 = scmp.lt.s32.totalorder %s17, 4
      // Predicated region
      $region25: #{tpu_custom_call.1} parent=5 // pred_check
        %p239 = pneg %p238
      $region26: #{tpu_custom_call.1} parent=5 // pred_check_branch
        %241 = sbr.rel (%p239) target = $region28
      $region27: #{tpu_custom_call.1} parent=5 // pred_region
        // Predicated region
        $region29: #{tpu_custom_call.1} parent=27 // pred_check
          %p242 = pneg %p51
        $region30: #{tpu_custom_call.1} parent=27 // pred_check_branch
          %244 = sbr.rel (%p242) target = $region32
        $region31: #{tpu_custom_call.1} parent=27 // pred_region
          %s245 = sand.u32 %s41, 1
          %s246 = scalar_lea.sflag [#allocation3], %s245
          %s247 = sand.u32 %s41, 1
          %s248 = smul.addr %s247, 128
          %s249 = scalar_lea.vmem [#allocation2], %s248
          %s250 = smul.u32 16, %s25
          %s252 = ssub.s32 2048, 2048
          %253 = vsyncadd %s246, %s252
          %s254 = smul.addr %s24, 32
          %s255 = sadd.s32 %s250, %s254
          %s256 = smul.addr %s255, 128
          %s257 = scalar_lea.hbm %s0, %s256
          %s258 = sshll.u32 %s249, 4
          %s259 = int_to_ptr.vmem [resolvable:$true] %s258
          %264 = dma.hbm_to_vmem [thread:$0]  %s257, 2048, %s259, %s246, 128, 128, 8
        $region32: #{tpu_custom_call.1} parent=27 // pred_fallthru
          _
      $region28: #{tpu_custom_call.1} parent=5 // pred_fallthru
        _
      %p265 = scmp.le.s32.totalorder 1, %s17
      %p266 = scmp.lt.s32.totalorder %s17, 5
      %p267 = pnand %p265, %p266
      %p268 = pneg %p267
      // Predicated region
      $region33: #{tpu_custom_call.1} parent=5 // pred_check
        _
      $region34: #{tpu_custom_call.1} parent=5 // pred_check_branch
        %270 = sbr.rel (%p267) target = $region36
      $region35: #{tpu_custom_call.1} parent=5 // pred_region
        %s271 = ssub.s32 %s17, 1
        %s272 = sand.u32 %s44, 1
        %s273 = scalar_lea.sflag [#allocation3], %s272
        %s274 = sand.u32 %s44, 1
        %s275 = smul.addr %s274, 128
        %s276 = scalar_lea.vmem [#allocation2], %s275
        // Predicated region
        $region37: #{tpu_custom_call.1} parent=35 // pred_check
          %p277 = pneg %p57
        $region38: #{tpu_custom_call.1} parent=35 // pred_check_branch
          %279 = sbr.rel (%p277) target = $region40
        $region39: #{tpu_custom_call.1} parent=35 // pred_region
          %280 = dma.done %s273, 2048
        $region40: #{tpu_custom_call.1} parent=35 // pred_fallthru
          _
        // Predicated region
        $region41: #{tpu_custom_call.1} parent=35 // pred_check
          %p281 = pneg %p120
        $region42: #{tpu_custom_call.1} parent=35 // pred_check_branch
          %283 = sbr.rel (%p281) target = $region44
        $region43: #{tpu_custom_call.1} parent=35 // pred_region
          %284 = dma.done [#allocation5], 3072
        $region44: #{tpu_custom_call.1} parent=35 // pred_fallthru
          _
        %s285 = sand.u32 %s44, 1
        %s286 = scalar_lea.sflag [#allocation3], %s285
        %s287 = sand.u32 %s44, 1
        %s288 = smul.addr %s287, 128
        %s289 = scalar_lea.vmem [#allocation2], %s288
        %p290 = pneg %p57
        %p291 = pneg %p54
        %p292 = pneg %p78
        %p293 = pneg %p75
        %p294 = pneg %p99
        %p295 = pneg %p96
        %p296 = pneg %p120
        %p297 = pneg %p117
        %p298 = pneg %p148
        %p299 = pneg %p145
        %s300 = sand.u32 %s135, 1
        %s301 = sand.u32 %s135, 1
        %s302 = smul.addr %s301, 256
        %s303 = scalar_lea.vmem [#allocation6], %s302
        %p304 = pneg %p176
        %p305 = pneg %p173
        %s306 = sand.u32 %s163, 1
        %s307 = sand.u32 %s163, 1
        %s308 = smul.addr %s307, 256
        %s309 = scalar_lea.vmem [#allocation7], %s308
        %p310 = pneg %p204
        %p311 = pneg %p201
        %s312 = sand.u32 %s191, 1
        %s313 = sand.u32 %s191, 1
        %s314 = smul.addr %s313, 256
        %s315 = scalar_lea.vmem [#allocation8], %s314
        %s316 = smul.u32 16, %s27
        %s317 = smul.u32 16, %s27
        %s318 = smul.u32 16, %s27
        %s319 = smul.u32 16, %s27
        %v321 = vld [vmem:[%s276] sm:$0xff]
        %v322 = vld [vmem:[%s276 + $0x8] sm:$0xff]
        %v323 = vld [vmem:[%s276 + $0x10] sm:$0xff]
        %v324 = vld [vmem:[%s276 + $0x18] sm:$0xff]
        %v325 = vld [vmem:[%s276 + $0x20] sm:$0xff]
        %v326 = vld [vmem:[%s276 + $0x28] sm:$0xff]
        %v327 = vld [vmem:[%s276 + $0x30] sm:$0xff]
        %v328 = vld [vmem:[%s276 + $0x38] sm:$0xff]
        %v329 = vld [vmem:[%s276 + $0x40] sm:$0xff]
        %v330 = vld [vmem:[%s276 + $0x48] sm:$0xff]
        %v331 = vld [vmem:[%s276 + $0x50] sm:$0xff]
        %v332 = vld [vmem:[%s276 + $0x58] sm:$0xff]
        %v333 = vld [vmem:[%s276 + $0x60] sm:$0xff]
        %v334 = vld [vmem:[%s276 + $0x68] sm:$0xff]
        %v335 = vld [vmem:[%s276 + $0x70] sm:$0xff]
        %v336 = vld [vmem:[%s276 + $0x78] sm:$0xff]
        %v337 = vld [vmem:[%s1] sm:$0x1]
        %v338 = vld [vmem:[%s2] sm:$0x1]
        %339 = vadd.xlane.f32.xlu0 %v321
        %v340 = vpop.xlane.xlu0 %339
        %341 = vadd.xlane.f32.xlu0 %v322
        %v342 = vpop.xlane.xlu0 %341
        %343 = vadd.xlane.f32.xlu0 %v323
        %v344 = vpop.xlane.xlu0 %343
        %345 = vadd.xlane.f32.xlu0 %v324
        %v346 = vpop.xlane.xlu0 %345
        %347 = vadd.xlane.f32.xlu0 %v325
        %v348 = vpop.xlane.xlu0 %347
        %349 = vadd.xlane.f32.xlu0 %v326
        %v350 = vpop.xlane.xlu0 %349
        %351 = vadd.xlane.f32.xlu0 %v327
        %v352 = vpop.xlane.xlu0 %351
        %353 = vadd.xlane.f32.xlu0 %v328
        %v354 = vpop.xlane.xlu0 %353
        %355 = vadd.xlane.f32.xlu0 %v329
        %v356 = vpop.xlane.xlu0 %355
        %357 = vadd.xlane.f32.xlu0 %v330
        %v358 = vpop.xlane.xlu0 %357
        %359 = vadd.xlane.f32.xlu0 %v331
        %v360 = vpop.xlane.xlu0 %359
        %361 = vadd.xlane.f32.xlu0 %v332
        %v362 = vpop.xlane.xlu0 %361
        %363 = vadd.xlane.f32.xlu0 %v333
        %v364 = vpop.xlane.xlu0 %363
        %365 = vadd.xlane.f32.xlu0 %v334
        %v366 = vpop.xlane.xlu0 %365
        %367 = vadd.xlane.f32.xlu0 %v335
        %v368 = vpop.xlane.xlu0 %367
        %369 = vadd.xlane.f32.xlu0 %v336
        %v370 = vpop.xlane.xlu0 %369
        %v371 = vrcp.pop 128.0
        %v372 = vmul.f32 %v340, %v371
        %v373 = vmul.f32 %v342, %v371
        %v374 = vmul.f32 %v344, %v371
        %v375 = vmul.f32 %v346, %v371
        %v376 = vmul.f32 %v348, %v371
        %v377 = vmul.f32 %v350, %v371
        %v378 = vmul.f32 %v352, %v371
        %v379 = vmul.f32 %v354, %v371
        %v380 = vmul.f32 %v356, %v371
        %v381 = vmul.f32 %v358, %v371
        %v382 = vmul.f32 %v360, %v371
        %v383 = vmul.f32 %v362, %v371
        %v384 = vmul.f32 %v364, %v371
        %v385 = vmul.f32 %v366, %v371
        %v386 = vmul.f32 %v368, %v371
        %v387 = vmul.f32 %v370, %v371
        %v388 = vsub.f32 %v321, %v372
        %v389 = vsub.f32 %v322, %v373
        %v390 = vsub.f32 %v323, %v374
        %v391 = vsub.f32 %v324, %v375
        %v392 = vsub.f32 %v325, %v376
        %v393 = vsub.f32 %v326, %v377
        %v394 = vsub.f32 %v327, %v378
        %v395 = vsub.f32 %v328, %v379
        %v396 = vsub.f32 %v329, %v380
        %v397 = vsub.f32 %v330, %v381
        %v398 = vsub.f32 %v331, %v382
        %v399 = vsub.f32 %v332, %v383
        %v400 = vsub.f32 %v333, %v384
        %v401 = vsub.f32 %v334, %v385
        %v402 = vsub.f32 %v335, %v386
        %v403 = vsub.f32 %v336, %v387
        %v404 = vmul.f32 %v388, %v388
        %v405 = vmul.f32 %v389, %v389
        %v406 = vmul.f32 %v390, %v390
        %v407 = vmul.f32 %v391, %v391
        %v408 = vmul.f32 %v392, %v392
        %v409 = vmul.f32 %v393, %v393
        %v410 = vmul.f32 %v394, %v394
        %v411 = vmul.f32 %v395, %v395
        %v412 = vmul.f32 %v396, %v396
        %v413 = vmul.f32 %v397, %v397
        %v414 = vmul.f32 %v398, %v398
        %v415 = vmul.f32 %v399, %v399
        %v416 = vmul.f32 %v400, %v400
        %v417 = vmul.f32 %v401, %v401
        %v418 = vmul.f32 %v402, %v402
        %v419 = vmul.f32 %v403, %v403
        %420 = vadd.xlane.f32.xlu0 %v404
        %v421 = vpop.xlane.xlu0 %420
        %422 = vadd.xlane.f32.xlu0 %v405
        %v423 = vpop.xlane.xlu0 %422
        %424 = vadd.xlane.f32.xlu0 %v406
        %v425 = vpop.xlane.xlu0 %424
        %426 = vadd.xlane.f32.xlu0 %v407
        %v427 = vpop.xlane.xlu0 %426
        %428 = vadd.xlane.f32.xlu0 %v408
        %v429 = vpop.xlane.xlu0 %428
        %430 = vadd.xlane.f32.xlu0 %v409
        %v431 = vpop.xlane.xlu0 %430
        %432 = vadd.xlane.f32.xlu0 %v410
        %v433 = vpop.xlane.xlu0 %432
        %434 = vadd.xlane.f32.xlu0 %v411
        %v435 = vpop.xlane.xlu0 %434
        %436 = vadd.xlane.f32.xlu0 %v412
        %v437 = vpop.xlane.xlu0 %436
        %438 = vadd.xlane.f32.xlu0 %v413
        %v439 = vpop.xlane.xlu0 %438
        %440 = vadd.xlane.f32.xlu0 %v414
        %v441 = vpop.xlane.xlu0 %440
        %442 = vadd.xlane.f32.xlu0 %v415
        %v443 = vpop.xlane.xlu0 %442
        %444 = vadd.xlane.f32.xlu0 %v416
        %v445 = vpop.xlane.xlu0 %444
        %446 = vadd.xlane.f32.xlu0 %v417
        %v447 = vpop.xlane.xlu0 %446
        %448 = vadd.xlane.f32.xlu0 %v418
        %v449 = vpop.xlane.xlu0 %448
        %450 = vadd.xlane.f32.xlu0 %v419
        %v451 = vpop.xlane.xlu0 %450
        %v452 = vmul.f32 %v421, %v371
        %v453 = vmul.f32 %v423, %v371
        %v454 = vmul.f32 %v425, %v371
        %v455 = vmul.f32 %v427, %v371
        %v456 = vmul.f32 %v429, %v371
        %v457 = vmul.f32 %v431, %v371
        %v458 = vmul.f32 %v433, %v371
        %v459 = vmul.f32 %v435, %v371
        %v460 = vmul.f32 %v437, %v371
        %v461 = vmul.f32 %v439, %v371
        %v462 = vmul.f32 %v441, %v371
        %v463 = vmul.f32 %v443, %v371
        %v464 = vmul.f32 %v445, %v371
        %v465 = vmul.f32 %v447, %v371
        %v466 = vmul.f32 %v449, %v371
        %v467 = vmul.f32 %v451, %v371
        %v468 = vadd.f32 %v452, 1e-05
        %v469 = vadd.f32 %v453, 1e-05
        %v470 = vadd.f32 %v454, 1e-05
        %v471 = vadd.f32 %v455, 1e-05
        %v472 = vadd.f32 %v456, 1e-05
        %v473 = vadd.f32 %v457, 1e-05
        %v474 = vadd.f32 %v458, 1e-05
        %v475 = vadd.f32 %v459, 1e-05
        %v476 = vadd.f32 %v460, 1e-05
        %v477 = vadd.f32 %v461, 1e-05
        %v478 = vadd.f32 %v462, 1e-05
        %v479 = vadd.f32 %v463, 1e-05
        %v480 = vadd.f32 %v464, 1e-05
        %v481 = vadd.f32 %v465, 1e-05
        %v482 = vadd.f32 %v466, 1e-05
        %v483 = vadd.f32 %v467, 1e-05
        %v484 = vrsqrt.pop %v468
        %v485 = vrsqrt.pop %v469
        %v486 = vrsqrt.pop %v470
        %v487 = vrsqrt.pop %v471
        %v488 = vrsqrt.pop %v472
        %v489 = vrsqrt.pop %v473
        %v490 = vrsqrt.pop %v474
        %v491 = vrsqrt.pop %v475
        %v492 = vrsqrt.pop %v476
        %v493 = vrsqrt.pop %v477
        %v494 = vrsqrt.pop %v478
        %v495 = vrsqrt.pop %v479
        %v496 = vrsqrt.pop %v480
        %v497 = vrsqrt.pop %v481
        %v498 = vrsqrt.pop %v482
        %v499 = vrsqrt.pop %v483
        %v500 = vmul.f32 %v388, %v484
        %v501 = vmul.f32 %v389, %v485
        %v502 = vmul.f32 %v390, %v486
        %v503 = vmul.f32 %v391, %v487
        %v504 = vmul.f32 %v392, %v488
        %v505 = vmul.f32 %v393, %v489
        %v506 = vmul.f32 %v394, %v490
        %v507 = vmul.f32 %v395, %v491
        %v508 = vmul.f32 %v396, %v492
        %v509 = vmul.f32 %v397, %v493
        %v510 = vmul.f32 %v398, %v494
        %v511 = vmul.f32 %v399, %v495
        %v512 = vmul.f32 %v400, %v496
        %v513 = vmul.f32 %v401, %v497
        %v514 = vmul.f32 %v402, %v498
        %v515 = vmul.f32 %v403, %v499
        %v517 = vlaneseq
        %v518 = vshrl.u32 %v517, 7
        %v519 = vsub.s32 0, %v518
        %v520 = vrot.slane %v337, %v519
        %v522 = vmul.f32 %v500, %v520
        %v523 = vmul.f32 %v501, %v520
        %v524 = vmul.f32 %v502, %v520
        %v525 = vmul.f32 %v503, %v520
        %v526 = vmul.f32 %v504, %v520
        %v527 = vmul.f32 %v505, %v520
        %v528 = vmul.f32 %v506, %v520
        %v529 = vmul.f32 %v507, %v520
        %v530 = vmul.f32 %v508, %v520
        %v531 = vmul.f32 %v509, %v520
        %v532 = vmul.f32 %v510, %v520
        %v533 = vmul.f32 %v511, %v520
        %v534 = vmul.f32 %v512, %v520
        %v535 = vmul.f32 %v513, %v520
        %v536 = vmul.f32 %v514, %v520
        %v537 = vmul.f32 %v515, %v520
        %v539 = vlaneseq
        %v540 = vshrl.u32 %v539, 7
        %v541 = vsub.s32 0, %v540
        %v542 = vrot.slane %v338, %v541
        %v544 = vadd.f32 %v522, %v542
        %v545 = vadd.f32 %v523, %v542
        %v546 = vadd.f32 %v524, %v542
        %v547 = vadd.f32 %v525, %v542
        %v548 = vadd.f32 %v526, %v542
        %v549 = vadd.f32 %v527, %v542
        %v550 = vadd.f32 %v528, %v542
        %v551 = vadd.f32 %v529, %v542
        %v552 = vadd.f32 %v530, %v542
        %v553 = vadd.f32 %v531, %v542
        %v554 = vadd.f32 %v532, %v542
        %v555 = vadd.f32 %v533, %v542
        %v556 = vadd.f32 %v534, %v542
        %v557 = vadd.f32 %v535, %v542
        %v558 = vadd.f32 %v536, %v542
        %v559 = vadd.f32 %v537, %v542
        %v560 = vpack.c.bf16 %v545, %v544
        %v561 = vpack.c.bf16 %v547, %v546
        %v562 = vpack.c.bf16 %v549, %v548
        %v563 = vpack.c.bf16 %v551, %v550
        %v564 = vpack.c.bf16 %v553, %v552
        %v565 = vpack.c.bf16 %v555, %v554
        %v566 = vpack.c.bf16 %v557, %v556
        %v567 = vpack.c.bf16 %v559, %v558
        %v568 = vld [vmem:[#allocation4] sm:$0xff]
        %v569 = vld [vmem:[#allocation4 + $0x8] sm:$0xf]
        %v570 = vld [vmem:[#allocation4 + $0xc] sm:$0xff]
        %v571 = vld [vmem:[#allocation4 + $0x14] sm:$0xf]
        %v572 = vld [vmem:[#allocation4 + $0x18] sm:$0xff]
        %v573 = vld [vmem:[#allocation4 + $0x20] sm:$0xf]
        %v574 = vld [vmem:[#allocation4 + $0x24] sm:$0xff]
        %v575 = vld [vmem:[#allocation4 + $0x2c] sm:$0xf]
        %v576 = vld [vmem:[#allocation4 + $0x30] sm:$0xff]
        %v577 = vld [vmem:[#allocation4 + $0x38] sm:$0xf]
        %v578 = vld [vmem:[#allocation4 + $0x3c] sm:$0xff]
        %v579 = vld [vmem:[#allocation4 + $0x44] sm:$0xf]
        %v580 = vld [vmem:[#allocation4 + $0x48] sm:$0xff]
        %v581 = vld [vmem:[#allocation4 + $0x50] sm:$0xf]
        %v582 = vld [vmem:[#allocation4 + $0x54] sm:$0xff]
        %v583 = vld [vmem:[#allocation4 + $0x5c] sm:$0xf]
        %v584 = vld [vmem:[#allocation4 + $0x60] sm:$0xff]
        %v585 = vld [vmem:[#allocation4 + $0x68] sm:$0xf]
        %v586 = vld [vmem:[#allocation4 + $0x6c] sm:$0xff]
        %v587 = vld [vmem:[#allocation4 + $0x74] sm:$0xf]
        %v588 = vld [vmem:[#allocation4 + $0x78] sm:$0xff]
        %v589 = vld [vmem:[#allocation4 + $0x80] sm:$0xf]
        %v590 = vld [vmem:[#allocation4 + $0x84] sm:$0xff]
        %v591 = vld [vmem:[#allocation4 + $0x8c] sm:$0xf]
        %v592 = vld [vmem:[#allocation4 + $0x90] sm:$0xff]
        %v593 = vld [vmem:[#allocation4 + $0x98] sm:$0xf]
        %v594 = vld [vmem:[#allocation4 + $0x9c] sm:$0xff]
        %v595 = vld [vmem:[#allocation4 + $0xa4] sm:$0xf]
        %v596 = vld [vmem:[#allocation4 + $0xa8] sm:$0xff]
        %v597 = vld [vmem:[#allocation4 + $0xb0] sm:$0xf]
        %v598 = vld [vmem:[#allocation4 + $0xb4] sm:$0xff]
        %v599 = vld [vmem:[#allocation4 + $0xbc] sm:$0xf]
        %v632 = vunpack.c.l.b16 %v568
        %v633 = vunpack.c.h.b16 %v568
        %v634 = vunpack.c.l.b16 %v569
        %v635 = vunpack.c.l.b16 %v570
        %v636 = vunpack.c.h.b16 %v570
        %v637 = vunpack.c.l.b16 %v571
        %v638 = vunpack.c.l.b16 %v572
        %v639 = vunpack.c.h.b16 %v572
        %v640 = vunpack.c.l.b16 %v573
        %v641 = vunpack.c.l.b16 %v574
        %v642 = vunpack.c.h.b16 %v574
        %v643 = vunpack.c.l.b16 %v575
        %v644 = vunpack.c.l.b16 %v576
        %v645 = vunpack.c.h.b16 %v576
        %v646 = vunpack.c.l.b16 %v577
        %v647 = vunpack.c.l.b16 %v578
        %v648 = vunpack.c.h.b16 %v578
        %v649 = vunpack.c.l.b16 %v579
        %v650 = vunpack.c.l.b16 %v580
        %v651 = vunpack.c.h.b16 %v580
        %v652 = vunpack.c.l.b16 %v581
        %v653 = vunpack.c.l.b16 %v582
        %v654 = vunpack.c.h.b16 %v582
        %v655 = vunpack.c.l.b16 %v583
        %v656 = vunpack.c.l.b16 %v584
        %v657 = vunpack.c.h.b16 %v584
        %v658 = vunpack.c.l.b16 %v585
        %v659 = vunpack.c.l.b16 %v586
        %v660 = vunpack.c.h.b16 %v586
        %v661 = vunpack.c.l.b16 %v587
        %v662 = vunpack.c.l.b16 %v588
        %v663 = vunpack.c.h.b16 %v588
        %v664 = vunpack.c.l.b16 %v589
        %v665 = vunpack.c.l.b16 %v590
        %v666 = vunpack.c.h.b16 %v590
        %v667 = vunpack.c.l.b16 %v591
        %v668 = vunpack.c.l.b16 %v592
        %v669 = vunpack.c.h.b16 %v592
        %v670 = vunpack.c.l.b16 %v593
        %v671 = vunpack.c.l.b16 %v594
        %v672 = vunpack.c.h.b16 %v594
        %v673 = vunpack.c.l.b16 %v595
        %v674 = vunpack.c.l.b16 %v596
        %v675 = vunpack.c.h.b16 %v596
        %v676 = vunpack.c.l.b16 %v597
        %v677 = vunpack.c.l.b16 %v598
        %v678 = vunpack.c.h.b16 %v598
        %v679 = vunpack.c.l.b16 %v599
        %v680 = vpack.c.b16 %v635, %v632
        %v681 = vpack.c.b16 %v636, %v633
        %v682 = vpack.c.b16 %v637, %v634
        %v683 = vpack.c.b16 %v641, %v638
        %v684 = vpack.c.b16 %v642, %v639
        %v685 = vpack.c.b16 %v643, %v640
        %v686 = vpack.c.b16 %v647, %v644
        %v687 = vpack.c.b16 %v648, %v645
        %v688 = vpack.c.b16 %v649, %v646
        %v689 = vpack.c.b16 %v653, %v650
        %v690 = vpack.c.b16 %v654, %v651
        %v691 = vpack.c.b16 %v655, %v652
        %v692 = vpack.c.b16 %v659, %v656
        %v693 = vpack.c.b16 %v660, %v657
        %v694 = vpack.c.b16 %v661, %v658
        %v695 = vpack.c.b16 %v665, %v662
        %v696 = vpack.c.b16 %v666, %v663
        %v697 = vpack.c.b16 %v667, %v664
        %v698 = vpack.c.b16 %v671, %v668
        %v699 = vpack.c.b16 %v672, %v669
        %v700 = vpack.c.b16 %v673, %v670
        %v701 = vpack.c.b16 %v677, %v674
        %v702 = vpack.c.b16 %v678, %v675
        %v703 = vpack.c.b16 %v679, %v676
        %728 = vmatprep.subr.bf16.mxu0 %v681
        %729 = vmatpush1.bf16.msra.mxu0 %v680
        %730 = vmatprep.subr.bf16.mxu0 %v684
        %731 = vmatpush1.bf16.msra.mxu0 %v683
        %732 = vmatprep.subr.bf16.mxu0 %v687
        %733 = vmatpush1.bf16.msra.mxu0 %v686
        %734 = vmatprep.subr.bf16.mxu0 %v690
        %735 = vmatpush1.bf16.msra.mxu0 %v689
        %736 = vmatprep.subr.bf16.mxu0 %v693
        %737 = vmatpush1.bf16.msra.mxu0 %v692
        %738 = vmatprep.subr.bf16.mxu0 %v696
        %739 = vmatpush1.bf16.msra.mxu0 %v695
        %740 = vmatprep.subr.bf16.mxu0 %v699
        %741 = vmatpush1.bf16.msra.mxu0 %v698
        %742 = vmatprep.subr.bf16.mxu0 %v702
        %743 = vmatpush1.bf16.msra.mxu0 %v701
        %744 = vmatprep.subr.bf16.mxu0 0
        %745 = vmatpush1.bf16.msra.mxu0 0
        %746 = vmatprep.subr.bf16.mxu0 0
        %747 = vmatpush1.bf16.msra.mxu0 0
        %748 = vmatprep.subr.bf16.mxu0 0
        %749 = vmatpush1.bf16.msra.mxu0 0
        %750 = vmatprep.subr.bf16.mxu0 0
        %751 = vmatpush1.bf16.msra.mxu0 0
        %752 = vmatprep.subr.bf16.mxu0 0
        %753 = vmatpush1.bf16.msra.mxu0 0
        %754 = vmatprep.subr.bf16.mxu0 0
        %755 = vmatpush1.bf16.msra.mxu0 0
        %756 = vmatprep.subr.bf16.mxu0 0
        %757 = vmatpush1.bf16.msra.mxu0 0
        %758 = vmatprep.subr.bf16.mxu0 0
        %759 = vmatpush1.bf16.msra.mxu0 0
        %760 = vmatprep.mubr.bf16.mxu0 0
        %761 = vmatmul.mubr.bf16.gmra.mrb[0].mxu0 %v560
        %v762 = vpop.f32.mrb[0].mxu0
        %v763 = vadd.f32 0.0, %v762
        %v764 = vpop.f32.mrb[0].mxu0
        %v765 = vadd.f32 0.0, %v764
        %v766 = vpop.f32.mrb[0].mxu0
        %v767 = vadd.f32 0.0, %v766
        %v768 = vpop.f32.mrb[0].mxu0
        %v769 = vadd.f32 0.0, %v768
        %770 = vmatprep.mubr.bf16.mxu0 0
        %771 = vmatmul.mubr.bf16.gmra.mrb[0].mxu0 %v561
        %v772 = vpop.f32.mrb[0].mxu0
        %v773 = vadd.f32 0.0, %v772
        %v774 = vpop.f32.mrb[0].mxu0
        %v775 = vadd.f32 0.0, %v774
        %v776 = vpop.f32.mrb[0].mxu0
        %v777 = vadd.f32 0.0, %v776
        %v778 = vpop.f32.mrb[0].mxu0
        %v779 = vadd.f32 0.0, %v778
        %780 = vmatprep.mubr.bf16.mxu0 0
        %781 = vmatmul.mubr.bf16.gmra.mrb[0].mxu0 %v562
        %v782 = vpop.f32.mrb[0].mxu0
        %v783 = vadd.f32 0.0, %v782
        %v784 = vpop.f32.mrb[0].mxu0
        %v785 = vadd.f32 0.0, %v784
        %v786 = vpop.f32.mrb[0].mxu0
        %v787 = vadd.f32 0.0, %v786
        %v788 = vpop.f32.mrb[0].mxu0
        %v789 = vadd.f32 0.0, %v788
        %790 = vmatprep.mubr.bf16.mxu0 0
        %791 = vmatmul.mubr.bf16.gmra.mrb[0].mxu0 %v563
        %v792 = vpop.f32.mrb[0].mxu0
        %v793 = vadd.f32 0.0, %v792
        %v794 = vpop.f32.mrb[0].mxu0
        %v795 = vadd.f32 0.0, %v794
        %v796 = vpop.f32.mrb[0].mxu0
        %v797 = vadd.f32 0.0, %v796
        %v798 = vpop.f32.mrb[0].mxu0
        %v799 = vadd.f32 0.0, %v798
        %800 = vmatprep.mubr.bf16.mxu0 0
        %801 = vmatmul.mubr.bf16.gmra.mrb[0].mxu0 %v564
        %v802 = vpop.f32.mrb[0].mxu0
        %v803 = vadd.f32 0.0, %v802
        %v804 = vpop.f32.mrb[0].mxu0
        %v805 = vadd.f32 0.0, %v804
        %v806 = vpop.f32.mrb[0].mxu0
        %v807 = vadd.f32 0.0, %v806
        %v808 = vpop.f32.mrb[0].mxu0
        %v809 = vadd.f32 0.0, %v808
        %810 = vmatprep.mubr.bf16.mxu0 0
        %811 = vmatmul.mubr.bf16.gmra.mrb[0].mxu0 %v565
        %v812 = vpop.f32.mrb[0].mxu0
        %v813 = vadd.f32 0.0, %v812
        %v814 = vpop.f32.mrb[0].mxu0
        %v815 = vadd.f32 0.0, %v814
        %v816 = vpop.f32.mrb[0].mxu0
        %v817 = vadd.f32 0.0, %v816
        %v818 = vpop.f32.mrb[0].mxu0
        %v819 = vadd.f32 0.0, %v818
        %820 = vmatprep.mubr.bf16.mxu0 0
        %821 = vmatmul.mubr.bf16.gmra.mrb[0].mxu0 %v566
        %v822 = vpop.f32.mrb[0].mxu0
        %v823 = vadd.f32 0.0, %v822
        %v824 = vpop.f32.mrb[0].mxu0
        %v825 = vadd.f32 0.0, %v824
        %v826 = vpop.f32.mrb[0].mxu0
        %v827 = vadd.f32 0.0, %v826
        %v828 = vpop.f32.mrb[0].mxu0
        %v829 = vadd.f32 0.0, %v828
        %830 = vmatprep.mubr.bf16.mxu0 0
        %831 = vmatmul.mubr.bf16.gmra.mrb[0].mxu0 %v567
        %v832 = vpop.f32.mrb[0].mxu0
        %v833 = vadd.f32 0.0, %v832
        %v834 = vpop.f32.mrb[0].mxu0
        %v835 = vadd.f32 0.0, %v834
        %v836 = vpop.f32.mrb[0].mxu0
        %v837 = vadd.f32 0.0, %v836
        %v838 = vpop.f32.mrb[0].mxu0
        %v839 = vadd.f32 0.0, %v838
        %840 = vdwg.mxu0
        %841 = vmatprep.subr.bf16.mxu0 0
        %842 = vmatpush1.bf16.msra.mxu0 %v682
        %843 = vmatprep.subr.bf16.mxu0 0
        %844 = vmatpush1.bf16.msra.mxu0 %v685
        %845 = vmatprep.subr.bf16.mxu0 0
        %846 = vmatpush1.bf16.msra.mxu0 %v688
        %847 = vmatprep.subr.bf16.mxu0 0
        %848 = vmatpush1.bf16.msra.mxu0 %v691
        %849 = vmatprep.subr.bf16.mxu0 0
        %850 = vmatpush1.bf16.msra.mxu0 %v694
        %851 = vmatprep.subr.bf16.mxu0 0
        %852 = vmatpush1.bf16.msra.mxu0 %v697
        %853 = vmatprep.subr.bf16.mxu0 0
        %854 = vmatpush1.bf16.msra.mxu0 %v700
        %855 = vmatprep.subr.bf16.mxu0 0
        %856 = vmatpush1.bf16.msra.mxu0 %v703
        %857 = vmatprep.subr.bf16.mxu0 0
        %858 = vmatpush1.bf16.msra.mxu0 0
        %859 = vmatprep.subr.bf16.mxu0 0
        %860 = vmatpush1.bf16.msra.mxu0 0
        %861 = vmatprep.subr.bf16.mxu0 0
        %862 = vmatpush1.bf16.msra.mxu0 0
        %863 = vmatprep.subr.bf16.mxu0 0
        %864 = vmatpush1.bf16.msra.mxu0 0
        %865 = vmatprep.subr.bf16.mxu0 0
        %866 = vmatpush1.bf16.msra.mxu0 0
        %867 = vmatprep.subr.bf16.mxu0 0
        %868 = vmatpush1.bf16.msra.mxu0 0
        %869 = vmatprep.subr.bf16.mxu0 0
        %870 = vmatpush1.bf16.msra.mxu0 0
        %871 = vmatprep.subr.bf16.mxu0 0
        %872 = vmatpush1.bf16.msra.mxu0 0
        %873 = vmatprep.mubr.bf16.mxu0 0
        %874 = vmatmul.mubr.bf16.gmra.mrb[0].mxu0 %v560
        %v875 = vpop.f32.mrb[0].mxu0
        %v876 = vadd.f32 0.0, %v875
        %v877 = vpop.f32.mrb[0].mxu0
        %v878 = vpop.f32.mrb[0].mxu0
        %v879 = vadd.f32 0.0, %v878
        %v880 = vpop.f32.mrb[0].mxu0
        %881 = vmatprep.mubr.bf16.mxu0 0
        %882 = vmatmul.mubr.bf16.gmra.mrb[0].mxu0 %v561
        %v883 = vpop.f32.mrb[0].mxu0
        %v884 = vadd.f32 0.0, %v883
        %v885 = vpop.f32.mrb[0].mxu0
        %v886 = vpop.f32.mrb[0].mxu0
        %v887 = vadd.f32 0.0, %v886
        %v888 = vpop.f32.mrb[0].mxu0
        %889 = vmatprep.mubr.bf16.mxu0 0
        %890 = vmatmul.mubr.bf16.gmra.mrb[0].mxu0 %v562
        %v891 = vpop.f32.mrb[0].mxu0
        %v892 = vadd.f32 0.0, %v891
        %v893 = vpop.f32.mrb[0].mxu0
        %v894 = vpop.f32.mrb[0].mxu0
        %v895 = vadd.f32 0.0, %v894
        %v896 = vpop.f32.mrb[0].mxu0
        %897 = vmatprep.mubr.bf16.mxu0 0
        %898 = vmatmul.mubr.bf16.gmra.mrb[0].mxu0 %v563
        %v899 = vpop.f32.mrb[0].mxu0
        %v900 = vadd.f32 0.0, %v899
        %v901 = vpop.f32.mrb[0].mxu0
        %v902 = vpop.f32.mrb[0].mxu0
        %v903 = vadd.f32 0.0, %v902
        %v904 = vpop.f32.mrb[0].mxu0
        %905 = vmatprep.mubr.bf16.mxu0 0
        %906 = vmatmul.mubr.bf16.gmra.mrb[0].mxu0 %v564
        %v907 = vpop.f32.mrb[0].mxu0
        %v908 = vadd.f32 0.0, %v907
        %v909 = vpop.f32.mrb[0].mxu0
        %v910 = vpop.f32.mrb[0].mxu0
        %v911 = vadd.f32 0.0, %v910
        %v912 = vpop.f32.mrb[0].mxu0
        %913 = vmatprep.mubr.bf16.mxu0 0
        %914 = vmatmul.mubr.bf16.gmra.mrb[0].mxu0 %v565
        %v915 = vpop.f32.mrb[0].mxu0
        %v916 = vadd.f32 0.0, %v915
        %v917 = vpop.f32.mrb[0].mxu0
        %v918 = vpop.f32.mrb[0].mxu0
        %v919 = vadd.f32 0.0, %v918
        %v920 = vpop.f32.mrb[0].mxu0
        %921 = vmatprep.mubr.bf16.mxu0 0
        %922 = vmatmul.mubr.bf16.gmra.mrb[0].mxu0 %v566
        %v923 = vpop.f32.mrb[0].mxu0
        %v924 = vadd.f32 0.0, %v923
        %v925 = vpop.f32.mrb[0].mxu0
        %v926 = vpop.f32.mrb[0].mxu0
        %v927 = vadd.f32 0.0, %v926
        %v928 = vpop.f32.mrb[0].mxu0
        %929 = vmatprep.mubr.bf16.mxu0 0
        %930 = vmatmul.mubr.bf16.gmra.mrb[0].mxu0 %v567
        %v931 = vpop.f32.mrb[0].mxu0
        %v932 = vadd.f32 0.0, %v931
        %v933 = vpop.f32.mrb[0].mxu0
        %v934 = vpop.f32.mrb[0].mxu0
        %v935 = vadd.f32 0.0, %v934
        %v936 = vpop.f32.mrb[0].mxu0
        %937 = vdwg.mxu0
        %v938 = vmul.f32 %v763, 0.17677669
        %v939 = vmul.f32 %v767, 0.17677669
        %v940 = vmul.f32 %v773, 0.17677669
        %v941 = vmul.f32 %v777, 0.17677669
        %v942 = vmul.f32 %v783, 0.17677669
        %v943 = vmul.f32 %v787, 0.17677669
        %v944 = vmul.f32 %v793, 0.17677669
        %v945 = vmul.f32 %v797, 0.17677669
        %v946 = vmul.f32 %v803, 0.17677669
        %v947 = vmul.f32 %v807, 0.17677669
        %v948 = vmul.f32 %v813, 0.17677669
        %v949 = vmul.f32 %v817, 0.17677669
        %v950 = vmul.f32 %v823, 0.17677669
        %v951 = vmul.f32 %v827, 0.17677669
        %v952 = vmul.f32 %v833, 0.17677669
        %v953 = vmul.f32 %v837, 0.17677669
        %v954 = vpack.c.bf16 %v939, %v938
        %v955 = vpack.c.bf16 %v941, %v940
        %v956 = vpack.c.bf16 %v943, %v942
        %v957 = vpack.c.bf16 %v945, %v944
        %v958 = vpack.c.bf16 %v947, %v946
        %v959 = vpack.c.bf16 %v949, %v948
        %v960 = vpack.c.bf16 %v951, %v950
        %v961 = vpack.c.bf16 %v953, %v952
        %v970 = vunpack.c.l.b16 %v954
        %v971 = vunpack.c.h.b16 %v954
        %v972 = vunpack.c.l.b16 %v955
        %v973 = vunpack.c.h.b16 %v955
        %v974 = vunpack.c.l.b16 %v956
        %v975 = vunpack.c.h.b16 %v956
        %v976 = vunpack.c.l.b16 %v957
        %v977 = vunpack.c.h.b16 %v957
        %v978 = vunpack.c.l.b16 %v958
        %v979 = vunpack.c.h.b16 %v958
        %v980 = vunpack.c.l.b16 %v959
        %v981 = vunpack.c.h.b16 %v959
        %v982 = vunpack.c.l.b16 %v960
        %v983 = vunpack.c.h.b16 %v960
        %v984 = vunpack.c.l.b16 %v961
        %v985 = vunpack.c.h.b16 %v961
        %v986 = vpack.c.b16 %v970, %v970
        %v987 = vpack.c.b16 %v971, %v971
        %v988 = vpack.c.b16 %v972, %v972
        %v989 = vpack.c.b16 %v973, %v973
        %v990 = vpack.c.b16 %v974, %v974
        %v991 = vpack.c.b16 %v975, %v975
        %v992 = vpack.c.b16 %v976, %v976
        %v993 = vpack.c.b16 %v977, %v977
        %v994 = vpack.c.b16 %v978, %v978
        %v995 = vpack.c.b16 %v979, %v979
        %v996 = vpack.c.b16 %v980, %v980
        %v997 = vpack.c.b16 %v981, %v981
        %v998 = vpack.c.b16 %v982, %v982
        %v999 = vpack.c.b16 %v983, %v983
        %v1000 = vpack.c.b16 %v984, %v984
        %v1001 = vpack.c.b16 %v985, %v985
        %vm1018 = vcmask 257024
        %1019 = vst.msk [vmem:[%s303] sm:$0xf] %vm1018, %v986
        %1020 = vst.msk [vmem:[%s303 + $0x4] sm:$0xf] %vm1018, %v987
        %1021 = vst.msk [vmem:[%s303 + $0x8] sm:$0xf] %vm1018, %v988
        %1022 = vst.msk [vmem:[%s303 + $0xc] sm:$0xf] %vm1018, %v989
        %1023 = vst.msk [vmem:[%s303 + $0x10] sm:$0xf] %vm1018, %v990
        %1024 = vst.msk [vmem:[%s303 + $0x14] sm:$0xf] %vm1018, %v991
        %1025 = vst.msk [vmem:[%s303 + $0x18] sm:$0xf] %vm1018, %v992
        %1026 = vst.msk [vmem:[%s303 + $0x1c] sm:$0xf] %vm1018, %v993
        %1027 = vst.msk [vmem:[%s303 + $0x20] sm:$0xf] %vm1018, %v994
        %1028 = vst.msk [vmem:[%s303 + $0x24] sm:$0xf] %vm1018, %v995
        %1029 = vst.msk [vmem:[%s303 + $0x28] sm:$0xf] %vm1018, %v996
        %1030 = vst.msk [vmem:[%s303 + $0x2c] sm:$0xf] %vm1018, %v997
        %1031 = vst.msk [vmem:[%s303 + $0x30] sm:$0xf] %vm1018, %v998
        %1032 = vst.msk [vmem:[%s303 + $0x34] sm:$0xf] %vm1018, %v999
        %1033 = vst.msk [vmem:[%s303 + $0x38] sm:$0xf] %vm1018, %v1000
        %1034 = vst.msk [vmem:[%s303 + $0x3c] sm:$0xf] %vm1018, %v1001
        %v1035 = vpack.c.bf16 %v769, %v765
        %v1036 = vpack.c.bf16 %v779, %v775
        %v1037 = vpack.c.bf16 %v789, %v785
        %v1038 = vpack.c.bf16 %v799, %v795
        %v1039 = vpack.c.bf16 %v809, %v805
        %v1040 = vpack.c.bf16 %v819, %v815
        %v1041 = vpack.c.bf16 %v829, %v825
        %v1042 = vpack.c.bf16 %v839, %v835
        %v1051 = vunpack.c.l.b16 %v1035
        %v1052 = vunpack.c.h.b16 %v1035
        %v1053 = vunpack.c.l.b16 %v1036
        %v1054 = vunpack.c.h.b16 %v1036
        %v1055 = vunpack.c.l.b16 %v1037
        %v1056 = vunpack.c.h.b16 %v1037
        %v1057 = vunpack.c.l.b16 %v1038
        %v1058 = vunpack.c.h.b16 %v1038
        %v1059 = vunpack.c.l.b16 %v1039
        %v1060 = vunpack.c.h.b16 %v1039
        %v1061 = vunpack.c.l.b16 %v1040
        %v1062 = vunpack.c.h.b16 %v1040
        %v1063 = vunpack.c.l.b16 %v1041
        %v1064 = vunpack.c.h.b16 %v1041
        %v1065 = vunpack.c.l.b16 %v1042
        %v1066 = vunpack.c.h.b16 %v1042
        %v1067 = vpack.c.b16 %v1051, %v1051
        %v1068 = vpack.c.b16 %v1052, %v1052
        %v1069 = vpack.c.b16 %v1053, %v1053
        %v1070 = vpack.c.b16 %v1054, %v1054
        %v1071 = vpack.c.b16 %v1055, %v1055
        %v1072 = vpack.c.b16 %v1056, %v1056
        %v1073 = vpack.c.b16 %v1057, %v1057
        %v1074 = vpack.c.b16 %v1058, %v1058
        %v1075 = vpack.c.b16 %v1059, %v1059
        %v1076 = vpack.c.b16 %v1060, %v1060
        %v1077 = vpack.c.b16 %v1061, %v1061
        %v1078 = vpack.c.b16 %v1062, %v1062
        %v1079 = vpack.c.b16 %v1063, %v1063
        %v1080 = vpack.c.b16 %v1064, %v1064
        %v1081 = vpack.c.b16 %v1065, %v1065
        %v1082 = vpack.c.b16 %v1066, %v1066
        %1099 = vst.msk [vmem:[%s309] sm:$0xf] %vm1018, %v1067
        %1100 = vst.msk [vmem:[%s309 + $0x4] sm:$0xf] %vm1018, %v1068
        %1101 = vst.msk [vmem:[%s309 + $0x8] sm:$0xf] %vm1018, %v1069
        %1102 = vst.msk [vmem:[%s309 + $0xc] sm:$0xf] %vm1018, %v1070
        %1103 = vst.msk [vmem:[%s309 + $0x10] sm:$0xf] %vm1018, %v1071
        %1104 = vst.msk [vmem:[%s309 + $0x14] sm:$0xf] %vm1018, %v1072
        %1105 = vst.msk [vmem:[%s309 + $0x18] sm:$0xf] %vm1018, %v1073
        %1106 = vst.msk [vmem:[%s309 + $0x1c] sm:$0xf] %vm1018, %v1074
        %1107 = vst.msk [vmem:[%s309 + $0x20] sm:$0xf] %vm1018, %v1075
        %1108 = vst.msk [vmem:[%s309 + $0x24] sm:$0xf] %vm1018, %v1076
        %1109 = vst.msk [vmem:[%s309 + $0x28] sm:$0xf] %vm1018, %v1077
        %1110 = vst.msk [vmem:[%s309 + $0x2c] sm:$0xf] %vm1018, %v1078
        %1111 = vst.msk [vmem:[%s309 + $0x30] sm:$0xf] %vm1018, %v1079
        %1112 = vst.msk [vmem:[%s309 + $0x34] sm:$0xf] %vm1018, %v1080
        %1113 = vst.msk [vmem:[%s309 + $0x38] sm:$0xf] %vm1018, %v1081
        %1114 = vst.msk [vmem:[%s309 + $0x3c] sm:$0xf] %vm1018, %v1082
        %v1115 = vpack.c.bf16 %v879, %v876
        %v1116 = vpack.c.bf16 %v887, %v884
        %v1117 = vpack.c.bf16 %v895, %v892
        %v1118 = vpack.c.bf16 %v903, %v900
        %v1119 = vpack.c.bf16 %v911, %v908
        %v1120 = vpack.c.bf16 %v919, %v916
        %v1121 = vpack.c.bf16 %v927, %v924
        %v1122 = vpack.c.bf16 %v935, %v932
        %v1131 = vunpack.c.l.b16 %v1115
        %v1132 = vunpack.c.h.b16 %v1115
        %v1133 = vunpack.c.l.b16 %v1116
        %v1134 = vunpack.c.h.b16 %v1116
        %v1135 = vunpack.c.l.b16 %v1117
        %v1136 = vunpack.c.h.b16 %v1117
        %v1137 = vunpack.c.l.b16 %v1118
        %v1138 = vunpack.c.h.b16 %v1118
        %v1139 = vunpack.c.l.b16 %v1119
        %v1140 = vunpack.c.h.b16 %v1119
        %v1141 = vunpack.c.l.b16 %v1120
        %v1142 = vunpack.c.h.b16 %v1120
        %v1143 = vunpack.c.l.b16 %v1121
        %v1144 = vunpack.c.h.b16 %v1121
        %v1145 = vunpack.c.l.b16 %v1122
        %v1146 = vunpack.c.h.b16 %v1122
        %v1147 = vpack.c.b16 %v1131, %v1131
        %v1148 = vpack.c.b16 %v1132, %v1132
        %v1149 = vpack.c.b16 %v1133, %v1133
        %v1150 = vpack.c.b16 %v1134, %v1134
        %v1151 = vpack.c.b16 %v1135, %v1135
        %v1152 = vpack.c.b16 %v1136, %v1136
        %v1153 = vpack.c.b16 %v1137, %v1137
        %v1154 = vpack.c.b16 %v1138, %v1138
        %v1155 = vpack.c.b16 %v1139, %v1139
        %v1156 = vpack.c.b16 %v1140, %v1140
        %v1157 = vpack.c.b16 %v1141, %v1141
        %v1158 = vpack.c.b16 %v1142, %v1142
        %v1159 = vpack.c.b16 %v1143, %v1143
        %v1160 = vpack.c.b16 %v1144, %v1144
        %v1161 = vpack.c.b16 %v1145, %v1145
        %v1162 = vpack.c.b16 %v1146, %v1146
        %1179 = vst.msk [vmem:[%s315] sm:$0xf] %vm1018, %v1147
        %1180 = vst.msk [vmem:[%s315 + $0x4] sm:$0xf] %vm1018, %v1148
        %1181 = vst.msk [vmem:[%s315 + $0x8] sm:$0xf] %vm1018, %v1149
        %1182 = vst.msk [vmem:[%s315 + $0xc] sm:$0xf] %vm1018, %v1150
        %1183 = vst.msk [vmem:[%s315 + $0x10] sm:$0xf] %vm1018, %v1151
        %1184 = vst.msk [vmem:[%s315 + $0x14] sm:$0xf] %vm1018, %v1152
        %1185 = vst.msk [vmem:[%s315 + $0x18] sm:$0xf] %vm1018, %v1153
        %1186 = vst.msk [vmem:[%s315 + $0x1c] sm:$0xf] %vm1018, %v1154
        %1187 = vst.msk [vmem:[%s315 + $0x20] sm:$0xf] %vm1018, %v1155
        %1188 = vst.msk [vmem:[%s315 + $0x24] sm:$0xf] %vm1018, %v1156
        %1189 = vst.msk [vmem:[%s315 + $0x28] sm:$0xf] %vm1018, %v1157
        %1190 = vst.msk [vmem:[%s315 + $0x2c] sm:$0xf] %vm1018, %v1158
        %1191 = vst.msk [vmem:[%s315 + $0x30] sm:$0xf] %vm1018, %v1159
        %1192 = vst.msk [vmem:[%s315 + $0x34] sm:$0xf] %vm1018, %v1160
        %1193 = vst.msk [vmem:[%s315 + $0x38] sm:$0xf] %vm1018, %v1161
        %1194 = vst.msk [vmem:[%s315 + $0x3c] sm:$0xf] %vm1018, %v1162
        %1195 = vrot.lane.b32.xlu0 %v986, 96
        %v1196 = vpop.permute.xlu0 %1195
        %1197 = vrot.lane.b32.xlu0 %v987, 96
        %v1198 = vpop.permute.xlu0 %1197
        %1199 = vrot.lane.b32.xlu0 %v988, 96
        %v1200 = vpop.permute.xlu0 %1199
        %1201 = vrot.lane.b32.xlu0 %v989, 96
        %v1202 = vpop.permute.xlu0 %1201
        %1203 = vrot.lane.b32.xlu0 %v990, 96
        %v1204 = vpop.permute.xlu0 %1203
        %1205 = vrot.lane.b32.xlu0 %v991, 96
        %v1206 = vpop.permute.xlu0 %1205
        %1207 = vrot.lane.b32.xlu0 %v992, 96
        %v1208 = vpop.permute.xlu0 %1207
        %1209 = vrot.lane.b32.xlu0 %v993, 96
        %v1210 = vpop.permute.xlu0 %1209
        %1211 = vrot.lane.b32.xlu0 %v994, 96
        %v1212 = vpop.permute.xlu0 %1211
        %1213 = vrot.lane.b32.xlu0 %v995, 96
        %v1214 = vpop.permute.xlu0 %1213
        %1215 = vrot.lane.b32.xlu0 %v996, 96
        %v1216 = vpop.permute.xlu0 %1215
        %1217 = vrot.lane.b32.xlu0 %v997, 96
        %v1218 = vpop.permute.xlu0 %1217
        %1219 = vrot.lane.b32.xlu0 %v998, 96
        %v1220 = vpop.permute.xlu0 %1219
        %1221 = vrot.lane.b32.xlu0 %v999, 96
        %v1222 = vpop.permute.xlu0 %1221
        %1223 = vrot.lane.b32.xlu0 %v1000, 96
        %v1224 = vpop.permute.xlu0 %1223
        %1225 = vrot.lane.b32.xlu0 %v1001, 96
        %v1226 = vpop.permute.xlu0 %1225
        %s1243 = scalar_lea.vmem %s303, 64 [#allocation6]
        %1244 = vst.msk [vmem:[%s1243] sm:$0xf] %vm1018, %v1196
        %1245 = vst.msk [vmem:[%s1243 + $0x4] sm:$0xf] %vm1018, %v1198
        %1246 = vst.msk [vmem:[%s1243 + $0x8] sm:$0xf] %vm1018, %v1200
        %1247 = vst.msk [vmem:[%s1243 + $0xc] sm:$0xf] %vm1018, %v1202
        %1248 = vst.msk [vmem:[%s1243 + $0x10] sm:$0xf] %vm1018, %v1204
        %1249 = vst.msk [vmem:[%s1243 + $0x14] sm:$0xf] %vm1018, %v1206
        %1250 = vst.msk [vmem:[%s1243 + $0x18] sm:$0xf] %vm1018, %v1208
        %1251 = vst.msk [vmem:[%s1243 + $0x1c] sm:$0xf] %vm1018, %v1210
        %1252 = vst.msk [vmem:[%s1243 + $0x20] sm:$0xf] %vm1018, %v1212
        %1253 = vst.msk [vmem:[%s1243 + $0x24] sm:$0xf] %vm1018, %v1214
        %1254 = vst.msk [vmem:[%s1243 + $0x28] sm:$0xf] %vm1018, %v1216
        %1255 = vst.msk [vmem:[%s1243 + $0x2c] sm:$0xf] %vm1018, %v1218
        %1256 = vst.msk [vmem:[%s1243 + $0x30] sm:$0xf] %vm1018, %v1220
        %1257 = vst.msk [vmem:[%s1243 + $0x34] sm:$0xf] %vm1018, %v1222
        %1258 = vst.msk [vmem:[%s1243 + $0x38] sm:$0xf] %vm1018, %v1224
        %1259 = vst.msk [vmem:[%s1243 + $0x3c] sm:$0xf] %vm1018, %v1226
        %1260 = vrot.lane.b32.xlu0 %v1067, 96
        %v1261 = vpop.permute.xlu0 %1260
        %1262 = vrot.lane.b32.xlu0 %v1068, 96
        %v1263 = vpop.permute.xlu0 %1262
        %1264 = vrot.lane.b32.xlu0 %v1069, 96
        %v1265 = vpop.permute.xlu0 %1264
        %1266 = vrot.lane.b32.xlu0 %v1070, 96
        %v1267 = vpop.permute.xlu0 %1266
        %1268 = vrot.lane.b32.xlu0 %v1071, 96
        %v1269 = vpop.permute.xlu0 %1268
        %1270 = vrot.lane.b32.xlu0 %v1072, 96
        %v1271 = vpop.permute.xlu0 %1270
        %1272 = vrot.lane.b32.xlu0 %v1073, 96
        %v1273 = vpop.permute.xlu0 %1272
        %1274 = vrot.lane.b32.xlu0 %v1074, 96
        %v1275 = vpop.permute.xlu0 %1274
        %1276 = vrot.lane.b32.xlu0 %v1075, 96
        %v1277 = vpop.permute.xlu0 %1276
        %1278 = vrot.lane.b32.xlu0 %v1076, 96
        %v1279 = vpop.permute.xlu0 %1278
        %1280 = vrot.lane.b32.xlu0 %v1077, 96
        %v1281 = vpop.permute.xlu0 %1280
        %1282 = vrot.lane.b32.xlu0 %v1078, 96
        %v1283 = vpop.permute.xlu0 %1282
        %1284 = vrot.lane.b32.xlu0 %v1079, 96
        %v1285 = vpop.permute.xlu0 %1284
        %1286 = vrot.lane.b32.xlu0 %v1080, 96
        %v1287 = vpop.permute.xlu0 %1286
        %1288 = vrot.lane.b32.xlu0 %v1081, 96
        %v1289 = vpop.permute.xlu0 %1288
        %1290 = vrot.lane.b32.xlu0 %v1082, 96
        %v1291 = vpop.permute.xlu0 %1290
        %s1308 = scalar_lea.vmem %s309, 64 [#allocation7]
        %1309 = vst.msk [vmem:[%s1308] sm:$0xf] %vm1018, %v1261
        %1310 = vst.msk [vmem:[%s1308 + $0x4] sm:$0xf] %vm1018, %v1263
        %1311 = vst.msk [vmem:[%s1308 + $0x8] sm:$0xf] %vm1018, %v1265
        %1312 = vst.msk [vmem:[%s1308 + $0xc] sm:$0xf] %vm1018, %v1267
        %1313 = vst.msk [vmem:[%s1308 + $0x10] sm:$0xf] %vm1018, %v1269
        %1314 = vst.msk [vmem:[%s1308 + $0x14] sm:$0xf] %vm1018, %v1271
        %1315 = vst.msk [vmem:[%s1308 + $0x18] sm:$0xf] %vm1018, %v1273
        %1316 = vst.msk [vmem:[%s1308 + $0x1c] sm:$0xf] %vm1018, %v1275
        %1317 = vst.msk [vmem:[%s1308 + $0x20] sm:$0xf] %vm1018, %v1277
        %1318 = vst.msk [vmem:[%s1308 + $0x24] sm:$0xf] %vm1018, %v1279
        %1319 = vst.msk [vmem:[%s1308 + $0x28] sm:$0xf] %vm1018, %v1281
        %1320 = vst.msk [vmem:[%s1308 + $0x2c] sm:$0xf] %vm1018, %v1283
        %1321 = vst.msk [vmem:[%s1308 + $0x30] sm:$0xf] %vm1018, %v1285
        %1322 = vst.msk [vmem:[%s1308 + $0x34] sm:$0xf] %vm1018, %v1287
        %1323 = vst.msk [vmem:[%s1308 + $0x38] sm:$0xf] %vm1018, %v1289
        %1324 = vst.msk [vmem:[%s1308 + $0x3c] sm:$0xf] %vm1018, %v1291
        %1325 = vrot.lane.b32.xlu0 %v1147, 96
        %v1326 = vpop.permute.xlu0 %1325
        %1327 = vrot.lane.b32.xlu0 %v1148, 96
        %v1328 = vpop.permute.xlu0 %1327
        %1329 = vrot.lane.b32.xlu0 %v1149, 96
        %v1330 = vpop.permute.xlu0 %1329
        %1331 = vrot.lane.b32.xlu0 %v1150, 96
        %v1332 = vpop.permute.xlu0 %1331
        %1333 = vrot.lane.b32.xlu0 %v1151, 96
        %v1334 = vpop.permute.xlu0 %1333
        %1335 = vrot.lane.b32.xlu0 %v1152, 96
        %v1336 = vpop.permute.xlu0 %1335
        %1337 = vrot.lane.b32.xlu0 %v1153, 96
        %v1338 = vpop.permute.xlu0 %1337
        %1339 = vrot.lane.b32.xlu0 %v1154, 96
        %v1340 = vpop.permute.xlu0 %1339
        %1341 = vrot.lane.b32.xlu0 %v1155, 96
        %v1342 = vpop.permute.xlu0 %1341
        %1343 = vrot.lane.b32.xlu0 %v1156, 96
        %v1344 = vpop.permute.xlu0 %1343
        %1345 = vrot.lane.b32.xlu0 %v1157, 96
        %v1346 = vpop.permute.xlu0 %1345
        %1347 = vrot.lane.b32.xlu0 %v1158, 96
        %v1348 = vpop.permute.xlu0 %1347
        %1349 = vrot.lane.b32.xlu0 %v1159, 96
        %v1350 = vpop.permute.xlu0 %1349
        %1351 = vrot.lane.b32.xlu0 %v1160, 96
        %v1352 = vpop.permute.xlu0 %1351
        %1353 = vrot.lane.b32.xlu0 %v1161, 96
        %v1354 = vpop.permute.xlu0 %1353
        %1355 = vrot.lane.b32.xlu0 %v1162, 96
        %v1356 = vpop.permute.xlu0 %1355
        %s1373 = scalar_lea.vmem %s315, 64 [#allocation8]
        %1374 = vst.msk [vmem:[%s1373] sm:$0xf] %vm1018, %v1326
        %1375 = vst.msk [vmem:[%s1373 + $0x4] sm:$0xf] %vm1018, %v1328
        %1376 = vst.msk [vmem:[%s1373 + $0x8] sm:$0xf] %vm1018, %v1330
        %1377 = vst.msk [vmem:[%s1373 + $0xc] sm:$0xf] %vm1018, %v1332
        %1378 = vst.msk [vmem:[%s1373 + $0x10] sm:$0xf] %vm1018, %v1334
        %1379 = vst.msk [vmem:[%s1373 + $0x14] sm:$0xf] %vm1018, %v1336
        %1380 = vst.msk [vmem:[%s1373 + $0x18] sm:$0xf] %vm1018, %v1338
        %1381 = vst.msk [vmem:[%s1373 + $0x1c] sm:$0xf] %vm1018, %v1340
        %1382 = vst.msk [vmem:[%s1373 + $0x20] sm:$0xf] %vm1018, %v1342
        %1383 = vst.msk [vmem:[%s1373 + $0x24] sm:$0xf] %vm1018, %v1344
        %1384 = vst.msk [vmem:[%s1373 + $0x28] sm:$0xf] %vm1018, %v1346
        %1385 = vst.msk [vmem:[%s1373 + $0x2c] sm:$0xf] %vm1018, %v1348
        %1386 = vst.msk [vmem:[%s1373 + $0x30] sm:$0xf] %vm1018, %v1350
        %1387 = vst.msk [vmem:[%s1373 + $0x34] sm:$0xf] %vm1018, %v1352
        %1388 = vst.msk [vmem:[%s1373 + $0x38] sm:$0xf] %vm1018, %v1354
        %1389 = vst.msk [vmem:[%s1373 + $0x3c] sm:$0xf] %vm1018, %v1356
        %1390 = vrot.lane.b32.xlu0 %v986, 64
        %v1391 = vpop.permute.xlu0 %1390
        %1392 = vrot.lane.b32.xlu0 %v987, 64
        %v1393 = vpop.permute.xlu0 %1392
        %1394 = vrot.lane.b32.xlu0 %v988, 64
        %v1395 = vpop.permute.xlu0 %1394
        %1396 = vrot.lane.b32.xlu0 %v989, 64
        %v1397 = vpop.permute.xlu0 %1396
        %1398 = vrot.lane.b32.xlu0 %v990, 64
        %v1399 = vpop.permute.xlu0 %1398
        %1400 = vrot.lane.b32.xlu0 %v991, 64
        %v1401 = vpop.permute.xlu0 %1400
        %1402 = vrot.lane.b32.xlu0 %v992, 64
        %v1403 = vpop.permute.xlu0 %1402
        %1404 = vrot.lane.b32.xlu0 %v993, 64
        %v1405 = vpop.permute.xlu0 %1404
        %1406 = vrot.lane.b32.xlu0 %v994, 64
        %v1407 = vpop.permute.xlu0 %1406
        %1408 = vrot.lane.b32.xlu0 %v995, 64
        %v1409 = vpop.permute.xlu0 %1408
        %1410 = vrot.lane.b32.xlu0 %v996, 64
        %v1411 = vpop.permute.xlu0 %1410
        %1412 = vrot.lane.b32.xlu0 %v997, 64
        %v1413 = vpop.permute.xlu0 %1412
        %1414 = vrot.lane.b32.xlu0 %v998, 64
        %v1415 = vpop.permute.xlu0 %1414
        %1416 = vrot.lane.b32.xlu0 %v999, 64
        %v1417 = vpop.permute.xlu0 %1416
        %1418 = vrot.lane.b32.xlu0 %v1000, 64
        %v1419 = vpop.permute.xlu0 %1418
        %1420 = vrot.lane.b32.xlu0 %v1001, 64
        %v1421 = vpop.permute.xlu0 %1420
        %s1438 = scalar_lea.vmem %s303, 128 [#allocation6]
        %1439 = vst.msk [vmem:[%s1438] sm:$0xf] %vm1018, %v1391
        %1440 = vst.msk [vmem:[%s1438 + $0x4] sm:$0xf] %vm1018, %v1393
        %1441 = vst.msk [vmem:[%s1438 + $0x8] sm:$0xf] %vm1018, %v1395
        %1442 = vst.msk [vmem:[%s1438 + $0xc] sm:$0xf] %vm1018, %v1397
        %1443 = vst.msk [vmem:[%s1438 + $0x10] sm:$0xf] %vm1018, %v1399
        %1444 = vst.msk [vmem:[%s1438 + $0x14] sm:$0xf] %vm1018, %v1401
        %1445 = vst.msk [vmem:[%s1438 + $0x18] sm:$0xf] %vm1018, %v1403
        %1446 = vst.msk [vmem:[%s1438 + $0x1c] sm:$0xf] %vm1018, %v1405
        %1447 = vst.msk [vmem:[%s1438 + $0x20] sm:$0xf] %vm1018, %v1407
        %1448 = vst.msk [vmem:[%s1438 + $0x24] sm:$0xf] %vm1018, %v1409
        %1449 = vst.msk [vmem:[%s1438 + $0x28] sm:$0xf] %vm1018, %v1411
        %1450 = vst.msk [vmem:[%s1438 + $0x2c] sm:$0xf] %vm1018, %v1413
        %1451 = vst.msk [vmem:[%s1438 + $0x30] sm:$0xf] %vm1018, %v1415
        %1452 = vst.msk [vmem:[%s1438 + $0x34] sm:$0xf] %vm1018, %v1417
        %1453 = vst.msk [vmem:[%s1438 + $0x38] sm:$0xf] %vm1018, %v1419
        %1454 = vst.msk [vmem:[%s1438 + $0x3c] sm:$0xf] %vm1018, %v1421
        %1455 = vrot.lane.b32.xlu0 %v1067, 64
        %v1456 = vpop.permute.xlu0 %1455
        %1457 = vrot.lane.b32.xlu0 %v1068, 64
        %v1458 = vpop.permute.xlu0 %1457
        %1459 = vrot.lane.b32.xlu0 %v1069, 64
        %v1460 = vpop.permute.xlu0 %1459
        %1461 = vrot.lane.b32.xlu0 %v1070, 64
        %v1462 = vpop.permute.xlu0 %1461
        %1463 = vrot.lane.b32.xlu0 %v1071, 64
        %v1464 = vpop.permute.xlu0 %1463
        %1465 = vrot.lane.b32.xlu0 %v1072, 64
        %v1466 = vpop.permute.xlu0 %1465
        %1467 = vrot.lane.b32.xlu0 %v1073, 64
        %v1468 = vpop.permute.xlu0 %1467
        %1469 = vrot.lane.b32.xlu0 %v1074, 64
        %v1470 = vpop.permute.xlu0 %1469
        %1471 = vrot.lane.b32.xlu0 %v1075, 64
        %v1472 = vpop.permute.xlu0 %1471
        %1473 = vrot.lane.b32.xlu0 %v1076, 64
        %v1474 = vpop.permute.xlu0 %1473
        %1475 = vrot.lane.b32.xlu0 %v1077, 64
        %v1476 = vpop.permute.xlu0 %1475
        %1477 = vrot.lane.b32.xlu0 %v1078, 64
        %v1478 = vpop.permute.xlu0 %1477
        %1479 = vrot.lane.b32.xlu0 %v1079, 64
        %v1480 = vpop.permute.xlu0 %1479
        %1481 = vrot.lane.b32.xlu0 %v1080, 64
        %v1482 = vpop.permute.xlu0 %1481
        %1483 = vrot.lane.b32.xlu0 %v1081, 64
        %v1484 = vpop.permute.xlu0 %1483
        %1485 = vrot.lane.b32.xlu0 %v1082, 64
        %v1486 = vpop.permute.xlu0 %1485
        %s1503 = scalar_lea.vmem %s309, 128 [#allocation7]
        %1504 = vst.msk [vmem:[%s1503] sm:$0xf] %vm1018, %v1456
        %1505 = vst.msk [vmem:[%s1503 + $0x4] sm:$0xf] %vm1018, %v1458
        %1506 = vst.msk [vmem:[%s1503 + $0x8] sm:$0xf] %vm1018, %v1460
        %1507 = vst.msk [vmem:[%s1503 + $0xc] sm:$0xf] %vm1018, %v1462
        %1508 = vst.msk [vmem:[%s1503 + $0x10] sm:$0xf] %vm1018, %v1464
        %1509 = vst.msk [vmem:[%s1503 + $0x14] sm:$0xf] %vm1018, %v1466
        %1510 = vst.msk [vmem:[%s1503 + $0x18] sm:$0xf] %vm1018, %v1468
        %1511 = vst.msk [vmem:[%s1503 + $0x1c] sm:$0xf] %vm1018, %v1470
        %1512 = vst.msk [vmem:[%s1503 + $0x20] sm:$0xf] %vm1018, %v1472
        %1513 = vst.msk [vmem:[%s1503 + $0x24] sm:$0xf] %vm1018, %v1474
        %1514 = vst.msk [vmem:[%s1503 + $0x28] sm:$0xf] %vm1018, %v1476
        %1515 = vst.msk [vmem:[%s1503 + $0x2c] sm:$0xf] %vm1018, %v1478
        %1516 = vst.msk [vmem:[%s1503 + $0x30] sm:$0xf] %vm1018, %v1480
        %1517 = vst.msk [vmem:[%s1503 + $0x34] sm:$0xf] %vm1018, %v1482
        %1518 = vst.msk [vmem:[%s1503 + $0x38] sm:$0xf] %vm1018, %v1484
        %1519 = vst.msk [vmem:[%s1503 + $0x3c] sm:$0xf] %vm1018, %v1486
        %1520 = vrot.lane.b32.xlu0 %v1147, 64
        %v1521 = vpop.permute.xlu0 %1520
        %1522 = vrot.lane.b32.xlu0 %v1148, 64
        %v1523 = vpop.permute.xlu0 %1522
        %1524 = vrot.lane.b32.xlu0 %v1149, 64
        %v1525 = vpop.permute.xlu0 %1524
        %1526 = vrot.lane.b32.xlu0 %v1150, 64
        %v1527 = vpop.permute.xlu0 %1526
        %1528 = vrot.lane.b32.xlu0 %v1151, 64
        %v1529 = vpop.permute.xlu0 %1528
        %1530 = vrot.lane.b32.xlu0 %v1152, 64
        %v1531 = vpop.permute.xlu0 %1530
        %1532 = vrot.lane.b32.xlu0 %v1153, 64
        %v1533 = vpop.permute.xlu0 %1532
        %1534 = vrot.lane.b32.xlu0 %v1154, 64
        %v1535 = vpop.permute.xlu0 %1534
        %1536 = vrot.lane.b32.xlu0 %v1155, 64
        %v1537 = vpop.permute.xlu0 %1536
        %1538 = vrot.lane.b32.xlu0 %v1156, 64
        %v1539 = vpop.permute.xlu0 %1538
        %1540 = vrot.lane.b32.xlu0 %v1157, 64
        %v1541 = vpop.permute.xlu0 %1540
        %1542 = vrot.lane.b32.xlu0 %v1158, 64
        %v1543 = vpop.permute.xlu0 %1542
        %1544 = vrot.lane.b32.xlu0 %v1159, 64
        %v1545 = vpop.permute.xlu0 %1544
        %1546 = vrot.lane.b32.xlu0 %v1160, 64
        %v1547 = vpop.permute.xlu0 %1546
        %1548 = vrot.lane.b32.xlu0 %v1161, 64
        %v1549 = vpop.permute.xlu0 %1548
        %1550 = vrot.lane.b32.xlu0 %v1162, 64
        %v1551 = vpop.permute.xlu0 %1550
        %s1568 = scalar_lea.vmem %s315, 128 [#allocation8]
        %1569 = vst.msk [vmem:[%s1568] sm:$0xf] %vm1018, %v1521
        %1570 = vst.msk [vmem:[%s1568 + $0x4] sm:$0xf] %vm1018, %v1523
        %1571 = vst.msk [vmem:[%s1568 + $0x8] sm:$0xf] %vm1018, %v1525
        %1572 = vst.msk [vmem:[%s1568 + $0xc] sm:$0xf] %vm1018, %v1527
        %1573 = vst.msk [vmem:[%s1568 + $0x10] sm:$0xf] %vm1018, %v1529
        %1574 = vst.msk [vmem:[%s1568 + $0x14] sm:$0xf] %vm1018, %v1531
        %1575 = vst.msk [vmem:[%s1568 + $0x18] sm:$0xf] %vm1018, %v1533
        %1576 = vst.msk [vmem:[%s1568 + $0x1c] sm:$0xf] %vm1018, %v1535
        %1577 = vst.msk [vmem:[%s1568 + $0x20] sm:$0xf] %vm1018, %v1537
        %1578 = vst.msk [vmem:[%s1568 + $0x24] sm:$0xf] %vm1018, %v1539
        %1579 = vst.msk [vmem:[%s1568 + $0x28] sm:$0xf] %vm1018, %v1541
        %1580 = vst.msk [vmem:[%s1568 + $0x2c] sm:$0xf] %vm1018, %v1543
        %1581 = vst.msk [vmem:[%s1568 + $0x30] sm:$0xf] %vm1018, %v1545
        %1582 = vst.msk [vmem:[%s1568 + $0x34] sm:$0xf] %vm1018, %v1547
        %1583 = vst.msk [vmem:[%s1568 + $0x38] sm:$0xf] %vm1018, %v1549
        %1584 = vst.msk [vmem:[%s1568 + $0x3c] sm:$0xf] %vm1018, %v1551
        %1585 = vrot.lane.b32.xlu0 %v986, 32
        %v1586 = vpop.permute.xlu0 %1585
        %1587 = vrot.lane.b32.xlu0 %v987, 32
        %v1588 = vpop.permute.xlu0 %1587
        %1589 = vrot.lane.b32.xlu0 %v988, 32
        %v1590 = vpop.permute.xlu0 %1589
        %1591 = vrot.lane.b32.xlu0 %v989, 32
        %v1592 = vpop.permute.xlu0 %1591
        %1593 = vrot.lane.b32.xlu0 %v990, 32
        %v1594 = vpop.permute.xlu0 %1593
        %1595 = vrot.lane.b32.xlu0 %v991, 32
        %v1596 = vpop.permute.xlu0 %1595
        %1597 = vrot.lane.b32.xlu0 %v992, 32
        %v1598 = vpop.permute.xlu0 %1597
        %1599 = vrot.lane.b32.xlu0 %v993, 32
        %v1600 = vpop.permute.xlu0 %1599
        %1601 = vrot.lane.b32.xlu0 %v994, 32
        %v1602 = vpop.permute.xlu0 %1601
        %1603 = vrot.lane.b32.xlu0 %v995, 32
        %v1604 = vpop.permute.xlu0 %1603
        %1605 = vrot.lane.b32.xlu0 %v996, 32
        %v1606 = vpop.permute.xlu0 %1605
        %1607 = vrot.lane.b32.xlu0 %v997, 32
        %v1608 = vpop.permute.xlu0 %1607
        %1609 = vrot.lane.b32.xlu0 %v998, 32
        %v1610 = vpop.permute.xlu0 %1609
        %1611 = vrot.lane.b32.xlu0 %v999, 32
        %v1612 = vpop.permute.xlu0 %1611
        %1613 = vrot.lane.b32.xlu0 %v1000, 32
        %v1614 = vpop.permute.xlu0 %1613
        %1615 = vrot.lane.b32.xlu0 %v1001, 32
        %v1616 = vpop.permute.xlu0 %1615
        %s1633 = scalar_lea.vmem %s303, 192 [#allocation6]
        %1634 = vst.msk [vmem:[%s1633] sm:$0xf] %vm1018, %v1586
        %1635 = vst.msk [vmem:[%s1633 + $0x4] sm:$0xf] %vm1018, %v1588
        %1636 = vst.msk [vmem:[%s1633 + $0x8] sm:$0xf] %vm1018, %v1590
        %1637 = vst.msk [vmem:[%s1633 + $0xc] sm:$0xf] %vm1018, %v1592
        %1638 = vst.msk [vmem:[%s1633 + $0x10] sm:$0xf] %vm1018, %v1594
        %1639 = vst.msk [vmem:[%s1633 + $0x14] sm:$0xf] %vm1018, %v1596
        %1640 = vst.msk [vmem:[%s1633 + $0x18] sm:$0xf] %vm1018, %v1598
        %1641 = vst.msk [vmem:[%s1633 + $0x1c] sm:$0xf] %vm1018, %v1600
        %1642 = vst.msk [vmem:[%s1633 + $0x20] sm:$0xf] %vm1018, %v1602
        %1643 = vst.msk [vmem:[%s1633 + $0x24] sm:$0xf] %vm1018, %v1604
        %1644 = vst.msk [vmem:[%s1633 + $0x28] sm:$0xf] %vm1018, %v1606
        %1645 = vst.msk [vmem:[%s1633 + $0x2c] sm:$0xf] %vm1018, %v1608
        %1646 = vst.msk [vmem:[%s1633 + $0x30] sm:$0xf] %vm1018, %v1610
        %1647 = vst.msk [vmem:[%s1633 + $0x34] sm:$0xf] %vm1018, %v1612
        %1648 = vst.msk [vmem:[%s1633 + $0x38] sm:$0xf] %vm1018, %v1614
        %1649 = vst.msk [vmem:[%s1633 + $0x3c] sm:$0xf] %vm1018, %v1616
        %1650 = vrot.lane.b32.xlu0 %v1067, 32
        %v1651 = vpop.permute.xlu0 %1650
        %1652 = vrot.lane.b32.xlu0 %v1068, 32
        %v1653 = vpop.permute.xlu0 %1652
        %1654 = vrot.lane.b32.xlu0 %v1069, 32
        %v1655 = vpop.permute.xlu0 %1654
        %1656 = vrot.lane.b32.xlu0 %v1070, 32
        %v1657 = vpop.permute.xlu0 %1656
        %1658 = vrot.lane.b32.xlu0 %v1071, 32
        %v1659 = vpop.permute.xlu0 %1658
        %1660 = vrot.lane.b32.xlu0 %v1072, 32
        %v1661 = vpop.permute.xlu0 %1660
        %1662 = vrot.lane.b32.xlu0 %v1073, 32
        %v1663 = vpop.permute.xlu0 %1662
        %1664 = vrot.lane.b32.xlu0 %v1074, 32
        %v1665 = vpop.permute.xlu0 %1664
        %1666 = vrot.lane.b32.xlu0 %v1075, 32
        %v1667 = vpop.permute.xlu0 %1666
        %1668 = vrot.lane.b32.xlu0 %v1076, 32
        %v1669 = vpop.permute.xlu0 %1668
        %1670 = vrot.lane.b32.xlu0 %v1077, 32
        %v1671 = vpop.permute.xlu0 %1670
        %1672 = vrot.lane.b32.xlu0 %v1078, 32
        %v1673 = vpop.permute.xlu0 %1672
        %1674 = vrot.lane.b32.xlu0 %v1079, 32
        %v1675 = vpop.permute.xlu0 %1674
        %1676 = vrot.lane.b32.xlu0 %v1080, 32
        %v1677 = vpop.permute.xlu0 %1676
        %1678 = vrot.lane.b32.xlu0 %v1081, 32
        %v1679 = vpop.permute.xlu0 %1678
        %1680 = vrot.lane.b32.xlu0 %v1082, 32
        %v1681 = vpop.permute.xlu0 %1680
        %s1698 = scalar_lea.vmem %s309, 192 [#allocation7]
        %1699 = vst.msk [vmem:[%s1698] sm:$0xf] %vm1018, %v1651
        %1700 = vst.msk [vmem:[%s1698 + $0x4] sm:$0xf] %vm1018, %v1653
        %1701 = vst.msk [vmem:[%s1698 + $0x8] sm:$0xf] %vm1018, %v1655
        %1702 = vst.msk [vmem:[%s1698 + $0xc] sm:$0xf] %vm1018, %v1657
        %1703 = vst.msk [vmem:[%s1698 + $0x10] sm:$0xf] %vm1018, %v1659
        %1704 = vst.msk [vmem:[%s1698 + $0x14] sm:$0xf] %vm1018, %v1661
        %1705 = vst.msk [vmem:[%s1698 + $0x18] sm:$0xf] %vm1018, %v1663
        %1706 = vst.msk [vmem:[%s1698 + $0x1c] sm:$0xf] %vm1018, %v1665
        %1707 = vst.msk [vmem:[%s1698 + $0x20] sm:$0xf] %vm1018, %v1667
        %1708 = vst.msk [vmem:[%s1698 + $0x24] sm:$0xf] %vm1018, %v1669
        %1709 = vst.msk [vmem:[%s1698 + $0x28] sm:$0xf] %vm1018, %v1671
        %1710 = vst.msk [vmem:[%s1698 + $0x2c] sm:$0xf] %vm1018, %v1673
        %1711 = vst.msk [vmem:[%s1698 + $0x30] sm:$0xf] %vm1018, %v1675
        %1712 = vst.msk [vmem:[%s1698 + $0x34] sm:$0xf] %vm1018, %v1677
        %1713 = vst.msk [vmem:[%s1698 + $0x38] sm:$0xf] %vm1018, %v1679
        %1714 = vst.msk [vmem:[%s1698 + $0x3c] sm:$0xf] %vm1018, %v1681
        %1715 = vrot.lane.b32.xlu0 %v1147, 32
        %v1716 = vpop.permute.xlu0 %1715
        %1717 = vrot.lane.b32.xlu0 %v1148, 32
        %v1718 = vpop.permute.xlu0 %1717
        %1719 = vrot.lane.b32.xlu0 %v1149, 32
        %v1720 = vpop.permute.xlu0 %1719
        %1721 = vrot.lane.b32.xlu0 %v1150, 32
        %v1722 = vpop.permute.xlu0 %1721
        %1723 = vrot.lane.b32.xlu0 %v1151, 32
        %v1724 = vpop.permute.xlu0 %1723
        %1725 = vrot.lane.b32.xlu0 %v1152, 32
        %v1726 = vpop.permute.xlu0 %1725
        %1727 = vrot.lane.b32.xlu0 %v1153, 32
        %v1728 = vpop.permute.xlu0 %1727
        %1729 = vrot.lane.b32.xlu0 %v1154, 32
        %v1730 = vpop.permute.xlu0 %1729
        %1731 = vrot.lane.b32.xlu0 %v1155, 32
        %v1732 = vpop.permute.xlu0 %1731
        %1733 = vrot.lane.b32.xlu0 %v1156, 32
        %v1734 = vpop.permute.xlu0 %1733
        %1735 = vrot.lane.b32.xlu0 %v1157, 32
        %v1736 = vpop.permute.xlu0 %1735
        %1737 = vrot.lane.b32.xlu0 %v1158, 32
        %v1738 = vpop.permute.xlu0 %1737
        %1739 = vrot.lane.b32.xlu0 %v1159, 32
        %v1740 = vpop.permute.xlu0 %1739
        %1741 = vrot.lane.b32.xlu0 %v1160, 32
        %v1742 = vpop.permute.xlu0 %1741
        %1743 = vrot.lane.b32.xlu0 %v1161, 32
        %v1744 = vpop.permute.xlu0 %1743
        %1745 = vrot.lane.b32.xlu0 %v1162, 32
        %v1746 = vpop.permute.xlu0 %1745
        %s1763 = scalar_lea.vmem %s315, 192 [#allocation8]
        %1764 = vst.msk [vmem:[%s1763] sm:$0xf] %vm1018, %v1716
        %1765 = vst.msk [vmem:[%s1763 + $0x4] sm:$0xf] %vm1018, %v1718
        %1766 = vst.msk [vmem:[%s1763 + $0x8] sm:$0xf] %vm1018, %v1720
        %1767 = vst.msk [vmem:[%s1763 + $0xc] sm:$0xf] %vm1018, %v1722
        %1768 = vst.msk [vmem:[%s1763 + $0x10] sm:$0xf] %vm1018, %v1724
        %1769 = vst.msk [vmem:[%s1763 + $0x14] sm:$0xf] %vm1018, %v1726
        %1770 = vst.msk [vmem:[%s1763 + $0x18] sm:$0xf] %vm1018, %v1728
        %1771 = vst.msk [vmem:[%s1763 + $0x1c] sm:$0xf] %vm1018, %v1730
        %1772 = vst.msk [vmem:[%s1763 + $0x20] sm:$0xf] %vm1018, %v1732
        %1773 = vst.msk [vmem:[%s1763 + $0x24] sm:$0xf] %vm1018, %v1734
        %1774 = vst.msk [vmem:[%s1763 + $0x28] sm:$0xf] %vm1018, %v1736
        %1775 = vst.msk [vmem:[%s1763 + $0x2c] sm:$0xf] %vm1018, %v1738
        %1776 = vst.msk [vmem:[%s1763 + $0x30] sm:$0xf] %vm1018, %v1740
        %1777 = vst.msk [vmem:[%s1763 + $0x34] sm:$0xf] %vm1018, %v1742
        %1778 = vst.msk [vmem:[%s1763 + $0x38] sm:$0xf] %vm1018, %v1744
        %1779 = vst.msk [vmem:[%s1763 + $0x3c] sm:$0xf] %vm1018, %v1746
        %s1780 = sand.u32 %s135, 1
        %s1781 = sand.u32 %s135, 1
        %s1782 = smul.addr %s1781, 256
        %s1783 = scalar_lea.vmem [#allocation6], %s1782
        %s1784 = sand.u32 %s163, 1
        %s1785 = sand.u32 %s163, 1
        %s1786 = smul.addr %s1785, 256
        %s1787 = scalar_lea.vmem [#allocation7], %s1786
        %s1788 = sand.u32 %s191, 1
        %s1789 = sand.u32 %s191, 1
        %s1790 = smul.addr %s1789, 256
        %s1791 = scalar_lea.vmem [#allocation8], %s1790
        // Predicated region
        $region45: #{tpu_custom_call.1} parent=35 // pred_check
          %p1792 = pneg %p145
        $region46: #{tpu_custom_call.1} parent=35 // pred_check_branch
          %1794 = sbr.rel (%p1792) target = $region48
        $region47: #{tpu_custom_call.1} parent=35 // pred_region
          %s1795 = smul.u32 16, %s27
          %s1796 = smul.addr %s26, 128
          %s1797 = sadd.s32 %s1795, %s1796
          %s1798 = smul.addr %s1797, 4
          %s1799 = scalar_lea.vmem %s4, %s1798
          // Predicated region
          $region49: #{tpu_custom_call.1} parent=47 // pred_check
            _
          $region50: #{tpu_custom_call.1} parent=47 // pred_check_branch
            %1801 = sbr.rel (0) target = $region52
          $region51: #{tpu_custom_call.1} parent=47 // pred_region
            // Predicated region
            $region53: #{tpu_custom_call.1} parent=51 // pred_check
              _
            $region54: #{tpu_custom_call.1} parent=51 // pred_check_branch
              %1803 = sbr.rel target = $region56
            $region55: #{tpu_custom_call.1} parent=51 // pred_region
              // Predicated region
              $region68: #{tpu_custom_call.1} parent=55 // pred_check
                _
              $region69: #{tpu_custom_call.1} parent=55 // pred_check_branch
                %1944 = sbr.rel (0) target = $region71
              $region70: #{tpu_custom_call.1} parent=55 // pred_region
                loop: start=0, step=1, limit=1
                $region72: #{tpu_custom_call.1} parent=70 // loop_pre_header
                  _
                $region73: #{tpu_custom_call.1} parent=70 // loop_header
                  %s1946 = sphi 0, %s1950
                  %p1947 = scmp.ge.s32.totalorder %s1946, 1
                  %s1951 = sphi %s1783, %s1783
                  %s1952 = sphi %s1799, %s1799
                $region74: #{tpu_custom_call.1} parent=70 // loop_header_branch
                  %1949 = sbr.rel (%p1947) target = $region78
                $region75: #{tpu_custom_call.1} parent=70 // loop_body
                  _
                $region76: #{tpu_custom_call.1} parent=70 // loop_footer
                  %s1950 = sadd.s32 1, %s1946
                $region77: #{tpu_custom_call.1} parent=70 // loop_footer_branch
                  %1945 = sbr.rel target = $region73
                $region78: #{tpu_custom_call.1} parent=70 // loop_exit
                  _
                loop: start=0, step=1, limit=1
                $region79: #{tpu_custom_call.1} parent=70 // loop_pre_header
                  _
                $region80: #{tpu_custom_call.1} parent=70 // loop_header
                  %s1955 = sphi 0, %s1959
                  %p1956 = scmp.ge.s32.totalorder %s1955, 1
                  %s1960 = sphi %s1783, %s1783
                  %s1961 = sphi %s1799, %s1799
                $region81: #{tpu_custom_call.1} parent=70 // loop_header_branch
                  %1958 = sbr.rel (%p1956) target = $region85
                $region82: #{tpu_custom_call.1} parent=70 // loop_body
                  %v1962 = vld [vmem:[%s1960] sm:$0xf]
                  %1963 = vst [vmem:[%s1961] sm:$0xf] %v1962
                  %v1964 = vld [vmem:[%s1960 + $0x4] sm:$0xf]
                  %1965 = vst [vmem:[%s1961 + $0x4] sm:$0xf] %v1964
                  %v1966 = vld [vmem:[%s1960 + $0x8] sm:$0xf]
                  %1967 = vst [vmem:[%s1961 + $0x8] sm:$0xf] %v1966
                  %v1968 = vld [vmem:[%s1960 + $0xc] sm:$0xf]
                  %1969 = vst [vmem:[%s1961 + $0xc] sm:$0xf] %v1968
                  %v1970 = vld [vmem:[%s1960 + $0x10] sm:$0xf]
                  %1971 = vst [vmem:[%s1961 + $0x10] sm:$0xf] %v1970
                  %v1972 = vld [vmem:[%s1960 + $0x14] sm:$0xf]
                  %1973 = vst [vmem:[%s1961 + $0x14] sm:$0xf] %v1972
                  %v1974 = vld [vmem:[%s1960 + $0x18] sm:$0xf]
                  %1975 = vst [vmem:[%s1961 + $0x18] sm:$0xf] %v1974
                  %v1976 = vld [vmem:[%s1960 + $0x1c] sm:$0xf]
                  %1977 = vst [vmem:[%s1961 + $0x1c] sm:$0xf] %v1976
                  %v1978 = vld [vmem:[%s1960 + $0x20] sm:$0xf]
                  %1979 = vst [vmem:[%s1961 + $0x20] sm:$0xf] %v1978
                  %v1980 = vld [vmem:[%s1960 + $0x24] sm:$0xf]
                  %1981 = vst [vmem:[%s1961 + $0x24] sm:$0xf] %v1980
                  %v1982 = vld [vmem:[%s1960 + $0x28] sm:$0xf]
                  %1983 = vst [vmem:[%s1961 + $0x28] sm:$0xf] %v1982
                  %v1984 = vld [vmem:[%s1960 + $0x2c] sm:$0xf]
                  %1985 = vst [vmem:[%s1961 + $0x2c] sm:$0xf] %v1984
                  %v1986 = vld [vmem:[%s1960 + $0x30] sm:$0xf]
                  %1987 = vst [vmem:[%s1961 + $0x30] sm:$0xf] %v1986
                  %v1988 = vld [vmem:[%s1960 + $0x34] sm:$0xf]
                  %1989 = vst [vmem:[%s1961 + $0x34] sm:$0xf] %v1988
                  %v1990 = vld [vmem:[%s1960 + $0x38] sm:$0xf]
                  %1991 = vst [vmem:[%s1961 + $0x38] sm:$0xf] %v1990
                  %v1992 = vld [vmem:[%s1960 + $0x3c] sm:$0xf]
                  %1993 = vst [vmem:[%s1961 + $0x3c] sm:$0xf] %v1992
                  %v1994 = vld [vmem:[%s1960 + $0x40] sm:$0xf]
                  %1995 = vst [vmem:[%s1961 + $0x80] sm:$0xf] %v1994
                  %v1996 = vld [vmem:[%s1960 + $0x44] sm:$0xf]
                  %1997 = vst [vmem:[%s1961 + $0x84] sm:$0xf] %v1996
                  %v1998 = vld [vmem:[%s1960 + $0x48] sm:$0xf]
                  %1999 = vst [vmem:[%s1961 + $0x88] sm:$0xf] %v1998
                  %v2000 = vld [vmem:[%s1960 + $0x4c] sm:$0xf]
                  %2001 = vst [vmem:[%s1961 + $0x8c] sm:$0xf] %v2000
                  %v2002 = vld [vmem:[%s1960 + $0x50] sm:$0xf]
                  %2003 = vst [vmem:[%s1961 + $0x90] sm:$0xf] %v2002
                  %v2004 = vld [vmem:[%s1960 + $0x54] sm:$0xf]
                  %2005 = vst [vmem:[%s1961 + $0x94] sm:$0xf] %v2004
                  %v2006 = vld [vmem:[%s1960 + $0x58] sm:$0xf]
                  %2007 = vst [vmem:[%s1961 + $0x98] sm:$0xf] %v2006
                  %v2008 = vld [vmem:[%s1960 + $0x5c] sm:$0xf]
                  %2009 = vst [vmem:[%s1961 + $0x9c] sm:$0xf] %v2008
                  %v2010 = vld [vmem:[%s1960 + $0x60] sm:$0xf]
                  %2011 = vst [vmem:[%s1961 + $0xa0] sm:$0xf] %v2010
                  %v2012 = vld [vmem:[%s1960 + $0x64] sm:$0xf]
                  %2013 = vst [vmem:[%s1961 + $0xa4] sm:$0xf] %v2012
                  %v2014 = vld [vmem:[%s1960 + $0x68] sm:$0xf]
                  %2015 = vst [vmem:[%s1961 + $0xa8] sm:$0xf] %v2014
                  %v2016 = vld [vmem:[%s1960 + $0x6c] sm:$0xf]
                  %2017 = vst [vmem:[%s1961 + $0xac] sm:$0xf] %v2016
                  %v2018 = vld [vmem:[%s1960 + $0x70] sm:$0xf]
                  %2019 = vst [vmem:[%s1961 + $0xb0] sm:$0xf] %v2018
                  %v2020 = vld [vmem:[%s1960 + $0x74] sm:$0xf]
                  %2021 = vst [vmem:[%s1961 + $0xb4] sm:$0xf] %v2020
                  %v2022 = vld [vmem:[%s1960 + $0x78] sm:$0xf]
                  %2023 = vst [vmem:[%s1961 + $0xb8] sm:$0xf] %v2022
                  %v2024 = vld [vmem:[%s1960 + $0x7c] sm:$0xf]
                  %2025 = vst [vmem:[%s1961 + $0xbc] sm:$0xf] %v2024
                  %v2026 = vld [vmem:[%s1960 + $0x80] sm:$0xf]
                  %2027 = vst [vmem:[%s1961 + $0x100] sm:$0xf] %v2026
                  %v2028 = vld [vmem:[%s1960 + $0x84] sm:$0xf]
                  %2029 = vst [vmem:[%s1961 + $0x104] sm:$0xf] %v2028
                  %v2030 = vld [vmem:[%s1960 + $0x88] sm:$0xf]
                  %2031 = vst [vmem:[%s1961 + $0x108] sm:$0xf] %v2030
                  %v2032 = vld [vmem:[%s1960 + $0x8c] sm:$0xf]
                  %2033 = vst [vmem:[%s1961 + $0x10c] sm:$0xf] %v2032
                  %v2034 = vld [vmem:[%s1960 + $0x90] sm:$0xf]
                  %2035 = vst [vmem:[%s1961 + $0x110] sm:$0xf] %v2034
                  %v2036 = vld [vmem:[%s1960 + $0x94] sm:$0xf]
                  %2037 = vst [vmem:[%s1961 + $0x114] sm:$0xf] %v2036
                  %v2038 = vld [vmem:[%s1960 + $0x98] sm:$0xf]
                  %2039 = vst [vmem:[%s1961 + $0x118] sm:$0xf] %v2038
                  %v2040 = vld [vmem:[%s1960 + $0x9c] sm:$0xf]
                  %2041 = vst [vmem:[%s1961 + $0x11c] sm:$0xf] %v2040
                  %v2042 = vld [vmem:[%s1960 + $0xa0] sm:$0xf]
                  %2043 = vst [vmem:[%s1961 + $0x120] sm:$0xf] %v2042
                  %v2044 = vld [vmem:[%s1960 + $0xa4] sm:$0xf]
                  %2045 = vst [vmem:[%s1961 + $0x124] sm:$0xf] %v2044
                  %v2046 = vld [vmem:[%s1960 + $0xa8] sm:$0xf]
                  %2047 = vst [vmem:[%s1961 + $0x128] sm:$0xf] %v2046
                  %v2048 = vld [vmem:[%s1960 + $0xac] sm:$0xf]
                  %2049 = vst [vmem:[%s1961 + $0x12c] sm:$0xf] %v2048
                  %v2050 = vld [vmem:[%s1960 + $0xb0] sm:$0xf]
                  %2051 = vst [vmem:[%s1961 + $0x130] sm:$0xf] %v2050
                  %v2052 = vld [vmem:[%s1960 + $0xb4] sm:$0xf]
                  %2053 = vst [vmem:[%s1961 + $0x134] sm:$0xf] %v2052
                  %v2054 = vld [vmem:[%s1960 + $0xb8] sm:$0xf]
                  %2055 = vst [vmem:[%s1961 + $0x138] sm:$0xf] %v2054
                  %v2056 = vld [vmem:[%s1960 + $0xbc] sm:$0xf]
                  %2057 = vst [vmem:[%s1961 + $0x13c] sm:$0xf] %v2056
                  %v2058 = vld [vmem:[%s1960 + $0xc0] sm:$0xf]
                  %2059 = vst [vmem:[%s1961 + $0x180] sm:$0xf] %v2058
                  %v2060 = vld [vmem:[%s1960 + $0xc4] sm:$0xf]
                  %2061 = vst [vmem:[%s1961 + $0x184] sm:$0xf] %v2060
                  %v2062 = vld [vmem:[%s1960 + $0xc8] sm:$0xf]
                  %2063 = vst [vmem:[%s1961 + $0x188] sm:$0xf] %v2062
                  %v2064 = vld [vmem:[%s1960 + $0xcc] sm:$0xf]
                  %2065 = vst [vmem:[%s1961 + $0x18c] sm:$0xf] %v2064
                  %v2066 = vld [vmem:[%s1960 + $0xd0] sm:$0xf]
                  %2067 = vst [vmem:[%s1961 + $0x190] sm:$0xf] %v2066
                  %v2068 = vld [vmem:[%s1960 + $0xd4] sm:$0xf]
                  %2069 = vst [vmem:[%s1961 + $0x194] sm:$0xf] %v2068
                  %v2070 = vld [vmem:[%s1960 + $0xd8] sm:$0xf]
                  %2071 = vst [vmem:[%s1961 + $0x198] sm:$0xf] %v2070
                  %v2072 = vld [vmem:[%s1960 + $0xdc] sm:$0xf]
                  %2073 = vst [vmem:[%s1961 + $0x19c] sm:$0xf] %v2072
                  %v2074 = vld [vmem:[%s1960 + $0xe0] sm:$0xf]
                  %2075 = vst [vmem:[%s1961 + $0x1a0] sm:$0xf] %v2074
                  %v2076 = vld [vmem:[%s1960 + $0xe4] sm:$0xf]
                  %2077 = vst [vmem:[%s1961 + $0x1a4] sm:$0xf] %v2076
                  %v2078 = vld [vmem:[%s1960 + $0xe8] sm:$0xf]
                  %2079 = vst [vmem:[%s1961 + $0x1a8] sm:$0xf] %v2078
                  %v2080 = vld [vmem:[%s1960 + $0xec] sm:$0xf]
                  %2081 = vst [vmem:[%s1961 + $0x1ac] sm:$0xf] %v2080
                  %v2082 = vld [vmem:[%s1960 + $0xf0] sm:$0xf]
                  %2083 = vst [vmem:[%s1961 + $0x1b0] sm:$0xf] %v2082
                  %v2084 = vld [vmem:[%s1960 + $0xf4] sm:$0xf]
                  %2085 = vst [vmem:[%s1961 + $0x1b4] sm:$0xf] %v2084
                  %v2086 = vld [vmem:[%s1960 + $0xf8] sm:$0xf]
                  %2087 = vst [vmem:[%s1961 + $0x1b8] sm:$0xf] %v2086
                  %v2088 = vld [vmem:[%s1960 + $0xfc] sm:$0xf]
                  %2089 = vst [vmem:[%s1961 + $0x1bc] sm:$0xf] %v2088
                $region83: #{tpu_custom_call.1} parent=70 // loop_footer
                  %s1959 = sadd.s32 1, %s1955
                $region84: #{tpu_custom_call.1} parent=70 // loop_footer_branch
                  %1954 = sbr.rel target = $region80
                $region85: #{tpu_custom_call.1} parent=70 // loop_exit
                  _
              $region71: #{tpu_custom_call.1} parent=55 // pred_fallthru
                _
            $region56: #{tpu_custom_call.1} parent=51 // pred_fallthru
              _
            // Predicated region
            $region57: #{tpu_custom_call.1} parent=51 // pred_check
              _
            $region58: #{tpu_custom_call.1} parent=51 // pred_check_branch
              %1805 = sbr.rel (0) target = $region60
            $region59: #{tpu_custom_call.1} parent=51 // pred_region
              loop: start=0, step=1, limit=1
              $region61: #{tpu_custom_call.1} parent=59 // loop_pre_header
                _
              $region62: #{tpu_custom_call.1} parent=59 // loop_header
                %s1808 = sphi 0, %s1812
                %p1809 = scmp.ge.s32.totalorder %s1808, 1
                %s1813 = sphi %s1783, %s1783
                %s1814 = sphi %s1799, %s1799
              $region63: #{tpu_custom_call.1} parent=59 // loop_header_branch
                %1811 = sbr.rel (%p1809) target = $region67
              $region64: #{tpu_custom_call.1} parent=59 // loop_body
                %v1815 = vld [vmem:[%s1813] sm:$0xf]
                %1816 = vst [vmem:[%s1814] sm:$0xf] %v1815
                %v1817 = vld [vmem:[%s1813 + $0x4] sm:$0xf]
                %1818 = vst [vmem:[%s1814 + $0x4] sm:$0xf] %v1817
                %v1819 = vld [vmem:[%s1813 + $0x8] sm:$0xf]
                %1820 = vst [vmem:[%s1814 + $0x8] sm:$0xf] %v1819
                %v1821 = vld [vmem:[%s1813 + $0xc] sm:$0xf]
                %1822 = vst [vmem:[%s1814 + $0xc] sm:$0xf] %v1821
                %v1823 = vld [vmem:[%s1813 + $0x10] sm:$0xf]
                %1824 = vst [vmem:[%s1814 + $0x10] sm:$0xf] %v1823
                %v1825 = vld [vmem:[%s1813 + $0x14] sm:$0xf]
                %1826 = vst [vmem:[%s1814 + $0x14] sm:$0xf] %v1825
                %v1827 = vld [vmem:[%s1813 + $0x18] sm:$0xf]
                %1828 = vst [vmem:[%s1814 + $0x18] sm:$0xf] %v1827
                %v1829 = vld [vmem:[%s1813 + $0x1c] sm:$0xf]
                %1830 = vst [vmem:[%s1814 + $0x1c] sm:$0xf] %v1829
                %v1831 = vld [vmem:[%s1813 + $0x20] sm:$0xf]
                %1832 = vst [vmem:[%s1814 + $0x20] sm:$0xf] %v1831
                %v1833 = vld [vmem:[%s1813 + $0x24] sm:$0xf]
                %1834 = vst [vmem:[%s1814 + $0x24] sm:$0xf] %v1833
                %v1835 = vld [vmem:[%s1813 + $0x28] sm:$0xf]
                %1836 = vst [vmem:[%s1814 + $0x28] sm:$0xf] %v1835
                %v1837 = vld [vmem:[%s1813 + $0x2c] sm:$0xf]
                %1838 = vst [vmem:[%s1814 + $0x2c] sm:$0xf] %v1837
                %v1839 = vld [vmem:[%s1813 + $0x30] sm:$0xf]
                %1840 = vst [vmem:[%s1814 + $0x30] sm:$0xf] %v1839
                %v1841 = vld [vmem:[%s1813 + $0x34] sm:$0xf]
                %1842 = vst [vmem:[%s1814 + $0x34] sm:$0xf] %v1841
                %v1843 = vld [vmem:[%s1813 + $0x38] sm:$0xf]
                %1844 = vst [vmem:[%s1814 + $0x38] sm:$0xf] %v1843
                %v1845 = vld [vmem:[%s1813 + $0x3c] sm:$0xf]
                %1846 = vst [vmem:[%s1814 + $0x3c] sm:$0xf] %v1845
                %v1847 = vld [vmem:[%s1813 + $0x40] sm:$0xf]
                %1848 = vst [vmem:[%s1814 + $0x80] sm:$0xf] %v1847
                %v1849 = vld [vmem:[%s1813 + $0x44] sm:$0xf]
                %1850 = vst [vmem:[%s1814 + $0x84] sm:$0xf] %v1849
                %v1851 = vld [vmem:[%s1813 + $0x48] sm:$0xf]
                %1852 = vst [vmem:[%s1814 + $0x88] sm:$0xf] %v1851
                %v1853 = vld [vmem:[%s1813 + $0x4c] sm:$0xf]
                %1854 = vst [vmem:[%s1814 + $0x8c] sm:$0xf] %v1853
                %v1855 = vld [vmem:[%s1813 + $0x50] sm:$0xf]
                %1856 = vst [vmem:[%s1814 + $0x90] sm:$0xf] %v1855
                %v1857 = vld [vmem:[%s1813 + $0x54] sm:$0xf]
                %1858 = vst [vmem:[%s1814 + $0x94] sm:$0xf] %v1857
                %v1859 = vld [vmem:[%s1813 + $0x58] sm:$0xf]
                %1860 = vst [vmem:[%s1814 + $0x98] sm:$0xf] %v1859
                %v1861 = vld [vmem:[%s1813 + $0x5c] sm:$0xf]
                %1862 = vst [vmem:[%s1814 + $0x9c] sm:$0xf] %v1861
                %v1863 = vld [vmem:[%s1813 + $0x60] sm:$0xf]
                %1864 = vst [vmem:[%s1814 + $0xa0] sm:$0xf] %v1863
                %v1865 = vld [vmem:[%s1813 + $0x64] sm:$0xf]
                %1866 = vst [vmem:[%s1814 + $0xa4] sm:$0xf] %v1865
                %v1867 = vld [vmem:[%s1813 + $0x68] sm:$0xf]
                %1868 = vst [vmem:[%s1814 + $0xa8] sm:$0xf] %v1867
                %v1869 = vld [vmem:[%s1813 + $0x6c] sm:$0xf]
                %1870 = vst [vmem:[%s1814 + $0xac] sm:$0xf] %v1869
                %v1871 = vld [vmem:[%s1813 + $0x70] sm:$0xf]
                %1872 = vst [vmem:[%s1814 + $0xb0] sm:$0xf] %v1871
                %v1873 = vld [vmem:[%s1813 + $0x74] sm:$0xf]
                %1874 = vst [vmem:[%s1814 + $0xb4] sm:$0xf] %v1873
                %v1875 = vld [vmem:[%s1813 + $0x78] sm:$0xf]
                %1876 = vst [vmem:[%s1814 + $0xb8] sm:$0xf] %v1875
                %v1877 = vld [vmem:[%s1813 + $0x7c] sm:$0xf]
                %1878 = vst [vmem:[%s1814 + $0xbc] sm:$0xf] %v1877
                %v1879 = vld [vmem:[%s1813 + $0x80] sm:$0xf]
                %1880 = vst [vmem:[%s1814 + $0x100] sm:$0xf] %v1879
                %v1881 = vld [vmem:[%s1813 + $0x84] sm:$0xf]
                %1882 = vst [vmem:[%s1814 + $0x104] sm:$0xf] %v1881
                %v1883 = vld [vmem:[%s1813 + $0x88] sm:$0xf]
                %1884 = vst [vmem:[%s1814 + $0x108] sm:$0xf] %v1883
                %v1885 = vld [vmem:[%s1813 + $0x8c] sm:$0xf]
                %1886 = vst [vmem:[%s1814 + $0x10c] sm:$0xf] %v1885
                %v1887 = vld [vmem:[%s1813 + $0x90] sm:$0xf]
                %1888 = vst [vmem:[%s1814 + $0x110] sm:$0xf] %v1887
                %v1889 = vld [vmem:[%s1813 + $0x94] sm:$0xf]
                %1890 = vst [vmem:[%s1814 + $0x114] sm:$0xf] %v1889
                %v1891 = vld [vmem:[%s1813 + $0x98] sm:$0xf]
                %1892 = vst [vmem:[%s1814 + $0x118] sm:$0xf] %v1891
                %v1893 = vld [vmem:[%s1813 + $0x9c] sm:$0xf]
                %1894 = vst [vmem:[%s1814 + $0x11c] sm:$0xf] %v1893
                %v1895 = vld [vmem:[%s1813 + $0xa0] sm:$0xf]
                %1896 = vst [vmem:[%s1814 + $0x120] sm:$0xf] %v1895
                %v1897 = vld [vmem:[%s1813 + $0xa4] sm:$0xf]
                %1898 = vst [vmem:[%s1814 + $0x124] sm:$0xf] %v1897
                %v1899 = vld [vmem:[%s1813 + $0xa8] sm:$0xf]
                %1900 = vst [vmem:[%s1814 + $0x128] sm:$0xf] %v1899
                %v1901 = vld [vmem:[%s1813 + $0xac] sm:$0xf]
                %1902 = vst [vmem:[%s1814 + $0x12c] sm:$0xf] %v1901
                %v1903 = vld [vmem:[%s1813 + $0xb0] sm:$0xf]
                %1904 = vst [vmem:[%s1814 + $0x130] sm:$0xf] %v1903
                %v1905 = vld [vmem:[%s1813 + $0xb4] sm:$0xf]
                %1906 = vst [vmem:[%s1814 + $0x134] sm:$0xf] %v1905
                %v1907 = vld [vmem:[%s1813 + $0xb8] sm:$0xf]
                %1908 = vst [vmem:[%s1814 + $0x138] sm:$0xf] %v1907
                %v1909 = vld [vmem:[%s1813 + $0xbc] sm:$0xf]
                %1910 = vst [vmem:[%s1814 + $0x13c] sm:$0xf] %v1909
                %v1911 = vld [vmem:[%s1813 + $0xc0] sm:$0xf]
                %1912 = vst [vmem:[%s1814 + $0x180] sm:$0xf] %v1911
                %v1913 = vld [vmem:[%s1813 + $0xc4] sm:$0xf]
                %1914 = vst [vmem:[%s1814 + $0x184] sm:$0xf] %v1913
                %v1915 = vld [vmem:[%s1813 + $0xc8] sm:$0xf]
                %1916 = vst [vmem:[%s1814 + $0x188] sm:$0xf] %v1915
                %v1917 = vld [vmem:[%s1813 + $0xcc] sm:$0xf]
                %1918 = vst [vmem:[%s1814 + $0x18c] sm:$0xf] %v1917
                %v1919 = vld [vmem:[%s1813 + $0xd0] sm:$0xf]
                %1920 = vst [vmem:[%s1814 + $0x190] sm:$0xf] %v1919
                %v1921 = vld [vmem:[%s1813 + $0xd4] sm:$0xf]
                %1922 = vst [vmem:[%s1814 + $0x194] sm:$0xf] %v1921
                %v1923 = vld [vmem:[%s1813 + $0xd8] sm:$0xf]
                %1924 = vst [vmem:[%s1814 + $0x198] sm:$0xf] %v1923
                %v1925 = vld [vmem:[%s1813 + $0xdc] sm:$0xf]
                %1926 = vst [vmem:[%s1814 + $0x19c] sm:$0xf] %v1925
                %v1927 = vld [vmem:[%s1813 + $0xe0] sm:$0xf]
                %1928 = vst [vmem:[%s1814 + $0x1a0] sm:$0xf] %v1927
                %v1929 = vld [vmem:[%s1813 + $0xe4] sm:$0xf]
                %1930 = vst [vmem:[%s1814 + $0x1a4] sm:$0xf] %v1929
                %v1931 = vld [vmem:[%s1813 + $0xe8] sm:$0xf]
                %1932 = vst [vmem:[%s1814 + $0x1a8] sm:$0xf] %v1931
                %v1933 = vld [vmem:[%s1813 + $0xec] sm:$0xf]
                %1934 = vst [vmem:[%s1814 + $0x1ac] sm:$0xf] %v1933
                %v1935 = vld [vmem:[%s1813 + $0xf0] sm:$0xf]
                %1936 = vst [vmem:[%s1814 + $0x1b0] sm:$0xf] %v1935
                %v1937 = vld [vmem:[%s1813 + $0xf4] sm:$0xf]
                %1938 = vst [vmem:[%s1814 + $0x1b4] sm:$0xf] %v1937
                %v1939 = vld [vmem:[%s1813 + $0xf8] sm:$0xf]
                %1940 = vst [vmem:[%s1814 + $0x1b8] sm:$0xf] %v1939
                %v1941 = vld [vmem:[%s1813 + $0xfc] sm:$0xf]
                %1942 = vst [vmem:[%s1814 + $0x1bc] sm:$0xf] %v1941
              $region65: #{tpu_custom_call.1} parent=59 // loop_footer
                %s1812 = sadd.s32 1, %s1808
              $region66: #{tpu_custom_call.1} parent=59 // loop_footer_branch
                %1807 = sbr.rel target = $region62
              $region67: #{tpu_custom_call.1} parent=59 // loop_exit
                _
            $region60: #{tpu_custom_call.1} parent=51 // pred_fallthru
              _
          $region52: #{tpu_custom_call.1} parent=47 // pred_fallthru
            _
          %2090 = vnop
        $region48: #{tpu_custom_call.1} parent=35 // pred_fallthru
          _
        // Predicated region
        $region86: #{tpu_custom_call.1} parent=35 // pred_check
          %p2091 = pneg %p173
        $region87: #{tpu_custom_call.1} parent=35 // pred_check_branch
          %2093 = sbr.rel (%p2091) target = $region89
        $region88: #{tpu_custom_call.1} parent=35 // pred_region
          %s2094 = smul.u32 16, %s27
          %s2095 = smul.addr %s26, 128
          %s2096 = sadd.s32 %s2094, %s2095
          %s2097 = smul.addr %s2096, 4
          %s2098 = scalar_lea.vmem %s5, %s2097
          // Predicated region
          $region90: #{tpu_custom_call.1} parent=88 // pred_check
            _
          $region91: #{tpu_custom_call.1} parent=88 // pred_check_branch
            %2100 = sbr.rel (0) target = $region93
          $region92: #{tpu_custom_call.1} parent=88 // pred_region
            // Predicated region
            $region94: #{tpu_custom_call.1} parent=92 // pred_check
              _
            $region95: #{tpu_custom_call.1} parent=92 // pred_check_branch
              %2102 = sbr.rel target = $region97
            $region96: #{tpu_custom_call.1} parent=92 // pred_region
              // Predicated region
              $region109: #{tpu_custom_call.1} parent=96 // pred_check
                _
              $region110: #{tpu_custom_call.1} parent=96 // pred_check_branch
                %2243 = sbr.rel (0) target = $region112
              $region111: #{tpu_custom_call.1} parent=96 // pred_region
                loop: start=0, step=1, limit=1
                $region113: #{tpu_custom_call.1} parent=111 // loop_pre_header
                  _
                $region114: #{tpu_custom_call.1} parent=111 // loop_header
                  %s2245 = sphi 0, %s2249
                  %p2246 = scmp.ge.s32.totalorder %s2245, 1
                  %s2250 = sphi %s1787, %s1787
                  %s2251 = sphi %s2098, %s2098
                $region115: #{tpu_custom_call.1} parent=111 // loop_header_branch
                  %2248 = sbr.rel (%p2246) target = $region119
                $region116: #{tpu_custom_call.1} parent=111 // loop_body
                  _
                $region117: #{tpu_custom_call.1} parent=111 // loop_footer
                  %s2249 = sadd.s32 1, %s2245
                $region118: #{tpu_custom_call.1} parent=111 // loop_footer_branch
                  %2244 = sbr.rel target = $region114
                $region119: #{tpu_custom_call.1} parent=111 // loop_exit
                  _
                loop: start=0, step=1, limit=1
                $region120: #{tpu_custom_call.1} parent=111 // loop_pre_header
                  _
                $region121: #{tpu_custom_call.1} parent=111 // loop_header
                  %s2254 = sphi 0, %s2258
                  %p2255 = scmp.ge.s32.totalorder %s2254, 1
                  %s2259 = sphi %s1787, %s1787
                  %s2260 = sphi %s2098, %s2098
                $region122: #{tpu_custom_call.1} parent=111 // loop_header_branch
                  %2257 = sbr.rel (%p2255) target = $region126
                $region123: #{tpu_custom_call.1} parent=111 // loop_body
                  %v2261 = vld [vmem:[%s2259] sm:$0xf]
                  %2262 = vst [vmem:[%s2260] sm:$0xf] %v2261
                  %v2263 = vld [vmem:[%s2259 + $0x4] sm:$0xf]
                  %2264 = vst [vmem:[%s2260 + $0x4] sm:$0xf] %v2263
                  %v2265 = vld [vmem:[%s2259 + $0x8] sm:$0xf]
                  %2266 = vst [vmem:[%s2260 + $0x8] sm:$0xf] %v2265
                  %v2267 = vld [vmem:[%s2259 + $0xc] sm:$0xf]
                  %2268 = vst [vmem:[%s2260 + $0xc] sm:$0xf] %v2267
                  %v2269 = vld [vmem:[%s2259 + $0x10] sm:$0xf]
                  %2270 = vst [vmem:[%s2260 + $0x10] sm:$0xf] %v2269
                  %v2271 = vld [vmem:[%s2259 + $0x14] sm:$0xf]
                  %2272 = vst [vmem:[%s2260 + $0x14] sm:$0xf] %v2271
                  %v2273 = vld [vmem:[%s2259 + $0x18] sm:$0xf]
                  %2274 = vst [vmem:[%s2260 + $0x18] sm:$0xf] %v2273
                  %v2275 = vld [vmem:[%s2259 + $0x1c] sm:$0xf]
                  %2276 = vst [vmem:[%s2260 + $0x1c] sm:$0xf] %v2275
                  %v2277 = vld [vmem:[%s2259 + $0x20] sm:$0xf]
                  %2278 = vst [vmem:[%s2260 + $0x20] sm:$0xf] %v2277
                  %v2279 = vld [vmem:[%s2259 + $0x24] sm:$0xf]
                  %2280 = vst [vmem:[%s2260 + $0x24] sm:$0xf] %v2279
                  %v2281 = vld [vmem:[%s2259 + $0x28] sm:$0xf]
                  %2282 = vst [vmem:[%s2260 + $0x28] sm:$0xf] %v2281
                  %v2283 = vld [vmem:[%s2259 + $0x2c] sm:$0xf]
                  %2284 = vst [vmem:[%s2260 + $0x2c] sm:$0xf] %v2283
                  %v2285 = vld [vmem:[%s2259 + $0x30] sm:$0xf]
                  %2286 = vst [vmem:[%s2260 + $0x30] sm:$0xf] %v2285
                  %v2287 = vld [vmem:[%s2259 + $0x34] sm:$0xf]
                  %2288 = vst [vmem:[%s2260 + $0x34] sm:$0xf] %v2287
                  %v2289 = vld [vmem:[%s2259 + $0x38] sm:$0xf]
                  %2290 = vst [vmem:[%s2260 + $0x38] sm:$0xf] %v2289
                  %v2291 = vld [vmem:[%s2259 + $0x3c] sm:$0xf]
                  %2292 = vst [vmem:[%s2260 + $0x3c] sm:$0xf] %v2291
                  %v2293 = vld [vmem:[%s2259 + $0x40] sm:$0xf]
                  %2294 = vst [vmem:[%s2260 + $0x80] sm:$0xf] %v2293
                  %v2295 = vld [vmem:[%s2259 + $0x44] sm:$0xf]
                  %2296 = vst [vmem:[%s2260 + $0x84] sm:$0xf] %v2295
                  %v2297 = vld [vmem:[%s2259 + $0x48] sm:$0xf]
                  %2298 = vst [vmem:[%s2260 + $0x88] sm:$0xf] %v2297
                  %v2299 = vld [vmem:[%s2259 + $0x4c] sm:$0xf]
                  %2300 = vst [vmem:[%s2260 + $0x8c] sm:$0xf] %v2299
                  %v2301 = vld [vmem:[%s2259 + $0x50] sm:$0xf]
                  %2302 = vst [vmem:[%s2260 + $0x90] sm:$0xf] %v2301
                  %v2303 = vld [vmem:[%s2259 + $0x54] sm:$0xf]
                  %2304 = vst [vmem:[%s2260 + $0x94] sm:$0xf] %v2303
                  %v2305 = vld [vmem:[%s2259 + $0x58] sm:$0xf]
                  %2306 = vst [vmem:[%s2260 + $0x98] sm:$0xf] %v2305
                  %v2307 = vld [vmem:[%s2259 + $0x5c] sm:$0xf]
                  %2308 = vst [vmem:[%s2260 + $0x9c] sm:$0xf] %v2307
                  %v2309 = vld [vmem:[%s2259 + $0x60] sm:$0xf]
                  %2310 = vst [vmem:[%s2260 + $0xa0] sm:$0xf] %v2309
                  %v2311 = vld [vmem:[%s2259 + $0x64] sm:$0xf]
                  %2312 = vst [vmem:[%s2260 + $0xa4] sm:$0xf] %v2311
                  %v2313 = vld [vmem:[%s2259 + $0x68] sm:$0xf]
                  %2314 = vst [vmem:[%s2260 + $0xa8] sm:$0xf] %v2313
                  %v2315 = vld [vmem:[%s2259 + $0x6c] sm:$0xf]
                  %2316 = vst [vmem:[%s2260 + $0xac] sm:$0xf] %v2315
                  %v2317 = vld [vmem:[%s2259 + $0x70] sm:$0xf]
                  %2318 = vst [vmem:[%s2260 + $0xb0] sm:$0xf] %v2317
                  %v2319 = vld [vmem:[%s2259 + $0x74] sm:$0xf]
                  %2320 = vst [vmem:[%s2260 + $0xb4] sm:$0xf] %v2319
                  %v2321 = vld [vmem:[%s2259 + $0x78] sm:$0xf]
                  %2322 = vst [vmem:[%s2260 + $0xb8] sm:$0xf] %v2321
                  %v2323 = vld [vmem:[%s2259 + $0x7c] sm:$0xf]
                  %2324 = vst [vmem:[%s2260 + $0xbc] sm:$0xf] %v2323
                  %v2325 = vld [vmem:[%s2259 + $0x80] sm:$0xf]
                  %2326 = vst [vmem:[%s2260 + $0x100] sm:$0xf] %v2325
                  %v2327 = vld [vmem:[%s2259 + $0x84] sm:$0xf]
                  %2328 = vst [vmem:[%s2260 + $0x104] sm:$0xf] %v2327
                  %v2329 = vld [vmem:[%s2259 + $0x88] sm:$0xf]
                  %2330 = vst [vmem:[%s2260 + $0x108] sm:$0xf] %v2329
                  %v2331 = vld [vmem:[%s2259 + $0x8c] sm:$0xf]
                  %2332 = vst [vmem:[%s2260 + $0x10c] sm:$0xf] %v2331
                  %v2333 = vld [vmem:[%s2259 + $0x90] sm:$0xf]
                  %2334 = vst [vmem:[%s2260 + $0x110] sm:$0xf] %v2333
                  %v2335 = vld [vmem:[%s2259 + $0x94] sm:$0xf]
                  %2336 = vst [vmem:[%s2260 + $0x114] sm:$0xf] %v2335
                  %v2337 = vld [vmem:[%s2259 + $0x98] sm:$0xf]
                  %2338 = vst [vmem:[%s2260 + $0x118] sm:$0xf] %v2337
                  %v2339 = vld [vmem:[%s2259 + $0x9c] sm:$0xf]
                  %2340 = vst [vmem:[%s2260 + $0x11c] sm:$0xf] %v2339
                  %v2341 = vld [vmem:[%s2259 + $0xa0] sm:$0xf]
                  %2342 = vst [vmem:[%s2260 + $0x120] sm:$0xf] %v2341
                  %v2343 = vld [vmem:[%s2259 + $0xa4] sm:$0xf]
                  %2344 = vst [vmem:[%s2260 + $0x124] sm:$0xf] %v2343
                  %v2345 = vld [vmem:[%s2259 + $0xa8] sm:$0xf]
                  %2346 = vst [vmem:[%s2260 + $0x128] sm:$0xf] %v2345
                  %v2347 = vld [vmem:[%s2259 + $0xac] sm:$0xf]
                  %2348 = vst [vmem:[%s2260 + $0x12c] sm:$0xf] %v2347
                  %v2349 = vld [vmem:[%s2259 + $0xb0] sm:$0xf]
                  %2350 = vst [vmem:[%s2260 + $0x130] sm:$0xf] %v2349
                  %v2351 = vld [vmem:[%s2259 + $0xb4] sm:$0xf]
                  %2352 = vst [vmem:[%s2260 + $0x134] sm:$0xf] %v2351
                  %v2353 = vld [vmem:[%s2259 + $0xb8] sm:$0xf]
                  %2354 = vst [vmem:[%s2260 + $0x138] sm:$0xf] %v2353
                  %v2355 = vld [vmem:[%s2259 + $0xbc] sm:$0xf]
                  %2356 = vst [vmem:[%s2260 + $0x13c] sm:$0xf] %v2355
                  %v2357 = vld [vmem:[%s2259 + $0xc0] sm:$0xf]
                  %2358 = vst [vmem:[%s2260 + $0x180] sm:$0xf] %v2357
                  %v2359 = vld [vmem:[%s2259 + $0xc4] sm:$0xf]
                  %2360 = vst [vmem:[%s2260 + $0x184] sm:$0xf] %v2359
                  %v2361 = vld [vmem:[%s2259 + $0xc8] sm:$0xf]
                  %2362 = vst [vmem:[%s2260 + $0x188] sm:$0xf] %v2361
                  %v2363 = vld [vmem:[%s2259 + $0xcc] sm:$0xf]
                  %2364 = vst [vmem:[%s2260 + $0x18c] sm:$0xf] %v2363
                  %v2365 = vld [vmem:[%s2259 + $0xd0] sm:$0xf]
                  %2366 = vst [vmem:[%s2260 + $0x190] sm:$0xf] %v2365
                  %v2367 = vld [vmem:[%s2259 + $0xd4] sm:$0xf]
                  %2368 = vst [vmem:[%s2260 + $0x194] sm:$0xf] %v2367
                  %v2369 = vld [vmem:[%s2259 + $0xd8] sm:$0xf]
                  %2370 = vst [vmem:[%s2260 + $0x198] sm:$0xf] %v2369
                  %v2371 = vld [vmem:[%s2259 + $0xdc] sm:$0xf]
                  %2372 = vst [vmem:[%s2260 + $0x19c] sm:$0xf] %v2371
                  %v2373 = vld [vmem:[%s2259 + $0xe0] sm:$0xf]
                  %2374 = vst [vmem:[%s2260 + $0x1a0] sm:$0xf] %v2373
                  %v2375 = vld [vmem:[%s2259 + $0xe4] sm:$0xf]
                  %2376 = vst [vmem:[%s2260 + $0x1a4] sm:$0xf] %v2375
                  %v2377 = vld [vmem:[%s2259 + $0xe8] sm:$0xf]
                  %2378 = vst [vmem:[%s2260 + $0x1a8] sm:$0xf] %v2377
                  %v2379 = vld [vmem:[%s2259 + $0xec] sm:$0xf]
                  %2380 = vst [vmem:[%s2260 + $0x1ac] sm:$0xf] %v2379
                  %v2381 = vld [vmem:[%s2259 + $0xf0] sm:$0xf]
                  %2382 = vst [vmem:[%s2260 + $0x1b0] sm:$0xf] %v2381
                  %v2383 = vld [vmem:[%s2259 + $0xf4] sm:$0xf]
                  %2384 = vst [vmem:[%s2260 + $0x1b4] sm:$0xf] %v2383
                  %v2385 = vld [vmem:[%s2259 + $0xf8] sm:$0xf]
                  %2386 = vst [vmem:[%s2260 + $0x1b8] sm:$0xf] %v2385
                  %v2387 = vld [vmem:[%s2259 + $0xfc] sm:$0xf]
                  %2388 = vst [vmem:[%s2260 + $0x1bc] sm:$0xf] %v2387
                $region124: #{tpu_custom_call.1} parent=111 // loop_footer
                  %s2258 = sadd.s32 1, %s2254
                $region125: #{tpu_custom_call.1} parent=111 // loop_footer_branch
                  %2253 = sbr.rel target = $region121
                $region126: #{tpu_custom_call.1} parent=111 // loop_exit
                  _
              $region112: #{tpu_custom_call.1} parent=96 // pred_fallthru
                _
            $region97: #{tpu_custom_call.1} parent=92 // pred_fallthru
              _
            // Predicated region
            $region98: #{tpu_custom_call.1} parent=92 // pred_check
              _
            $region99: #{tpu_custom_call.1} parent=92 // pred_check_branch
              %2104 = sbr.rel (0) target = $region101
            $region100: #{tpu_custom_call.1} parent=92 // pred_region
              loop: start=0, step=1, limit=1
              $region102: #{tpu_custom_call.1} parent=100 // loop_pre_header
                _
              $region103: #{tpu_custom_call.1} parent=100 // loop_header
                %s2107 = sphi 0, %s2111
                %p2108 = scmp.ge.s32.totalorder %s2107, 1
                %s2112 = sphi %s1787, %s1787
                %s2113 = sphi %s2098, %s2098
              $region104: #{tpu_custom_call.1} parent=100 // loop_header_branch
                %2110 = sbr.rel (%p2108) target = $region108
              $region105: #{tpu_custom_call.1} parent=100 // loop_body
                %v2114 = vld [vmem:[%s2112] sm:$0xf]
                %2115 = vst [vmem:[%s2113] sm:$0xf] %v2114
                %v2116 = vld [vmem:[%s2112 + $0x4] sm:$0xf]
                %2117 = vst [vmem:[%s2113 + $0x4] sm:$0xf] %v2116
                %v2118 = vld [vmem:[%s2112 + $0x8] sm:$0xf]
                %2119 = vst [vmem:[%s2113 + $0x8] sm:$0xf] %v2118
                %v2120 = vld [vmem:[%s2112 + $0xc] sm:$0xf]
                %2121 = vst [vmem:[%s2113 + $0xc] sm:$0xf] %v2120
                %v2122 = vld [vmem:[%s2112 + $0x10] sm:$0xf]
                %2123 = vst [vmem:[%s2113 + $0x10] sm:$0xf] %v2122
                %v2124 = vld [vmem:[%s2112 + $0x14] sm:$0xf]
                %2125 = vst [vmem:[%s2113 + $0x14] sm:$0xf] %v2124
                %v2126 = vld [vmem:[%s2112 + $0x18] sm:$0xf]
                %2127 = vst [vmem:[%s2113 + $0x18] sm:$0xf] %v2126
                %v2128 = vld [vmem:[%s2112 + $0x1c] sm:$0xf]
                %2129 = vst [vmem:[%s2113 + $0x1c] sm:$0xf] %v2128
                %v2130 = vld [vmem:[%s2112 + $0x20] sm:$0xf]
                %2131 = vst [vmem:[%s2113 + $0x20] sm:$0xf] %v2130
                %v2132 = vld [vmem:[%s2112 + $0x24] sm:$0xf]
                %2133 = vst [vmem:[%s2113 + $0x24] sm:$0xf] %v2132
                %v2134 = vld [vmem:[%s2112 + $0x28] sm:$0xf]
                %2135 = vst [vmem:[%s2113 + $0x28] sm:$0xf] %v2134
                %v2136 = vld [vmem:[%s2112 + $0x2c] sm:$0xf]
                %2137 = vst [vmem:[%s2113 + $0x2c] sm:$0xf] %v2136
                %v2138 = vld [vmem:[%s2112 + $0x30] sm:$0xf]
                %2139 = vst [vmem:[%s2113 + $0x30] sm:$0xf] %v2138
                %v2140 = vld [vmem:[%s2112 + $0x34] sm:$0xf]
                %2141 = vst [vmem:[%s2113 + $0x34] sm:$0xf] %v2140
                %v2142 = vld [vmem:[%s2112 + $0x38] sm:$0xf]
                %2143 = vst [vmem:[%s2113 + $0x38] sm:$0xf] %v2142
                %v2144 = vld [vmem:[%s2112 + $0x3c] sm:$0xf]
                %2145 = vst [vmem:[%s2113 + $0x3c] sm:$0xf] %v2144
                %v2146 = vld [vmem:[%s2112 + $0x40] sm:$0xf]
                %2147 = vst [vmem:[%s2113 + $0x80] sm:$0xf] %v2146
                %v2148 = vld [vmem:[%s2112 + $0x44] sm:$0xf]
                %2149 = vst [vmem:[%s2113 + $0x84] sm:$0xf] %v2148
                %v2150 = vld [vmem:[%s2112 + $0x48] sm:$0xf]
                %2151 = vst [vmem:[%s2113 + $0x88] sm:$0xf] %v2150
                %v2152 = vld [vmem:[%s2112 + $0x4c] sm:$0xf]
                %2153 = vst [vmem:[%s2113 + $0x8c] sm:$0xf] %v2152
                %v2154 = vld [vmem:[%s2112 + $0x50] sm:$0xf]
                %2155 = vst [vmem:[%s2113 + $0x90] sm:$0xf] %v2154
                %v2156 = vld [vmem:[%s2112 + $0x54] sm:$0xf]
                %2157 = vst [vmem:[%s2113 + $0x94] sm:$0xf] %v2156
                %v2158 = vld [vmem:[%s2112 + $0x58] sm:$0xf]
                %2159 = vst [vmem:[%s2113 + $0x98] sm:$0xf] %v2158
                %v2160 = vld [vmem:[%s2112 + $0x5c] sm:$0xf]
                %2161 = vst [vmem:[%s2113 + $0x9c] sm:$0xf] %v2160
                %v2162 = vld [vmem:[%s2112 + $0x60] sm:$0xf]
                %2163 = vst [vmem:[%s2113 + $0xa0] sm:$0xf] %v2162
                %v2164 = vld [vmem:[%s2112 + $0x64] sm:$0xf]
                %2165 = vst [vmem:[%s2113 + $0xa4] sm:$0xf] %v2164
                %v2166 = vld [vmem:[%s2112 + $0x68] sm:$0xf]
                %2167 = vst [vmem:[%s2113 + $0xa8] sm:$0xf] %v2166
                %v2168 = vld [vmem:[%s2112 + $0x6c] sm:$0xf]
                %2169 = vst [vmem:[%s2113 + $0xac] sm:$0xf] %v2168
                %v2170 = vld [vmem:[%s2112 + $0x70] sm:$0xf]
                %2171 = vst [vmem:[%s2113 + $0xb0] sm:$0xf] %v2170
                %v2172 = vld [vmem:[%s2112 + $0x74] sm:$0xf]
                %2173 = vst [vmem:[%s2113 + $0xb4] sm:$0xf] %v2172
                %v2174 = vld [vmem:[%s2112 + $0x78] sm:$0xf]
                %2175 = vst [vmem:[%s2113 + $0xb8] sm:$0xf] %v2174
                %v2176 = vld [vmem:[%s2112 + $0x7c] sm:$0xf]
                %2177 = vst [vmem:[%s2113 + $0xbc] sm:$0xf] %v2176
                %v2178 = vld [vmem:[%s2112 + $0x80] sm:$0xf]
                %2179 = vst [vmem:[%s2113 + $0x100] sm:$0xf] %v2178
                %v2180 = vld [vmem:[%s2112 + $0x84] sm:$0xf]
                %2181 = vst [vmem:[%s2113 + $0x104] sm:$0xf] %v2180
                %v2182 = vld [vmem:[%s2112 + $0x88] sm:$0xf]
                %2183 = vst [vmem:[%s2113 + $0x108] sm:$0xf] %v2182
                %v2184 = vld [vmem:[%s2112 + $0x8c] sm:$0xf]
                %2185 = vst [vmem:[%s2113 + $0x10c] sm:$0xf] %v2184
                %v2186 = vld [vmem:[%s2112 + $0x90] sm:$0xf]
                %2187 = vst [vmem:[%s2113 + $0x110] sm:$0xf] %v2186
                %v2188 = vld [vmem:[%s2112 + $0x94] sm:$0xf]
                %2189 = vst [vmem:[%s2113 + $0x114] sm:$0xf] %v2188
                %v2190 = vld [vmem:[%s2112 + $0x98] sm:$0xf]
                %2191 = vst [vmem:[%s2113 + $0x118] sm:$0xf] %v2190
                %v2192 = vld [vmem:[%s2112 + $0x9c] sm:$0xf]
                %2193 = vst [vmem:[%s2113 + $0x11c] sm:$0xf] %v2192
                %v2194 = vld [vmem:[%s2112 + $0xa0] sm:$0xf]
                %2195 = vst [vmem:[%s2113 + $0x120] sm:$0xf] %v2194
                %v2196 = vld [vmem:[%s2112 + $0xa4] sm:$0xf]
                %2197 = vst [vmem:[%s2113 + $0x124] sm:$0xf] %v2196
                %v2198 = vld [vmem:[%s2112 + $0xa8] sm:$0xf]
                %2199 = vst [vmem:[%s2113 + $0x128] sm:$0xf] %v2198
                %v2200 = vld [vmem:[%s2112 + $0xac] sm:$0xf]
                %2201 = vst [vmem:[%s2113 + $0x12c] sm:$0xf] %v2200
                %v2202 = vld [vmem:[%s2112 + $0xb0] sm:$0xf]
                %2203 = vst [vmem:[%s2113 + $0x130] sm:$0xf] %v2202
                %v2204 = vld [vmem:[%s2112 + $0xb4] sm:$0xf]
                %2205 = vst [vmem:[%s2113 + $0x134] sm:$0xf] %v2204
                %v2206 = vld [vmem:[%s2112 + $0xb8] sm:$0xf]
                %2207 = vst [vmem:[%s2113 + $0x138] sm:$0xf] %v2206
                %v2208 = vld [vmem:[%s2112 + $0xbc] sm:$0xf]
                %2209 = vst [vmem:[%s2113 + $0x13c] sm:$0xf] %v2208
                %v2210 = vld [vmem:[%s2112 + $0xc0] sm:$0xf]
                %2211 = vst [vmem:[%s2113 + $0x180] sm:$0xf] %v2210
                %v2212 = vld [vmem:[%s2112 + $0xc4] sm:$0xf]
                %2213 = vst [vmem:[%s2113 + $0x184] sm:$0xf] %v2212
                %v2214 = vld [vmem:[%s2112 + $0xc8] sm:$0xf]
                %2215 = vst [vmem:[%s2113 + $0x188] sm:$0xf] %v2214
                %v2216 = vld [vmem:[%s2112 + $0xcc] sm:$0xf]
                %2217 = vst [vmem:[%s2113 + $0x18c] sm:$0xf] %v2216
                %v2218 = vld [vmem:[%s2112 + $0xd0] sm:$0xf]
                %2219 = vst [vmem:[%s2113 + $0x190] sm:$0xf] %v2218
                %v2220 = vld [vmem:[%s2112 + $0xd4] sm:$0xf]
                %2221 = vst [vmem:[%s2113 + $0x194] sm:$0xf] %v2220
                %v2222 = vld [vmem:[%s2112 + $0xd8] sm:$0xf]
                %2223 = vst [vmem:[%s2113 + $0x198] sm:$0xf] %v2222
                %v2224 = vld [vmem:[%s2112 + $0xdc] sm:$0xf]
                %2225 = vst [vmem:[%s2113 + $0x19c] sm:$0xf] %v2224
                %v2226 = vld [vmem:[%s2112 + $0xe0] sm:$0xf]
                %2227 = vst [vmem:[%s2113 + $0x1a0] sm:$0xf] %v2226
                %v2228 = vld [vmem:[%s2112 + $0xe4] sm:$0xf]
                %2229 = vst [vmem:[%s2113 + $0x1a4] sm:$0xf] %v2228
                %v2230 = vld [vmem:[%s2112 + $0xe8] sm:$0xf]
                %2231 = vst [vmem:[%s2113 + $0x1a8] sm:$0xf] %v2230
                %v2232 = vld [vmem:[%s2112 + $0xec] sm:$0xf]
                %2233 = vst [vmem:[%s2113 + $0x1ac] sm:$0xf] %v2232
                %v2234 = vld [vmem:[%s2112 + $0xf0] sm:$0xf]
                %2235 = vst [vmem:[%s2113 + $0x1b0] sm:$0xf] %v2234
                %v2236 = vld [vmem:[%s2112 + $0xf4] sm:$0xf]
                %2237 = vst [vmem:[%s2113 + $0x1b4] sm:$0xf] %v2236
                %v2238 = vld [vmem:[%s2112 + $0xf8] sm:$0xf]
                %2239 = vst [vmem:[%s2113 + $0x1b8] sm:$0xf] %v2238
                %v2240 = vld [vmem:[%s2112 + $0xfc] sm:$0xf]
                %2241 = vst [vmem:[%s2113 + $0x1bc] sm:$0xf] %v2240
              $region106: #{tpu_custom_call.1} parent=100 // loop_footer
                %s2111 = sadd.s32 1, %s2107
              $region107: #{tpu_custom_call.1} parent=100 // loop_footer_branch
                %2106 = sbr.rel target = $region103
              $region108: #{tpu_custom_call.1} parent=100 // loop_exit
                _
            $region101: #{tpu_custom_call.1} parent=92 // pred_fallthru
              _
          $region93: #{tpu_custom_call.1} parent=88 // pred_fallthru
            _
          %2389 = vnop
        $region89: #{tpu_custom_call.1} parent=35 // pred_fallthru
          _
        // Predicated region
        $region127: #{tpu_custom_call.1} parent=35 // pred_check
          %p2390 = pneg %p201
        $region128: #{tpu_custom_call.1} parent=35 // pred_check_branch
          %2392 = sbr.rel (%p2390) target = $region130
        $region129: #{tpu_custom_call.1} parent=35 // pred_region
          %s2393 = smul.u32 16, %s27
          %s2394 = smul.addr %s26, 128
          %s2395 = sadd.s32 %s2393, %s2394
          %s2396 = smul.addr %s2395, 4
          %s2397 = scalar_lea.vmem %s6, %s2396
          // Predicated region
          $region131: #{tpu_custom_call.1} parent=129 // pred_check
            _
          $region132: #{tpu_custom_call.1} parent=129 // pred_check_branch
            %2399 = sbr.rel (0) target = $region134
          $region133: #{tpu_custom_call.1} parent=129 // pred_region
            // Predicated region
            $region135: #{tpu_custom_call.1} parent=133 // pred_check
              _
            $region136: #{tpu_custom_call.1} parent=133 // pred_check_branch
              %2401 = sbr.rel target = $region138
            $region137: #{tpu_custom_call.1} parent=133 // pred_region
              // Predicated region
              $region150: #{tpu_custom_call.1} parent=137 // pred_check
                _
              $region151: #{tpu_custom_call.1} parent=137 // pred_check_branch
                %2542 = sbr.rel (0) target = $region153
              $region152: #{tpu_custom_call.1} parent=137 // pred_region
                loop: start=0, step=1, limit=1
                $region154: #{tpu_custom_call.1} parent=152 // loop_pre_header
                  _
                $region155: #{tpu_custom_call.1} parent=152 // loop_header
                  %s2544 = sphi 0, %s2548
                  %p2545 = scmp.ge.s32.totalorder %s2544, 1
                  %s2549 = sphi %s1791, %s1791
                  %s2550 = sphi %s2397, %s2397
                $region156: #{tpu_custom_call.1} parent=152 // loop_header_branch
                  %2547 = sbr.rel (%p2545) target = $region160
                $region157: #{tpu_custom_call.1} parent=152 // loop_body
                  _
                $region158: #{tpu_custom_call.1} parent=152 // loop_footer
                  %s2548 = sadd.s32 1, %s2544
                $region159: #{tpu_custom_call.1} parent=152 // loop_footer_branch
                  %2543 = sbr.rel target = $region155
                $region160: #{tpu_custom_call.1} parent=152 // loop_exit
                  _
                loop: start=0, step=1, limit=1
                $region161: #{tpu_custom_call.1} parent=152 // loop_pre_header
                  _
                $region162: #{tpu_custom_call.1} parent=152 // loop_header
                  %s2553 = sphi 0, %s2557
                  %p2554 = scmp.ge.s32.totalorder %s2553, 1
                  %s2558 = sphi %s1791, %s1791
                  %s2559 = sphi %s2397, %s2397
                $region163: #{tpu_custom_call.1} parent=152 // loop_header_branch
                  %2556 = sbr.rel (%p2554) target = $region167
                $region164: #{tpu_custom_call.1} parent=152 // loop_body
                  %v2560 = vld [vmem:[%s2558] sm:$0xf]
                  %2561 = vst [vmem:[%s2559] sm:$0xf] %v2560
                  %v2562 = vld [vmem:[%s2558 + $0x4] sm:$0xf]
                  %2563 = vst [vmem:[%s2559 + $0x4] sm:$0xf] %v2562
                  %v2564 = vld [vmem:[%s2558 + $0x8] sm:$0xf]
                  %2565 = vst [vmem:[%s2559 + $0x8] sm:$0xf] %v2564
                  %v2566 = vld [vmem:[%s2558 + $0xc] sm:$0xf]
                  %2567 = vst [vmem:[%s2559 + $0xc] sm:$0xf] %v2566
                  %v2568 = vld [vmem:[%s2558 + $0x10] sm:$0xf]
                  %2569 = vst [vmem:[%s2559 + $0x10] sm:$0xf] %v2568
                  %v2570 = vld [vmem:[%s2558 + $0x14] sm:$0xf]
                  %2571 = vst [vmem:[%s2559 + $0x14] sm:$0xf] %v2570
                  %v2572 = vld [vmem:[%s2558 + $0x18] sm:$0xf]
                  %2573 = vst [vmem:[%s2559 + $0x18] sm:$0xf] %v2572
                  %v2574 = vld [vmem:[%s2558 + $0x1c] sm:$0xf]
                  %2575 = vst [vmem:[%s2559 + $0x1c] sm:$0xf] %v2574
                  %v2576 = vld [vmem:[%s2558 + $0x20] sm:$0xf]
                  %2577 = vst [vmem:[%s2559 + $0x20] sm:$0xf] %v2576
                  %v2578 = vld [vmem:[%s2558 + $0x24] sm:$0xf]
                  %2579 = vst [vmem:[%s2559 + $0x24] sm:$0xf] %v2578
                  %v2580 = vld [vmem:[%s2558 + $0x28] sm:$0xf]
                  %2581 = vst [vmem:[%s2559 + $0x28] sm:$0xf] %v2580
                  %v2582 = vld [vmem:[%s2558 + $0x2c] sm:$0xf]
                  %2583 = vst [vmem:[%s2559 + $0x2c] sm:$0xf] %v2582
                  %v2584 = vld [vmem:[%s2558 + $0x30] sm:$0xf]
                  %2585 = vst [vmem:[%s2559 + $0x30] sm:$0xf] %v2584
                  %v2586 = vld [vmem:[%s2558 + $0x34] sm:$0xf]
                  %2587 = vst [vmem:[%s2559 + $0x34] sm:$0xf] %v2586
                  %v2588 = vld [vmem:[%s2558 + $0x38] sm:$0xf]
                  %2589 = vst [vmem:[%s2559 + $0x38] sm:$0xf] %v2588
                  %v2590 = vld [vmem:[%s2558 + $0x3c] sm:$0xf]
                  %2591 = vst [vmem:[%s2559 + $0x3c] sm:$0xf] %v2590
                  %v2592 = vld [vmem:[%s2558 + $0x40] sm:$0xf]
                  %2593 = vst [vmem:[%s2559 + $0x80] sm:$0xf] %v2592
                  %v2594 = vld [vmem:[%s2558 + $0x44] sm:$0xf]
                  %2595 = vst [vmem:[%s2559 + $0x84] sm:$0xf] %v2594
                  %v2596 = vld [vmem:[%s2558 + $0x48] sm:$0xf]
                  %2597 = vst [vmem:[%s2559 + $0x88] sm:$0xf] %v2596
                  %v2598 = vld [vmem:[%s2558 + $0x4c] sm:$0xf]
                  %2599 = vst [vmem:[%s2559 + $0x8c] sm:$0xf] %v2598
                  %v2600 = vld [vmem:[%s2558 + $0x50] sm:$0xf]
                  %2601 = vst [vmem:[%s2559 + $0x90] sm:$0xf] %v2600
                  %v2602 = vld [vmem:[%s2558 + $0x54] sm:$0xf]
                  %2603 = vst [vmem:[%s2559 + $0x94] sm:$0xf] %v2602
                  %v2604 = vld [vmem:[%s2558 + $0x58] sm:$0xf]
                  %2605 = vst [vmem:[%s2559 + $0x98] sm:$0xf] %v2604
                  %v2606 = vld [vmem:[%s2558 + $0x5c] sm:$0xf]
                  %2607 = vst [vmem:[%s2559 + $0x9c] sm:$0xf] %v2606
                  %v2608 = vld [vmem:[%s2558 + $0x60] sm:$0xf]
                  %2609 = vst [vmem:[%s2559 + $0xa0] sm:$0xf] %v2608
                  %v2610 = vld [vmem:[%s2558 + $0x64] sm:$0xf]
                  %2611 = vst [vmem:[%s2559 + $0xa4] sm:$0xf] %v2610
                  %v2612 = vld [vmem:[%s2558 + $0x68] sm:$0xf]
                  %2613 = vst [vmem:[%s2559 + $0xa8] sm:$0xf] %v2612
                  %v2614 = vld [vmem:[%s2558 + $0x6c] sm:$0xf]
                  %2615 = vst [vmem:[%s2559 + $0xac] sm:$0xf] %v2614
                  %v2616 = vld [vmem:[%s2558 + $0x70] sm:$0xf]
                  %2617 = vst [vmem:[%s2559 + $0xb0] sm:$0xf] %v2616
                  %v2618 = vld [vmem:[%s2558 + $0x74] sm:$0xf]
                  %2619 = vst [vmem:[%s2559 + $0xb4] sm:$0xf] %v2618
                  %v2620 = vld [vmem:[%s2558 + $0x78] sm:$0xf]
                  %2621 = vst [vmem:[%s2559 + $0xb8] sm:$0xf] %v2620
                  %v2622 = vld [vmem:[%s2558 + $0x7c] sm:$0xf]
                  %2623 = vst [vmem:[%s2559 + $0xbc] sm:$0xf] %v2622
                  %v2624 = vld [vmem:[%s2558 + $0x80] sm:$0xf]
                  %2625 = vst [vmem:[%s2559 + $0x100] sm:$0xf] %v2624
                  %v2626 = vld [vmem:[%s2558 + $0x84] sm:$0xf]
                  %2627 = vst [vmem:[%s2559 + $0x104] sm:$0xf] %v2626
                  %v2628 = vld [vmem:[%s2558 + $0x88] sm:$0xf]
                  %2629 = vst [vmem:[%s2559 + $0x108] sm:$0xf] %v2628
                  %v2630 = vld [vmem:[%s2558 + $0x8c] sm:$0xf]
                  %2631 = vst [vmem:[%s2559 + $0x10c] sm:$0xf] %v2630
                  %v2632 = vld [vmem:[%s2558 + $0x90] sm:$0xf]
                  %2633 = vst [vmem:[%s2559 + $0x110] sm:$0xf] %v2632
                  %v2634 = vld [vmem:[%s2558 + $0x94] sm:$0xf]
                  %2635 = vst [vmem:[%s2559 + $0x114] sm:$0xf] %v2634
                  %v2636 = vld [vmem:[%s2558 + $0x98] sm:$0xf]
                  %2637 = vst [vmem:[%s2559 + $0x118] sm:$0xf] %v2636
                  %v2638 = vld [vmem:[%s2558 + $0x9c] sm:$0xf]
                  %2639 = vst [vmem:[%s2559 + $0x11c] sm:$0xf] %v2638
                  %v2640 = vld [vmem:[%s2558 + $0xa0] sm:$0xf]
                  %2641 = vst [vmem:[%s2559 + $0x120] sm:$0xf] %v2640
                  %v2642 = vld [vmem:[%s2558 + $0xa4] sm:$0xf]
                  %2643 = vst [vmem:[%s2559 + $0x124] sm:$0xf] %v2642
                  %v2644 = vld [vmem:[%s2558 + $0xa8] sm:$0xf]
                  %2645 = vst [vmem:[%s2559 + $0x128] sm:$0xf] %v2644
                  %v2646 = vld [vmem:[%s2558 + $0xac] sm:$0xf]
                  %2647 = vst [vmem:[%s2559 + $0x12c] sm:$0xf] %v2646
                  %v2648 = vld [vmem:[%s2558 + $0xb0] sm:$0xf]
                  %2649 = vst [vmem:[%s2559 + $0x130] sm:$0xf] %v2648
                  %v2650 = vld [vmem:[%s2558 + $0xb4] sm:$0xf]
                  %2651 = vst [vmem:[%s2559 + $0x134] sm:$0xf] %v2650
                  %v2652 = vld [vmem:[%s2558 + $0xb8] sm:$0xf]
                  %2653 = vst [vmem:[%s2559 + $0x138] sm:$0xf] %v2652
                  %v2654 = vld [vmem:[%s2558 + $0xbc] sm:$0xf]
                  %2655 = vst [vmem:[%s2559 + $0x13c] sm:$0xf] %v2654
                  %v2656 = vld [vmem:[%s2558 + $0xc0] sm:$0xf]
                  %2657 = vst [vmem:[%s2559 + $0x180] sm:$0xf] %v2656
                  %v2658 = vld [vmem:[%s2558 + $0xc4] sm:$0xf]
                  %2659 = vst [vmem:[%s2559 + $0x184] sm:$0xf] %v2658
                  %v2660 = vld [vmem:[%s2558 + $0xc8] sm:$0xf]
                  %2661 = vst [vmem:[%s2559 + $0x188] sm:$0xf] %v2660
                  %v2662 = vld [vmem:[%s2558 + $0xcc] sm:$0xf]
                  %2663 = vst [vmem:[%s2559 + $0x18c] sm:$0xf] %v2662
                  %v2664 = vld [vmem:[%s2558 + $0xd0] sm:$0xf]
                  %2665 = vst [vmem:[%s2559 + $0x190] sm:$0xf] %v2664
                  %v2666 = vld [vmem:[%s2558 + $0xd4] sm:$0xf]
                  %2667 = vst [vmem:[%s2559 + $0x194] sm:$0xf] %v2666
                  %v2668 = vld [vmem:[%s2558 + $0xd8] sm:$0xf]
                  %2669 = vst [vmem:[%s2559 + $0x198] sm:$0xf] %v2668
                  %v2670 = vld [vmem:[%s2558 + $0xdc] sm:$0xf]
                  %2671 = vst [vmem:[%s2559 + $0x19c] sm:$0xf] %v2670
                  %v2672 = vld [vmem:[%s2558 + $0xe0] sm:$0xf]
                  %2673 = vst [vmem:[%s2559 + $0x1a0] sm:$0xf] %v2672
                  %v2674 = vld [vmem:[%s2558 + $0xe4] sm:$0xf]
                  %2675 = vst [vmem:[%s2559 + $0x1a4] sm:$0xf] %v2674
                  %v2676 = vld [vmem:[%s2558 + $0xe8] sm:$0xf]
                  %2677 = vst [vmem:[%s2559 + $0x1a8] sm:$0xf] %v2676
                  %v2678 = vld [vmem:[%s2558 + $0xec] sm:$0xf]
                  %2679 = vst [vmem:[%s2559 + $0x1ac] sm:$0xf] %v2678
                  %v2680 = vld [vmem:[%s2558 + $0xf0] sm:$0xf]
                  %2681 = vst [vmem:[%s2559 + $0x1b0] sm:$0xf] %v2680
                  %v2682 = vld [vmem:[%s2558 + $0xf4] sm:$0xf]
                  %2683 = vst [vmem:[%s2559 + $0x1b4] sm:$0xf] %v2682
                  %v2684 = vld [vmem:[%s2558 + $0xf8] sm:$0xf]
                  %2685 = vst [vmem:[%s2559 + $0x1b8] sm:$0xf] %v2684
                  %v2686 = vld [vmem:[%s2558 + $0xfc] sm:$0xf]
                  %2687 = vst [vmem:[%s2559 + $0x1bc] sm:$0xf] %v2686
                $region165: #{tpu_custom_call.1} parent=152 // loop_footer
                  %s2557 = sadd.s32 1, %s2553
                $region166: #{tpu_custom_call.1} parent=152 // loop_footer_branch
                  %2552 = sbr.rel target = $region162
                $region167: #{tpu_custom_call.1} parent=152 // loop_exit
                  _
              $region153: #{tpu_custom_call.1} parent=137 // pred_fallthru
                _
            $region138: #{tpu_custom_call.1} parent=133 // pred_fallthru
              _
            // Predicated region
            $region139: #{tpu_custom_call.1} parent=133 // pred_check
              _
            $region140: #{tpu_custom_call.1} parent=133 // pred_check_branch
              %2403 = sbr.rel (0) target = $region142
            $region141: #{tpu_custom_call.1} parent=133 // pred_region
              loop: start=0, step=1, limit=1
              $region143: #{tpu_custom_call.1} parent=141 // loop_pre_header
                _
              $region144: #{tpu_custom_call.1} parent=141 // loop_header
                %s2406 = sphi 0, %s2410
                %p2407 = scmp.ge.s32.totalorder %s2406, 1
                %s2411 = sphi %s1791, %s1791
                %s2412 = sphi %s2397, %s2397
              $region145: #{tpu_custom_call.1} parent=141 // loop_header_branch
                %2409 = sbr.rel (%p2407) target = $region149
              $region146: #{tpu_custom_call.1} parent=141 // loop_body
                %v2413 = vld [vmem:[%s2411] sm:$0xf]
                %2414 = vst [vmem:[%s2412] sm:$0xf] %v2413
                %v2415 = vld [vmem:[%s2411 + $0x4] sm:$0xf]
                %2416 = vst [vmem:[%s2412 + $0x4] sm:$0xf] %v2415
                %v2417 = vld [vmem:[%s2411 + $0x8] sm:$0xf]
                %2418 = vst [vmem:[%s2412 + $0x8] sm:$0xf] %v2417
                %v2419 = vld [vmem:[%s2411 + $0xc] sm:$0xf]
                %2420 = vst [vmem:[%s2412 + $0xc] sm:$0xf] %v2419
                %v2421 = vld [vmem:[%s2411 + $0x10] sm:$0xf]
                %2422 = vst [vmem:[%s2412 + $0x10] sm:$0xf] %v2421
                %v2423 = vld [vmem:[%s2411 + $0x14] sm:$0xf]
                %2424 = vst [vmem:[%s2412 + $0x14] sm:$0xf] %v2423
                %v2425 = vld [vmem:[%s2411 + $0x18] sm:$0xf]
                %2426 = vst [vmem:[%s2412 + $0x18] sm:$0xf] %v2425
                %v2427 = vld [vmem:[%s2411 + $0x1c] sm:$0xf]
                %2428 = vst [vmem:[%s2412 + $0x1c] sm:$0xf] %v2427
                %v2429 = vld [vmem:[%s2411 + $0x20] sm:$0xf]
                %2430 = vst [vmem:[%s2412 + $0x20] sm:$0xf] %v2429
                %v2431 = vld [vmem:[%s2411 + $0x24] sm:$0xf]
                %2432 = vst [vmem:[%s2412 + $0x24] sm:$0xf] %v2431
                %v2433 = vld [vmem:[%s2411 + $0x28] sm:$0xf]
                %2434 = vst [vmem:[%s2412 + $0x28] sm:$0xf] %v2433
                %v2435 = vld [vmem:[%s2411 + $0x2c] sm:$0xf]
                %2436 = vst [vmem:[%s2412 + $0x2c] sm:$0xf] %v2435
                %v2437 = vld [vmem:[%s2411 + $0x30] sm:$0xf]
                %2438 = vst [vmem:[%s2412 + $0x30] sm:$0xf] %v2437
                %v2439 = vld [vmem:[%s2411 + $0x34] sm:$0xf]
                %2440 = vst [vmem:[%s2412 + $0x34] sm:$0xf] %v2439
                %v2441 = vld [vmem:[%s2411 + $0x38] sm:$0xf]
                %2442 = vst [vmem:[%s2412 + $0x38] sm:$0xf] %v2441
                %v2443 = vld [vmem:[%s2411 + $0x3c] sm:$0xf]
                %2444 = vst [vmem:[%s2412 + $0x3c] sm:$0xf] %v2443
                %v2445 = vld [vmem:[%s2411 + $0x40] sm:$0xf]
                %2446 = vst [vmem:[%s2412 + $0x80] sm:$0xf] %v2445
                %v2447 = vld [vmem:[%s2411 + $0x44] sm:$0xf]
                %2448 = vst [vmem:[%s2412 + $0x84] sm:$0xf] %v2447
                %v2449 = vld [vmem:[%s2411 + $0x48] sm:$0xf]
                %2450 = vst [vmem:[%s2412 + $0x88] sm:$0xf] %v2449
                %v2451 = vld [vmem:[%s2411 + $0x4c] sm:$0xf]
                %2452 = vst [vmem:[%s2412 + $0x8c] sm:$0xf] %v2451
                %v2453 = vld [vmem:[%s2411 + $0x50] sm:$0xf]
                %2454 = vst [vmem:[%s2412 + $0x90] sm:$0xf] %v2453
                %v2455 = vld [vmem:[%s2411 + $0x54] sm:$0xf]
                %2456 = vst [vmem:[%s2412 + $0x94] sm:$0xf] %v2455
                %v2457 = vld [vmem:[%s2411 + $0x58] sm:$0xf]
                %2458 = vst [vmem:[%s2412 + $0x98] sm:$0xf] %v2457
                %v2459 = vld [vmem:[%s2411 + $0x5c] sm:$0xf]
                %2460 = vst [vmem:[%s2412 + $0x9c] sm:$0xf] %v2459
                %v2461 = vld [vmem:[%s2411 + $0x60] sm:$0xf]
                %2462 = vst [vmem:[%s2412 + $0xa0] sm:$0xf] %v2461
                %v2463 = vld [vmem:[%s2411 + $0x64] sm:$0xf]
                %2464 = vst [vmem:[%s2412 + $0xa4] sm:$0xf] %v2463
                %v2465 = vld [vmem:[%s2411 + $0x68] sm:$0xf]
                %2466 = vst [vmem:[%s2412 + $0xa8] sm:$0xf] %v2465
                %v2467 = vld [vmem:[%s2411 + $0x6c] sm:$0xf]
                %2468 = vst [vmem:[%s2412 + $0xac] sm:$0xf] %v2467
                %v2469 = vld [vmem:[%s2411 + $0x70] sm:$0xf]
                %2470 = vst [vmem:[%s2412 + $0xb0] sm:$0xf] %v2469
                %v2471 = vld [vmem:[%s2411 + $0x74] sm:$0xf]
                %2472 = vst [vmem:[%s2412 + $0xb4] sm:$0xf] %v2471
                %v2473 = vld [vmem:[%s2411 + $0x78] sm:$0xf]
                %2474 = vst [vmem:[%s2412 + $0xb8] sm:$0xf] %v2473
                %v2475 = vld [vmem:[%s2411 + $0x7c] sm:$0xf]
                %2476 = vst [vmem:[%s2412 + $0xbc] sm:$0xf] %v2475
                %v2477 = vld [vmem:[%s2411 + $0x80] sm:$0xf]
                %2478 = vst [vmem:[%s2412 + $0x100] sm:$0xf] %v2477
                %v2479 = vld [vmem:[%s2411 + $0x84] sm:$0xf]
                %2480 = vst [vmem:[%s2412 + $0x104] sm:$0xf] %v2479
                %v2481 = vld [vmem:[%s2411 + $0x88] sm:$0xf]
                %2482 = vst [vmem:[%s2412 + $0x108] sm:$0xf] %v2481
                %v2483 = vld [vmem:[%s2411 + $0x8c] sm:$0xf]
                %2484 = vst [vmem:[%s2412 + $0x10c] sm:$0xf] %v2483
                %v2485 = vld [vmem:[%s2411 + $0x90] sm:$0xf]
                %2486 = vst [vmem:[%s2412 + $0x110] sm:$0xf] %v2485
                %v2487 = vld [vmem:[%s2411 + $0x94] sm:$0xf]
                %2488 = vst [vmem:[%s2412 + $0x114] sm:$0xf] %v2487
                %v2489 = vld [vmem:[%s2411 + $0x98] sm:$0xf]
                %2490 = vst [vmem:[%s2412 + $0x118] sm:$0xf] %v2489
                %v2491 = vld [vmem:[%s2411 + $0x9c] sm:$0xf]
                %2492 = vst [vmem:[%s2412 + $0x11c] sm:$0xf] %v2491
                %v2493 = vld [vmem:[%s2411 + $0xa0] sm:$0xf]
                %2494 = vst [vmem:[%s2412 + $0x120] sm:$0xf] %v2493
                %v2495 = vld [vmem:[%s2411 + $0xa4] sm:$0xf]
                %2496 = vst [vmem:[%s2412 + $0x124] sm:$0xf] %v2495
                %v2497 = vld [vmem:[%s2411 + $0xa8] sm:$0xf]
                %2498 = vst [vmem:[%s2412 + $0x128] sm:$0xf] %v2497
                %v2499 = vld [vmem:[%s2411 + $0xac] sm:$0xf]
                %2500 = vst [vmem:[%s2412 + $0x12c] sm:$0xf] %v2499
                %v2501 = vld [vmem:[%s2411 + $0xb0] sm:$0xf]
                %2502 = vst [vmem:[%s2412 + $0x130] sm:$0xf] %v2501
                %v2503 = vld [vmem:[%s2411 + $0xb4] sm:$0xf]
                %2504 = vst [vmem:[%s2412 + $0x134] sm:$0xf] %v2503
                %v2505 = vld [vmem:[%s2411 + $0xb8] sm:$0xf]
                %2506 = vst [vmem:[%s2412 + $0x138] sm:$0xf] %v2505
                %v2507 = vld [vmem:[%s2411 + $0xbc] sm:$0xf]
                %2508 = vst [vmem:[%s2412 + $0x13c] sm:$0xf] %v2507
                %v2509 = vld [vmem:[%s2411 + $0xc0] sm:$0xf]
                %2510 = vst [vmem:[%s2412 + $0x180] sm:$0xf] %v2509
                %v2511 = vld [vmem:[%s2411 + $0xc4] sm:$0xf]
                %2512 = vst [vmem:[%s2412 + $0x184] sm:$0xf] %v2511
                %v2513 = vld [vmem:[%s2411 + $0xc8] sm:$0xf]
                %2514 = vst [vmem:[%s2412 + $0x188] sm:$0xf] %v2513
                %v2515 = vld [vmem:[%s2411 + $0xcc] sm:$0xf]
                %2516 = vst [vmem:[%s2412 + $0x18c] sm:$0xf] %v2515
                %v2517 = vld [vmem:[%s2411 + $0xd0] sm:$0xf]
                %2518 = vst [vmem:[%s2412 + $0x190] sm:$0xf] %v2517
                %v2519 = vld [vmem:[%s2411 + $0xd4] sm:$0xf]
                %2520 = vst [vmem:[%s2412 + $0x194] sm:$0xf] %v2519
                %v2521 = vld [vmem:[%s2411 + $0xd8] sm:$0xf]
                %2522 = vst [vmem:[%s2412 + $0x198] sm:$0xf] %v2521
                %v2523 = vld [vmem:[%s2411 + $0xdc] sm:$0xf]
                %2524 = vst [vmem:[%s2412 + $0x19c] sm:$0xf] %v2523
                %v2525 = vld [vmem:[%s2411 + $0xe0] sm:$0xf]
                %2526 = vst [vmem:[%s2412 + $0x1a0] sm:$0xf] %v2525
                %v2527 = vld [vmem:[%s2411 + $0xe4] sm:$0xf]
                %2528 = vst [vmem:[%s2412 + $0x1a4] sm:$0xf] %v2527
                %v2529 = vld [vmem:[%s2411 + $0xe8] sm:$0xf]
                %2530 = vst [vmem:[%s2412 + $0x1a8] sm:$0xf] %v2529
                %v2531 = vld [vmem:[%s2411 + $0xec] sm:$0xf]
                %2532 = vst [vmem:[%s2412 + $0x1ac] sm:$0xf] %v2531
                %v2533 = vld [vmem:[%s2411 + $0xf0] sm:$0xf]
                %2534 = vst [vmem:[%s2412 + $0x1b0] sm:$0xf] %v2533
                %v2535 = vld [vmem:[%s2411 + $0xf4] sm:$0xf]
                %2536 = vst [vmem:[%s2412 + $0x1b4] sm:$0xf] %v2535
                %v2537 = vld [vmem:[%s2411 + $0xf8] sm:$0xf]
                %2538 = vst [vmem:[%s2412 + $0x1b8] sm:$0xf] %v2537
                %v2539 = vld [vmem:[%s2411 + $0xfc] sm:$0xf]
                %2540 = vst [vmem:[%s2412 + $0x1bc] sm:$0xf] %v2539
              $region147: #{tpu_custom_call.1} parent=141 // loop_footer
                %s2410 = sadd.s32 1, %s2406
              $region148: #{tpu_custom_call.1} parent=141 // loop_footer_branch
                %2405 = sbr.rel target = $region144
              $region149: #{tpu_custom_call.1} parent=141 // loop_exit
                _
            $region142: #{tpu_custom_call.1} parent=133 // pred_fallthru
              _
          $region134: #{tpu_custom_call.1} parent=129 // pred_fallthru
            _
          %2688 = vnop
        $region130: #{tpu_custom_call.1} parent=35 // pred_fallthru
          _
      $region36: #{tpu_custom_call.1} parent=5 // pred_fallthru
        _
      %p2689 = scmp.le.s32.totalorder 2, %s17
      // Predicated region
      $region168: #{tpu_custom_call.1} parent=5 // pred_check
        %p2690 = pneg %p2689
      $region169: #{tpu_custom_call.1} parent=5 // pred_check_branch
        %2692 = sbr.rel (%p2690) target = $region171
      $region170: #{tpu_custom_call.1} parent=5 // pred_region
        %s2693 = ssub.s32 %s17, 2
        // Predicated region
        $region172: #{tpu_custom_call.1} parent=170 // pred_check
          %p2694 = pneg %p151
        $region173: #{tpu_custom_call.1} parent=170 // pred_check_branch
          %2696 = sbr.rel (%p2694) target = $region175
        $region174: #{tpu_custom_call.1} parent=170 // pred_region
          %s2697 = sand.u32 %s136, 1
          %s2698 = sand.u32 %s136, 1
          %s2699 = smul.addr %s2698, 256
          %s2700 = scalar_lea.vmem [#allocation6], %s2699
        $region175: #{tpu_custom_call.1} parent=170 // pred_fallthru
          _
        // Predicated region
        $region176: #{tpu_custom_call.1} parent=170 // pred_check
          %p2701 = pneg %p179
        $region177: #{tpu_custom_call.1} parent=170 // pred_check_branch
          %2703 = sbr.rel (%p2701) target = $region179
        $region178: #{tpu_custom_call.1} parent=170 // pred_region
          %s2704 = sand.u32 %s164, 1
          %s2705 = sand.u32 %s164, 1
          %s2706 = smul.addr %s2705, 256
          %s2707 = scalar_lea.vmem [#allocation7], %s2706
        $region179: #{tpu_custom_call.1} parent=170 // pred_fallthru
          _
        // Predicated region
        $region180: #{tpu_custom_call.1} parent=170 // pred_check
          %p2708 = pneg %p207
        $region181: #{tpu_custom_call.1} parent=170 // pred_check_branch
          %2710 = sbr.rel (%p2708) target = $region183
        $region182: #{tpu_custom_call.1} parent=170 // pred_region
          %s2711 = sand.u32 %s192, 1
          %s2712 = sand.u32 %s192, 1
          %s2713 = smul.addr %s2712, 256
          %s2714 = scalar_lea.vmem [#allocation8], %s2713
        $region183: #{tpu_custom_call.1} parent=170 // pred_fallthru
          _
      $region171: #{tpu_custom_call.1} parent=5 // pred_fallthru
        _
    $region6: #{tpu_custom_call.1} parent=1 // loop_footer
      %s21 = sadd.s32 1, %s17
    $region7: #{tpu_custom_call.1} parent=1 // loop_footer_branch
      %16 = sbr.rel target = $region3
    $region8: #{tpu_custom_call.1} parent=1 // loop_exit
      _
    %2715 = vsyncpa [#allocation3], 1
    %s2716 = scalar_lea.sflag [#allocation3], 1
    %2717 = vsyncpa %s2716, 1
    %2718 = vsyncpa [#allocation5], 1

// kernel: tpu_custom_call.1
$region0: #{tpu_custom_call.1}
  #allocation0 [shape = 'u32[]', space=smem, size = 0x4, offset = 0x4, fixed_abs, tag = 'smem constant byte address 0x4 - core index']
  #allocation1 [shape = 'u32[144,128]{1,0:T(1,128)}', space=vmem, size = 0x12000, scoped, tag = 'internal scratch']
  %s0 = inlined_call_operand.hbm [shape: f32[2,256,128], index: 0, kind: input, shape index: {}]
  %s1 = inlined_call_operand.vmem [shape: f32[1,128], index: 1, kind: input, shape index: {}]
  %s2 = inlined_call_operand.vmem [shape: f32[1,128], index: 2, kind: input, shape index: {}]
  %s3 = inlined_call_operand.hbm [shape: bf16[128,384], index: 3, kind: input, shape index: {}]
  %s4 = inlined_call_operand.vmem [shape: bf16[2,4,256,32], index: 4, kind: output, shape index: {0}]
  %s5 = inlined_call_operand.vmem [shape: bf16[2,4,256,32], index: 5, kind: output, shape index: {1}]
  %s6 = inlined_call_operand.vmem [shape: bf16[2,4,256,32], index: 6, kind: output, shape index: {2}]
  %7 = xla_tuple %s4, %s5, %s6
  %s8 = sld [smem:[#allocation0]]
  $region184: #{tpu_custom_call.1} parent=0
    _
  %s10 = ssub.s32 1, %s8
  %s11 = scalar_select 0, %s10, %s8
  $region1: #{tpu_custom_call.1} parent=0
    #allocation2 [shape = 'u8[131072]{0}', space=vmem, size = 0x20000, scoped, tag = 'input window, operand 0']
    #allocation3 [shape = 's32[2]{0}', space=sflag, size = 0x8, scoped, tag = 'scoped memory for tpu_custom_call.1']
    #allocation4 [shape = 'u8[98304]{0}', space=vmem, size = 0x18000, scoped, tag = 'input window, operand 3, single buffered']
    #allocation5 [shape = 's32[1]{0}', space=sflag, size = 0x4, scoped, tag = 'scoped memory for tpu_custom_call.1']
    #allocation6 [shape = 'u8[262144]{0}', space=vmem, size = 0x40000, scoped, tag = 'output window, operand 0']
    #allocation7 [shape = 'u8[262144]{0}', space=vmem, size = 0x40000, scoped, tag = 'output window, operand 1']
    #allocation8 [shape = 'u8[262144]{0}', space=vmem, size = 0x40000, scoped, tag = 'output window, operand 2']
    %12 = vsyncpa [#allocation3], 0
    %s13 = scalar_lea.sflag [#allocation3], 1
    %14 = vsyncpa %s13, 0
    %15 = vsyncpa [#allocation5], 0
    loop: start=0, step=1, limit=6
    $region2: #{tpu_custom_call.1} parent=1 // loop_pre_header
      _
    $region3: #{tpu_custom_call.1} parent=1 // loop_header
      %s17 = sphi 0, %s21
      %p18 = scmp.ge.s32.totalorder %s17, 6
      %s24 = sphi 0, %s36
      %s25 = sphi 0, %s32
      %s26 = sphi 0, %s24
      %s27 = sphi 0, %s25
      %s28 = sphi 0, %s26
      %s29 = sphi 0, %s27
      %s41 = sphi 0, %s43
      %s44 = sphi 0, %s41
      %s45 = sphi 0, %s44
      %s61 = sphi 0, %s45
      %s65 = sphi 0, %s65
      %s67 = sphi 0, %s65
      %s68 = sphi 0, %s67
      %s82 = sphi 0, %s68
      %s86 = sphi 0, %s86
      %s88 = sphi 0, %s86
      %s89 = sphi 0, %s88
      %s103 = sphi 0, %s89
      %s107 = sphi 0, %s107
      %s109 = sphi 0, %s107
      %s110 = sphi 0, %s109
      %s124 = sphi 0, %s110
      %s132 = sphi 0, %s134
      %s135 = sphi 0, %s132
      %s136 = sphi 0, %s135
      %s152 = sphi 0, %s136
      %s160 = sphi 0, %s162
      %s163 = sphi 0, %s160
      %s164 = sphi 0, %s163
      %s180 = sphi 0, %s164
      %s188 = sphi 0, %s190
      %s191 = sphi 0, %s188
      %s192 = sphi 0, %s191
      %s208 = sphi 0, %s192
    $region4: #{tpu_custom_call.1} parent=1 // loop_header_branch
      %20 = sbr.rel (%p18) target = $region8
    $region5: #{tpu_custom_call.1} parent=1 // loop_body
      %s22 = ssub.s32 %s17, 1
      %s23 = ssub.s32 %s17, 2
      %s30 = sadd.s32 1, %s25
      %p31 = scmp.ge.s32.totalorder %s30, 2
      %s32 = scalar_select %p31, 0, %s30
      %s33 = sadd.s32 1, %s24
      %s34 = scalar_select %p31, %s33, %s24
      %p35 = scmp.ge.s32.totalorder %s34, 2
      %s36 = scalar_select %p35, 0, %s34
      %s37 = ssub.s32 %s24, %s36
      %s38 = ssub.s32 %s25, %s32
      %s39 = sor.u32 %s37, %s38
      %p40 = scmp.eq.s32.totalorder %s39, 0
      %s42 = sadd.s32 %s41, 1
      %s43 = scalar_select %p40, %s41, %s42
      %p46 = pneg %p40
      %p47 = scmp.eq.s32.totalorder %s17, 3
      %p48 = por %p46, %p47
      %p49 = scmp.ne.s32.totalorder %s41, %s44
      %p50 = scmp.eq.s32.totalorder %s17, 0
      %p51 = por %p49, %p50
      %p52 = scmp.ne.s32.totalorder %s41, %s44
      %p53 = scmp.eq.s32.totalorder %s22, 3
      %p54 = por %p52, %p53
      %p55 = scmp.ne.s32.totalorder %s44, %s45
      %p56 = scmp.eq.s32.totalorder %s22, 0
      %p57 = por %p55, %p56
      %p58 = scmp.ne.s32.totalorder %s44, %s45
      %p59 = scmp.eq.s32.totalorder %s23, 3
      %p60 = por %p58, %p59
      %p62 = scmp.ne.s32.totalorder %s45, %s61
      %p63 = scmp.eq.s32.totalorder %s23, 0
      %p64 = por %p62, %p63
      %s66 = sadd.s32 %s65, 1
      %p69 = scmp.eq.s32.totalorder %s17, 3
      %p70 = scmp.ne.s32.totalorder %s65, %s67
      %p71 = scmp.eq.s32.totalorder %s17, 0
      %p72 = por %p70, %p71
      %p73 = scmp.ne.s32.totalorder %s65, %s67
      %p74 = scmp.eq.s32.totalorder %s22, 3
      %p75 = por %p73, %p74
      %p76 = scmp.ne.s32.totalorder %s67, %s68
      %p77 = scmp.eq.s32.totalorder %s22, 0
      %p78 = por %p76, %p77
      %p79 = scmp.ne.s32.totalorder %s67, %s68
      %p80 = scmp.eq.s32.totalorder %s23, 3
      %p81 = por %p79, %p80
      %p83 = scmp.ne.s32.totalorder %s68, %s82
      %p84 = scmp.eq.s32.totalorder %s23, 0
      %p85 = por %p83, %p84
      %s87 = sadd.s32 %s86, 1
      %p90 = scmp.eq.s32.totalorder %s17, 3
      %p91 = scmp.ne.s32.totalorder %s86, %s88
      %p92 = scmp.eq.s32.totalorder %s17, 0
      %p93 = por %p91, %p92
      %p94 = scmp.ne.s32.totalorder %s86, %s88
      %p95 = scmp.eq.s32.totalorder %s22, 3
      %p96 = por %p94, %p95
      %p97 = scmp.ne.s32.totalorder %s88, %s89
      %p98 = scmp.eq.s32.totalorder %s22, 0
      %p99 = por %p97, %p98
      %p100 = scmp.ne.s32.totalorder %s88, %s89
      %p101 = scmp.eq.s32.totalorder %s23, 3
      %p102 = por %p100, %p101
      %p104 = scmp.ne.s32.totalorder %s89, %s103
      %p105 = scmp.eq.s32.totalorder %s23, 0
      %p106 = por %p104, %p105
      %s108 = sadd.s32 %s107, 1
      %p111 = scmp.eq.s32.totalorder %s17, 3
      %p112 = scmp.ne.s32.totalorder %s107, %s109
      %p113 = scmp.eq.s32.totalorder %s17, 0
      %p114 = por %p112, %p113
      %p115 = scmp.ne.s32.totalorder %s107, %s109
      %p116 = scmp.eq.s32.totalorder %s22, 3
      %p117 = por %p115, %p116
      %p118 = scmp.ne.s32.totalorder %s109, %s110
      %p119 = scmp.eq.s32.totalorder %s22, 0
      %p120 = por %p118, %p119
      %p121 = scmp.ne.s32.totalorder %s109, %s110
      %p122 = scmp.eq.s32.totalorder %s23, 3
      %p123 = por %p121, %p122
      %p125 = scmp.ne.s32.totalorder %s110, %s124
      %p126 = scmp.eq.s32.totalorder %s23, 0
      %p127 = por %p125, %p126
      %s128 = ssub.s32 %s24, %s36
      %s129 = ssub.s32 %s25, %s32
      %s130 = sor.u32 %s128, %s129
      %p131 = scmp.eq.s32.totalorder %s130, 0
      %s133 = sadd.s32 %s132, 1
      %s134 = scalar_select %p131, %s132, %s133
      %p137 = pneg %p131
      %p138 = scmp.eq.s32.totalorder %s17, 3
      %p139 = por %p137, %p138
      %p140 = scmp.ne.s32.totalorder %s132, %s135
      %p141 = scmp.eq.s32.totalorder %s17, 0
      %p142 = por %p140, %p141
      %p143 = scmp.ne.s32.totalorder %s132, %s135
      %p144 = scmp.eq.s32.totalorder %s22, 3
      %p145 = por %p143, %p144
      %p146 = scmp.ne.s32.totalorder %s135, %s136
      %p147 = scmp.eq.s32.totalorder %s22, 0
      %p148 = por %p146, %p147
      %p149 = scmp.ne.s32.totalorder %s135, %s136
      %p150 = scmp.eq.s32.totalorder %s23, 3
      %p151 = por %p149, %p150
      %p153 = scmp.ne.s32.totalorder %s136, %s152
      %p154 = scmp.eq.s32.totalorder %s23, 0
      %p155 = por %p153, %p154
      %s156 = ssub.s32 %s24, %s36
      %s157 = ssub.s32 %s25, %s32
      %s158 = sor.u32 %s156, %s157
      %p159 = scmp.eq.s32.totalorder %s158, 0
      %s161 = sadd.s32 %s160, 1
      %s162 = scalar_select %p159, %s160, %s161
      %p165 = pneg %p159
      %p166 = scmp.eq.s32.totalorder %s17, 3
      %p167 = por %p165, %p166
      %p168 = scmp.ne.s32.totalorder %s160, %s163
      %p169 = scmp.eq.s32.totalorder %s17, 0
      %p170 = por %p168, %p169
      %p171 = scmp.ne.s32.totalorder %s160, %s163
      %p172 = scmp.eq.s32.totalorder %s22, 3
      %p173 = por %p171, %p172
      %p174 = scmp.ne.s32.totalorder %s163, %s164
      %p175 = scmp.eq.s32.totalorder %s22, 0
      %p176 = por %p174, %p175
      %p177 = scmp.ne.s32.totalorder %s163, %s164
      %p178 = scmp.eq.s32.totalorder %s23, 3
      %p179 = por %p177, %p178
      %p181 = scmp.ne.s32.totalorder %s164, %s180
      %p182 = scmp.eq.s32.totalorder %s23, 0
      %p183 = por %p181, %p182
      %s184 = ssub.s32 %s24, %s36
      %s185 = ssub.s32 %s25, %s32
      %s186 = sor.u32 %s184, %s185
      %p187 = scmp.eq.s32.totalorder %s186, 0
      %s189 = sadd.s32 %s188, 1
      %s190 = scalar_select %p187, %s188, %s189
      %p193 = pneg %p187
      %p194 = scmp.eq.s32.totalorder %s17, 3
      %p195 = por %p193, %p194
      %p196 = scmp.ne.s32.totalorder %s188, %s191
      %p197 = scmp.eq.s32.totalorder %s17, 0
      %p198 = por %p196, %p197
      %p199 = scmp.ne.s32.totalorder %s188, %s191
      %p200 = scmp.eq.s32.totalorder %s22, 3
      %p201 = por %p199, %p200
      %p202 = scmp.ne.s32.totalorder %s191, %s192
      %p203 = scmp.eq.s32.totalorder %s22, 0
      %p204 = por %p202, %p203
      %p205 = scmp.ne.s32.totalorder %s191, %s192
      %p206 = scmp.eq.s32.totalorder %s23, 3
      %p207 = por %p205, %p206
      %p209 = scmp.ne.s32.totalorder %s192, %s208
      %p210 = scmp.eq.s32.totalorder %s23, 0
      %p211 = por %p209, %p210
      %p212 = scmp.le.s32.totalorder 1, %s17
      %p213 = scmp.lt.s32.totalorder %s17, 5
      %p214 = pnand %p212, %p213
      %p215 = pneg %p214
      // Predicated region
      $region9: #{tpu_custom_call.1} parent=5 // pred_check
        _
      $region10: #{tpu_custom_call.1} parent=5 // pred_check_branch
        %217 = sbr.rel (%p214) target = $region12
      $region11: #{tpu_custom_call.1} parent=5 // pred_region
        %s218 = ssub.s32 %s17, 1
        // Predicated region
        $region13: #{tpu_custom_call.1} parent=11 // pred_check
          %p219 = pneg %p78
        $region14: #{tpu_custom_call.1} parent=11 // pred_check_branch
          %221 = sbr.rel (%p219) target = $region16
        $region15: #{tpu_custom_call.1} parent=11 // pred_region
          _
        $region16: #{tpu_custom_call.1} parent=11 // pred_fallthru
          _
        // Predicated region
        $region17: #{tpu_custom_call.1} parent=11 // pred_check
          %p222 = pneg %p99
        $region18: #{tpu_custom_call.1} parent=11 // pred_check_branch
          %224 = sbr.rel (%p222) target = $region20
        $region19: #{tpu_custom_call.1} parent=11 // pred_region
          _
        $region20: #{tpu_custom_call.1} parent=11 // pred_fallthru
          _
        // Predicated region
        $region21: #{tpu_custom_call.1} parent=11 // pred_check
          %p225 = pneg %p120
        $region22: #{tpu_custom_call.1} parent=11 // pred_check_branch
          %227 = sbr.rel (%p225) target = $region24
        $region23: #{tpu_custom_call.1} parent=11 // pred_region
          %s229 = ssub.s32 3072, 3072
          %230 = vsyncadd [#allocation5], %s229
          %s231 = sshll.u32 [#allocation4], 4
          %s232 = int_to_ptr.vmem [resolvable:$true] %s231
          %237 = dma.hbm_to_vmem [thread:$0]  %s3, 3072, %s232, [#allocation5], 192, 192, 12
        $region24: #{tpu_custom_call.1} parent=11 // pred_fallthru
          _
      $region12: #{tpu_custom_call.1} parent=5 // pred_fallthru
        _
      %p238 = scmp.lt.s32.totalorder %s17, 4
      // Predicated region
      $region25: #{tpu_custom_call.1} parent=5 // pred_check
        %p239 = pneg %p238
      $region26: #{tpu_custom_call.1} parent=5 // pred_check_branch
        %241 = sbr.rel (%p239) target = $region28
      $region27: #{tpu_custom_call.1} parent=5 // pred_region
        // Predicated region
        $region29: #{tpu_custom_call.1} parent=27 // pred_check
          %p242 = pneg %p51
        $region30: #{tpu_custom_call.1} parent=27 // pred_check_branch
          %244 = sbr.rel (%p242) target = $region32
        $region31: #{tpu_custom_call.1} parent=27 // pred_region
          %s245 = sand.u32 %s41, 1
          %s246 = scalar_lea.sflag [#allocation3], %s245
          %s247 = sand.u32 %s41, 1
          %s248 = smul.addr %s247, 128
          %s249 = scalar_lea.vmem [#allocation2], %s248
          %s250 = smul.u32 16, %s25
          %s252 = ssub.s32 2048, 2048
          %253 = vsyncadd %s246, %s252
          %s254 = smul.addr %s24, 32
          %s255 = sadd.s32 %s250, %s254
          %s256 = smul.addr %s255, 128
          %s257 = scalar_lea.hbm %s0, %s256
          %s258 = sshll.u32 %s249, 4
          %s259 = int_to_ptr.vmem [resolvable:$true] %s258
          %264 = dma.hbm_to_vmem [thread:$0]  %s257, 2048, %s259, %s246, 128, 128, 8
        $region32: #{tpu_custom_call.1} parent=27 // pred_fallthru
          _
      $region28: #{tpu_custom_call.1} parent=5 // pred_fallthru
        _
      %p265 = scmp.le.s32.totalorder 1, %s17
      %p266 = scmp.lt.s32.totalorder %s17, 5
      %p267 = pnand %p265, %p266
      %p268 = pneg %p267
      // Predicated region
      $region33: #{tpu_custom_call.1} parent=5 // pred_check
        _
      $region34: #{tpu_custom_call.1} parent=5 // pred_check_branch
        %270 = sbr.rel (%p267) target = $region36
      $region35: #{tpu_custom_call.1} parent=5 // pred_region
        %s271 = ssub.s32 %s17, 1
        %s272 = sand.u32 %s44, 1
        %s273 = scalar_lea.sflag [#allocation3], %s272
        %s274 = sand.u32 %s44, 1
        %s275 = smul.addr %s274, 128
        %s276 = scalar_lea.vmem [#allocation2], %s275
        // Predicated region
        $region37: #{tpu_custom_call.1} parent=35 // pred_check
          %p277 = pneg %p57
        $region38: #{tpu_custom_call.1} parent=35 // pred_check_branch
          %279 = sbr.rel (%p277) target = $region40
        $region39: #{tpu_custom_call.1} parent=35 // pred_region
          %280 = dma.done %s273, 2048
        $region40: #{tpu_custom_call.1} parent=35 // pred_fallthru
          _
        // Predicated region
        $region41: #{tpu_custom_call.1} parent=35 // pred_check
          %p281 = pneg %p120
        $region42: #{tpu_custom_call.1} parent=35 // pred_check_branch
          %283 = sbr.rel (%p281) target = $region44
        $region43: #{tpu_custom_call.1} parent=35 // pred_region
          %284 = dma.done [#allocation5], 3072
        $region44: #{tpu_custom_call.1} parent=35 // pred_fallthru
          _
        %s285 = sand.u32 %s44, 1
        %s286 = scalar_lea.sflag [#allocation3], %s285
        %s287 = sand.u32 %s44, 1
        %s288 = smul.addr %s287, 128
        %s289 = scalar_lea.vmem [#allocation2], %s288
        %p290 = pneg %p57
        %p291 = pneg %p54
        %p292 = pneg %p78
        %p293 = pneg %p75
        %p294 = pneg %p99
        %p295 = pneg %p96
        %p296 = pneg %p120
        %p297 = pneg %p117
        %p298 = pneg %p148
        %p299 = pneg %p145
        %s300 = sand.u32 %s135, 1
        %s301 = sand.u32 %s135, 1
        %s302 = smul.addr %s301, 256
        %s303 = scalar_lea.vmem [#allocation6], %s302
        %p304 = pneg %p176
        %p305 = pneg %p173
        %s306 = sand.u32 %s163, 1
        %s307 = sand.u32 %s163, 1
        %s308 = smul.addr %s307, 256
        %s309 = scalar_lea.vmem [#allocation7], %s308
        %p310 = pneg %p204
        %p311 = pneg %p201
        %s312 = sand.u32 %s191, 1
        %s313 = sand.u32 %s191, 1
        %s314 = smul.addr %s313, 256
        %s315 = scalar_lea.vmem [#allocation8], %s314
        %s316 = smul.u32 16, %s27
        %s317 = smul.u32 16, %s27
        %s318 = smul.u32 16, %s27
        %s319 = smul.u32 16, %s27
        %v321 = vld [vmem:[%s276] sm:$0xff]
        %v322 = vld [vmem:[%s276 + $0x8] sm:$0xff]
        %v323 = vld [vmem:[%s276 + $0x10] sm:$0xff]
        %v324 = vld [vmem:[%s276 + $0x18] sm:$0xff]
        %v325 = vld [vmem:[%s276 + $0x20] sm:$0xff]
        %v326 = vld [vmem:[%s276 + $0x28] sm:$0xff]
        %v327 = vld [vmem:[%s276 + $0x30] sm:$0xff]
        %v328 = vld [vmem:[%s276 + $0x38] sm:$0xff]
        %v329 = vld [vmem:[%s276 + $0x40] sm:$0xff]
        %v330 = vld [vmem:[%s276 + $0x48] sm:$0xff]
        %v331 = vld [vmem:[%s276 + $0x50] sm:$0xff]
        %v332 = vld [vmem:[%s276 + $0x58] sm:$0xff]
        %v333 = vld [vmem:[%s276 + $0x60] sm:$0xff]
        %v334 = vld [vmem:[%s276 + $0x68] sm:$0xff]
        %v335 = vld [vmem:[%s276 + $0x70] sm:$0xff]
        %v336 = vld [vmem:[%s276 + $0x78] sm:$0xff]
        %v337 = vld [vmem:[%s1] sm:$0x1]
        %v338 = vld [vmem:[%s2] sm:$0x1]
        %339 = vadd.xlane.f32.xlu0 %v321
        %v340 = vpop.xlane.xlu0 %339
        %341 = vadd.xlane.f32.xlu0 %v322
        %v342 = vpop.xlane.xlu0 %341
        %343 = vadd.xlane.f32.xlu0 %v323
        %v344 = vpop.xlane.xlu0 %343
        %345 = vadd.xlane.f32.xlu0 %v324
        %v346 = vpop.xlane.xlu0 %345
        %347 = vadd.xlane.f32.xlu0 %v325
        %v348 = vpop.xlane.xlu0 %347
        %349 = vadd.xlane.f32.xlu0 %v326
        %v350 = vpop.xlane.xlu0 %349
        %351 = vadd.xlane.f32.xlu0 %v327
        %v352 = vpop.xlane.xlu0 %351
        %353 = vadd.xlane.f32.xlu0 %v328
        %v354 = vpop.xlane.xlu0 %353
        %355 = vadd.xlane.f32.xlu0 %v329
        %v356 = vpop.xlane.xlu0 %355
        %357 = vadd.xlane.f32.xlu0 %v330
        %v358 = vpop.xlane.xlu0 %357
        %359 = vadd.xlane.f32.xlu0 %v331
        %v360 = vpop.xlane.xlu0 %359
        %361 = vadd.xlane.f32.xlu0 %v332
        %v362 = vpop.xlane.xlu0 %361
        %363 = vadd.xlane.f32.xlu0 %v333
        %v364 = vpop.xlane.xlu0 %363
        %365 = vadd.xlane.f32.xlu0 %v334
        %v366 = vpop.xlane.xlu0 %365
        %367 = vadd.xlane.f32.xlu0 %v335
        %v368 = vpop.xlane.xlu0 %367
        %369 = vadd.xlane.f32.xlu0 %v336
        %v370 = vpop.xlane.xlu0 %369
        %v371 = vrcp.pop 128.0
        %v372 = vmul.f32 %v340, %v371
        %v373 = vmul.f32 %v342, %v371
        %v374 = vmul.f32 %v344, %v371
        %v375 = vmul.f32 %v346, %v371
        %v376 = vmul.f32 %v348, %v371
        %v377 = vmul.f32 %v350, %v371
        %v378 = vmul.f32 %v352, %v371
        %v379 = vmul.f32 %v354, %v371
        %v380 = vmul.f32 %v356, %v371
        %v381 = vmul.f32 %v358, %v371
        %v382 = vmul.f32 %v360, %v371
        %v383 = vmul.f32 %v362, %v371
        %v384 = vmul.f32 %v364, %v371
        %v385 = vmul.f32 %v366, %v371
        %v386 = vmul.f32 %v368, %v371
        %v387 = vmul.f32 %v370, %v371
        %v388 = vsub.f32 %v321, %v372
        %v389 = vsub.f32 %v322, %v373
        %v390 = vsub.f32 %v323, %v374
        %v391 = vsub.f32 %v324, %v375
        %v392 = vsub.f32 %v325, %v376
        %v393 = vsub.f32 %v326, %v377
        %v394 = vsub.f32 %v327, %v378
        %v395 = vsub.f32 %v328, %v379
        %v396 = vsub.f32 %v329, %v380
        %v397 = vsub.f32 %v330, %v381
        %v398 = vsub.f32 %v331, %v382
        %v399 = vsub.f32 %v332, %v383
        %v400 = vsub.f32 %v333, %v384
        %v401 = vsub.f32 %v334, %v385
        %v402 = vsub.f32 %v335, %v386
        %v403 = vsub.f32 %v336, %v387
        %v404 = vmul.f32 %v388, %v388
        %v405 = vmul.f32 %v389, %v389
        %v406 = vmul.f32 %v390, %v390
        %v407 = vmul.f32 %v391, %v391
        %v408 = vmul.f32 %v392, %v392
        %v409 = vmul.f32 %v393, %v393
        %v410 = vmul.f32 %v394, %v394
        %v411 = vmul.f32 %v395, %v395
        %v412 = vmul.f32 %v396, %v396
        %v413 = vmul.f32 %v397, %v397
        %v414 = vmul.f32 %v398, %v398
        %v415 = vmul.f32 %v399, %v399
        %v416 = vmul.f32 %v400, %v400
        %v417 = vmul.f32 %v401, %v401
        %v418 = vmul.f32 %v402, %v402
        %v419 = vmul.f32 %v403, %v403
        %420 = vadd.xlane.f32.xlu0 %v404
        %v421 = vpop.xlane.xlu0 %420
        %422 = vadd.xlane.f32.xlu0 %v405
        %v423 = vpop.xlane.xlu0 %422
        %424 = vadd.xlane.f32.xlu0 %v406
        %v425 = vpop.xlane.xlu0 %424
        %426 = vadd.xlane.f32.xlu0 %v407
        %v427 = vpop.xlane.xlu0 %426
        %428 = vadd.xlane.f32.xlu0 %v408
        %v429 = vpop.xlane.xlu0 %428
        %430 = vadd.xlane.f32.xlu0 %v409
        %v431 = vpop.xlane.xlu0 %430
        %432 = vadd.xlane.f32.xlu0 %v410
        %v433 = vpop.xlane.xlu0 %432
        %434 = vadd.xlane.f32.xlu0 %v411
        %v435 = vpop.xlane.xlu0 %434
        %436 = vadd.xlane.f32.xlu0 %v412
        %v437 = vpop.xlane.xlu0 %436
        %438 = vadd.xlane.f32.xlu0 %v413
        %v439 = vpop.xlane.xlu0 %438
        %440 = vadd.xlane.f32.xlu0 %v414
        %v441 = vpop.xlane.xlu0 %440
        %442 = vadd.xlane.f32.xlu0 %v415
        %v443 = vpop.xlane.xlu0 %442
        %444 = vadd.xlane.f32.xlu0 %v416
        %v445 = vpop.xlane.xlu0 %444
        %446 = vadd.xlane.f32.xlu0 %v417
        %v447 = vpop.xlane.xlu0 %446
        %448 = vadd.xlane.f32.xlu0 %v418
        %v449 = vpop.xlane.xlu0 %448
        %450 = vadd.xlane.f32.xlu0 %v419
        %v451 = vpop.xlane.xlu0 %450
        %v452 = vmul.f32 %v421, %v371
        %v453 = vmul.f32 %v423, %v371
        %v454 = vmul.f32 %v425, %v371
        %v455 = vmul.f32 %v427, %v371
        %v456 = vmul.f32 %v429, %v371
        %v457 = vmul.f32 %v431, %v371
        %v458 = vmul.f32 %v433, %v371
        %v459 = vmul.f32 %v435, %v371
        %v460 = vmul.f32 %v437, %v371
        %v461 = vmul.f32 %v439, %v371
        %v462 = vmul.f32 %v441, %v371
        %v463 = vmul.f32 %v443, %v371
        %v464 = vmul.f32 %v445, %v371
        %v465 = vmul.f32 %v447, %v371
        %v466 = vmul.f32 %v449, %v371
        %v467 = vmul.f32 %v451, %v371
        %v468 = vadd.f32 %v452, 1e-05
        %v469 = vadd.f32 %v453, 1e-05
        %v470 = vadd.f32 %v454, 1e-05
        %v471 = vadd.f32 %v455, 1e-05
        %v472 = vadd.f32 %v456, 1e-05
        %v473 = vadd.f32 %v457, 1e-05
        %v474 = vadd.f32 %v458, 1e-05
        %v475 = vadd.f32 %v459, 1e-05
        %v476 = vadd.f32 %v460, 1e-05
        %v477 = vadd.f32 %v461, 1e-05
        %v478 = vadd.f32 %v462, 1e-05
        %v479 = vadd.f32 %v463, 1e-05
        %v480 = vadd.f32 %v464, 1e-05
        %v481 = vadd.f32 %v465, 1e-05
        %v482 = vadd.f32 %v466, 1e-05
        %v483 = vadd.f32 %v467, 1e-05
        %v484 = vrsqrt.pop %v468
        %v485 = vrsqrt.pop %v469
        %v486 = vrsqrt.pop %v470
        %v487 = vrsqrt.pop %v471
        %v488 = vrsqrt.pop %v472
        %v489 = vrsqrt.pop %v473
        %v490 = vrsqrt.pop %v474
        %v491 = vrsqrt.pop %v475
        %v492 = vrsqrt.pop %v476
        %v493 = vrsqrt.pop %v477
        %v494 = vrsqrt.pop %v478
        %v495 = vrsqrt.pop %v479
        %v496 = vrsqrt.pop %v480
        %v497 = vrsqrt.pop %v481
        %v498 = vrsqrt.pop %v482
        %v499 = vrsqrt.pop %v483
        %v500 = vmul.f32 %v388, %v484
        %v501 = vmul.f32 %v389, %v485
        %v502 = vmul.f32 %v390, %v486
        %v503 = vmul.f32 %v391, %v487
        %v504 = vmul.f32 %v392, %v488
        %v505 = vmul.f32 %v393, %v489
        %v506 = vmul.f32 %v394, %v490
        %v507 = vmul.f32 %v395, %v491
        %v508 = vmul.f32 %v396, %v492
        %v509 = vmul.f32 %v397, %v493
        %v510 = vmul.f32 %v398, %v494
        %v511 = vmul.f32 %v399, %v495
        %v512 = vmul.f32 %v400, %v496
        %v513 = vmul.f32 %v401, %v497
        %v514 = vmul.f32 %v402, %v498
        %v515 = vmul.f32 %v403, %v499
        %v517 = vlaneseq
        %v518 = vshrl.u32 %v517, 7
        %v519 = vsub.s32 0, %v518
        %v520 = vrot.slane %v337, %v519
        %v522 = vmul.f32 %v500, %v520
        %v523 = vmul.f32 %v501, %v520
        %v524 = vmul.f32 %v502, %v520
        %v525 = vmul.f32 %v503, %v520
        %v526 = vmul.f32 %v504, %v520
        %v527 = vmul.f32 %v505, %v520
        %v528 = vmul.f32 %v506, %v520
        %v529 = vmul.f32 %v507, %v520
        %v530 = vmul.f32 %v508, %v520
        %v531 = vmul.f32 %v509, %v520
        %v532 = vmul.f32 %v510, %v520
        %v533 = vmul.f32 %v511, %v520
        %v534 = vmul.f32 %v512, %v520
        %v535 = vmul.f32 %v513, %v520
        %v536 = vmul.f32 %v514, %v520
        %v537 = vmul.f32 %v515, %v520
        %v539 = vlaneseq
        %v540 = vshrl.u32 %v539, 7
        %v541 = vsub.s32 0, %v540
        %v542 = vrot.slane %v338, %v541
        %v544 = vadd.f32 %v522, %v542
        %v545 = vadd.f32 %v523, %v542
        %v546 = vadd.f32 %v524, %v542
        %v547 = vadd.f32 %v525, %v542
        %v548 = vadd.f32 %v526, %v542
        %v549 = vadd.f32 %v527, %v542
        %v550 = vadd.f32 %v528, %v542
        %v551 = vadd.f32 %v529, %v542
        %v552 = vadd.f32 %v530, %v542
        %v553 = vadd.f32 %v531, %v542
        %v554 = vadd.f32 %v532, %v542
        %v555 = vadd.f32 %v533, %v542
        %v556 = vadd.f32 %v534, %v542
        %v557 = vadd.f32 %v535, %v542
        %v558 = vadd.f32 %v536, %v542
        %v559 = vadd.f32 %v537, %v542
        %v560 = vpack.c.bf16 %v545, %v544
        %v561 = vpack.c.bf16 %v547, %v546
        %v562 = vpack.c.bf16 %v549, %v548
        %v563 = vpack.c.bf16 %v551, %v550
        %v564 = vpack.c.bf16 %v553, %v552
        %v565 = vpack.c.bf16 %v555, %v554
        %v566 = vpack.c.bf16 %v557, %v556
        %v567 = vpack.c.bf16 %v559, %v558
        %v568 = vld [vmem:[#allocation4] sm:$0xff]
        %v569 = vld [vmem:[#allocation4 + $0x8] sm:$0xf]
        %v570 = vld [vmem:[#allocation4 + $0xc] sm:$0xff]
        %v571 = vld [vmem:[#allocation4 + $0x14] sm:$0xf]
        %v572 = vld [vmem:[#allocation4 + $0x18] sm:$0xff]
        %v573 = vld [vmem:[#allocation4 + $0x20] sm:$0xf]
        %v574 = vld [vmem:[#allocation4 + $0x24] sm:$0xff]
        %v575 = vld [vmem:[#allocation4 + $0x2c] sm:$0xf]
        %v576 = vld [vmem:[#allocation4 + $0x30] sm:$0xff]
        %v577 = vld [vmem:[#allocation4 + $0x38] sm:$0xf]
        %v578 = vld [vmem:[#allocation4 + $0x3c] sm:$0xff]
        %v579 = vld [vmem:[#allocation4 + $0x44] sm:$0xf]
        %v580 = vld [vmem:[#allocation4 + $0x48] sm:$0xff]
        %v581 = vld [vmem:[#allocation4 + $0x50] sm:$0xf]
        %v582 = vld [vmem:[#allocation4 + $0x54] sm:$0xff]
        %v583 = vld [vmem:[#allocation4 + $0x5c] sm:$0xf]
        %v584 = vld [vmem:[#allocation4 + $0x60] sm:$0xff]
        %v585 = vld [vmem:[#allocation4 + $0x68] sm:$0xf]
        %v586 = vld [vmem:[#allocation4 + $0x6c] sm:$0xff]
        %v587 = vld [vmem:[#allocation4 + $0x74] sm:$0xf]
        %v588 = vld [vmem:[#allocation4 + $0x78] sm:$0xff]
        %v589 = vld [vmem:[#allocation4 + $0x80] sm:$0xf]
        %v590 = vld [vmem:[#allocation4 + $0x84] sm:$0xff]
        %v591 = vld [vmem:[#allocation4 + $0x8c] sm:$0xf]
        %v592 = vld [vmem:[#allocation4 + $0x90] sm:$0xff]
        %v593 = vld [vmem:[#allocation4 + $0x98] sm:$0xf]
        %v594 = vld [vmem:[#allocation4 + $0x9c] sm:$0xff]
        %v595 = vld [vmem:[#allocation4 + $0xa4] sm:$0xf]
        %v596 = vld [vmem:[#allocation4 + $0xa8] sm:$0xff]
        %v597 = vld [vmem:[#allocation4 + $0xb0] sm:$0xf]
        %v598 = vld [vmem:[#allocation4 + $0xb4] sm:$0xff]
        %v599 = vld [vmem:[#allocation4 + $0xbc] sm:$0xf]
        %v632 = vunpack.c.l.b16 %v568
        %v633 = vunpack.c.h.b16 %v568
        %v634 = vunpack.c.l.b16 %v569
        %v635 = vunpack.c.l.b16 %v570
        %v636 = vunpack.c.h.b16 %v570
        %v637 = vunpack.c.l.b16 %v571
        %v638 = vunpack.c.l.b16 %v572
        %v639 = vunpack.c.h.b16 %v572
        %v640 = vunpack.c.l.b16 %v573
        %v641 = vunpack.c.l.b16 %v574
        %v642 = vunpack.c.h.b16 %v574
        %v643 = vunpack.c.l.b16 %v575
        %v644 = vunpack.c.l.b16 %v576
        %v645 = vunpack.c.h.b16 %v576
        %v646 = vunpack.c.l.b16 %v577
        %v647 = vunpack.c.l.b16 %v578
        %v648 = vunpack.c.h.b16 %v578
        %v649 = vunpack.c.l.b16 %v579
        %v650 = vunpack.c.l.b16 %v580
        %v651 = vunpack.c.h.b16 %v580
        %v652 = vunpack.c.l.b16 %v581
        %v653 = vunpack.c.l.b16 %v582
        %v654 = vunpack.c.h.b16 %v582
        %v655 = vunpack.c.l.b16 %v583
        %v656 = vunpack.c.l.b16 %v584
        %v657 = vunpack.c.h.b16 %v584
        %v658 = vunpack.c.l.b16 %v585
        %v659 = vunpack.c.l.b16 %v586
        %v660 = vunpack.c.h.b16 %v586
        %v661 = vunpack.c.l.b16 %v587
        %v662 = vunpack.c.l.b16 %v588
        %v663 = vunpack.c.h.b16 %v588
        %v664 = vunpack.c.l.b16 %v589
        %v665 = vunpack.c.l.b16 %v590
        %v666 = vunpack.c.h.b16 %v590
        %v667 = vunpack.c.l.b16 %v591
        %v668 = vunpack.c.l.b16 %v592
        %v669 = vunpack.c.h.b16 %v592
        %v670 = vunpack.c.l.b16 %v593
        %v671 = vunpack.c.l.b16 %v594
        %v672 = vunpack.c.h.b16 %v594
        %v673 = vunpack.c.l.b16 %v595
        %v674 = vunpack.c.l.b16 %v596
        %v675 = vunpack.c.h.b16 %v596
        %v676 = vunpack.c.l.b16 %v597
        %v677 = vunpack.c.l.b16 %v598
        %v678 = vunpack.c.h.b16 %v598
        %v679 = vunpack.c.l.b16 %v599
        %v680 = vpack.c.b16 %v635, %v632
        %v681 = vpack.c.b16 %v636, %v633
        %v682 = vpack.c.b16 %v637, %v634
        %v683 = vpack.c.b16 %v641, %v638
        %v684 = vpack.c.b16 %v642, %v639
        %v685 = vpack.c.b16 %v643, %v640
        %v686 = vpack.c.b16 %v647, %v644
        %v687 = vpack.c.b16 %v648, %v645
        %v688 = vpack.c.b16 %v649, %v646
        %v689 = vpack.c.b16 %v653, %v650
        %v690 = vpack.c.b16 %v654, %v651
        %v691 = vpack.c.b16 %v655, %v652
        %v692 = vpack.c.b16 %v659, %v656
        %v693 = vpack.c.b16 %v660, %v657
        %v694 = vpack.c.b16 %v661, %v658
        %v695 = vpack.c.b16 %v665, %v662
        %v696 = vpack.c.b16 %v666, %v663
        %v697 = vpack.c.b16 %v667, %v664
        %v698 = vpack.c.b16 %v671, %v668
        %v699 = vpack.c.b16 %v672, %v669
        %v700 = vpack.c.b16 %v673, %v670
        %v701 = vpack.c.b16 %v677, %v674
        %v702 = vpack.c.b16 %v678, %v675
        %v703 = vpack.c.b16 %v679, %v676
        %728 = vmatprep.subr.bf16.mxu0 %v681
        %729 = vmatpush1.bf16.msra.mxu0 %v680
        %730 = vmatprep.subr.bf16.mxu0 %v684
        %731 = vmatpush1.bf16.msra.mxu0 %v683
        %732 = vmatprep.subr.bf16.mxu0 %v687
        %733 = vmatpush1.bf16.msra.mxu0 %v686
        %734 = vmatprep.subr.bf16.mxu0 %v690
        %735 = vmatpush1.bf16.msra.mxu0 %v689
        %736 = vmatprep.subr.bf16.mxu0 %v693
        %737 = vmatpush1.bf16.msra.mxu0 %v692
        %738 = vmatprep.subr.bf16.mxu0 %v696
        %739 = vmatpush1.bf16.msra.mxu0 %v695
        %740 = vmatprep.subr.bf16.mxu0 %v699
        %741 = vmatpush1.bf16.msra.mxu0 %v698
        %742 = vmatprep.subr.bf16.mxu0 %v702
        %743 = vmatpush1.bf16.msra.mxu0 %v701
        %744 = vmatprep.subr.bf16.mxu0 0
        %745 = vmatpush1.bf16.msra.mxu0 0
        %746 = vmatprep.subr.bf16.mxu0 0
        %747 = vmatpush1.bf16.msra.mxu0 0
        %748 = vmatprep.subr.bf16.mxu0 0
        %749 = vmatpush1.bf16.msra.mxu0 0
        %750 = vmatprep.subr.bf16.mxu0 0
        %751 = vmatpush1.bf16.msra.mxu0 0
        %752 = vmatprep.subr.bf16.mxu0 0
        %753 = vmatpush1.bf16.msra.mxu0 0
        %754 = vmatprep.subr.bf16.mxu0 0
        %755 = vmatpush1.bf16.msra.mxu0 0
        %756 = vmatprep.subr.bf16.mxu0 0
        %757 = vmatpush1.bf16.msra.mxu0 0
        %758 = vmatprep.subr.bf16.mxu0 0
        %759 = vmatpush1.bf16.msra.mxu0 0
        %760 = vmatprep.mubr.bf16.mxu0 0
        %761 = vmatmul.mubr.bf16.gmra.mrb[0].mxu0 %v560
        %v762 = vpop.f32.mrb[0].mxu0
        %v763 = vadd.f32 0.0, %v762
        %v764 = vpop.f32.mrb[0].mxu0
        %v765 = vadd.f32 0.0, %v764
        %v766 = vpop.f32.mrb[0].mxu0
        %v767 = vadd.f32 0.0, %v766
        %v768 = vpop.f32.mrb[0].mxu0
        %v769 = vadd.f32 0.0, %v768
        %770 = vmatprep.mubr.bf16.mxu0 0
        %771 = vmatmul.mubr.bf16.gmra.mrb[0].mxu0 %v561
        %v772 = vpop.f32.mrb[0].mxu0
        %v773 = vadd.f32 0.0, %v772
        %v774 = vpop.f32.mrb[0].mxu0
        %v775 = vadd.f32 0.0, %v774
        %v776 = vpop.f32.mrb[0].mxu0
        %v777 = vadd.f32 0.0, %v776
        %v778 = vpop.f32.mrb[0].mxu0
        %v779 = vadd.f32 0.0, %v778
        %780 = vmatprep.mubr.bf16.mxu0 0
        %781 = vmatmul.mubr.bf16.gmra.mrb[0].mxu0 %v562
        %v782 = vpop.f32.mrb[0].mxu0
        %v783 = vadd.f32 0.0, %v782
        %v784 = vpop.f32.mrb[0].mxu0
        %v785 = vadd.f32 0.0, %v784
        %v786 = vpop.f32.mrb[0].mxu0
        %v787 = vadd.f32 0.0, %v786
        %v788 = vpop.f32.mrb[0].mxu0
        %v789 = vadd.f32 0.0, %v788
        %790 = vmatprep.mubr.bf16.mxu0 0
        %791 = vmatmul.mubr.bf16.gmra.mrb[0].mxu0 %v563
        %v792 = vpop.f32.mrb[0].mxu0
        %v793 = vadd.f32 0.0, %v792
        %v794 = vpop.f32.mrb[0].mxu0
        %v795 = vadd.f32 0.0, %v794
        %v796 = vpop.f32.mrb[0].mxu0
        %v797 = vadd.f32 0.0, %v796
        %v798 = vpop.f32.mrb[0].mxu0
        %v799 = vadd.f32 0.0, %v798
        %800 = vmatprep.mubr.bf16.mxu0 0
        %801 = vmatmul.mubr.bf16.gmra.mrb[0].mxu0 %v564
        %v802 = vpop.f32.mrb[0].mxu0
        %v803 = vadd.f32 0.0, %v802
        %v804 = vpop.f32.mrb[0].mxu0
        %v805 = vadd.f32 0.0, %v804
        %v806 = vpop.f32.mrb[0].mxu0
        %v807 = vadd.f32 0.0, %v806
        %v808 = vpop.f32.mrb[0].mxu0
        %v809 = vadd.f32 0.0, %v808
        %810 = vmatprep.mubr.bf16.mxu0 0
        %811 = vmatmul.mubr.bf16.gmra.mrb[0].mxu0 %v565
        %v812 = vpop.f32.mrb[0].mxu0
        %v813 = vadd.f32 0.0, %v812
        %v814 = vpop.f32.mrb[0].mxu0
        %v815 = vadd.f32 0.0, %v814
        %v816 = vpop.f32.mrb[0].mxu0
        %v817 = vadd.f32 0.0, %v816
        %v818 = vpop.f32.mrb[0].mxu0
        %v819 = vadd.f32 0.0, %v818
        %820 = vmatprep.mubr.bf16.mxu0 0
        %821 = vmatmul.mubr.bf16.gmra.mrb[0].mxu0 %v566
        %v822 = vpop.f32.mrb[0].mxu0
        %v823 = vadd.f32 0.0, %v822
        %v824 = vpop.f32.mrb[0].mxu0
        %v825 = vadd.f32 0.0, %v824
        %v826 = vpop.f32.mrb[0].mxu0
        %v827 = vadd.f32 0.0, %v826
        %v828 = vpop.f32.mrb[0].mxu0
        %v829 = vadd.f32 0.0, %v828
        %830 = vmatprep.mubr.bf16.mxu0 0
        %831 = vmatmul.mubr.bf16.gmra.mrb[0].mxu0 %v567
        %v832 = vpop.f32.mrb[0].mxu0
        %v833 = vadd.f32 0.0, %v832
        %v834 = vpop.f32.mrb[0].mxu0
        %v835 = vadd.f32 0.0, %v834
        %v836 = vpop.f32.mrb[0].mxu0
        %v837 = vadd.f32 0.0, %v836
        %v838 = vpop.f32.mrb[0].mxu0
        %v839 = vadd.f32 0.0, %v838
        %840 = vdwg.mxu0
        %841 = vmatprep.subr.bf16.mxu0 0
        %842 = vmatpush1.bf16.msra.mxu0 %v682
        %843 = vmatprep.subr.bf16.mxu0 0
        %844 = vmatpush1.bf16.msra.mxu0 %v685
        %845 = vmatprep.subr.bf16.mxu0 0
        %846 = vmatpush1.bf16.msra.mxu0 %v688
        %847 = vmatprep.subr.bf16.mxu0 0
        %848 = vmatpush1.bf16.msra.mxu0 %v691
        %849 = vmatprep.subr.bf16.mxu0 0
        %850 = vmatpush1.bf16.msra.mxu0 %v694
        %851 = vmatprep.subr.bf16.mxu0 0
        %852 = vmatpush1.bf16.msra.mxu0 %v697
        %853 = vmatprep.subr.bf16.mxu0 0
        %854 = vmatpush1.bf16.msra.mxu0 %v700
        %855 = vmatprep.subr.bf16.mxu0 0
        %856 = vmatpush1.bf16.msra.mxu0 %v703
        %857 = vmatprep.subr.bf16.mxu0 0
        %858 = vmatpush1.bf16.msra.mxu0 0
        %859 = vmatprep.subr.bf16.mxu0 0
        %860 = vmatpush1.bf16.msra.mxu0 0
        %861 = vmatprep.subr.bf16.mxu0 0
        %862 = vmatpush1.bf16.msra.mxu0 0
        %863 = vmatprep.subr.bf16.mxu0 0
        %864 = vmatpush1.bf16.msra.mxu0 0
        %865 = vmatprep.subr.bf16.mxu0 0
        %866 = vmatpush1.bf16.msra.mxu0 0
        %867 = vmatprep.subr.bf16.mxu0 0
        %868 = vmatpush1.bf16.msra.mxu0 0
        %869 = vmatprep.subr.bf16.mxu0 0
        %870 = vmatpush1.bf16.msra.mxu0 0
        %871 = vmatprep.subr.bf16.mxu0 0
        %872 = vmatpush1.bf16.msra.mxu0 0
        %873 = vmatprep.mubr.bf16.mxu0 0
        %874 = vmatmul.mubr.bf16.gmra.mrb[0].mxu0 %v560
        %v875 = vpop.f32.mrb[0].mxu0
        %v876 = vadd.f32 0.0, %v875
        %v877 = vpop.f32.mrb[0].mxu0
        %v878 = vpop.f32.mrb[0].mxu0
        %v879 = vadd.f32 0.0, %v878
        %v880 = vpop.f32.mrb[0].mxu0
        %881 = vmatprep.mubr.bf16.mxu0 0
        %882 = vmatmul.mubr.bf16.gmra.mrb[0].mxu0 %v561
        %v883 = vpop.f32.mrb[0].mxu0
        %v884 = vadd.f32 0.0, %v883
        %v885 = vpop.f32.mrb[0].mxu0
        %v886 = vpop.f32.mrb[0].mxu0
        %v887 = vadd.f32 0.0, %v886
        %v888 = vpop.f32.mrb[0].mxu0
        %889 = vmatprep.mubr.bf16.mxu0 0
        %890 = vmatmul.mubr.bf16.gmra.mrb[0].mxu0 %v562
        %v891 = vpop.f32.mrb[0].mxu0
        %v892 = vadd.f32 0.0, %v891
        %v893 = vpop.f32.mrb[0].mxu0
        %v894 = vpop.f32.mrb[0].mxu0
        %v895 = vadd.f32 0.0, %v894
        %v896 = vpop.f32.mrb[0].mxu0
        %897 = vmatprep.mubr.bf16.mxu0 0
        %898 = vmatmul.mubr.bf16.gmra.mrb[0].mxu0 %v563
        %v899 = vpop.f32.mrb[0].mxu0
        %v900 = vadd.f32 0.0, %v899
        %v901 = vpop.f32.mrb[0].mxu0
        %v902 = vpop.f32.mrb[0].mxu0
        %v903 = vadd.f32 0.0, %v902
        %v904 = vpop.f32.mrb[0].mxu0
        %905 = vmatprep.mubr.bf16.mxu0 0
        %906 = vmatmul.mubr.bf16.gmra.mrb[0].mxu0 %v564
        %v907 = vpop.f32.mrb[0].mxu0
        %v908 = vadd.f32 0.0, %v907
        %v909 = vpop.f32.mrb[0].mxu0
        %v910 = vpop.f32.mrb[0].mxu0
        %v911 = vadd.f32 0.0, %v910
        %v912 = vpop.f32.mrb[0].mxu0
        %913 = vmatprep.mubr.bf16.mxu0 0
        %914 = vmatmul.mubr.bf16.gmra.mrb[0].mxu0 %v565
        %v915 = vpop.f32.mrb[0].mxu0
        %v916 = vadd.f32 0.0, %v915
        %v917 = vpop.f32.mrb[0].mxu0
        %v918 = vpop.f32.mrb[0].mxu0
        %v919 = vadd.f32 0.0, %v918
        %v920 = vpop.f32.mrb[0].mxu0
        %921 = vmatprep.mubr.bf16.mxu0 0
        %922 = vmatmul.mubr.bf16.gmra.mrb[0].mxu0 %v566
        %v923 = vpop.f32.mrb[0].mxu0
        %v924 = vadd.f32 0.0, %v923
        %v925 = vpop.f32.mrb[0].mxu0
        %v926 = vpop.f32.mrb[0].mxu0
        %v927 = vadd.f32 0.0, %v926
        %v928 = vpop.f32.mrb[0].mxu0
        %929 = vmatprep.mubr.bf16.mxu0 0
        %930 = vmatmul.mubr.bf16.gmra.mrb[0].mxu0 %v567
        %v931 = vpop.f32.mrb[0].mxu0
        %v932 = vadd.f32 0.0, %v931
        %v933 = vpop.f32.mrb[0].mxu0
        %v934 = vpop.f32.mrb[0].mxu0
        %v935 = vadd.f32 0.0, %v934
        %v936 = vpop.f32.mrb[0].mxu0
        %937 = vdwg.mxu0
        %v938 = vmul.f32 %v763, 0.17677669
        %v939 = vmul.f32 %v767, 0.17677669
        %v940 = vmul.f32 %v773, 0.17677669
        %v941 = vmul.f32 %v777, 0.17677669
        %v942 = vmul.f32 %v783, 0.17677669
        %v943 = vmul.f32 %v787, 0.17677669
        %v944 = vmul.f32 %v793, 0.17677669
        %v945 = vmul.f32 %v797, 0.17677669
        %v946 = vmul.f32 %v803, 0.17677669
        %v947 = vmul.f32 %v807, 0.17677669
        %v948 = vmul.f32 %v813, 0.17677669
        %v949 = vmul.f32 %v817, 0.17677669
        %v950 = vmul.f32 %v823, 0.17677669
        %v951 = vmul.f32 %v827, 0.17677669
        %v952 = vmul.f32 %v833, 0.17677669
        %v953 = vmul.f32 %v837, 0.17677669
        %v954 = vpack.c.bf16 %v939, %v938
        %v955 = vpack.c.bf16 %v941, %v940
        %v956 = vpack.c.bf16 %v943, %v942
        %v957 = vpack.c.bf16 %v945, %v944
        %v958 = vpack.c.bf16 %v947, %v946
        %v959 = vpack.c.bf16 %v949, %v948
        %v960 = vpack.c.bf16 %v951, %v950
        %v961 = vpack.c.bf16 %v953, %v952
        %v970 = vunpack.c.l.b16 %v954
        %v971 = vunpack.c.h.b16 %v954
        %v972 = vunpack.c.l.b16 %v955
        %v973 = vunpack.c.h.b16 %v955
        %v974 = vunpack.c.l.b16 %v956
        %v975 = vunpack.c.h.b16 %v956
        %v976 = vunpack.c.l.b16 %v957
        %v977 = vunpack.c.h.b16 %v957
        %v978 = vunpack.c.l.b16 %v958
        %v979 = vunpack.c.h.b16 %v958
        %v980 = vunpack.c.l.b16 %v959
        %v981 = vunpack.c.h.b16 %v959
        %v982 = vunpack.c.l.b16 %v960
        %v983 = vunpack.c.h.b16 %v960
        %v984 = vunpack.c.l.b16 %v961
        %v985 = vunpack.c.h.b16 %v961
        %v986 = vpack.c.b16 %v970, %v970
        %v987 = vpack.c.b16 %v971, %v971
        %v988 = vpack.c.b16 %v972, %v972
        %v989 = vpack.c.b16 %v973, %v973
        %v990 = vpack.c.b16 %v974, %v974
        %v991 = vpack.c.b16 %v975, %v975
        %v992 = vpack.c.b16 %v976, %v976
        %v993 = vpack.c.b16 %v977, %v977
        %v994 = vpack.c.b16 %v978, %v978
        %v995 = vpack.c.b16 %v979, %v979
        %v996 = vpack.c.b16 %v980, %v980
        %v997 = vpack.c.b16 %v981, %v981
        %v998 = vpack.c.b16 %v982, %v982
        %v999 = vpack.c.b16 %v983, %v983
        %v1000 = vpack.c.b16 %v984, %v984
        %v1001 = vpack.c.b16 %v985, %v985
        %vm1018 = vcmask 257024
        %1019 = vst.msk [vmem:[%s303] sm:$0xf] %vm1018, %v986
        %1020 = vst.msk [vmem:[%s303 + $0x4] sm:$0xf] %vm1018, %v987
        %1021 = vst.msk [vmem:[%s303 + $0x8] sm:$0xf] %vm1018, %v988
        %1022 = vst.msk [vmem:[%s303 + $0xc] sm:$0xf] %vm1018, %v989
        %1023 = vst.msk [vmem:[%s303 + $0x10] sm:$0xf] %vm1018, %v990
        %1024 = vst.msk [vmem:[%s303 + $0x14] sm:$0xf] %vm1018, %v991
        %1025 = vst.msk [vmem:[%s303 + $0x18] sm:$0xf] %vm1018, %v992
        %1026 = vst.msk [vmem:[%s303 + $0x1c] sm:$0xf] %vm1018, %v993
        %1027 = vst.msk [vmem:[%s303 + $0x20] sm:$0xf] %vm1018, %v994
        %1028 = vst.msk [vmem:[%s303 + $0x24] sm:$0xf] %vm1018, %v995
        %1029 = vst.msk [vmem:[%s303 + $0x28] sm:$0xf] %vm1018, %v996
        %1030 = vst.msk [vmem:[%s303 + $0x2c] sm:$0xf] %vm1018, %v997
        %1031 = vst.msk [vmem:[%s303 + $0x30] sm:$0xf] %vm1018, %v998
        %1032 = vst.msk [vmem:[%s303 + $0x34] sm:$0xf] %vm1018, %v999
        %1033 = vst.msk [vmem:[%s303 + $0x38] sm:$0xf] %vm1018, %v1000
        %1034 = vst.msk [vmem:[%s303 + $0x3c] sm:$0xf] %vm1018, %v1001
        %v1035 = vpack.c.bf16 %v769, %v765
        %v1036 = vpack.c.bf16 %v779, %v775
        %v1037 = vpack.c.bf16 %v789, %v785
        %v1038 = vpack.c.bf16 %v799, %v795
        %v1039 = vpack.c.bf16 %v809, %v805
        %v1040 = vpack.c.bf16 %v819, %v815
        %v1041 = vpack.c.bf16 %v829, %v825
        %v1042 = vpack.c.bf16 %v839, %v835
        %v1051 = vunpack.c.l.b16 %v1035
        %v1052 = vunpack.c.h.b16 %v1035
        %v1053 = vunpack.c.l.b16 %v1036
        %v1054 = vunpack.c.h.b16 %v1036
        %v1055 = vunpack.c.l.b16 %v1037
        %v1056 = vunpack.c.h.b16 %v1037
        %v1057 = vunpack.c.l.b16 %v1038
        %v1058 = vunpack.c.h.b16 %v1038
        %v1059 = vunpack.c.l.b16 %v1039
        %v1060 = vunpack.c.h.b16 %v1039
        %v1061 = vunpack.c.l.b16 %v1040
        %v1062 = vunpack.c.h.b16 %v1040
        %v1063 = vunpack.c.l.b16 %v1041
        %v1064 = vunpack.c.h.b16 %v1041
        %v1065 = vunpack.c.l.b16 %v1042
        %v1066 = vunpack.c.h.b16 %v1042
        %v1067 = vpack.c.b16 %v1051, %v1051
        %v1068 = vpack.c.b16 %v1052, %v1052
        %v1069 = vpack.c.b16 %v1053, %v1053
        %v1070 = vpack.c.b16 %v1054, %v1054
        %v1071 = vpack.c.b16 %v1055, %v1055
        %v1072 = vpack.c.b16 %v1056, %v1056
        %v1073 = vpack.c.b16 %v1057, %v1057
        %v1074 = vpack.c.b16 %v1058, %v1058
        %v1075 = vpack.c.b16 %v1059, %v1059
        %v1076 = vpack.c.b16 %v1060, %v1060
        %v1077 = vpack.c.b16 %v1061, %v1061
        %v1078 = vpack.c.b16 %v1062, %v1062
        %v1079 = vpack.c.b16 %v1063, %v1063
        %v1080 = vpack.c.b16 %v1064, %v1064
        %v1081 = vpack.c.b16 %v1065, %v1065
        %v1082 = vpack.c.b16 %v1066, %v1066
        %1099 = vst.msk [vmem:[%s309] sm:$0xf] %vm1018, %v1067
        %1100 = vst.msk [vmem:[%s309 + $0x4] sm:$0xf] %vm1018, %v1068
        %1101 = vst.msk [vmem:[%s309 + $0x8] sm:$0xf] %vm1018, %v1069
        %1102 = vst.msk [vmem:[%s309 + $0xc] sm:$0xf] %vm1018, %v1070
        %1103 = vst.msk [vmem:[%s309 + $0x10] sm:$0xf] %vm1018, %v1071
        %1104 = vst.msk [vmem:[%s309 + $0x14] sm:$0xf] %vm1018, %v1072
        %1105 = vst.msk [vmem:[%s309 + $0x18] sm:$0xf] %vm1018, %v1073
        %1106 = vst.msk [vmem:[%s309 + $0x1c] sm:$0xf] %vm1018, %v1074
        %1107 = vst.msk [vmem:[%s309 + $0x20] sm:$0xf] %vm1018, %v1075
        %1108 = vst.msk [vmem:[%s309 + $0x24] sm:$0xf] %vm1018, %v1076
        %1109 = vst.msk [vmem:[%s309 + $0x28] sm:$0xf] %vm1018, %v1077
        %1110 = vst.msk [vmem:[%s309 + $0x2c] sm:$0xf] %vm1018, %v1078
        %1111 = vst.msk [vmem:[%s309 + $0x30] sm:$0xf] %vm1018, %v1079
        %1112 = vst.msk [vmem:[%s309 + $0x34] sm:$0xf] %vm1018, %v1080
        %1113 = vst.msk [vmem:[%s309 + $0x38] sm:$0xf] %vm1018, %v1081
        %1114 = vst.msk [vmem:[%s309 + $0x3c] sm:$0xf] %vm1018, %v1082
        %v1115 = vpack.c.bf16 %v879, %v876
        %v1116 = vpack.c.bf16 %v887, %v884
        %v1117 = vpack.c.bf16 %v895, %v892
        %v1118 = vpack.c.bf16 %v903, %v900
        %v1119 = vpack.c.bf16 %v911, %v908
        %v1120 = vpack.c.bf16 %v919, %v916
        %v1121 = vpack.c.bf16 %v927, %v924
        %v1122 = vpack.c.bf16 %v935, %v932
        %v1131 = vunpack.c.l.b16 %v1115
        %v1132 = vunpack.c.h.b16 %v1115
        %v1133 = vunpack.c.l.b16 %v1116
        %v1134 = vunpack.c.h.b16 %v1116
        %v1135 = vunpack.c.l.b16 %v1117
        %v1136 = vunpack.c.h.b16 %v1117
        %v1137 = vunpack.c.l.b16 %v1118
        %v1138 = vunpack.c.h.b16 %v1118
        %v1139 = vunpack.c.l.b16 %v1119
        %v1140 = vunpack.c.h.b16 %v1119
        %v1141 = vunpack.c.l.b16 %v1120
        %v1142 = vunpack.c.h.b16 %v1120
        %v1143 = vunpack.c.l.b16 %v1121
        %v1144 = vunpack.c.h.b16 %v1121
        %v1145 = vunpack.c.l.b16 %v1122
        %v1146 = vunpack.c.h.b16 %v1122
        %v1147 = vpack.c.b16 %v1131, %v1131
        %v1148 = vpack.c.b16 %v1132, %v1132
        %v1149 = vpack.c.b16 %v1133, %v1133
        %v1150 = vpack.c.b16 %v1134, %v1134
        %v1151 = vpack.c.b16 %v1135, %v1135
        %v1152 = vpack.c.b16 %v1136, %v1136
        %v1153 = vpack.c.b16 %v1137, %v1137
        %v1154 = vpack.c.b16 %v1138, %v1138
        %v1155 = vpack.c.b16 %v1139, %v1139
        %v1156 = vpack.c.b16 %v1140, %v1140
        %v1157 = vpack.c.b16 %v1141, %v1141
        %v1158 = vpack.c.b16 %v1142, %v1142
        %v1159 = vpack.c.b16 %v1143, %v1143
        %v1160 = vpack.c.b16 %v1144, %v1144
        %v1161 = vpack.c.b16 %v1145, %v1145
        %v1162 = vpack.c.b16 %v1146, %v1146
        %1179 = vst.msk [vmem:[%s315] sm:$0xf] %vm1018, %v1147
        %1180 = vst.msk [vmem:[%s315 + $0x4] sm:$0xf] %vm1018, %v1148
        %1181 = vst.msk [vmem:[%s315 + $0x8] sm:$0xf] %vm1018, %v1149
        %1182 = vst.msk [vmem:[%s315 + $0xc] sm:$0xf] %vm1018, %v1150
        %1183 = vst.msk [vmem:[%s315 + $0x10] sm:$0xf] %vm1018, %v1151
        %1184 = vst.msk [vmem:[%s315 + $0x14] sm:$0xf] %vm1018, %v1152
        %1185 = vst.msk [vmem:[%s315 + $0x18] sm:$0xf] %vm1018, %v1153
        %1186 = vst.msk [vmem:[%s315 + $0x1c] sm:$0xf] %vm1018, %v1154
        %1187 = vst.msk [vmem:[%s315 + $0x20] sm:$0xf] %vm1018, %v1155
        %1188 = vst.msk [vmem:[%s315 + $0x24] sm:$0xf] %vm1018, %v1156
        %1189 = vst.msk [vmem:[%s315 + $0x28] sm:$0xf] %vm1018, %v1157
        %1190 = vst.msk [vmem:[%s315 + $0x2c] sm:$0xf] %vm1018, %v1158
        %1191 = vst.msk [vmem:[%s315 + $0x30] sm:$0xf] %vm1018, %v1159
        %1192 = vst.msk [vmem:[%s315 + $0x34] sm:$0xf] %vm1018, %v1160
        %1193 = vst.msk [vmem:[%s315 + $0x38] sm:$0xf] %vm1018, %v1161
        %1194 = vst.msk [vmem:[%s315 + $0x3c] sm:$0xf] %vm1018, %v1162
        %1195 = vrot.lane.b32.xlu0 %v986, 96
        %v1196 = vpop.permute.xlu0 %1195
        %1197 = vrot.lane.b32.xlu0 %v987, 96
        %v1198 = vpop.permute.xlu0 %1197
        %1199 = vrot.lane.b32.xlu0 %v988, 96
        %v1200 = vpop.permute.xlu0 %1199
        %1201 = vrot.lane.b32.xlu0 %v989, 96
        %v1202 = vpop.permute.xlu0 %1201
        %1203 = vrot.lane.b32.xlu0 %v990, 96
        %v1204 = vpop.permute.xlu0 %1203
        %1205 = vrot.lane.b32.xlu0 %v991, 96
        %v1206 = vpop.permute.xlu0 %1205
        %1207 = vrot.lane.b32.xlu0 %v992, 96
        %v1208 = vpop.permute.xlu0 %1207
        %1209 = vrot.lane.b32.xlu0 %v993, 96
        %v1210 = vpop.permute.xlu0 %1209
        %1211 = vrot.lane.b32.xlu0 %v994, 96
        %v1212 = vpop.permute.xlu0 %1211
        %1213 = vrot.lane.b32.xlu0 %v995, 96
        %v1214 = vpop.permute.xlu0 %1213
        %1215 = vrot.lane.b32.xlu0 %v996, 96
        %v1216 = vpop.permute.xlu0 %1215
        %1217 = vrot.lane.b32.xlu0 %v997, 96
        %v1218 = vpop.permute.xlu0 %1217
        %1219 = vrot.lane.b32.xlu0 %v998, 96
        %v1220 = vpop.permute.xlu0 %1219
        %1221 = vrot.lane.b32.xlu0 %v999, 96
        %v1222 = vpop.permute.xlu0 %1221
        %1223 = vrot.lane.b32.xlu0 %v1000, 96
        %v1224 = vpop.permute.xlu0 %1223
        %1225 = vrot.lane.b32.xlu0 %v1001, 96
        %v1226 = vpop.permute.xlu0 %1225
        %s1243 = scalar_lea.vmem %s303, 64 [#allocation6]
        %1244 = vst.msk [vmem:[%s1243] sm:$0xf] %vm1018, %v1196
        %1245 = vst.msk [vmem:[%s1243 + $0x4] sm:$0xf] %vm1018, %v1198
        %1246 = vst.msk [vmem:[%s1243 + $0x8] sm:$0xf] %vm1018, %v1200
        %1247 = vst.msk [vmem:[%s1243 + $0xc] sm:$0xf] %vm1018, %v1202
        %1248 = vst.msk [vmem:[%s1243 + $0x10] sm:$0xf] %vm1018, %v1204
        %1249 = vst.msk [vmem:[%s1243 + $0x14] sm:$0xf] %vm1018, %v1206
        %1250 = vst.msk [vmem:[%s1243 + $0x18] sm:$0xf] %vm1018, %v1208
        %1251 = vst.msk [vmem:[%s1243 + $0x1c] sm:$0xf] %vm1018, %v1210
        %1252 = vst.msk [vmem:[%s1243 + $0x20] sm:$0xf] %vm1018, %v1212
        %1253 = vst.msk [vmem:[%s1243 + $0x24] sm:$0xf] %vm1018, %v1214
        %1254 = vst.msk [vmem:[%s1243 + $0x28] sm:$0xf] %vm1018, %v1216
        %1255 = vst.msk [vmem:[%s1243 + $0x2c] sm:$0xf] %vm1018, %v1218
        %1256 = vst.msk [vmem:[%s1243 + $0x30] sm:$0xf] %vm1018, %v1220
        %1257 = vst.msk [vmem:[%s1243 + $0x34] sm:$0xf] %vm1018, %v1222
        %1258 = vst.msk [vmem:[%s1243 + $0x38] sm:$0xf] %vm1018, %v1224
        %1259 = vst.msk [vmem:[%s1243 + $0x3c] sm:$0xf] %vm1018, %v1226
        %1260 = vrot.lane.b32.xlu0 %v1067, 96
        %v1261 = vpop.permute.xlu0 %1260
        %1262 = vrot.lane.b32.xlu0 %v1068, 96
        %v1263 = vpop.permute.xlu0 %1262
        %1264 = vrot.lane.b32.xlu0 %v1069, 96
        %v1265 = vpop.permute.xlu0 %1264
        %1266 = vrot.lane.b32.xlu0 %v1070, 96
        %v1267 = vpop.permute.xlu0 %1266
        %1268 = vrot.lane.b32.xlu0 %v1071, 96
        %v1269 = vpop.permute.xlu0 %1268
        %1270 = vrot.lane.b32.xlu0 %v1072, 96
        %v1271 = vpop.permute.xlu0 %1270
        %1272 = vrot.lane.b32.xlu0 %v1073, 96
        %v1273 = vpop.permute.xlu0 %1272
        %1274 = vrot.lane.b32.xlu0 %v1074, 96
        %v1275 = vpop.permute.xlu0 %1274
        %1276 = vrot.lane.b32.xlu0 %v1075, 96
        %v1277 = vpop.permute.xlu0 %1276
        %1278 = vrot.lane.b32.xlu0 %v1076, 96
        %v1279 = vpop.permute.xlu0 %1278
        %1280 = vrot.lane.b32.xlu0 %v1077, 96
        %v1281 = vpop.permute.xlu0 %1280
        %1282 = vrot.lane.b32.xlu0 %v1078, 96
        %v1283 = vpop.permute.xlu0 %1282
        %1284 = vrot.lane.b32.xlu0 %v1079, 96
        %v1285 = vpop.permute.xlu0 %1284
        %1286 = vrot.lane.b32.xlu0 %v1080, 96
        %v1287 = vpop.permute.xlu0 %1286
        %1288 = vrot.lane.b32.xlu0 %v1081, 96
        %v1289 = vpop.permute.xlu0 %1288
        %1290 = vrot.lane.b32.xlu0 %v1082, 96
        %v1291 = vpop.permute.xlu0 %1290
        %s1308 = scalar_lea.vmem %s309, 64 [#allocation7]
        %1309 = vst.msk [vmem:[%s1308] sm:$0xf] %vm1018, %v1261
        %1310 = vst.msk [vmem:[%s1308 + $0x4] sm:$0xf] %vm1018, %v1263
        %1311 = vst.msk [vmem:[%s1308 + $0x8] sm:$0xf] %vm1018, %v1265
        %1312 = vst.msk [vmem:[%s1308 + $0xc] sm:$0xf] %vm1018, %v1267
        %1313 = vst.msk [vmem:[%s1308 + $0x10] sm:$0xf] %vm1018, %v1269
        %1314 = vst.msk [vmem:[%s1308 + $0x14] sm:$0xf] %vm1018, %v1271
        %1315 = vst.msk [vmem:[%s1308 + $0x18] sm:$0xf] %vm1018, %v1273
        %1316 = vst.msk [vmem:[%s1308 + $0x1c] sm:$0xf] %vm1018, %v1275
        %1317 = vst.msk [vmem:[%s1308 + $0x20] sm:$0xf] %vm1018, %v1277
        %1318 = vst.msk [vmem:[%s1308 + $0x24] sm:$0xf] %vm1018, %v1279
        %1319 = vst.msk [vmem:[%s1308 + $0x28] sm:$0xf] %vm1018, %v1281
        %1320 = vst.msk [vmem:[%s1308 + $0x2c] sm:$0xf] %vm1018, %v1283
        %1321 = vst.msk [vmem:[%s1308 + $0x30] sm:$0xf] %vm1018, %v1285
        %1322 = vst.msk [vmem:[%s1308 + $0x34] sm:$0xf] %vm1018, %v1287
        %1323 = vst.msk [vmem:[%s1308 + $0x38] sm:$0xf] %vm1018, %v1289
        %1324 = vst.msk [vmem:[%s1308 + $0x3c] sm:$0xf] %vm1018, %v1291
        %1325 = vrot.lane.b32.xlu0 %v1147, 96
        %v1326 = vpop.permute.xlu0 %1325
        %1327 = vrot.lane.b32.xlu0 %v1148, 96
        %v1328 = vpop.permute.xlu0 %1327
        %1329 = vrot.lane.b32.xlu0 %v1149, 96
        %v1330 = vpop.permute.xlu0 %1329
        %1331 = vrot.lane.b32.xlu0 %v1150, 96
        %v1332 = vpop.permute.xlu0 %1331
        %1333 = vrot.lane.b32.xlu0 %v1151, 96
        %v1334 = vpop.permute.xlu0 %1333
        %1335 = vrot.lane.b32.xlu0 %v1152, 96
        %v1336 = vpop.permute.xlu0 %1335
        %1337 = vrot.lane.b32.xlu0 %v1153, 96
        %v1338 = vpop.permute.xlu0 %1337
        %1339 = vrot.lane.b32.xlu0 %v1154, 96
        %v1340 = vpop.permute.xlu0 %1339
        %1341 = vrot.lane.b32.xlu0 %v1155, 96
        %v1342 = vpop.permute.xlu0 %1341
        %1343 = vrot.lane.b32.xlu0 %v1156, 96
        %v1344 = vpop.permute.xlu0 %1343
        %1345 = vrot.lane.b32.xlu0 %v1157, 96
        %v1346 = vpop.permute.xlu0 %1345
        %1347 = vrot.lane.b32.xlu0 %v1158, 96
        %v1348 = vpop.permute.xlu0 %1347
        %1349 = vrot.lane.b32.xlu0 %v1159, 96
        %v1350 = vpop.permute.xlu0 %1349
        %1351 = vrot.lane.b32.xlu0 %v1160, 96
        %v1352 = vpop.permute.xlu0 %1351
        %1353 = vrot.lane.b32.xlu0 %v1161, 96
        %v1354 = vpop.permute.xlu0 %1353
        %1355 = vrot.lane.b32.xlu0 %v1162, 96
        %v1356 = vpop.permute.xlu0 %1355
        %s1373 = scalar_lea.vmem %s315, 64 [#allocation8]
        %1374 = vst.msk [vmem:[%s1373] sm:$0xf] %vm1018, %v1326
        %1375 = vst.msk [vmem:[%s1373 + $0x4] sm:$0xf] %vm1018, %v1328
        %1376 = vst.msk [vmem:[%s1373 + $0x8] sm:$0xf] %vm1018, %v1330
        %1377 = vst.msk [vmem:[%s1373 + $0xc] sm:$0xf] %vm1018, %v1332
        %1378 = vst.msk [vmem:[%s1373 + $0x10] sm:$0xf] %vm1018, %v1334
        %1379 = vst.msk [vmem:[%s1373 + $0x14] sm:$0xf] %vm1018, %v1336
        %1380 = vst.msk [vmem:[%s1373 + $0x18] sm:$0xf] %vm1018, %v1338
        %1381 = vst.msk [vmem:[%s1373 + $0x1c] sm:$0xf] %vm1018, %v1340
        %1382 = vst.msk [vmem:[%s1373 + $0x20] sm:$0xf] %vm1018, %v1342
        %1383 = vst.msk [vmem:[%s1373 + $0x24] sm:$0xf] %vm1018, %v1344
        %1384 = vst.msk [vmem:[%s1373 + $0x28] sm:$0xf] %vm1018, %v1346
        %1385 = vst.msk [vmem:[%s1373 + $0x2c] sm:$0xf] %vm1018, %v1348
        %1386 = vst.msk [vmem:[%s1373 + $0x30] sm:$0xf] %vm1018, %v1350
        %1387 = vst.msk [vmem:[%s1373 + $0x34] sm:$0xf] %vm1018, %v1352
        %1388 = vst.msk [vmem:[%s1373 + $0x38] sm:$0xf] %vm1018, %v1354
        %1389 = vst.msk [vmem:[%s1373 + $0x3c] sm:$0xf] %vm1018, %v1356
        %1390 = vrot.lane.b32.xlu0 %v986, 64
        %v1391 = vpop.permute.xlu0 %1390
        %1392 = vrot.lane.b32.xlu0 %v987, 64
        %v1393 = vpop.permute.xlu0 %1392
        %1394 = vrot.lane.b32.xlu0 %v988, 64
        %v1395 = vpop.permute.xlu0 %1394
        %1396 = vrot.lane.b32.xlu0 %v989, 64
        %v1397 = vpop.permute.xlu0 %1396
        %1398 = vrot.lane.b32.xlu0 %v990, 64
        %v1399 = vpop.permute.xlu0 %1398
        %1400 = vrot.lane.b32.xlu0 %v991, 64
        %v1401 = vpop.permute.xlu0 %1400
        %1402 = vrot.lane.b32.xlu0 %v992, 64
        %v1403 = vpop.permute.xlu0 %1402
        %1404 = vrot.lane.b32.xlu0 %v993, 64
        %v1405 = vpop.permute.xlu0 %1404
        %1406 = vrot.lane.b32.xlu0 %v994, 64
        %v1407 = vpop.permute.xlu0 %1406
        %1408 = vrot.lane.b32.xlu0 %v995, 64
        %v1409 = vpop.permute.xlu0 %1408
        %1410 = vrot.lane.b32.xlu0 %v996, 64
        %v1411 = vpop.permute.xlu0 %1410
        %1412 = vrot.lane.b32.xlu0 %v997, 64
        %v1413 = vpop.permute.xlu0 %1412
        %1414 = vrot.lane.b32.xlu0 %v998, 64
        %v1415 = vpop.permute.xlu0 %1414
        %1416 = vrot.lane.b32.xlu0 %v999, 64
        %v1417 = vpop.permute.xlu0 %1416
        %1418 = vrot.lane.b32.xlu0 %v1000, 64
        %v1419 = vpop.permute.xlu0 %1418
        %1420 = vrot.lane.b32.xlu0 %v1001, 64
        %v1421 = vpop.permute.xlu0 %1420
        %s1438 = scalar_lea.vmem %s303, 128 [#allocation6]
        %1439 = vst.msk [vmem:[%s1438] sm:$0xf] %vm1018, %v1391
        %1440 = vst.msk [vmem:[%s1438 + $0x4] sm:$0xf] %vm1018, %v1393
        %1441 = vst.msk [vmem:[%s1438 + $0x8] sm:$0xf] %vm1018, %v1395
        %1442 = vst.msk [vmem:[%s1438 + $0xc] sm:$0xf] %vm1018, %v1397
        %1443 = vst.msk [vmem:[%s1438 + $0x10] sm:$0xf] %vm1018, %v1399
        %1444 = vst.msk [vmem:[%s1438 + $0x14] sm:$0xf] %vm1018, %v1401
        %1445 = vst.msk [vmem:[%s1438 + $0x18] sm:$0xf] %vm1018, %v1403
        %1446 = vst.msk [vmem:[%s1438 + $0x1c] sm:$0xf] %vm1018, %v1405
        %1447 = vst.msk [vmem:[%s1438 + $0x20] sm:$0xf] %vm1018, %v1407
        %1448 = vst.msk [vmem:[%s1438 + $0x24] sm:$0xf] %vm1018, %v1409
        %1449 = vst.msk [vmem:[%s1438 + $0x28] sm:$0xf] %vm1018, %v1411
        %1450 = vst.msk [vmem:[%s1438 + $0x2c] sm:$0xf] %vm1018, %v1413
        %1451 = vst.msk [vmem:[%s1438 + $0x30] sm:$0xf] %vm1018, %v1415
        %1452 = vst.msk [vmem:[%s1438 + $0x34] sm:$0xf] %vm1018, %v1417
        %1453 = vst.msk [vmem:[%s1438 + $0x38] sm:$0xf] %vm1018, %v1419
        %1454 = vst.msk [vmem:[%s1438 + $0x3c] sm:$0xf] %vm1018, %v1421
        %1455 = vrot.lane.b32.xlu0 %v1067, 64
        %v1456 = vpop.permute.xlu0 %1455
        %1457 = vrot.lane.b32.xlu0 %v1068, 64
        %v1458 = vpop.permute.xlu0 %1457
        %1459 = vrot.lane.b32.xlu0 %v1069, 64
        %v1460 = vpop.permute.xlu0 %1459
        %1461 = vrot.lane.b32.xlu0 %v1070, 64
        %v1462 = vpop.permute.xlu0 %1461
        %1463 = vrot.lane.b32.xlu0 %v1071, 64
        %v1464 = vpop.permute.xlu0 %1463
        %1465 = vrot.lane.b32.xlu0 %v1072, 64
        %v1466 = vpop.permute.xlu0 %1465
        %1467 = vrot.lane.b32.xlu0 %v1073, 64
        %v1468 = vpop.permute.xlu0 %1467
        %1469 = vrot.lane.b32.xlu0 %v1074, 64
        %v1470 = vpop.permute.xlu0 %1469
        %1471 = vrot.lane.b32.xlu0 %v1075, 64
        %v1472 = vpop.permute.xlu0 %1471
        %1473 = vrot.lane.b32.xlu0 %v1076, 64
        %v1474 = vpop.permute.xlu0 %1473
        %1475 = vrot.lane.b32.xlu0 %v1077, 64
        %v1476 = vpop.permute.xlu0 %1475
        %1477 = vrot.lane.b32.xlu0 %v1078, 64
        %v1478 = vpop.permute.xlu0 %1477
        %1479 = vrot.lane.b32.xlu0 %v1079, 64
        %v1480 = vpop.permute.xlu0 %1479
        %1481 = vrot.lane.b32.xlu0 %v1080, 64
        %v1482 = vpop.permute.xlu0 %1481
        %1483 = vrot.lane.b32.xlu0 %v1081, 64
        %v1484 = vpop.permute.xlu0 %1483
        %1485 = vrot.lane.b32.xlu0 %v1082, 64
        %v1486 = vpop.permute.xlu0 %1485
        %s1503 = scalar_lea.vmem %s309, 128 [#allocation7]
        %1504 = vst.msk [vmem:[%s1503] sm:$0xf] %vm1018, %v1456
        %1505 = vst.msk [vmem:[%s1503 + $0x4] sm:$0xf] %vm1018, %v1458
        %1506 = vst.msk [vmem:[%s1503 + $0x8] sm:$0xf] %vm1018, %v1460
        %1507 = vst.msk [vmem:[%s1503 + $0xc] sm:$0xf] %vm1018, %v1462
        %1508 = vst.msk [vmem:[%s1503 + $0x10] sm:$0xf] %vm1018, %v1464
        %1509 = vst.msk [vmem:[%s1503 + $0x14] sm:$0xf] %vm1018, %v1466
        %1510 = vst.msk [vmem:[%s1503 + $0x18] sm:$0xf] %vm1018, %v1468
        %1511 = vst.msk [vmem:[%s1503 + $0x1c] sm:$0xf] %vm1018, %v1470
        %1512 = vst.msk [vmem:[%s1503 + $0x20] sm:$0xf] %vm1018, %v1472
        %1513 = vst.msk [vmem:[%s1503 + $0x24] sm:$0xf] %vm1018, %v1474
        %1514 = vst.msk [vmem:[%s1503 + $0x28] sm:$0xf] %vm1018, %v1476
        %1515 = vst.msk [vmem:[%s1503 + $0x2c] sm:$0xf] %vm1018, %v1478
        %1516 = vst.msk [vmem:[%s1503 + $0x30] sm:$0xf] %vm1018, %v1480
        %1517 = vst.msk [vmem:[%s1503 + $0x34] sm:$0xf] %vm1018, %v1482
        %1518 = vst.msk [vmem:[%s1503 + $0x38] sm:$0xf] %vm1018, %v1484
        %1519 = vst.msk [vmem:[%s1503 + $0x3c] sm:$0xf] %vm1018, %v1486
        %1520 = vrot.lane.b32.xlu0 %v1147, 64
        %v1521 = vpop.permute.xlu0 %1520
        %1522 = vrot.lane.b32.xlu0 %v1148, 64
        %v1523 = vpop.permute.xlu0 %1522
        %1524 = vrot.lane.b32.xlu0 %v1149, 64
        %v1525 = vpop.permute.xlu0 %1524
        %1526 = vrot.lane.b32.xlu0 %v1150, 64
        %v1527 = vpop.permute.xlu0 %1526
        %1528 = vrot.lane.b32.xlu0 %v1151, 64
        %v1529 = vpop.permute.xlu0 %1528
        %1530 = vrot.lane.b32.xlu0 %v1152, 64
        %v1531 = vpop.permute.xlu0 %1530
        %1532 = vrot.lane.b32.xlu0 %v1153, 64
        %v1533 = vpop.permute.xlu0 %1532
        %1534 = vrot.lane.b32.xlu0 %v1154, 64
        %v1535 = vpop.permute.xlu0 %1534
        %1536 = vrot.lane.b32.xlu0 %v1155, 64
        %v1537 = vpop.permute.xlu0 %1536
        %1538 = vrot.lane.b32.xlu0 %v1156, 64
        %v1539 = vpop.permute.xlu0 %1538
        %1540 = vrot.lane.b32.xlu0 %v1157, 64
        %v1541 = vpop.permute.xlu0 %1540
        %1542 = vrot.lane.b32.xlu0 %v1158, 64
        %v1543 = vpop.permute.xlu0 %1542
        %1544 = vrot.lane.b32.xlu0 %v1159, 64
        %v1545 = vpop.permute.xlu0 %1544
        %1546 = vrot.lane.b32.xlu0 %v1160, 64
        %v1547 = vpop.permute.xlu0 %1546
        %1548 = vrot.lane.b32.xlu0 %v1161, 64
        %v1549 = vpop.permute.xlu0 %1548
        %1550 = vrot.lane.b32.xlu0 %v1162, 64
        %v1551 = vpop.permute.xlu0 %1550
        %s1568 = scalar_lea.vmem %s315, 128 [#allocation8]
        %1569 = vst.msk [vmem:[%s1568] sm:$0xf] %vm1018, %v1521
        %1570 = vst.msk [vmem:[%s1568 + $0x4] sm:$0xf] %vm1018, %v1523
        %1571 = vst.msk [vmem:[%s1568 + $0x8] sm:$0xf] %vm1018, %v1525
        %1572 = vst.msk [vmem:[%s1568 + $0xc] sm:$0xf] %vm1018, %v1527
        %1573 = vst.msk [vmem:[%s1568 + $0x10] sm:$0xf] %vm1018, %v1529
        %1574 = vst.msk [vmem:[%s1568 + $0x14] sm:$0xf] %vm1018, %v1531
        %1575 = vst.msk [vmem:[%s1568 + $0x18] sm:$0xf] %vm1018, %v1533
        %1576 = vst.msk [vmem:[%s1568 + $0x1c] sm:$0xf] %vm1018, %v1535
        %1577 = vst.msk [vmem:[%s1568 + $0x20] sm:$0xf] %vm1018, %v1537
        %1578 = vst.msk [vmem:[%s1568 + $0x24] sm:$0xf] %vm1018, %v1539
        %1579 = vst.msk [vmem:[%s1568 + $0x28] sm:$0xf] %vm1018, %v1541
        %1580 = vst.msk [vmem:[%s1568 + $0x2c] sm:$0xf] %vm1018, %v1543
        %1581 = vst.msk [vmem:[%s1568 + $0x30] sm:$0xf] %vm1018, %v1545
        %1582 = vst.msk [vmem:[%s1568 + $0x34] sm:$0xf] %vm1018, %v1547
        %1583 = vst.msk [vmem:[%s1568 + $0x38] sm:$0xf] %vm1018, %v1549
        %1584 = vst.msk [vmem:[%s1568 + $0x3c] sm:$0xf] %vm1018, %v1551
        %1585 = vrot.lane.b32.xlu0 %v986, 32
        %v1586 = vpop.permute.xlu0 %1585
        %1587 = vrot.lane.b32.xlu0 %v987, 32
        %v1588 = vpop.permute.xlu0 %1587
        %1589 = vrot.lane.b32.xlu0 %v988, 32
        %v1590 = vpop.permute.xlu0 %1589
        %1591 = vrot.lane.b32.xlu0 %v989, 32
        %v1592 = vpop.permute.xlu0 %1591
        %1593 = vrot.lane.b32.xlu0 %v990, 32
        %v1594 = vpop.permute.xlu0 %1593
        %1595 = vrot.lane.b32.xlu0 %v991, 32
        %v1596 = vpop.permute.xlu0 %1595
        %1597 = vrot.lane.b32.xlu0 %v992, 32
        %v1598 = vpop.permute.xlu0 %1597
        %1599 = vrot.lane.b32.xlu0 %v993, 32
        %v1600 = vpop.permute.xlu0 %1599
        %1601 = vrot.lane.b32.xlu0 %v994, 32
        %v1602 = vpop.permute.xlu0 %1601
        %1603 = vrot.lane.b32.xlu0 %v995, 32
        %v1604 = vpop.permute.xlu0 %1603
        %1605 = vrot.lane.b32.xlu0 %v996, 32
        %v1606 = vpop.permute.xlu0 %1605
        %1607 = vrot.lane.b32.xlu0 %v997, 32
        %v1608 = vpop.permute.xlu0 %1607
        %1609 = vrot.lane.b32.xlu0 %v998, 32
        %v1610 = vpop.permute.xlu0 %1609
        %1611 = vrot.lane.b32.xlu0 %v999, 32
        %v1612 = vpop.permute.xlu0 %1611
        %1613 = vrot.lane.b32.xlu0 %v1000, 32
        %v1614 = vpop.permute.xlu0 %1613
        %1615 = vrot.lane.b32.xlu0 %v1001, 32
        %v1616 = vpop.permute.xlu0 %1615
        %s1633 = scalar_lea.vmem %s303, 192 [#allocation6]
        %1634 = vst.msk [vmem:[%s1633] sm:$0xf] %vm1018, %v1586
        %1635 = vst.msk [vmem:[%s1633 + $0x4] sm:$0xf] %vm1018, %v1588
        %1636 = vst.msk [vmem:[%s1633 + $0x8] sm:$0xf] %vm1018, %v1590
        %1637 = vst.msk [vmem:[%s1633 + $0xc] sm:$0xf] %vm1018, %v1592
        %1638 = vst.msk [vmem:[%s1633 + $0x10] sm:$0xf] %vm1018, %v1594
        %1639 = vst.msk [vmem:[%s1633 + $0x14] sm:$0xf] %vm1018, %v1596
        %1640 = vst.msk [vmem:[%s1633 + $0x18] sm:$0xf] %vm1018, %v1598
        %1641 = vst.msk [vmem:[%s1633 + $0x1c] sm:$0xf] %vm1018, %v1600
        %1642 = vst.msk [vmem:[%s1633 + $0x20] sm:$0xf] %vm1018, %v1602
        %1643 = vst.msk [vmem:[%s1633 + $0x24] sm:$0xf] %vm1018, %v1604
        %1644 = vst.msk [vmem:[%s1633 + $0x28] sm:$0xf] %vm1018, %v1606
        %1645 = vst.msk [vmem:[%s1633 + $0x2c] sm:$0xf] %vm1018, %v1608
        %1646 = vst.msk [vmem:[%s1633 + $0x30] sm:$0xf] %vm1018, %v1610
        %1647 = vst.msk [vmem:[%s1633 + $0x34] sm:$0xf] %vm1018, %v1612
        %1648 = vst.msk [vmem:[%s1633 + $0x38] sm:$0xf] %vm1018, %v1614
        %1649 = vst.msk [vmem:[%s1633 + $0x3c] sm:$0xf] %vm1018, %v1616
        %1650 = vrot.lane.b32.xlu0 %v1067, 32
        %v1651 = vpop.permute.xlu0 %1650
        %1652 = vrot.lane.b32.xlu0 %v1068, 32
        %v1653 = vpop.permute.xlu0 %1652
        %1654 = vrot.lane.b32.xlu0 %v1069, 32
        %v1655 = vpop.permute.xlu0 %1654
        %1656 = vrot.lane.b32.xlu0 %v1070, 32
        %v1657 = vpop.permute.xlu0 %1656
        %1658 = vrot.lane.b32.xlu0 %v1071, 32
        %v1659 = vpop.permute.xlu0 %1658
        %1660 = vrot.lane.b32.xlu0 %v1072, 32
        %v1661 = vpop.permute.xlu0 %1660
        %1662 = vrot.lane.b32.xlu0 %v1073, 32
        %v1663 = vpop.permute.xlu0 %1662
        %1664 = vrot.lane.b32.xlu0 %v1074, 32
        %v1665 = vpop.permute.xlu0 %1664
        %1666 = vrot.lane.b32.xlu0 %v1075, 32
        %v1667 = vpop.permute.xlu0 %1666
        %1668 = vrot.lane.b32.xlu0 %v1076, 32
        %v1669 = vpop.permute.xlu0 %1668
        %1670 = vrot.lane.b32.xlu0 %v1077, 32
        %v1671 = vpop.permute.xlu0 %1670
        %1672 = vrot.lane.b32.xlu0 %v1078, 32
        %v1673 = vpop.permute.xlu0 %1672
        %1674 = vrot.lane.b32.xlu0 %v1079, 32
        %v1675 = vpop.permute.xlu0 %1674
        %1676 = vrot.lane.b32.xlu0 %v1080, 32
        %v1677 = vpop.permute.xlu0 %1676
        %1678 = vrot.lane.b32.xlu0 %v1081, 32
        %v1679 = vpop.permute.xlu0 %1678
        %1680 = vrot.lane.b32.xlu0 %v1082, 32
        %v1681 = vpop.permute.xlu0 %1680
        %s1698 = scalar_lea.vmem %s309, 192 [#allocation7]
        %1699 = vst.msk [vmem:[%s1698] sm:$0xf] %vm1018, %v1651
        %1700 = vst.msk [vmem:[%s1698 + $0x4] sm:$0xf] %vm1018, %v1653
        %1701 = vst.msk [vmem:[%s1698 + $0x8] sm:$0xf] %vm1018, %v1655
        %1702 = vst.msk [vmem:[%s1698 + $0xc] sm:$0xf] %vm1018, %v1657
        %1703 = vst.msk [vmem:[%s1698 + $0x10] sm:$0xf] %vm1018, %v1659
        %1704 = vst.msk [vmem:[%s1698 + $0x14] sm:$0xf] %vm1018, %v1661
        %1705 = vst.msk [vmem:[%s1698 + $0x18] sm:$0xf] %vm1018, %v1663
        %1706 = vst.msk [vmem:[%s1698 + $0x1c] sm:$0xf] %vm1018, %v1665
        %1707 = vst.msk [vmem:[%s1698 + $0x20] sm:$0xf] %vm1018, %v1667
        %1708 = vst.msk [vmem:[%s1698 + $0x24] sm:$0xf] %vm1018, %v1669
        %1709 = vst.msk [vmem:[%s1698 + $0x28] sm:$0xf] %vm1018, %v1671
        %1710 = vst.msk [vmem:[%s1698 + $0x2c] sm:$0xf] %vm1018, %v1673
        %1711 = vst.msk [vmem:[%s1698 + $0x30] sm:$0xf] %vm1018, %v1675
        %1712 = vst.msk [vmem:[%s1698 + $0x34] sm:$0xf] %vm1018, %v1677
        %1713 = vst.msk [vmem:[%s1698 + $0x38] sm:$0xf] %vm1018, %v1679
        %1714 = vst.msk [vmem:[%s1698 + $0x3c] sm:$0xf] %vm1018, %v1681
        %1715 = vrot.lane.b32.xlu0 %v1147, 32
        %v1716 = vpop.permute.xlu0 %1715
        %1717 = vrot.lane.b32.xlu0 %v1148, 32
        %v1718 = vpop.permute.xlu0 %1717
        %1719 = vrot.lane.b32.xlu0 %v1149, 32
        %v1720 = vpop.permute.xlu0 %1719
        %1721 = vrot.lane.b32.xlu0 %v1150, 32
        %v1722 = vpop.permute.xlu0 %1721
        %1723 = vrot.lane.b32.xlu0 %v1151, 32
        %v1724 = vpop.permute.xlu0 %1723
        %1725 = vrot.lane.b32.xlu0 %v1152, 32
        %v1726 = vpop.permute.xlu0 %1725
        %1727 = vrot.lane.b32.xlu0 %v1153, 32
        %v1728 = vpop.permute.xlu0 %1727
        %1729 = vrot.lane.b32.xlu0 %v1154, 32
        %v1730 = vpop.permute.xlu0 %1729
        %1731 = vrot.lane.b32.xlu0 %v1155, 32
        %v1732 = vpop.permute.xlu0 %1731
        %1733 = vrot.lane.b32.xlu0 %v1156, 32
        %v1734 = vpop.permute.xlu0 %1733
        %1735 = vrot.lane.b32.xlu0 %v1157, 32
        %v1736 = vpop.permute.xlu0 %1735
        %1737 = vrot.lane.b32.xlu0 %v1158, 32
        %v1738 = vpop.permute.xlu0 %1737
        %1739 = vrot.lane.b32.xlu0 %v1159, 32
        %v1740 = vpop.permute.xlu0 %1739
        %1741 = vrot.lane.b32.xlu0 %v1160, 32
        %v1742 = vpop.permute.xlu0 %1741
        %1743 = vrot.lane.b32.xlu0 %v1161, 32
        %v1744 = vpop.permute.xlu0 %1743
        %1745 = vrot.lane.b32.xlu0 %v1162, 32
        %v1746 = vpop.permute.xlu0 %1745
        %s1763 = scalar_lea.vmem %s315, 192 [#allocation8]
        %1764 = vst.msk [vmem:[%s1763] sm:$0xf] %vm1018, %v1716
        %1765 = vst.msk [vmem:[%s1763 + $0x4] sm:$0xf] %vm1018, %v1718
        %1766 = vst.msk [vmem:[%s1763 + $0x8] sm:$0xf] %vm1018, %v1720
        %1767 = vst.msk [vmem:[%s1763 + $0xc] sm:$0xf] %vm1018, %v1722
        %1768 = vst.msk [vmem:[%s1763 + $0x10] sm:$0xf] %vm1018, %v1724
        %1769 = vst.msk [vmem:[%s1763 + $0x14] sm:$0xf] %vm1018, %v1726
        %1770 = vst.msk [vmem:[%s1763 + $0x18] sm:$0xf] %vm1018, %v1728
        %1771 = vst.msk [vmem:[%s1763 + $0x1c] sm:$0xf] %vm1018, %v1730
        %1772 = vst.msk [vmem:[%s1763 + $0x20] sm:$0xf] %vm1018, %v1732
        %1773 = vst.msk [vmem:[%s1763 + $0x24] sm:$0xf] %vm1018, %v1734
        %1774 = vst.msk [vmem:[%s1763 + $0x28] sm:$0xf] %vm1018, %v1736
        %1775 = vst.msk [vmem:[%s1763 + $0x2c] sm:$0xf] %vm1018, %v1738
        %1776 = vst.msk [vmem:[%s1763 + $0x30] sm:$0xf] %vm1018, %v1740
        %1777 = vst.msk [vmem:[%s1763 + $0x34] sm:$0xf] %vm1018, %v1742
        %1778 = vst.msk [vmem:[%s1763 + $0x38] sm:$0xf] %vm1018, %v1744
        %1779 = vst.msk [vmem:[%s1763 + $0x3c] sm:$0xf] %vm1018, %v1746
        %s1780 = sand.u32 %s135, 1
        %s1781 = sand.u32 %s135, 1
        %s1782 = smul.addr %s1781, 256
        %s1783 = scalar_lea.vmem [#allocation6], %s1782
        %s1784 = sand.u32 %s163, 1
        %s1785 = sand.u32 %s163, 1
        %s1786 = smul.addr %s1785, 256
        %s1787 = scalar_lea.vmem [#allocation7], %s1786
        %s1788 = sand.u32 %s191, 1
        %s1789 = sand.u32 %s191, 1
        %s1790 = smul.addr %s1789, 256
        %s1791 = scalar_lea.vmem [#allocation8], %s1790
        // Predicated region
        $region45: #{tpu_custom_call.1} parent=35 // pred_check
          %p1792 = pneg %p145
        $region46: #{tpu_custom_call.1} parent=35 // pred_check_branch
          %1794 = sbr.rel (%p1792) target = $region48
        $region47: #{tpu_custom_call.1} parent=35 // pred_region
          %s1795 = smul.u32 16, %s27
          %s1796 = smul.addr %s26, 128
          %s1797 = sadd.s32 %s1795, %s1796
          %s1798 = smul.addr %s1797, 4
          %s1799 = scalar_lea.vmem %s4, %s1798
          // Predicated region
          $region49: #{tpu_custom_call.1} parent=47 // pred_check
            _
          $region50: #{tpu_custom_call.1} parent=47 // pred_check_branch
            %1801 = sbr.rel (0) target = $region52
          $region51: #{tpu_custom_call.1} parent=47 // pred_region
            // Predicated region
            $region53: #{tpu_custom_call.1} parent=51 // pred_check
              _
            $region54: #{tpu_custom_call.1} parent=51 // pred_check_branch
              %1803 = sbr.rel target = $region56
            $region55: #{tpu_custom_call.1} parent=51 // pred_region
              // Predicated region
              $region68: #{tpu_custom_call.1} parent=55 // pred_check
                _
              $region69: #{tpu_custom_call.1} parent=55 // pred_check_branch
                %1944 = sbr.rel (0) target = $region71
              $region70: #{tpu_custom_call.1} parent=55 // pred_region
                loop: start=0, step=1, limit=1
                $region72: #{tpu_custom_call.1} parent=70 // loop_pre_header
                  _
                $region73: #{tpu_custom_call.1} parent=70 // loop_header
                  %s1946 = sphi 0, %s1950
                  %p1947 = scmp.ge.s32.totalorder %s1946, 1
                  %s1951 = sphi %s1783, %s1783
                  %s1952 = sphi %s1799, %s1799
                $region74: #{tpu_custom_call.1} parent=70 // loop_header_branch
                  %1949 = sbr.rel (%p1947) target = $region78
                $region75: #{tpu_custom_call.1} parent=70 // loop_body
                  _
                $region76: #{tpu_custom_call.1} parent=70 // loop_footer
                  %s1950 = sadd.s32 1, %s1946
                $region77: #{tpu_custom_call.1} parent=70 // loop_footer_branch
                  %1945 = sbr.rel target = $region73
                $region78: #{tpu_custom_call.1} parent=70 // loop_exit
                  _
                loop: start=0, step=1, limit=1
                $region79: #{tpu_custom_call.1} parent=70 // loop_pre_header
                  _
                $region80: #{tpu_custom_call.1} parent=70 // loop_header
                  %s1955 = sphi 0, %s1959
                  %p1956 = scmp.ge.s32.totalorder %s1955, 1
                  %s1960 = sphi %s1783, %s1783
                  %s1961 = sphi %s1799, %s1799
                $region81: #{tpu_custom_call.1} parent=70 // loop_header_branch
                  %1958 = sbr.rel (%p1956) target = $region85
                $region82: #{tpu_custom_call.1} parent=70 // loop_body
                  %v1962 = vld [vmem:[%s1960] sm:$0xf]
                  %1963 = vst [vmem:[%s1961] sm:$0xf] %v1962
                  %v1964 = vld [vmem:[%s1960 + $0x4] sm:$0xf]
                  %1965 = vst [vmem:[%s1961 + $0x4] sm:$0xf] %v1964
                  %v1966 = vld [vmem:[%s1960 + $0x8] sm:$0xf]
                  %1967 = vst [vmem:[%s1961 + $0x8] sm:$0xf] %v1966
                  %v1968 = vld [vmem:[%s1960 + $0xc] sm:$0xf]
                  %1969 = vst [vmem:[%s1961 + $0xc] sm:$0xf] %v1968
                  %v1970 = vld [vmem:[%s1960 + $0x10] sm:$0xf]
                  %1971 = vst [vmem:[%s1961 + $0x10] sm:$0xf] %v1970
                  %v1972 = vld [vmem:[%s1960 + $0x14] sm:$0xf]
                  %1973 = vst [vmem:[%s1961 + $0x14] sm:$0xf] %v1972
                  %v1974 = vld [vmem:[%s1960 + $0x18] sm:$0xf]
                  %1975 = vst [vmem:[%s1961 + $0x18] sm:$0xf] %v1974
                  %v1976 = vld [vmem:[%s1960 + $0x1c] sm:$0xf]
                  %1977 = vst [vmem:[%s1961 + $0x1c] sm:$0xf] %v1976
                  %v1978 = vld [vmem:[%s1960 + $0x20] sm:$0xf]
                  %1979 = vst [vmem:[%s1961 + $0x20] sm:$0xf] %v1978
                  %v1980 = vld [vmem:[%s1960 + $0x24] sm:$0xf]
                  %1981 = vst [vmem:[%s1961 + $0x24] sm:$0xf] %v1980
                  %v1982 = vld [vmem:[%s1960 + $0x28] sm:$0xf]
                  %1983 = vst [vmem:[%s1961 + $0x28] sm:$0xf] %v1982
                  %v1984 = vld [vmem:[%s1960 + $0x2c] sm:$0xf]
                  %1985 = vst [vmem:[%s1961 + $0x2c] sm:$0xf] %v1984
                  %v1986 = vld [vmem:[%s1960 + $0x30] sm:$0xf]
                  %1987 = vst [vmem:[%s1961 + $0x30] sm:$0xf] %v1986
                  %v1988 = vld [vmem:[%s1960 + $0x34] sm:$0xf]
                  %1989 = vst [vmem:[%s1961 + $0x34] sm:$0xf] %v1988
                  %v1990 = vld [vmem:[%s1960 + $0x38] sm:$0xf]
                  %1991 = vst [vmem:[%s1961 + $0x38] sm:$0xf] %v1990
                  %v1992 = vld [vmem:[%s1960 + $0x3c] sm:$0xf]
                  %1993 = vst [vmem:[%s1961 + $0x3c] sm:$0xf] %v1992
                  %v1994 = vld [vmem:[%s1960 + $0x40] sm:$0xf]
                  %1995 = vst [vmem:[%s1961 + $0x80] sm:$0xf] %v1994
                  %v1996 = vld [vmem:[%s1960 + $0x44] sm:$0xf]
                  %1997 = vst [vmem:[%s1961 + $0x84] sm:$0xf] %v1996
                  %v1998 = vld [vmem:[%s1960 + $0x48] sm:$0xf]
                  %1999 = vst [vmem:[%s1961 + $0x88] sm:$0xf] %v1998
                  %v2000 = vld [vmem:[%s1960 + $0x4c] sm:$0xf]
                  %2001 = vst [vmem:[%s1961 + $0x8c] sm:$0xf] %v2000
                  %v2002 = vld [vmem:[%s1960 + $0x50] sm:$0xf]
                  %2003 = vst [vmem:[%s1961 + $0x90] sm:$0xf] %v2002
                  %v2004 = vld [vmem:[%s1960 + $0x54] sm:$0xf]
                  %2005 = vst [vmem:[%s1961 + $0x94] sm:$0xf] %v2004
                  %v2006 = vld [vmem:[%s1960 + $0x58] sm:$0xf]
                  %2007 = vst [vmem:[%s1961 + $0x98] sm:$0xf] %v2006
                  %v2008 = vld [vmem:[%s1960 + $0x5c] sm:$0xf]
                  %2009 = vst [vmem:[%s1961 + $0x9c] sm:$0xf] %v2008
                  %v2010 = vld [vmem:[%s1960 + $0x60] sm:$0xf]
                  %2011 = vst [vmem:[%s1961 + $0xa0] sm:$0xf] %v2010
                  %v2012 = vld [vmem:[%s1960 + $0x64] sm:$0xf]
                  %2013 = vst [vmem:[%s1961 + $0xa4] sm:$0xf] %v2012
                  %v2014 = vld [vmem:[%s1960 + $0x68] sm:$0xf]
                  %2015 = vst [vmem:[%s1961 + $0xa8] sm:$0xf] %v2014
                  %v2016 = vld [vmem:[%s1960 + $0x6c] sm:$0xf]
                  %2017 = vst [vmem:[%s1961 + $0xac] sm:$0xf] %v2016
                  %v2018 = vld [vmem:[%s1960 + $0x70] sm:$0xf]
                  %2019 = vst [vmem:[%s1961 + $0xb0] sm:$0xf] %v2018
                  %v2020 = vld [vmem:[%s1960 + $0x74] sm:$0xf]
                  %2021 = vst [vmem:[%s1961 + $0xb4] sm:$0xf] %v2020
                  %v2022 = vld [vmem:[%s1960 + $0x78] sm:$0xf]
                  %2023 = vst [vmem:[%s1961 + $0xb8] sm:$0xf] %v2022
                  %v2024 = vld [vmem:[%s1960 + $0x7c] sm:$0xf]
                  %2025 = vst [vmem:[%s1961 + $0xbc] sm:$0xf] %v2024
                  %v2026 = vld [vmem:[%s1960 + $0x80] sm:$0xf]
                  %2027 = vst [vmem:[%s1961 + $0x100] sm:$0xf] %v2026
                  %v2028 = vld [vmem:[%s1960 + $0x84] sm:$0xf]
                  %2029 = vst [vmem:[%s1961 + $0x104] sm:$0xf] %v2028
                  %v2030 = vld [vmem:[%s1960 + $0x88] sm:$0xf]
                  %2031 = vst [vmem:[%s1961 + $0x108] sm:$0xf] %v2030
                  %v2032 = vld [vmem:[%s1960 + $0x8c] sm:$0xf]
                  %2033 = vst [vmem:[%s1961 + $0x10c] sm:$0xf] %v2032
                  %v2034 = vld [vmem:[%s1960 + $0x90] sm:$0xf]
                  %2035 = vst [vmem:[%s1961 + $0x110] sm:$0xf] %v2034
                  %v2036 = vld [vmem:[%s1960 + $0x94] sm:$0xf]
                  %2037 = vst [vmem:[%s1961 + $0x114] sm:$0xf] %v2036
                  %v2038 = vld [vmem:[%s1960 + $0x98] sm:$0xf]
                  %2039 = vst [vmem:[%s1961 + $0x118] sm:$0xf] %v2038
                  %v2040 = vld [vmem:[%s1960 + $0x9c] sm:$0xf]
                  %2041 = vst [vmem:[%s1961 + $0x11c] sm:$0xf] %v2040
                  %v2042 = vld [vmem:[%s1960 + $0xa0] sm:$0xf]
                  %2043 = vst [vmem:[%s1961 + $0x120] sm:$0xf] %v2042
                  %v2044 = vld [vmem:[%s1960 + $0xa4] sm:$0xf]
                  %2045 = vst [vmem:[%s1961 + $0x124] sm:$0xf] %v2044
                  %v2046 = vld [vmem:[%s1960 + $0xa8] sm:$0xf]
                  %2047 = vst [vmem:[%s1961 + $0x128] sm:$0xf] %v2046
                  %v2048 = vld [vmem:[%s1960 + $0xac] sm:$0xf]
                  %2049 = vst [vmem:[%s1961 + $0x12c] sm:$0xf] %v2048
                  %v2050 = vld [vmem:[%s1960 + $0xb0] sm:$0xf]
                  %2051 = vst [vmem:[%s1961 + $0x130] sm:$0xf] %v2050
                  %v2052 = vld [vmem:[%s1960 + $0xb4] sm:$0xf]
                  %2053 = vst [vmem:[%s1961 + $0x134] sm:$0xf] %v2052
                  %v2054 = vld [vmem:[%s1960 + $0xb8] sm:$0xf]
                  %2055 = vst [vmem:[%s1961 + $0x138] sm:$0xf] %v2054
                  %v2056 = vld [vmem:[%s1960 + $0xbc] sm:$0xf]
                  %2057 = vst [vmem:[%s1961 + $0x13c] sm:$0xf] %v2056
                  %v2058 = vld [vmem:[%s1960 + $0xc0] sm:$0xf]
                  %2059 = vst [vmem:[%s1961 + $0x180] sm:$0xf] %v2058
                  %v2060 = vld [vmem:[%s1960 + $0xc4] sm:$0xf]
                  %2061 = vst [vmem:[%s1961 + $0x184] sm:$0xf] %v2060
                  %v2062 = vld [vmem:[%s1960 + $0xc8] sm:$0xf]
                  %2063 = vst [vmem:[%s1961 + $0x188] sm:$0xf] %v2062
                  %v2064 = vld [vmem:[%s1960 + $0xcc] sm:$0xf]
                  %2065 = vst [vmem:[%s1961 + $0x18c] sm:$0xf] %v2064
                  %v2066 = vld [vmem:[%s1960 + $0xd0] sm:$0xf]
                  %2067 = vst [vmem:[%s1961 + $0x190] sm:$0xf] %v2066
                  %v2068 = vld [vmem:[%s1960 + $0xd4] sm:$0xf]
                  %2069 = vst [vmem:[%s1961 + $0x194] sm:$0xf] %v2068
                  %v2070 = vld [vmem:[%s1960 + $0xd8] sm:$0xf]
                  %2071 = vst [vmem:[%s1961 + $0x198] sm:$0xf] %v2070
                  %v2072 = vld [vmem:[%s1960 + $0xdc] sm:$0xf]
                  %2073 = vst [vmem:[%s1961 + $0x19c] sm:$0xf] %v2072
                  %v2074 = vld [vmem:[%s1960 + $0xe0] sm:$0xf]
                  %2075 = vst [vmem:[%s1961 + $0x1a0] sm:$0xf] %v2074
                  %v2076 = vld [vmem:[%s1960 + $0xe4] sm:$0xf]
                  %2077 = vst [vmem:[%s1961 + $0x1a4] sm:$0xf] %v2076
                  %v2078 = vld [vmem:[%s1960 + $0xe8] sm:$0xf]
                  %2079 = vst [vmem:[%s1961 + $0x1a8] sm:$0xf] %v2078
                  %v2080 = vld [vmem:[%s1960 + $0xec] sm:$0xf]
                  %2081 = vst [vmem:[%s1961 + $0x1ac] sm:$0xf] %v2080
                  %v2082 = vld [vmem:[%s1960 + $0xf0] sm:$0xf]
                  %2083 = vst [vmem:[%s1961 + $0x1b0] sm:$0xf] %v2082
                  %v2084 = vld [vmem:[%s1960 + $0xf4] sm:$0xf]
                  %2085 = vst [vmem:[%s1961 + $0x1b4] sm:$0xf] %v2084
                  %v2086 = vld [vmem:[%s1960 + $0xf8] sm:$0xf]
                  %2087 = vst [vmem:[%s1961 + $0x1b8] sm:$0xf] %v2086
                  %v2088 = vld [vmem:[%s1960 + $0xfc] sm:$0xf]
                  %2089 = vst [vmem:[%s1961 + $0x1bc] sm:$0xf] %v2088
                $region83: #{tpu_custom_call.1} parent=70 // loop_footer
                  %s1959 = sadd.s32 1, %s1955
                $region84: #{tpu_custom_call.1} parent=70 // loop_footer_branch
                  %1954 = sbr.rel target = $region80
                $region85: #{tpu_custom_call.1} parent=70 // loop_exit
                  _
              $region71: #{tpu_custom_call.1} parent=55 // pred_fallthru
                _
            $region56: #{tpu_custom_call.1} parent=51 // pred_fallthru
              _
            // Predicated region
            $region57: #{tpu_custom_call.1} parent=51 // pred_check
              _
            $region58: #{tpu_custom_call.1} parent=51 // pred_check_branch
              %1805 = sbr.rel (0) target = $region60
            $region59: #{tpu_custom_call.1} parent=51 // pred_region
              loop: start=0, step=1, limit=1
              $region61: #{tpu_custom_call.1} parent=59 // loop_pre_header
                _
              $region62: #{tpu_custom_call.1} parent=59 // loop_header
                %s1808 = sphi 0, %s1812
                %p1809 = scmp.ge.s32.totalorder %s1808, 1
                %s1813 = sphi %s1783, %s1783
                %s1814 = sphi %s1799, %s1799
              $region63: #{tpu_custom_call.1} parent=59 // loop_header_branch
                %1811 = sbr.rel (%p1809) target = $region67
              $region64: #{tpu_custom_call.1} parent=59 // loop_body
                %v1815 = vld [vmem:[%s1813] sm:$0xf]
                %1816 = vst [vmem:[%s1814] sm:$0xf] %v1815
                %v1817 = vld [vmem:[%s1813 + $0x4] sm:$0xf]
                %1818 = vst [vmem:[%s1814 + $0x4] sm:$0xf] %v1817
                %v1819 = vld [vmem:[%s1813 + $0x8] sm:$0xf]
                %1820 = vst [vmem:[%s1814 + $0x8] sm:$0xf] %v1819
                %v1821 = vld [vmem:[%s1813 + $0xc] sm:$0xf]
                %1822 = vst [vmem:[%s1814 + $0xc] sm:$0xf] %v1821
                %v1823 = vld [vmem:[%s1813 + $0x10] sm:$0xf]
                %1824 = vst [vmem:[%s1814 + $0x10] sm:$0xf] %v1823
                %v1825 = vld [vmem:[%s1813 + $0x14] sm:$0xf]
                %1826 = vst [vmem:[%s1814 + $0x14] sm:$0xf] %v1825
                %v1827 = vld [vmem:[%s1813 + $0x18] sm:$0xf]
                %1828 = vst [vmem:[%s1814 + $0x18] sm:$0xf] %v1827
                %v1829 = vld [vmem:[%s1813 + $0x1c] sm:$0xf]
                %1830 = vst [vmem:[%s1814 + $0x1c] sm:$0xf] %v1829
                %v1831 = vld [vmem:[%s1813 + $0x20] sm:$0xf]
                %1832 = vst [vmem:[%s1814 + $0x20] sm:$0xf] %v1831
                %v1833 = vld [vmem:[%s1813 + $0x24] sm:$0xf]
                %1834 = vst [vmem:[%s1814 + $0x24] sm:$0xf] %v1833
                %v1835 = vld [vmem:[%s1813 + $0x28] sm:$0xf]
                %1836 = vst [vmem:[%s1814 + $0x28] sm:$0xf] %v1835
                %v1837 = vld [vmem:[%s1813 + $0x2c] sm:$0xf]
                %1838 = vst [vmem:[%s1814 + $0x2c] sm:$0xf] %v1837
                %v1839 = vld [vmem:[%s1813 + $0x30] sm:$0xf]
                %1840 = vst [vmem:[%s1814 + $0x30] sm:$0xf] %v1839
                %v1841 = vld [vmem:[%s1813 + $0x34] sm:$0xf]
                %1842 = vst [vmem:[%s1814 + $0x34] sm:$0xf] %v1841
                %v1843 = vld [vmem:[%s1813 + $0x38] sm:$0xf]
                %1844 = vst [vmem:[%s1814 + $0x38] sm:$0xf] %v1843
                %v1845 = vld [vmem:[%s1813 + $0x3c] sm:$0xf]
                %1846 = vst [vmem:[%s1814 + $0x3c] sm:$0xf] %v1845
                %v1847 = vld [vmem:[%s1813 + $0x40] sm:$0xf]
                %1848 = vst [vmem:[%s1814 + $0x80] sm:$0xf] %v1847
                %v1849 = vld [vmem:[%s1813 + $0x44] sm:$0xf]
                %1850 = vst [vmem:[%s1814 + $0x84] sm:$0xf] %v1849
                %v1851 = vld [vmem:[%s1813 + $0x48] sm:$0xf]
                %1852 = vst [vmem:[%s1814 + $0x88] sm:$0xf] %v1851
                %v1853 = vld [vmem:[%s1813 + $0x4c] sm:$0xf]
                %1854 = vst [vmem:[%s1814 + $0x8c] sm:$0xf] %v1853
                %v1855 = vld [vmem:[%s1813 + $0x50] sm:$0xf]
                %1856 = vst [vmem:[%s1814 + $0x90] sm:$0xf] %v1855
                %v1857 = vld [vmem:[%s1813 + $0x54] sm:$0xf]
                %1858 = vst [vmem:[%s1814 + $0x94] sm:$0xf] %v1857
                %v1859 = vld [vmem:[%s1813 + $0x58] sm:$0xf]
                %1860 = vst [vmem:[%s1814 + $0x98] sm:$0xf] %v1859
                %v1861 = vld [vmem:[%s1813 + $0x5c] sm:$0xf]
                %1862 = vst [vmem:[%s1814 + $0x9c] sm:$0xf] %v1861
                %v1863 = vld [vmem:[%s1813 + $0x60] sm:$0xf]
                %1864 = vst [vmem:[%s1814 + $0xa0] sm:$0xf] %v1863
                %v1865 = vld [vmem:[%s1813 + $0x64] sm:$0xf]
                %1866 = vst [vmem:[%s1814 + $0xa4] sm:$0xf] %v1865
                %v1867 = vld [vmem:[%s1813 + $0x68] sm:$0xf]
                %1868 = vst [vmem:[%s1814 + $0xa8] sm:$0xf] %v1867
                %v1869 = vld [vmem:[%s1813 + $0x6c] sm:$0xf]
                %1870 = vst [vmem:[%s1814 + $0xac] sm:$0xf] %v1869
                %v1871 = vld [vmem:[%s1813 + $0x70] sm:$0xf]
                %1872 = vst [vmem:[%s1814 + $0xb0] sm:$0xf] %v1871
                %v1873 = vld [vmem:[%s1813 + $0x74] sm:$0xf]
                %1874 = vst [vmem:[%s1814 + $0xb4] sm:$0xf] %v1873
                %v1875 = vld [vmem:[%s1813 + $0x78] sm:$0xf]
                %1876 = vst [vmem:[%s1814 + $0xb8] sm:$0xf] %v1875
                %v1877 = vld [vmem:[%s1813 + $0x7c] sm:$0xf]
                %1878 = vst [vmem:[%s1814 + $0xbc] sm:$0xf] %v1877
                %v1879 = vld [vmem:[%s1813 + $0x80] sm:$0xf]
                %1880 = vst [vmem:[%s1814 + $0x100] sm:$0xf] %v1879
                %v1881 = vld [vmem:[%s1813 + $0x84] sm:$0xf]
                %1882 = vst [vmem:[%s1814 + $0x104] sm:$0xf] %v1881
                %v1883 = vld [vmem:[%s1813 + $0x88] sm:$0xf]
                %1884 = vst [vmem:[%s1814 + $0x108] sm:$0xf] %v1883
                %v1885 = vld [vmem:[%s1813 + $0x8c] sm:$0xf]
                %1886 = vst [vmem:[%s1814 + $0x10c] sm:$0xf] %v1885
                %v1887 = vld [vmem:[%s1813 + $0x90] sm:$0xf]
                %1888 = vst [vmem:[%s1814 + $0x110] sm:$0xf] %v1887
                %v1889 = vld [vmem:[%s1813 + $0x94] sm:$0xf]
                %1890 = vst [vmem:[%s1814 + $0x114] sm:$0xf] %v1889
                %v1891 = vld [vmem:[%s1813 + $0x98] sm:$0xf]
                %1892 = vst [vmem:[%s1814 + $0x118] sm:$0xf] %v1891
                %v1893 = vld [vmem:[%s1813 + $0x9c] sm:$0xf]
                %1894 = vst [vmem:[%s1814 + $0x11c] sm:$0xf] %v1893
                %v1895 = vld [vmem:[%s1813 + $0xa0] sm:$0xf]
                %1896 = vst [vmem:[%s1814 + $0x120] sm:$0xf] %v1895
                %v1897 = vld [vmem:[%s1813 + $0xa4] sm:$0xf]
                %1898 = vst [vmem:[%s1814 + $0x124] sm:$0xf] %v1897
                %v1899 = vld [vmem:[%s1813 + $0xa8] sm:$0xf]
                %1900 = vst [vmem:[%s1814 + $0x128] sm:$0xf] %v1899
                %v1901 = vld [vmem:[%s1813 + $0xac] sm:$0xf]
                %1902 = vst [vmem:[%s1814 + $0x12c] sm:$0xf] %v1901
                %v1903 = vld [vmem:[%s1813 + $0xb0] sm:$0xf]
                %1904 = vst [vmem:[%s1814 + $0x130] sm:$0xf] %v1903
                %v1905 = vld [vmem:[%s1813 + $0xb4] sm:$0xf]
                %1906 = vst [vmem:[%s1814 + $0x134] sm:$0xf] %v1905
                %v1907 = vld [vmem:[%s1813 + $0xb8] sm:$0xf]
                %1908 = vst [vmem:[%s1814 + $0x138] sm:$0xf] %v1907
                %v1909 = vld [vmem:[%s1813 + $0xbc] sm:$0xf]
                %1910 = vst [vmem:[%s1814 + $0x13c] sm:$0xf] %v1909
                %v1911 = vld [vmem:[%s1813 + $0xc0] sm:$0xf]
                %1912 = vst [vmem:[%s1814 + $0x180] sm:$0xf] %v1911
                %v1913 = vld [vmem:[%s1813 + $0xc4] sm:$0xf]
                %1914 = vst [vmem:[%s1814 + $0x184] sm:$0xf] %v1913
                %v1915 = vld [vmem:[%s1813 + $0xc8] sm:$0xf]
                %1916 = vst [vmem:[%s1814 + $0x188] sm:$0xf] %v1915
                %v1917 = vld [vmem:[%s1813 + $0xcc] sm:$0xf]
                %1918 = vst [vmem:[%s1814 + $0x18c] sm:$0xf] %v1917
                %v1919 = vld [vmem:[%s1813 + $0xd0] sm:$0xf]
                %1920 = vst [vmem:[%s1814 + $0x190] sm:$0xf] %v1919
                %v1921 = vld [vmem:[%s1813 + $0xd4] sm:$0xf]
                %1922 = vst [vmem:[%s1814 + $0x194] sm:$0xf] %v1921
                %v1923 = vld [vmem:[%s1813 + $0xd8] sm:$0xf]
                %1924 = vst [vmem:[%s1814 + $0x198] sm:$0xf] %v1923
                %v1925 = vld [vmem:[%s1813 + $0xdc] sm:$0xf]
                %1926 = vst [vmem:[%s1814 + $0x19c] sm:$0xf] %v1925
                %v1927 = vld [vmem:[%s1813 + $0xe0] sm:$0xf]
                %1928 = vst [vmem:[%s1814 + $0x1a0] sm:$0xf] %v1927
                %v1929 = vld [vmem:[%s1813 + $0xe4] sm:$0xf]
                %1930 = vst [vmem:[%s1814 + $0x1a4] sm:$0xf] %v1929
                %v1931 = vld [vmem:[%s1813 + $0xe8] sm:$0xf]
                %1932 = vst [vmem:[%s1814 + $0x1a8] sm:$0xf] %v1931
                %v1933 = vld [vmem:[%s1813 + $0xec] sm:$0xf]
                %1934 = vst [vmem:[%s1814 + $0x1ac] sm:$0xf] %v1933
                %v1935 = vld [vmem:[%s1813 + $0xf0] sm:$0xf]
                %1936 = vst [vmem:[%s1814 + $0x1b0] sm:$0xf] %v1935
                %v1937 = vld [vmem:[%s1813 + $0xf4] sm:$0xf]
                %1938 = vst [vmem:[%s1814 + $0x1b4] sm:$0xf] %v1937
                %v1939 = vld [vmem:[%s1813 + $0xf8] sm:$0xf]
                %1940 = vst [vmem:[%s1814 + $0x1b8] sm:$0xf] %v1939
                %v1941 = vld [vmem:[%s1813 + $0xfc] sm:$0xf]
                %1942 = vst [vmem:[%s1814 + $0x1bc] sm:$0xf] %v1941
              $region65: #{tpu_custom_call.1} parent=59 // loop_footer
                %s1812 = sadd.s32 1, %s1808
              $region66: #{tpu_custom_call.1} parent=59 // loop_footer_branch
                %1807 = sbr.rel target = $region62
              $region67: #{tpu_custom_call.1} parent=59 // loop_exit
                _
            $region60: #{tpu_custom_call.1} parent=51 // pred_fallthru
              _
          $region52: #{tpu_custom_call.1} parent=47 // pred_fallthru
            _
          %2090 = vnop
        $region48: #{tpu_custom_call.1} parent=35 // pred_fallthru
          _
        // Predicated region
        $region86: #{tpu_custom_call.1} parent=35 // pred_check
          %p2091 = pneg %p173
        $region87: #{tpu_custom_call.1} parent=35 // pred_check_branch
          %2093 = sbr.rel (%p2091) target = $region89
        $region88: #{tpu_custom_call.1} parent=35 // pred_region
          %s2094 = smul.u32 16, %s27
          %s2095 = smul.addr %s26, 128
          %s2096 = sadd.s32 %s2094, %s2095
          %s2097 = smul.addr %s2096, 4
          %s2098 = scalar_lea.vmem %s5, %s2097
          // Predicated region
          $region90: #{tpu_custom_call.1} parent=88 // pred_check
            _
          $region91: #{tpu_custom_call.1} parent=88 // pred_check_branch
            %2100 = sbr.rel (0) target = $region93
          $region92: #{tpu_custom_call.1} parent=88 // pred_region
            // Predicated region
            $region94: #{tpu_custom_call.1} parent=92 // pred_check
              _
            $region95: #{tpu_custom_call.1} parent=92 // pred_check_branch
              %2102 = sbr.rel target = $region97
            $region96: #{tpu_custom_call.1} parent=92 // pred_region
              // Predicated region
              $region109: #{tpu_custom_call.1} parent=96 // pred_check
                _
              $region110: #{tpu_custom_call.1} parent=96 // pred_check_branch
                %2243 = sbr.rel (0) target = $region112
              $region111: #{tpu_custom_call.1} parent=96 // pred_region
                loop: start=0, step=1, limit=1
                $region113: #{tpu_custom_call.1} parent=111 // loop_pre_header
                  _
                $region114: #{tpu_custom_call.1} parent=111 // loop_header
                  %s2245 = sphi 0, %s2249
                  %p2246 = scmp.ge.s32.totalorder %s2245, 1
                  %s2250 = sphi %s1787, %s1787
                  %s2251 = sphi %s2098, %s2098
                $region115: #{tpu_custom_call.1} parent=111 // loop_header_branch
                  %2248 = sbr.rel (%p2246) target = $region119
                $region116: #{tpu_custom_call.1} parent=111 // loop_body
                  _
                $region117: #{tpu_custom_call.1} parent=111 // loop_footer
                  %s2249 = sadd.s32 1, %s2245
                $region118: #{tpu_custom_call.1} parent=111 // loop_footer_branch
                  %2244 = sbr.rel target = $region114
                $region119: #{tpu_custom_call.1} parent=111 // loop_exit
                  _
                loop: start=0, step=1, limit=1
                $region120: #{tpu_custom_call.1} parent=111 // loop_pre_header
                  _
                $region121: #{tpu_custom_call.1} parent=111 // loop_header
                  %s2254 = sphi 0, %s2258
                  %p2255 = scmp.ge.s32.totalorder %s2254, 1
                  %s2259 = sphi %s1787, %s1787
                  %s2260 = sphi %s2098, %s2098
                $region122: #{tpu_custom_call.1} parent=111 // loop_header_branch
                  %2257 = sbr.rel (%p2255) target = $region126
                $region123: #{tpu_custom_call.1} parent=111 // loop_body
                  %v2261 = vld [vmem:[%s2259] sm:$0xf]
                  %2262 = vst [vmem:[%s2260] sm:$0xf] %v2261
                  %v2263 = vld [vmem:[%s2259 + $0x4] sm:$0xf]
                  %2264 = vst [vmem:[%s2260 + $0x4] sm:$0xf] %v2263
                  %v2265 = vld [vmem:[%s2259 + $0x8] sm:$0xf]
                  %2266 = vst [vmem:[%s2260 + $0x8] sm:$0xf] %v2265
                  %v2267 = vld [vmem:[%s2259 + $0xc] sm:$0xf]
                  %2268 = vst [vmem:[%s2260 + $0xc] sm:$0xf] %v2267
                  %v2269 = vld [vmem:[%s2259 + $0x10] sm:$0xf]
                  %2270 = vst [vmem:[%s2260 + $0x10] sm:$0xf] %v2269
                  %v2271 = vld [vmem:[%s2259 + $0x14] sm:$0xf]
                  %2272 = vst [vmem:[%s2260 + $0x14] sm:$0xf] %v2271
                  %v2273 = vld [vmem:[%s2259 + $0x18] sm:$0xf]
                  %2274 = vst [vmem:[%s2260 + $0x18] sm:$0xf] %v2273
                  %v2275 = vld [vmem:[%s2259 + $0x1c] sm:$0xf]
                  %2276 = vst [vmem:[%s2260 + $0x1c] sm:$0xf] %v2275
                  %v2277 = vld [vmem:[%s2259 + $0x20] sm:$0xf]
                  %2278 = vst [vmem:[%s2260 + $0x20] sm:$0xf] %v2277
                  %v2279 = vld [vmem:[%s2259 + $0x24] sm:$0xf]
                  %2280 = vst [vmem:[%s2260 + $0x24] sm:$0xf] %v2279
                  %v2281 = vld [vmem:[%s2259 + $0x28] sm:$0xf]
                  %2282 = vst [vmem:[%s2260 + $0x28] sm:$0xf] %v2281
                  %v2283 = vld [vmem:[%s2259 + $0x2c] sm:$0xf]
                  %2284 = vst [vmem:[%s2260 + $0x2c] sm:$0xf] %v2283
                  %v2285 = vld [vmem:[%s2259 + $0x30] sm:$0xf]
                  %2286 = vst [vmem:[%s2260 + $0x30] sm:$0xf] %v2285
                  %v2287 = vld [vmem:[%s2259 + $0x34] sm:$0xf]
                  %2288 = vst [vmem:[%s2260 + $0x34] sm:$0xf] %v2287
                  %v2289 = vld [vmem:[%s2259 + $0x38] sm:$0xf]
                  %2290 = vst [vmem:[%s2260 + $0x38] sm:$0xf] %v2289
                  %v2291 = vld [vmem:[%s2259 + $0x3c] sm:$0xf]
                  %2292 = vst [vmem:[%s2260 + $0x3c] sm:$0xf] %v2291
                  %v2293 = vld [vmem:[%s2259 + $0x40] sm:$0xf]
                  %2294 = vst [vmem:[%s2260 + $0x80] sm:$0xf] %v2293
                  %v2295 = vld [vmem:[%s2259 + $0x44] sm:$0xf]
                  %2296 = vst [vmem:[%s2260 + $0x84] sm:$0xf] %v2295
                  %v2297 = vld [vmem:[%s2259 + $0x48] sm:$0xf]
                  %2298 = vst [vmem:[%s2260 + $0x88] sm:$0xf] %v2297
                  %v2299 = vld [vmem:[%s2259 + $0x4c] sm:$0xf]
                  %2300 = vst [vmem:[%s2260 + $0x8c] sm:$0xf] %v2299
                  %v2301 = vld [vmem:[%s2259 + $0x50] sm:$0xf]
                  %2302 = vst [vmem:[%s2260 + $0x90] sm:$0xf] %v2301
                  %v2303 = vld [vmem:[%s2259 + $0x54] sm:$0xf]
                  %2304 = vst [vmem:[%s2260 + $0x94] sm:$0xf] %v2303
                  %v2305 = vld [vmem:[%s2259 + $0x58] sm:$0xf]
                  %2306 = vst [vmem:[%s2260 + $0x98] sm:$0xf] %v2305
                  %v2307 = vld [vmem:[%s2259 + $0x5c] sm:$0xf]
                  %2308 = vst [vmem:[%s2260 + $0x9c] sm:$0xf] %v2307
                  %v2309 = vld [vmem:[%s2259 + $0x60] sm:$0xf]
                  %2310 = vst [vmem:[%s2260 + $0xa0] sm:$0xf] %v2309
                  %v2311 = vld [vmem:[%s2259 + $0x64] sm:$0xf]
                  %2312 = vst [vmem:[%s2260 + $0xa4] sm:$0xf] %v2311
                  %v2313 = vld [vmem:[%s2259 + $0x68] sm:$0xf]
                  %2314 = vst [vmem:[%s2260 + $0xa8] sm:$0xf] %v2313
                  %v2315 = vld [vmem:[%s2259 + $0x6c] sm:$0xf]
                  %2316 = vst [vmem:[%s2260 + $0xac] sm:$0xf] %v2315
                  %v2317 = vld [vmem:[%s2259 + $0x70] sm:$0xf]
                  %2318 = vst [vmem:[%s2260 + $0xb0] sm:$0xf] %v2317
                  %v2319 = vld [vmem:[%s2259 + $0x74] sm:$0xf]
                  %2320 = vst [vmem:[%s2260 + $0xb4] sm:$0xf] %v2319
                  %v2321 = vld [vmem:[%s2259 + $0x78] sm:$0xf]
                  %2322 = vst [vmem:[%s2260 + $0xb8] sm:$0xf] %v2321
                  %v2323 = vld [vmem:[%s2259 + $0x7c] sm:$0xf]
                  %2324 = vst [vmem:[%s2260 + $0xbc] sm:$0xf] %v2323
                  %v2325 = vld [vmem:[%s2259 + $0x80] sm:$0xf]
                  %2326 = vst [vmem:[%s2260 + $0x100] sm:$0xf] %v2325
                  %v2327 = vld [vmem:[%s2259 + $0x84] sm:$0xf]
                  %2328 = vst [vmem:[%s2260 + $0x104] sm:$0xf] %v2327
                  %v2329 = vld [vmem:[%s2259 + $0x88] sm:$0xf]
                  %2330 = vst [vmem:[%s2260 + $0x108] sm:$0xf] %v2329
                  %v2331 = vld [vmem:[%s2259 + $0x8c] sm:$0xf]
                  %2332 = vst [vmem:[%s2260 + $0x10c] sm:$0xf] %v2331
                  %v2333 = vld [vmem:[%s2259 + $0x90] sm:$0xf]
                  %2334 = vst [vmem:[%s2260 + $0x110] sm:$0xf] %v2333
                  %v2335 = vld [vmem:[%s2259 + $0x94] sm:$0xf]
                  %2336 = vst [vmem:[%s2260 + $0x114] sm:$0xf] %v2335
                  %v2337 = vld [vmem:[%s2259 + $0x98] sm:$0xf]
                  %2338 = vst [vmem:[%s2260 + $0x118] sm:$0xf] %v2337
                  %v2339 = vld [vmem:[%s2259 + $0x9c] sm:$0xf]
                  %2340 = vst [vmem:[%s2260 + $0x11c] sm:$0xf] %v2339
                  %v2341 = vld [vmem:[%s2259 + $0xa0] sm:$0xf]
                  %2342 = vst [vmem:[%s2260 + $0x120] sm:$0xf] %v2341
                  %v2343 = vld [vmem:[%s2259 + $0xa4] sm:$0xf]
                  %2344 = vst [vmem:[%s2260 + $0x124] sm:$0xf] %v2343
                  %v2345 = vld [vmem:[%s2259 + $0xa8] sm:$0xf]
                  %2346 = vst [vmem:[%s2260 + $0x128] sm:$0xf] %v2345
                  %v2347 = vld [vmem:[%s2259 + $0xac] sm:$0xf]
                  %2348 = vst [vmem:[%s2260 + $0x12c] sm:$0xf] %v2347
                  %v2349 = vld [vmem:[%s2259 + $0xb0] sm:$0xf]
                  %2350 = vst [vmem:[%s2260 + $0x130] sm:$0xf] %v2349
                  %v2351 = vld [vmem:[%s2259 + $0xb4] sm:$0xf]
                  %2352 = vst [vmem:[%s2260 + $0x134] sm:$0xf] %v2351
                  %v2353 = vld [vmem:[%s2259 + $0xb8] sm:$0xf]
                  %2354 = vst [vmem:[%s2260 + $0x138] sm:$0xf] %v2353
                  %v2355 = vld [vmem:[%s2259 + $0xbc] sm:$0xf]
                  %2356 = vst [vmem:[%s2260 + $0x13c] sm:$0xf] %v2355
                  %v2357 = vld [vmem:[%s2259 + $0xc0] sm:$0xf]
                  %2358 = vst [vmem:[%s2260 + $0x180] sm:$0xf] %v2357
                  %v2359 = vld [vmem:[%s2259 + $0xc4] sm:$0xf]
                  %2360 = vst [vmem:[%s2260 + $0x184] sm:$0xf] %v2359
                  %v2361 = vld [vmem:[%s2259 + $0xc8] sm:$0xf]
                  %2362 = vst [vmem:[%s2260 + $0x188] sm:$0xf] %v2361
                  %v2363 = vld [vmem:[%s2259 + $0xcc] sm:$0xf]
                  %2364 = vst [vmem:[%s2260 + $0x18c] sm:$0xf] %v2363
                  %v2365 = vld [vmem:[%s2259 + $0xd0] sm:$0xf]
                  %2366 = vst [vmem:[%s2260 + $0x190] sm:$0xf] %v2365
                  %v2367 = vld [vmem:[%s2259 + $0xd4] sm:$0xf]
                  %2368 = vst [vmem:[%s2260 + $0x194] sm:$0xf] %v2367
                  %v2369 = vld [vmem:[%s2259 + $0xd8] sm:$0xf]
                  %2370 = vst [vmem:[%s2260 + $0x198] sm:$0xf] %v2369
                  %v2371 = vld [vmem:[%s2259 + $0xdc] sm:$0xf]
                  %2372 = vst [vmem:[%s2260 + $0x19c] sm:$0xf] %v2371
                  %v2373 = vld [vmem:[%s2259 + $0xe0] sm:$0xf]
                  %2374 = vst [vmem:[%s2260 + $0x1a0] sm:$0xf] %v2373
                  %v2375 = vld [vmem:[%s2259 + $0xe4] sm:$0xf]
                  %2376 = vst [vmem:[%s2260 + $0x1a4] sm:$0xf] %v2375
                  %v2377 = vld [vmem:[%s2259 + $0xe8] sm:$0xf]
                  %2378 = vst [vmem:[%s2260 + $0x1a8] sm:$0xf] %v2377
                  %v2379 = vld [vmem:[%s2259 + $0xec] sm:$0xf]
                  %2380 = vst [vmem:[%s2260 + $0x1ac] sm:$0xf] %v2379
                  %v2381 = vld [vmem:[%s2259 + $0xf0] sm:$0xf]
                  %2382 = vst [vmem:[%s2260 + $0x1b0] sm:$0xf] %v2381
                  %v2383 = vld [vmem:[%s2259 + $0xf4] sm:$0xf]
                  %2384 = vst [vmem:[%s2260 + $0x1b4] sm:$0xf] %v2383
                  %v2385 = vld [vmem:[%s2259 + $0xf8] sm:$0xf]
                  %2386 = vst [vmem:[%s2260 + $0x1b8] sm:$0xf] %v2385
                  %v2387 = vld [vmem:[%s2259 + $0xfc] sm:$0xf]
                  %2388 = vst [vmem:[%s2260 + $0x1bc] sm:$0xf] %v2387
                $region124: #{tpu_custom_call.1} parent=111 // loop_footer
                  %s2258 = sadd.s32 1, %s2254
                $region125: #{tpu_custom_call.1} parent=111 // loop_footer_branch
                  %2253 = sbr.rel target = $region121
                $region126: #{tpu_custom_call.1} parent=111 // loop_exit
                  _
              $region112: #{tpu_custom_call.1} parent=96 // pred_fallthru
                _
            $region97: #{tpu_custom_call.1} parent=92 // pred_fallthru
              _
            // Predicated region
            $region98: #{tpu_custom_call.1} parent=92 // pred_check
              _
            $region99: #{tpu_custom_call.1} parent=92 // pred_check_branch
              %2104 = sbr.rel (0) target = $region101
            $region100: #{tpu_custom_call.1} parent=92 // pred_region
              loop: start=0, step=1, limit=1
              $region102: #{tpu_custom_call.1} parent=100 // loop_pre_header
                _
              $region103: #{tpu_custom_call.1} parent=100 // loop_header
                %s2107 = sphi 0, %s2111
                %p2108 = scmp.ge.s32.totalorder %s2107, 1
                %s2112 = sphi %s1787, %s1787
                %s2113 = sphi %s2098, %s2098
              $region104: #{tpu_custom_call.1} parent=100 // loop_header_branch
                %2110 = sbr.rel (%p2108) target = $region108
              $region105: #{tpu_custom_call.1} parent=100 // loop_body
                %v2114 = vld [vmem:[%s2112] sm:$0xf]
                %2115 = vst [vmem:[%s2113] sm:$0xf] %v2114
                %v2116 = vld [vmem:[%s2112 + $0x4] sm:$0xf]
                %2117 = vst [vmem:[%s2113 + $0x4] sm:$0xf] %v2116
                %v2118 = vld [vmem:[%s2112 + $0x8] sm:$0xf]
                %2119 = vst [vmem:[%s2113 + $0x8] sm:$0xf] %v2118
                %v2120 = vld [vmem:[%s2112 + $0xc] sm:$0xf]
                %2121 = vst [vmem:[%s2113 + $0xc] sm:$0xf] %v2120
                %v2122 = vld [vmem:[%s2112 + $0x10] sm:$0xf]
                %2123 = vst [vmem:[%s2113 + $0x10] sm:$0xf] %v2122
                %v2124 = vld [vmem:[%s2112 + $0x14] sm:$0xf]
                %2125 = vst [vmem:[%s2113 + $0x14] sm:$0xf] %v2124
                %v2126 = vld [vmem:[%s2112 + $0x18] sm:$0xf]
                %2127 = vst [vmem:[%s2113 + $0x18] sm:$0xf] %v2126
                %v2128 = vld [vmem:[%s2112 + $0x1c] sm:$0xf]
                %2129 = vst [vmem:[%s2113 + $0x1c] sm:$0xf] %v2128
                %v2130 = vld [vmem:[%s2112 + $0x20] sm:$0xf]
                %2131 = vst [vmem:[%s2113 + $0x20] sm:$0xf] %v2130
                %v2132 = vld [vmem:[%s2112 + $0x24] sm:$0xf]
                %2133 = vst [vmem:[%s2113 + $0x24] sm:$0xf] %v2132
                %v2134 = vld [vmem:[%s2112 + $0x28] sm:$0xf]
                %2135 = vst [vmem:[%s2113 + $0x28] sm:$0xf] %v2134
                %v2136 = vld [vmem:[%s2112 + $0x2c] sm:$0xf]
                %2137 = vst [vmem:[%s2113 + $0x2c] sm:$0xf] %v2136
                %v2138 = vld [vmem:[%s2112 + $0x30] sm:$0xf]
                %2139 = vst [vmem:[%s2113 + $0x30] sm:$0xf] %v2138
                %v2140 = vld [vmem:[%s2112 + $0x34] sm:$0xf]
                %2141 = vst [vmem:[%s2113 + $0x34] sm:$0xf] %v2140
                %v2142 = vld [vmem:[%s2112 + $0x38] sm:$0xf]
                %2143 = vst [vmem:[%s2113 + $0x38] sm:$0xf] %v2142
                %v2144 = vld [vmem:[%s2112 + $0x3c] sm:$0xf]
                %2145 = vst [vmem:[%s2113 + $0x3c] sm:$0xf] %v2144
                %v2146 = vld [vmem:[%s2112 + $0x40] sm:$0xf]
                %2147 = vst [vmem:[%s2113 + $0x80] sm:$0xf] %v2146
                %v2148 = vld [vmem:[%s2112 + $0x44] sm:$0xf]
                %2149 = vst [vmem:[%s2113 + $0x84] sm:$0xf] %v2148
                %v2150 = vld [vmem:[%s2112 + $0x48] sm:$0xf]
                %2151 = vst [vmem:[%s2113 + $0x88] sm:$0xf] %v2150
                %v2152 = vld [vmem:[%s2112 + $0x4c] sm:$0xf]
                %2153 = vst [vmem:[%s2113 + $0x8c] sm:$0xf] %v2152
                %v2154 = vld [vmem:[%s2112 + $0x50] sm:$0xf]
                %2155 = vst [vmem:[%s2113 + $0x90] sm:$0xf] %v2154
                %v2156 = vld [vmem:[%s2112 + $0x54] sm:$0xf]
                %2157 = vst [vmem:[%s2113 + $0x94] sm:$0xf] %v2156
                %v2158 = vld [vmem:[%s2112 + $0x58] sm:$0xf]
                %2159 = vst [vmem:[%s2113 + $0x98] sm:$0xf] %v2158
                %v2160 = vld [vmem:[%s2112 + $0x5c] sm:$0xf]
                %2161 = vst [vmem:[%s2113 + $0x9c] sm:$0xf] %v2160
                %v2162 = vld [vmem:[%s2112 + $0x60] sm:$0xf]
                %2163 = vst [vmem:[%s2113 + $0xa0] sm:$0xf] %v2162
                %v2164 = vld [vmem:[%s2112 + $0x64] sm:$0xf]
                %2165 = vst [vmem:[%s2113 + $0xa4] sm:$0xf] %v2164
                %v2166 = vld [vmem:[%s2112 + $0x68] sm:$0xf]
                %2167 = vst [vmem:[%s2113 + $0xa8] sm:$0xf] %v2166
                %v2168 = vld [vmem:[%s2112 + $0x6c] sm:$0xf]
                %2169 = vst [vmem:[%s2113 + $0xac] sm:$0xf] %v2168
                %v2170 = vld [vmem:[%s2112 + $0x70] sm:$0xf]
                %2171 = vst [vmem:[%s2113 + $0xb0] sm:$0xf] %v2170
                %v2172 = vld [vmem:[%s2112 + $0x74] sm:$0xf]
                %2173 = vst [vmem:[%s2113 + $0xb4] sm:$0xf] %v2172
                %v2174 = vld [vmem:[%s2112 + $0x78] sm:$0xf]
                %2175 = vst [vmem:[%s2113 + $0xb8] sm:$0xf] %v2174
                %v2176 = vld [vmem:[%s2112 + $0x7c] sm:$0xf]
                %2177 = vst [vmem:[%s2113 + $0xbc] sm:$0xf] %v2176
                %v2178 = vld [vmem:[%s2112 + $0x80] sm:$0xf]
                %2179 = vst [vmem:[%s2113 + $0x100] sm:$0xf] %v2178
                %v2180 = vld [vmem:[%s2112 + $0x84] sm:$0xf]
                %2181 = vst [vmem:[%s2113 + $0x104] sm:$0xf] %v2180
                %v2182 = vld [vmem:[%s2112 + $0x88] sm:$0xf]
                %2183 = vst [vmem:[%s2113 + $0x108] sm:$0xf] %v2182
                %v2184 = vld [vmem:[%s2112 + $0x8c] sm:$0xf]
                %2185 = vst [vmem:[%s2113 + $0x10c] sm:$0xf] %v2184
                %v2186 = vld [vmem:[%s2112 + $0x90] sm:$0xf]
                %2187 = vst [vmem:[%s2113 + $0x110] sm:$0xf] %v2186
                %v2188 = vld [vmem:[%s2112 + $0x94] sm:$0xf]
                %2189 = vst [vmem:[%s2113 + $0x114] sm:$0xf] %v2188
                %v2190 = vld [vmem:[%s2112 + $0x98] sm:$0xf]
                %2191 = vst [vmem:[%s2113 + $0x118] sm:$0xf] %v2190
                %v2192 = vld [vmem:[%s2112 + $0x9c] sm:$0xf]
                %2193 = vst [vmem:[%s2113 + $0x11c] sm:$0xf] %v2192
                %v2194 = vld [vmem:[%s2112 + $0xa0] sm:$0xf]
                %2195 = vst [vmem:[%s2113 + $0x120] sm:$0xf] %v2194
                %v2196 = vld [vmem:[%s2112 + $0xa4] sm:$0xf]
                %2197 = vst [vmem:[%s2113 + $0x124] sm:$0xf] %v2196
                %v2198 = vld [vmem:[%s2112 + $0xa8] sm:$0xf]
                %2199 = vst [vmem:[%s2113 + $0x128] sm:$0xf] %v2198
                %v2200 = vld [vmem:[%s2112 + $0xac] sm:$0xf]
                %2201 = vst [vmem:[%s2113 + $0x12c] sm:$0xf] %v2200
                %v2202 = vld [vmem:[%s2112 + $0xb0] sm:$0xf]
                %2203 = vst [vmem:[%s2113 + $0x130] sm:$0xf] %v2202
                %v2204 = vld [vmem:[%s2112 + $0xb4] sm:$0xf]
                %2205 = vst [vmem:[%s2113 + $0x134] sm:$0xf] %v2204
                %v2206 = vld [vmem:[%s2112 + $0xb8] sm:$0xf]
                %2207 = vst [vmem:[%s2113 + $0x138] sm:$0xf] %v2206
                %v2208 = vld [vmem:[%s2112 + $0xbc] sm:$0xf]
                %2209 = vst [vmem:[%s2113 + $0x13c] sm:$0xf] %v2208
                %v2210 = vld [vmem:[%s2112 + $0xc0] sm:$0xf]
                %2211 = vst [vmem:[%s2113 + $0x180] sm:$0xf] %v2210
                %v2212 = vld [vmem:[%s2112 + $0xc4] sm:$0xf]
                %2213 = vst [vmem:[%s2113 + $0x184] sm:$0xf] %v2212
                %v2214 = vld [vmem:[%s2112 + $0xc8] sm:$0xf]
                %2215 = vst [vmem:[%s2113 + $0x188] sm:$0xf] %v2214
                %v2216 = vld [vmem:[%s2112 + $0xcc] sm:$0xf]
                %2217 = vst [vmem:[%s2113 + $0x18c] sm:$0xf] %v2216
                %v2218 = vld [vmem:[%s2112 + $0xd0] sm:$0xf]
                %2219 = vst [vmem:[%s2113 + $0x190] sm:$0xf] %v2218
                %v2220 = vld [vmem:[%s2112 + $0xd4] sm:$0xf]
                %2221 = vst [vmem:[%s2113 + $0x194] sm:$0xf] %v2220
                %v2222 = vld [vmem:[%s2112 + $0xd8] sm:$0xf]
                %2223 = vst [vmem:[%s2113 + $0x198] sm:$0xf] %v2222
                %v2224 = vld [vmem:[%s2112 + $0xdc] sm:$0xf]
                %2225 = vst [vmem:[%s2113 + $0x19c] sm:$0xf] %v2224
                %v2226 = vld [vmem:[%s2112 + $0xe0] sm:$0xf]
                %2227 = vst [vmem:[%s2113 + $0x1a0] sm:$0xf] %v2226
                %v2228 = vld [vmem:[%s2112 + $0xe4] sm:$0xf]
                %2229 = vst [vmem:[%s2113 + $0x1a4] sm:$0xf] %v2228
                %v2230 = vld [vmem:[%s2112 + $0xe8] sm:$0xf]
                %2231 = vst [vmem:[%s2113 + $0x1a8] sm:$0xf] %v2230
                %v2232 = vld [vmem:[%s2112 + $0xec] sm:$0xf]
                %2233 = vst [vmem:[%s2113 + $0x1ac] sm:$0xf] %v2232
                %v2234 = vld [vmem:[%s2112 + $0xf0] sm:$0xf]
                %2235 = vst [vmem:[%s2113 + $0x1b0] sm:$0xf] %v2234
                %v2236 = vld [vmem:[%s2112 + $0xf4] sm:$0xf]
                %2237 = vst [vmem:[%s2113 + $0x1b4] sm:$0xf] %v2236
                %v2238 = vld [vmem:[%s2112 + $0xf8] sm:$0xf]
                %2239 = vst [vmem:[%s2113 + $0x1b8] sm:$0xf] %v2238
                %v2240 = vld [vmem:[%s2112 + $0xfc] sm:$0xf]
                %2241 = vst [vmem:[%s2113 + $0x1bc] sm:$0xf] %v2240
              $region106: #{tpu_custom_call.1} parent=100 // loop_footer
                %s2111 = sadd.s32 1, %s2107
              $region107: #{tpu_custom_call.1} parent=100 // loop_footer_branch
                %2106 = sbr.rel target = $region103
              $region108: #{tpu_custom_call.1} parent=100 // loop_exit
                _
            $region101: #{tpu_custom_call.1} parent=92 // pred_fallthru
              _
          $region93: #{tpu_custom_call.1} parent=88 // pred_fallthru
            _
          %2389 = vnop
        $region89: #{tpu_custom_call.1} parent=35 // pred_fallthru
          _
        // Predicated region
        $region127: #{tpu_custom_call.1} parent=35 // pred_check
          %p2390 = pneg %p201
        $region128: #{tpu_custom_call.1} parent=35 // pred_check_branch
          %2392 = sbr.rel (%p2390) target = $region130
        $region129: #{tpu_custom_call.1} parent=35 // pred_region
          %s2393 = smul.u32 16, %s27
          %s2394 = smul.addr %s26, 128
          %s2395 = sadd.s32 %s2393, %s2394
          %s2396 = smul.addr %s2395, 4
          %s2397 = scalar_lea.vmem %s6, %s2396
          // Predicated region
          $region131: #{tpu_custom_call.1} parent=129 // pred_check
            _
          $region132: #{tpu_custom_call.1} parent=129 // pred_check_branch
            %2399 = sbr.rel (0) target = $region134
          $region133: #{tpu_custom_call.1} parent=129 // pred_region
            // Predicated region
            $region135: #{tpu_custom_call.1} parent=133 // pred_check
              _
            $region136: #{tpu_custom_call.1} parent=133 // pred_check_branch
              %2401 = sbr.rel target = $region138
            $region137: #{tpu_custom_call.1} parent=133 // pred_region
              // Predicated region
              $region150: #{tpu_custom_call.1} parent=137 // pred_check
                _
              $region151: #{tpu_custom_call.1} parent=137 // pred_check_branch
                %2542 = sbr.rel (0) target = $region153
              $region152: #{tpu_custom_call.1} parent=137 // pred_region
                loop: start=0, step=1, limit=1
                $region154: #{tpu_custom_call.1} parent=152 // loop_pre_header
                  _
                $region155: #{tpu_custom_call.1} parent=152 // loop_header
                  %s2544 = sphi 0, %s2548
                  %p2545 = scmp.ge.s32.totalorder %s2544, 1
                  %s2549 = sphi %s1791, %s1791
                  %s2550 = sphi %s2397, %s2397
                $region156: #{tpu_custom_call.1} parent=152 // loop_header_branch
                  %2547 = sbr.rel (%p2545) target = $region160
                $region157: #{tpu_custom_call.1} parent=152 // loop_body
                  _
                $region158: #{tpu_custom_call.1} parent=152 // loop_footer
                  %s2548 = sadd.s32 1, %s2544
                $region159: #{tpu_custom_call.1} parent=152 // loop_footer_branch
                  %2543 = sbr.rel target = $region155
                $region160: #{tpu_custom_call.1} parent=152 // loop_exit
                  _
                loop: start=0, step=1, limit=1
                $region161: #{tpu_custom_call.1} parent=152 // loop_pre_header
                  _
                $region162: #{tpu_custom_call.1} parent=152 // loop_header
                  %s2553 = sphi 0, %s2557
                  %p2554 = scmp.ge.s32.totalorder %s2553, 1
                  %s2558 = sphi %s1791, %s1791
                  %s2559 = sphi %s2397, %s2397
                $region163: #{tpu_custom_call.1} parent=152 // loop_header_branch
                  %2556 = sbr.rel (%p2554) target = $region167
                $region164: #{tpu_custom_call.1} parent=152 // loop_body
                  %v2560 = vld [vmem:[%s2558] sm:$0xf]
                  %2561 = vst [vmem:[%s2559] sm:$0xf] %v2560
                  %v2562 = vld [vmem:[%s2558 + $0x4] sm:$0xf]
                  %2563 = vst [vmem:[%s2559 + $0x4] sm:$0xf] %v2562
                  %v2564 = vld [vmem:[%s2558 + $0x8] sm:$0xf]
                  %2565 = vst [vmem:[%s2559 + $0x8] sm:$0xf] %v2564
                  %v2566 = vld [vmem:[%s2558 + $0xc] sm:$0xf]
                  %2567 = vst [vmem:[%s2559 + $0xc] sm:$0xf] %v2566
                  %v2568 = vld [vmem:[%s2558 + $0x10] sm:$0xf]
                  %2569 = vst [vmem:[%s2559 + $0x10] sm:$0xf] %v2568
                  %v2570 = vld [vmem:[%s2558 + $0x14] sm:$0xf]
                  %2571 = vst [vmem:[%s2559 + $0x14] sm:$0xf] %v2570
                  %v2572 = vld [vmem:[%s2558 + $0x18] sm:$0xf]
                  %2573 = vst [vmem:[%s2559 + $0x18] sm:$0xf] %v2572
                  %v2574 = vld [vmem:[%s2558 + $0x1c] sm:$0xf]
                  %2575 = vst [vmem:[%s2559 + $0x1c] sm:$0xf] %v2574
                  %v2576 = vld [vmem:[%s2558 + $0x20] sm:$0xf]
                  %2577 = vst [vmem:[%s2559 + $0x20] sm:$0xf] %v2576
                  %v2578 = vld [vmem:[%s2558 + $0x24] sm:$0xf]
                  %2579 = vst [vmem:[%s2559 + $0x24] sm:$0xf] %v2578
                  %v2580 = vld [vmem:[%s2558 + $0x28] sm:$0xf]
                  %2581 = vst [vmem:[%s2559 + $0x28] sm:$0xf] %v2580
                  %v2582 = vld [vmem:[%s2558 + $0x2c] sm:$0xf]
                  %2583 = vst [vmem:[%s2559 + $0x2c] sm:$0xf] %v2582
                  %v2584 = vld [vmem:[%s2558 + $0x30] sm:$0xf]
                  %2585 = vst [vmem:[%s2559 + $0x30] sm:$0xf] %v2584
                  %v2586 = vld [vmem:[%s2558 + $0x34] sm:$0xf]
                  %2587 = vst [vmem:[%s2559 + $0x34] sm:$0xf] %v2586
                  %v2588 = vld [vmem:[%s2558 + $0x38] sm:$0xf]
                  %2589 = vst [vmem:[%s2559 + $0x38] sm:$0xf] %v2588
                  %v2590 = vld [vmem:[%s2558 + $0x3c] sm:$0xf]
                  %2591 = vst [vmem:[%s2559 + $0x3c] sm:$0xf] %v2590
                  %v2592 = vld [vmem:[%s2558 + $0x40] sm:$0xf]
                  %2593 = vst [vmem:[%s2559 + $0x80] sm:$0xf] %v2592
                  %v2594 = vld [vmem:[%s2558 + $0x44] sm:$0xf]
                  %2595 = vst [vmem:[%s2559 + $0x84] sm:$0xf] %v2594
                  %v2596 = vld [vmem:[%s2558 + $0x48] sm:$0xf]
                  %2597 = vst [vmem:[%s2559 + $0x88] sm:$0xf] %v2596
                  %v2598 = vld [vmem:[%s2558 + $0x4c] sm:$0xf]
                  %2599 = vst [vmem:[%s2559 + $0x8c] sm:$0xf] %v2598
                  %v2600 = vld [vmem:[%s2558 + $0x50] sm:$0xf]
                  %2601 = vst [vmem:[%s2559 + $0x90] sm:$0xf] %v2600
                  %v2602 = vld [vmem:[%s2558 + $0x54] sm:$0xf]
                  %2603 = vst [vmem:[%s2559 + $0x94] sm:$0xf] %v2602
                  %v2604 = vld [vmem:[%s2558 + $0x58] sm:$0xf]
                  %2605 = vst [vmem:[%s2559 + $0x98] sm:$0xf] %v2604
                  %v2606 = vld [vmem:[%s2558 + $0x5c] sm:$0xf]
                  %2607 = vst [vmem:[%s2559 + $0x9c] sm:$0xf] %v2606
                  %v2608 = vld [vmem:[%s2558 + $0x60] sm:$0xf]
                  %2609 = vst [vmem:[%s2559 + $0xa0] sm:$0xf] %v2608
                  %v2610 = vld [vmem:[%s2558 + $0x64] sm:$0xf]
                  %2611 = vst [vmem:[%s2559 + $0xa4] sm:$0xf] %v2610
                  %v2612 = vld [vmem:[%s2558 + $0x68] sm:$0xf]
                  %2613 = vst [vmem:[%s2559 + $0xa8] sm:$0xf] %v2612
                  %v2614 = vld [vmem:[%s2558 + $0x6c] sm:$0xf]
                  %2615 = vst [vmem:[%s2559 + $0xac] sm:$0xf] %v2614
                  %v2616 = vld [vmem:[%s2558 + $0x70] sm:$0xf]
                  %2617 = vst [vmem:[%s2559 + $0xb0] sm:$0xf] %v2616
                  %v2618 = vld [vmem:[%s2558 + $0x74] sm:$0xf]
                  %2619 = vst [vmem:[%s2559 + $0xb4] sm:$0xf] %v2618
                  %v2620 = vld [vmem:[%s2558 + $0x78] sm:$0xf]
                  %2621 = vst [vmem:[%s2559 + $0xb8] sm:$0xf] %v2620
                  %v2622 = vld [vmem:[%s2558 + $0x7c] sm:$0xf]
                  %2623 = vst [vmem:[%s2559 + $0xbc] sm:$0xf] %v2622
                  %v2624 = vld [vmem:[%s2558 + $0x80] sm:$0xf]
                  %2625 = vst [vmem:[%s2559 + $0x100] sm:$0xf] %v2624
                  %v2626 = vld [vmem:[%s2558 + $0x84] sm:$0xf]
                  %2627 = vst [vmem:[%s2559 + $0x104] sm:$0xf] %v2626
                  %v2628 = vld [vmem:[%s2558 + $0x88] sm:$0xf]
                  %2629 = vst [vmem:[%s2559 + $0x108] sm:$0xf] %v2628
                  %v2630 = vld [vmem:[%s2558 + $0x8c] sm:$0xf]
                  %2631 = vst [vmem:[%s2559 + $0x10c] sm:$0xf] %v2630
                  %v2632 = vld [vmem:[%s2558 + $0x90] sm:$0xf]
                  %2633 = vst [vmem:[%s2559 + $0x110] sm:$0xf] %v2632
                  %v2634 = vld [vmem:[%s2558 + $0x94] sm:$0xf]
                  %2635 = vst [vmem:[%s2559 + $0x114] sm:$0xf] %v2634
                  %v2636 = vld [vmem:[%s2558 + $0x98] sm:$0xf]
                  %2637 = vst [vmem:[%s2559 + $0x118] sm:$0xf] %v2636
                  %v2638 = vld [vmem:[%s2558 + $0x9c] sm:$0xf]
                  %2639 = vst [vmem:[%s2559 + $0x11c] sm:$0xf] %v2638
                  %v2640 = vld [vmem:[%s2558 + $0xa0] sm:$0xf]
                  %2641 = vst [vmem:[%s2559 + $0x120] sm:$0xf] %v2640
                  %v2642 = vld [vmem:[%s2558 + $0xa4] sm:$0xf]
                  %2643 = vst [vmem:[%s2559 + $0x124] sm:$0xf] %v2642
                  %v2644 = vld [vmem:[%s2558 + $0xa8] sm:$0xf]
                  %2645 = vst [vmem:[%s2559 + $0x128] sm:$0xf] %v2644
                  %v2646 = vld [vmem:[%s2558 + $0xac] sm:$0xf]
                  %2647 = vst [vmem:[%s2559 + $0x12c] sm:$0xf] %v2646
                  %v2648 = vld [vmem:[%s2558 + $0xb0] sm:$0xf]
                  %2649 = vst [vmem:[%s2559 + $0x130] sm:$0xf] %v2648
                  %v2650 = vld [vmem:[%s2558 + $0xb4] sm:$0xf]
                  %2651 = vst [vmem:[%s2559 + $0x134] sm:$0xf] %v2650
                  %v2652 = vld [vmem:[%s2558 + $0xb8] sm:$0xf]
                  %2653 = vst [vmem:[%s2559 + $0x138] sm:$0xf] %v2652
                  %v2654 = vld [vmem:[%s2558 + $0xbc] sm:$0xf]
                  %2655 = vst [vmem:[%s2559 + $0x13c] sm:$0xf] %v2654
                  %v2656 = vld [vmem:[%s2558 + $0xc0] sm:$0xf]
                  %2657 = vst [vmem:[%s2559 + $0x180] sm:$0xf] %v2656
                  %v2658 = vld [vmem:[%s2558 + $0xc4] sm:$0xf]
                  %2659 = vst [vmem:[%s2559 + $0x184] sm:$0xf] %v2658
                  %v2660 = vld [vmem:[%s2558 + $0xc8] sm:$0xf]
                  %2661 = vst [vmem:[%s2559 + $0x188] sm:$0xf] %v2660
                  %v2662 = vld [vmem:[%s2558 + $0xcc] sm:$0xf]
                  %2663 = vst [vmem:[%s2559 + $0x18c] sm:$0xf] %v2662
                  %v2664 = vld [vmem:[%s2558 + $0xd0] sm:$0xf]
                  %2665 = vst [vmem:[%s2559 + $0x190] sm:$0xf] %v2664
                  %v2666 = vld [vmem:[%s2558 + $0xd4] sm:$0xf]
                  %2667 = vst [vmem:[%s2559 + $0x194] sm:$0xf] %v2666
                  %v2668 = vld [vmem:[%s2558 + $0xd8] sm:$0xf]
                  %2669 = vst [vmem:[%s2559 + $0x198] sm:$0xf] %v2668
                  %v2670 = vld [vmem:[%s2558 + $0xdc] sm:$0xf]
                  %2671 = vst [vmem:[%s2559 + $0x19c] sm:$0xf] %v2670
                  %v2672 = vld [vmem:[%s2558 + $0xe0] sm:$0xf]
                  %2673 = vst [vmem:[%s2559 + $0x1a0] sm:$0xf] %v2672
                  %v2674 = vld [vmem:[%s2558 + $0xe4] sm:$0xf]
                  %2675 = vst [vmem:[%s2559 + $0x1a4] sm:$0xf] %v2674
                  %v2676 = vld [vmem:[%s2558 + $0xe8] sm:$0xf]
                  %2677 = vst [vmem:[%s2559 + $0x1a8] sm:$0xf] %v2676
                  %v2678 = vld [vmem:[%s2558 + $0xec] sm:$0xf]
                  %2679 = vst [vmem:[%s2559 + $0x1ac] sm:$0xf] %v2678
                  %v2680 = vld [vmem:[%s2558 + $0xf0] sm:$0xf]
                  %2681 = vst [vmem:[%s2559 + $0x1b0] sm:$0xf] %v2680
                  %v2682 = vld [vmem:[%s2558 + $0xf4] sm:$0xf]
                  %2683 = vst [vmem:[%s2559 + $0x1b4] sm:$0xf] %v2682
                  %v2684 = vld [vmem:[%s2558 + $0xf8] sm:$0xf]
                  %2685 = vst [vmem:[%s2559 + $0x1b8] sm:$0xf] %v2684
                  %v2686 = vld [vmem:[%s2558 + $0xfc] sm:$0xf]
                  %2687 = vst [vmem:[%s2559 + $0x1bc] sm:$0xf] %v2686
                $region165: #{tpu_custom_call.1} parent=152 // loop_footer
                  %s2557 = sadd.s32 1, %s2553
                $region166: #{tpu_custom_call.1} parent=152 // loop_footer_branch
                  %2552 = sbr.rel target = $region162
                $region167: #{tpu_custom_call.1} parent=152 // loop_exit
                  _
              $region153: #{tpu_custom_call.1} parent=137 // pred_fallthru
                _
            $region138: #{tpu_custom_call.1} parent=133 // pred_fallthru
              _
            // Predicated region
            $region139: #{tpu_custom_call.1} parent=133 // pred_check
              _
            $region140: #{tpu_custom_call.1} parent=133 // pred_check_branch
              %2403 = sbr.rel (0) target = $region142
            $region141: #{tpu_custom_call.1} parent=133 // pred_region
              loop: start=0, step=1, limit=1
              $region143: #{tpu_custom_call.1} parent=141 // loop_pre_header
                _
              $region144: #{tpu_custom_call.1} parent=141 // loop_header
                %s2406 = sphi 0, %s2410
                %p2407 = scmp.ge.s32.totalorder %s2406, 1
                %s2411 = sphi %s1791, %s1791
                %s2412 = sphi %s2397, %s2397
              $region145: #{tpu_custom_call.1} parent=141 // loop_header_branch
                %2409 = sbr.rel (%p2407) target = $region149
              $region146: #{tpu_custom_call.1} parent=141 // loop_body
                %v2413 = vld [vmem:[%s2411] sm:$0xf]
                %2414 = vst [vmem:[%s2412] sm:$0xf] %v2413
                %v2415 = vld [vmem:[%s2411 + $0x4] sm:$0xf]
                %2416 = vst [vmem:[%s2412 + $0x4] sm:$0xf] %v2415
                %v2417 = vld [vmem:[%s2411 + $0x8] sm:$0xf]
                %2418 = vst [vmem:[%s2412 + $0x8] sm:$0xf] %v2417
                %v2419 = vld [vmem:[%s2411 + $0xc] sm:$0xf]
                %2420 = vst [vmem:[%s2412 + $0xc] sm:$0xf] %v2419
                %v2421 = vld [vmem:[%s2411 + $0x10] sm:$0xf]
                %2422 = vst [vmem:[%s2412 + $0x10] sm:$0xf] %v2421
                %v2423 = vld [vmem:[%s2411 + $0x14] sm:$0xf]
                %2424 = vst [vmem:[%s2412 + $0x14] sm:$0xf] %v2423
                %v2425 = vld [vmem:[%s2411 + $0x18] sm:$0xf]
                %2426 = vst [vmem:[%s2412 + $0x18] sm:$0xf] %v2425
                %v2427 = vld [vmem:[%s2411 + $0x1c] sm:$0xf]
                %2428 = vst [vmem:[%s2412 + $0x1c] sm:$0xf] %v2427
                %v2429 = vld [vmem:[%s2411 + $0x20] sm:$0xf]
                %2430 = vst [vmem:[%s2412 + $0x20] sm:$0xf] %v2429
                %v2431 = vld [vmem:[%s2411 + $0x24] sm:$0xf]
                %2432 = vst [vmem:[%s2412 + $0x24] sm:$0xf] %v2431
                %v2433 = vld [vmem:[%s2411 + $0x28] sm:$0xf]
                %2434 = vst [vmem:[%s2412 + $0x28] sm:$0xf] %v2433
                %v2435 = vld [vmem:[%s2411 + $0x2c] sm:$0xf]
                %2436 = vst [vmem:[%s2412 + $0x2c] sm:$0xf] %v2435
                %v2437 = vld [vmem:[%s2411 + $0x30] sm:$0xf]
                %2438 = vst [vmem:[%s2412 + $0x30] sm:$0xf] %v2437
                %v2439 = vld [vmem:[%s2411 + $0x34] sm:$0xf]
                %2440 = vst [vmem:[%s2412 + $0x34] sm:$0xf] %v2439
                %v2441 = vld [vmem:[%s2411 + $0x38] sm:$0xf]
                %2442 = vst [vmem:[%s2412 + $0x38] sm:$0xf] %v2441
                %v2443 = vld [vmem:[%s2411 + $0x3c] sm:$0xf]
                %2444 = vst [vmem:[%s2412 + $0x3c] sm:$0xf] %v2443
                %v2445 = vld [vmem:[%s2411 + $0x40] sm:$0xf]
                %2446 = vst [vmem:[%s2412 + $0x80] sm:$0xf] %v2445
                %v2447 = vld [vmem:[%s2411 + $0x44] sm:$0xf]
                %2448 = vst [vmem:[%s2412 + $0x84] sm:$0xf] %v2447
                %v2449 = vld [vmem:[%s2411 + $0x48] sm:$0xf]
                %2450 = vst [vmem:[%s2412 + $0x88] sm:$0xf] %v2449
                %v2451 = vld [vmem:[%s2411 + $0x4c] sm:$0xf]
                %2452 = vst [vmem:[%s2412 + $0x8c] sm:$0xf] %v2451
                %v2453 = vld [vmem:[%s2411 + $0x50] sm:$0xf]
                %2454 = vst [vmem:[%s2412 + $0x90] sm:$0xf] %v2453
                %v2455 = vld [vmem:[%s2411 + $0x54] sm:$0xf]
                %2456 = vst [vmem:[%s2412 + $0x94] sm:$0xf] %v2455
                %v2457 = vld [vmem:[%s2411 + $0x58] sm:$0xf]
                %2458 = vst [vmem:[%s2412 + $0x98] sm:$0xf] %v2457
                %v2459 = vld [vmem:[%s2411 + $0x5c] sm:$0xf]
                %2460 = vst [vmem:[%s2412 + $0x9c] sm:$0xf] %v2459
                %v2461 = vld [vmem:[%s2411 + $0x60] sm:$0xf]
                %2462 = vst [vmem:[%s2412 + $0xa0] sm:$0xf] %v2461
                %v2463 = vld [vmem:[%s2411 + $0x64] sm:$0xf]
                %2464 = vst [vmem:[%s2412 + $0xa4] sm:$0xf] %v2463
                %v2465 = vld [vmem:[%s2411 + $0x68] sm:$0xf]
                %2466 = vst [vmem:[%s2412 + $0xa8] sm:$0xf] %v2465
                %v2467 = vld [vmem:[%s2411 + $0x6c] sm:$0xf]
                %2468 = vst [vmem:[%s2412 + $0xac] sm:$0xf] %v2467
                %v2469 = vld [vmem:[%s2411 + $0x70] sm:$0xf]
                %2470 = vst [vmem:[%s2412 + $0xb0] sm:$0xf] %v2469
                %v2471 = vld [vmem:[%s2411 + $0x74] sm:$0xf]
                %2472 = vst [vmem:[%s2412 + $0xb4] sm:$0xf] %v2471
                %v2473 = vld [vmem:[%s2411 + $0x78] sm:$0xf]
                %2474 = vst [vmem:[%s2412 + $0xb8] sm:$0xf] %v2473
                %v2475 = vld [vmem:[%s2411 + $0x7c] sm:$0xf]
                %2476 = vst [vmem:[%s2412 + $0xbc] sm:$0xf] %v2475
                %v2477 = vld [vmem:[%s2411 + $0x80] sm:$0xf]
                %2478 = vst [vmem:[%s2412 + $0x100] sm:$0xf] %v2477
                %v2479 = vld [vmem:[%s2411 + $0x84] sm:$0xf]
                %2480 = vst [vmem:[%s2412 + $0x104] sm:$0xf] %v2479
                %v2481 = vld [vmem:[%s2411 + $0x88] sm:$0xf]
                %2482 = vst [vmem:[%s2412 + $0x108] sm:$0xf] %v2481
                %v2483 = vld [vmem:[%s2411 + $0x8c] sm:$0xf]
                %2484 = vst [vmem:[%s2412 + $0x10c] sm:$0xf] %v2483
                %v2485 = vld [vmem:[%s2411 + $0x90] sm:$0xf]
                %2486 = vst [vmem:[%s2412 + $0x110] sm:$0xf] %v2485
                %v2487 = vld [vmem:[%s2411 + $0x94] sm:$0xf]
                %2488 = vst [vmem:[%s2412 + $0x114] sm:$0xf] %v2487
                %v2489 = vld [vmem:[%s2411 + $0x98] sm:$0xf]
                %2490 = vst [vmem:[%s2412 + $0x118] sm:$0xf] %v2489
                %v2491 = vld [vmem:[%s2411 + $0x9c] sm:$0xf]
                %2492 = vst [vmem:[%s2412 + $0x11c] sm:$0xf] %v2491
                %v2493 = vld [vmem:[%s2411 + $0xa0] sm:$0xf]
                %2494 = vst [vmem:[%s2412 + $0x120] sm:$0xf] %v2493
                %v2495 = vld [vmem:[%s2411 + $0xa4] sm:$0xf]
                %2496 = vst [vmem:[%s2412 + $0x124] sm:$0xf] %v2495
                %v2497 = vld [vmem:[%s2411 + $0xa8] sm:$0xf]
                %2498 = vst [vmem:[%s2412 + $0x128] sm:$0xf] %v2497
                %v2499 = vld [vmem:[%s2411 + $0xac] sm:$0xf]
                %2500 = vst [vmem:[%s2412 + $0x12c] sm:$0xf] %v2499
                %v2501 = vld [vmem:[%s2411 + $0xb0] sm:$0xf]
                %2502 = vst [vmem:[%s2412 + $0x130] sm:$0xf] %v2501
                %v2503 = vld [vmem:[%s2411 + $0xb4] sm:$0xf]
                %2504 = vst [vmem:[%s2412 + $0x134] sm:$0xf] %v2503
                %v2505 = vld [vmem:[%s2411 + $0xb8] sm:$0xf]
                %2506 = vst [vmem:[%s2412 + $0x138] sm:$0xf] %v2505
                %v2507 = vld [vmem:[%s2411 + $0xbc] sm:$0xf]
                %2508 = vst [vmem:[%s2412 + $0x13c] sm:$0xf] %v2507
                %v2509 = vld [vmem:[%s2411 + $0xc0] sm:$0xf]
                %2510 = vst [vmem:[%s2412 + $0x180] sm:$0xf] %v2509
                %v2511 = vld [vmem:[%s2411 + $0xc4] sm:$0xf]
                %2512 = vst [vmem:[%s2412 + $0x184] sm:$0xf] %v2511
                %v2513 = vld [vmem:[%s2411 + $0xc8] sm:$0xf]
                %2514 = vst [vmem:[%s2412 + $0x188] sm:$0xf] %v2513
                %v2515 = vld [vmem:[%s2411 + $0xcc] sm:$0xf]
                %2516 = vst [vmem:[%s2412 + $0x18c] sm:$0xf] %v2515
                %v2517 = vld [vmem:[%s2411 + $0xd0] sm:$0xf]
                %2518 = vst [vmem:[%s2412 + $0x190] sm:$0xf] %v2517
                %v2519 = vld [vmem:[%s2411 + $0xd4] sm:$0xf]
                %2520 = vst [vmem:[%s2412 + $0x194] sm:$0xf] %v2519
                %v2521 = vld [vmem:[%s2411 + $0xd8] sm:$0xf]
                %2522 = vst [vmem:[%s2412 + $0x198] sm:$0xf] %v2521
                %v2523 = vld [vmem:[%s2411 + $0xdc] sm:$0xf]
                %2524 = vst [vmem:[%s2412 + $0x19c] sm:$0xf] %v2523
                %v2525 = vld [vmem:[%s2411 + $0xe0] sm:$0xf]
                %2526 = vst [vmem:[%s2412 + $0x1a0] sm:$0xf] %v2525
                %v2527 = vld [vmem:[%s2411 + $0xe4] sm:$0xf]
                %2528 = vst [vmem:[%s2412 + $0x1a4] sm:$0xf] %v2527
                %v2529 = vld [vmem:[%s2411 + $0xe8] sm:$0xf]
                %2530 = vst [vmem:[%s2412 + $0x1a8] sm:$0xf] %v2529
                %v2531 = vld [vmem:[%s2411 + $0xec] sm:$0xf]
                %2532 = vst [vmem:[%s2412 + $0x1ac] sm:$0xf] %v2531
                %v2533 = vld [vmem:[%s2411 + $0xf0] sm:$0xf]
                %2534 = vst [vmem:[%s2412 + $0x1b0] sm:$0xf] %v2533
                %v2535 = vld [vmem:[%s2411 + $0xf4] sm:$0xf]
                %2536 = vst [vmem:[%s2412 + $0x1b4] sm:$0xf] %v2535
                %v2537 = vld [vmem:[%s2411 + $0xf8] sm:$0xf]
                %2538 = vst [vmem:[%s2412 + $0x1b8] sm:$0xf] %v2537
                %v2539 = vld [vmem:[%s2411 + $0xfc] sm:$0xf]
                %2540 = vst [vmem:[%s2412 + $0x1bc] sm:$0xf] %v2539
              $region147: #{tpu_custom_call.1} parent=141 // loop_footer
                %s2410 = sadd.s32 1, %s2406
              $region148: #{tpu_custom_call.1} parent=141 // loop_footer_branch
                %2405 = sbr.rel target = $region144
              $region149: #{tpu_custom_call.1} parent=141 // loop_exit
                _
            $region142: #{tpu_custom_call.1} parent=133 // pred_fallthru
              _
          $region134: #{tpu_custom_call.1} parent=129 // pred_fallthru
            _
          %2688 = vnop
        $region130: #{tpu_custom_call.1} parent=35 // pred_fallthru
          _
      $region36: #{tpu_custom_call.1} parent=5 // pred_fallthru
        _
      %p2689 = scmp.le.s32.totalorder 2, %s17
      // Predicated region
      $region168: #{tpu_custom_call.1} parent=5 // pred_check
        %p2690 = pneg %p2689
      $region169: #{tpu_custom_call.1} parent=5 // pred_check_branch
        %2692 = sbr.rel (%p2690) target = $region171
      $region170: #{tpu_custom_call.1} parent=5 // pred_region
        %s2693 = ssub.s32 %s17, 2
        // Predicated region
        $region172: #{tpu_custom_call.1} parent=170 // pred_check
          %p2694 = pneg %p151
        $region173: #{tpu_custom_call.1} parent=170 // pred_check_branch
          %2696 = sbr.rel (%p2694) target = $region175
        $region174: #{tpu_custom_call.1} parent=170 // pred_region
          %s2697 = sand.u32 %s136, 1
          %s2698 = sand.u32 %s136, 1
          %s2699 = smul.addr %s2698, 256
          %s2700 = scalar_lea.vmem [#allocation6], %s2699
        $region175: #{tpu_custom_call.1} parent=170 // pred_fallthru
          _
        // Predicated region
        $region176: #{tpu_custom_call.1} parent=170 // pred_check
          %p2701 = pneg %p179
        $region177: #{tpu_custom_call.1} parent=170 // pred_check_branch
          %2703 = sbr.rel (%p2701) target = $region179
        $region178: #{tpu_custom_call.1} parent=170 // pred_region
          %s2704 = sand.u32 %s164, 1
          %s2705 = sand.u32 %s164, 1
          %s2706 = smul.addr %s2705, 256
          %s2707 = scalar_lea.vmem [#allocation7], %s2706
        $region179: #{tpu_custom_call.1} parent=170 // pred_fallthru
          _
        // Predicated region
        $region180: #{tpu_custom_call.1} parent=170 // pred_check
          %p2708 = pneg %p207
        $region181: #{tpu_custom_call.1} parent=170 // pred_check_branch
          %2710 = sbr.rel (%p2708) target = $region183
        $region182: #{tpu_custom_call.1} parent=170 // pred_region
          %s2711 = sand.u32 %s192, 1
          %s2712 = sand.u32 %s192, 1
          %s2713 = smul.addr %s2712, 256
          %s2714 = scalar_lea.vmem [#allocation8], %s2713
        $region183: #{tpu_custom_call.1} parent=170 // pred_fallthru
          _
      $region171: #{tpu_custom_call.1} parent=5 // pred_fallthru
        _
    $region6: #{tpu_custom_call.1} parent=1 // loop_footer
      %s21 = sadd.s32 1, %s17
    $region7: #{tpu_custom_call.1} parent=1 // loop_footer_branch
      %16 = sbr.rel target = $region3
    $region8: #{tpu_custom_call.1} parent=1 // loop_exit
      _
    %2715 = vsyncpa [#allocation3], 1
    %s2716 = scalar_lea.sflag [#allocation3], 1
    %2717 = vsyncpa %s2716, 1
    %2718 = vsyncpa [#allocation5], 1

</llo_original>
